<compile_context>
chip_gen: v5e
topology: v5e:2x2
jax: 0.10.0
libtpu: 0.0.40
codegen_flags: <defaults>
</compile_context>

<pallas_src>
import functools
import math

import jax
import jax.numpy as jnp
from jax import lax
from jax.experimental import pallas as pl
from jax.experimental.pallas import tpu as pltpu


# ------------------------------ configuration --------------------------------

PATCH_K = 64      # 4x4x3 = 48 patch features, zero-padded to 64 (aligned contraction)
COMB_PAD = 1024   # combine_linear output padded from 1000 -> 1024
EMIS_PAD = 128    # fc output padded from num_labels -> 128 (lane-dense HBM store)

# All (H,)-sized f32 vectors (biases / LayerNorm scales) packed into one array.
_VEC_NAMES = (
    "bert_ln_g", "bert_ln_b",        # BERT stand-in LayerNorm
    "b_pic", "b_vis",                # linear_pic / vismap2text biases
    "b_xo", "ln1_g", "ln1_b",        # cross-attn output bias + LN1
    "b_xout", "ln2_g", "ln2_b",      # FFN output bias + LN2
    "b_qf", "b_kf", "b_vf",          # fine-grained q/k/v biases
    "norm_g", "norm_b",              # norm_t2i_process
    "b_gimg", "b_gate",              # Gate_image / Gate biases
)
_V = {name: i for i, name in enumerate(_VEC_NAMES)}

# Order of weight operands fed to the fused kernel (single source of truth).
_W_NAMES = (
    "vec64",
    "w_patch", "b_patch",
    "w_pic", "w_vis",
    "w_xq_h", "b_xq_h", "w_xk_h", "b_xk_h", "w_xv_h", "b_xv_h", "w_xo_h",
    "w_qf", "w_kf", "w_vf",
    "w_inter", "b_inter", "w_xout",
    "w_ext_r", "b_ext_r",
    "w_gimg", "w_gate_a", "w_gate_b",
    "w_comb_a", "w_comb_b", "b_comb",
    "w_fc", "b_fc",
)


# ------------------------------- fused kernel --------------------------------

def _siamner_fused_kernel(tok_ref, patch_ref, mask_ref, wsc_ref, *rest, S, H, nh):
    nw = len(_W_NAMES)
    w = dict(zip(_W_NAMES, rest[:nw]))
    out_ref = rest[nw]
    dh = H // nh
    f32, bf16 = jnp.float32, jnp.bfloat16

    def vec(name):                       # packed (H,)-vector -> (1, H) f32
        return w["vec64"][_V[name]]

    def mm(a, b):                        # bf16 x bf16 MXU matmul, f32 accumulation
        return jnp.dot(a.astype(bf16), b.astype(bf16), preferred_element_type=f32)

    def mm_nt(a, b):                     # a (m, d) x b (n, d)^T -> (m, n), f32 acc
        return lax.dot_general(a.astype(bf16), b.astype(bf16),
                               (((1,), (1,)), ((), ())),
                               preferred_element_type=f32)

    def layer_norm(x, g, b, eps):
        mu = jnp.mean(x, axis=-1, keepdims=True)
        var = jnp.mean(jnp.square(x - mu), axis=-1, keepdims=True)
        return (x - mu) * lax.rsqrt(var + eps) * g + b

    def softmax_lastdim(s):
        m = jnp.max(s, axis=-1, keepdims=True)
        e = jnp.exp(s - m)
        return e * pl.reciprocal(jnp.sum(e, axis=-1, keepdims=True), approx=True)

    def gelu(x):  # tanh approximation (BERT intermediate activation)
        return 0.5 * x * (1.0 + jnp.tanh(0.7978845608028654 * (x + 0.044715 * x * x * x)))

    # --- BERT text encoder stand-in: (embedding done in wrapper) + LayerNorm ---
    hidden_text = layer_norm(tok_ref[0], vec("bert_ln_g"), vec("bert_ln_b"), 1e-12)  # (S, H)

    # --- ResNet50 forward_features stand-in: 4x4-patch projection to 2048 ch ---
    pic_ori = mm(patch_ref[0], w["w_patch"][...]) + w["b_patch"][...]                # (49, 2048)
    pic_ori16 = pic_ori.astype(bf16)     # cast the largest intermediate once, reuse twice

    # --- linear_pic / vismap2text (both consume VMEM-resident pic_ori) ---
    pic_ori_ = mm(pic_ori16, w["w_pic"][...]) + vec("b_pic")                         # (49, H)
    vis_map = mm(pic_ori16, w["w_vis"][...]) + vec("b_vis")                          # (49, H)

    # --- txt2img BertCrossEncoder (1 layer): multi-head cross attention ---
    img_bias = (1.0 - mask_ref[0]) * -10000.0                                        # (1, 49)
    attn_acc = jnp.zeros((S, H), f32)
    for h in range(nh):                                  # unrolled head loop
        qh = mm(hidden_text, w["w_xq_h"][h]) + w["b_xq_h"][h]                        # (S, dh)
        kh = mm(vis_map, w["w_xk_h"][h]) + w["b_xk_h"][h]                            # (49, dh)
        vh = mm(vis_map, w["w_xv_h"][h]) + w["b_xv_h"][h]                            # (49, dh)
        sc = mm_nt(qh, kh) * (1.0 / math.sqrt(dh)) + img_bias                        # (S, 49)
        ph = softmax_lastdim(sc)
        ctx_h = mm(ph, vh)                                                           # (S, dh)
        # accumulate straight through the output projection (no concat needed)
        attn_acc = attn_acc + mm(ctx_h, w["w_xo_h"][h])                              # (S, H)
    attn_out = layer_norm(attn_acc + vec("b_xo") + hidden_text,
                          vec("ln1_g"), vec("ln1_b"), 1e-12)                         # (S, H)
    inter = gelu(mm(attn_out, w["w_inter"][...]) + w["b_inter"][...])                # (S, 4H)
    ffn = mm(inter, w["w_xout"][...]) + vec("b_xout")                                # (S, H)
    cross_out = layer_norm(ffn + attn_out, vec("ln2_g"), vec("ln2_b"), 1e-12)        # (S, H)

    # --- fine-grained image->text attention (self.att) ---
    q_fine = mm(pic_ori_, w["w_qf"][...]) + vec("b_qf")                              # (49, H)
    k_fine = mm(hidden_text, w["w_kf"][...]) + vec("b_kf")                           # (S, H)
    v_fine = mm(hidden_text, w["w_vf"][...]) + vec("b_vf")                           # (S, H)
    # scores / sqrt(d_k) / sqrt(hidden_size) == scores / H (matches reference att())
    sc_f = mm_nt(q_fine, k_fine) * (1.0 / H)                                         # (49, S)
    att_out = mm(softmax_lastdim(sc_f), v_fine)                                      # (49, H)
    pic_original = jnp.sum(jnp.tanh(att_out), axis=0, keepdims=True)                 # (1, H)

    pic_sum = jnp.sum(pic_ori_, axis=0, keepdims=True)                               # (1, H)
    pic_final = (pic_original + pic_sum) * wsc_ref[0]                                # (1, H)
    pic_final = layer_norm(pic_final, vec("norm_g"), vec("norm_b"), 1e-5)

    # --- linear_extend_pic -> tanh, assembled token-by-token (reshape-free) ---
    pf_rep = jnp.broadcast_to(pic_final, (S, H))                                     # (S, H)
    row_ids = lax.broadcasted_iota(jnp.int32, (S, 1), 0)
    res_pic = jnp.zeros((S, 3 * H), f32)
    for s in range(S):                                   # unrolled token loop
        row = jnp.tanh(mm(pf_rep, w["w_ext_r"][s]) + w["b_ext_r"][s])                # (S, 3H), rows identical
        res_pic = res_pic + jnp.where(row_ids == s, row, 0.0)

    # --- gated fusion ---
    gate_img = mm(cross_out, w["w_gimg"][...]) + vec("b_gimg")                       # (S, H)
    gate_pre = (mm(gate_img, w["w_gate_a"][...])
                + mm(res_pic, w["w_gate_b"][...]) + vec("b_gate"))                   # (S, H)
    gate = 1.0 / (1.0 + jnp.exp(-gate_pre))
    comb = (mm(hidden_text, w["w_comb_a"][...])
            + mm(gate, w["w_comb_b"][...]) + w["b_comb"][...])                       # (S, 1024)
    final = jnp.maximum(comb, 0.0)                                                   # relu
    emis = mm(final, w["w_fc"][...]) + w["b_fc"][...]                                # (S, EMIS_PAD)
    out_ref[0] = emis


def _fused_forward(prep, tok_pos, patches, img_mask, wscale, *, S, H, nh):
    B = tok_pos.shape[0]
    batch_inputs = [tok_pos, patches, img_mask, wscale]
    batch_specs = [
        pl.BlockSpec((1, S, H), lambda b: (b, 0, 0)),
        pl.BlockSpec((1, 49, PATCH_K), lambda b: (b, 0, 0)),
        pl.BlockSpec((1, 1, 49), lambda b: (b, 0, 0)),
        pl.BlockSpec((1, 1, 1), lambda b: (b, 0, 0)),
    ]
    weight_inputs = [prep[name] for name in _W_NAMES]
    # Weights: full block, constant index_map -> DMA'd once, VMEM-resident.
    weight_specs = [
        pl.BlockSpec(prep[name].shape, lambda b, _nd=prep[name].ndim: (0,) * _nd)
        for name in _W_NAMES
    ]
    return pl.pallas_call(
        functools.partial(_siamner_fused_kernel, S=S, H=H, nh=nh),
        out_shape=jax.ShapeDtypeStruct((B, S, EMIS_PAD), jnp.float32),
        grid=(B,),
        in_specs=batch_specs + weight_specs,
        out_specs=pl.BlockSpec((1, S, EMIS_PAD), lambda b: (b, 0, 0)),
        compiler_params=pltpu.CompilerParams(dimension_semantics=("parallel",)),
    )(*batch_inputs, *weight_inputs)


# ------------------------------ plain-JAX glue --------------------------------

def crf_viterbi_decode(emissions, mask, start_trans, end_trans, trans):
    """torchcrf-style Viterbi decode (batch_first).  Plain JAX: sequential scan."""
    # TODO(synk): backtrace assumes full-length masks (true for the example inputs);
    # variable-length sequences are returned padded rather than as ragged lists.
    B, S, L = emissions.shape
    score0 = start_trans[None, :] + emissions[:, 0]                    # (B, L)

    def fwd(score, xs):
        emit_t, mask_t = xs
        nxt = score[:, :, None] + trans[None, :, :] + emit_t[:, None, :]
        best = jnp.max(nxt, axis=1)
        idx = jnp.argmax(nxt, axis=1).astype(jnp.int32)
        new_score = jnp.where(mask_t[:, None], best, score)
        return new_score, idx

    xs = (jnp.transpose(emissions[:, 1:], (1, 0, 2)),
          jnp.transpose(mask[:, 1:], (1, 0)))
    final_score, history = lax.scan(fwd, score0, xs)
    final_score = final_score + end_trans[None, :]
    last_tag = jnp.argmax(final_score, axis=1).astype(jnp.int32)

    def bwd(tag, hist_t):
        prev = jnp.take_along_axis(hist_t, tag[:, None], axis=1)[:, 0]
        return prev, prev

    _, prev_tags = lax.scan(bwd, last_tag, history, reverse=True)
    tags = jnp.concatenate([prev_tags, last_tag[None, :]], axis=0)
    return jnp.transpose(tags, (1, 0))


def init_params(key, *, vocab=100, H=64, S=8, L=5, C_feat=2048, patch_dim=48):
    keys = iter(jax.random.split(key, 64))

    def dense(din, dout):
        return (jax.random.normal(next(keys), (din, dout), jnp.float32) * 0.02,
                jnp.zeros((dout,), jnp.float32))

    p = {}
    # BERT stand-in
    p["bert_emb"] = jax.random.normal(next(keys), (vocab, H), jnp.float32) * 0.02
    p["bert_pos"] = jax.random.normal(next(keys), (S, H), jnp.float32) * 0.02
    p["bert_ln_g"] = jnp.ones((H,), jnp.float32)
    p["bert_ln_b"] = jnp.zeros((H,), jnp.float32)
    # ResNet50 forward_features stand-in (patch projection to 2048 channels)
    p["patch_proj"] = dense(patch_dim, C_feat)
    # SIAMNER head
    p["linear_pic"] = dense(C_feat, H)
    p["vismap2text"] = dense(C_feat, H)
    # BertCrossEncoder (1 layer): cross-attention + FFN
    p["xq"], p["xk"], p["xv"], p["xo"] = dense(H, H), dense(H, H), dense(H, H), dense(H, H)
    p["x_ln1_g"], p["x_ln1_b"] = jnp.ones((H,), jnp.float32), jnp.zeros((H,), jnp.float32)
    p["x_inter"] = dense(H, 4 * H)
    p["x_out"] = dense(4 * H, H)
    p["x_ln2_g"], p["x_ln2_b"] = jnp.ones((H,), jnp.float32), jnp.zeros((H,), jnp.float32)
    # fine-grained attention projections
    p["linear_k_fine"] = dense(H, H)
    p["linear_v_fine"] = dense(H, H)
    p["linear_q_fine"] = dense(H, H)
    p["norm_t2i_g"], p["norm_t2i_b"] = jnp.ones((H,), jnp.float32), jnp.zeros((H,), jnp.float32)
    p["linear_extend_pic"] = dense(H, S * 3 * H)   # image2token_emb = 3*H
    p["Gate_image"] = dense(H, H)
    p["Gate"] = dense(4 * H, H)
    p["combine_linear"] = dense(2 * H, 1000)
    p["fc"] = dense(1000, L)
    # CRF parameters (torchcrf init: uniform(-0.1, 0.1))
    p["crf_start"] = jax.random.uniform(next(keys), (L,), jnp.float32, -0.1, 0.1)
    p["crf_end"] = jax.random.uniform(next(keys), (L,), jnp.float32, -0.1, 0.1)
    p["crf_trans"] = jax.random.uniform(next(keys), (L, L), jnp.float32, -0.1, 0.1)
    return p


def prepare_params(params, *, S=8, H=64, nh=4, num_labels=5):
    """Pack / pad / bf16-cast weights once, into the layout the fused kernel expects."""
    dh = H // nh
    bf16, f32 = jnp.bfloat16, jnp.float32

    def heads_out(wm):   # (H, H) -> (nh, H, dh): split the output dim into heads
        return jnp.transpose(wm.reshape(H, nh, dh), (1, 0, 2)).astype(bf16)

    w_pic, b_pic = params["linear_pic"]
    w_vis, b_vis = params["vismap2text"]
    w_xq, b_xq = params["xq"]; w_xk, b_xk = params["xk"]; w_xv, b_xv = params["xv"]
    w_xo, b_xo = params["xo"]
    w_inter, b_inter = params["x_inter"]
    w_xout, b_xout = params["x_out"]
    w_qf, b_qf = params["linear_q_fine"]
    w_kf, b_kf = params["linear_k_fine"]
    w_vf, b_vf = params["linear_v_fine"]
    w_ext, b_ext = params["linear_extend_pic"]
    w_gimg, b_gimg = params["Gate_image"]
    w_gate, b_gate = params["Gate"]
    w_comb, b_comb = params["combine_linear"]
    w_fc, b_fc = params["fc"]
    w_patch, b_patch = params["patch_proj"]

    vecs = jnp.stack([
        params["bert_ln_g"], params["bert_ln_b"],
        b_pic, b_vis,
        b_xo, params["x_ln1_g"], params["x_ln1_b"],
        b_xout, params["x_ln2_g"], params["x_ln2_b"],
        b_qf, b_kf, b_vf,
        params["norm_t2i_g"], params["norm_t2i_b"],
        b_gimg, b_gate,
    ], axis=0).astype(f32).reshape(len(_VEC_NAMES), 1, H)

    prep = {
        "vec64": vecs,
        "w_patch": jnp.pad(w_patch, ((0, PATCH_K - w_patch.shape[0]), (0, 0))).astype(bf16),
        "b_patch": b_patch.reshape(1, -1).astype(f32),
        "w_pic": w_pic.astype(bf16),
        "w_vis": w_vis.astype(bf16),
        "w_xq_h": heads_out(w_xq), "b_xq_h": b_xq.reshape(nh, 1, dh).astype(f32),
        "w_xk_h": heads_out(w_xk), "b_xk_h": b_xk.reshape(nh, 1, dh).astype(f32),
        "w_xv_h": heads_out(w_xv), "b_xv_h": b_xv.reshape(nh, 1, dh).astype(f32),
        "w_xo_h": w_xo.reshape(nh, dh, H).astype(bf16),
        "w_qf": w_qf.astype(bf16), "w_kf": w_kf.astype(bf16), "w_vf": w_vf.astype(bf16),
        "w_inter": w_inter.astype(bf16), "b_inter": b_inter.reshape(1, -1).astype(f32),
        "w_xout": w_xout.astype(bf16),
        # linear_extend_pic regrouped per token: [s] == W[:, s*3H:(s+1)*3H]
        "w_ext_r": jnp.transpose(w_ext.reshape(H, S, 3 * H), (1, 0, 2)).astype(bf16),
        "b_ext_r": b_ext.reshape(S, 1, 3 * H).astype(f32),
        "w_gimg": w_gimg.astype(bf16),
        # Gate input is cat([Gate_image(cross_out), res_pic]) -> split the weight
        "w_gate_a": w_gate[:H, :].astype(bf16),
        "w_gate_b": w_gate[H:, :].astype(bf16),
        # combine_linear split by concat([hidden_text, gate]); output padded 1000 -> 1024
        "w_comb_a": jnp.pad(w_comb[:H, :], ((0, 0), (0, COMB_PAD - w_comb.shape[1]))).astype(bf16),
        "w_comb_b": jnp.pad(w_comb[H:, :], ((0, 0), (0, COMB_PAD - w_comb.shape[1]))).astype(bf16),
        "b_comb": jnp.pad(b_comb, (0, COMB_PAD - b_comb.shape[0])).reshape(1, -1).astype(f32),
        # fc padded (1000, L) -> (1024, EMIS_PAD); pad rows/cols are zero so the
        # first L output lanes are exact.
        "w_fc": jnp.pad(w_fc, ((0, COMB_PAD - w_fc.shape[0]),
                               (0, EMIS_PAD - w_fc.shape[1]))).astype(bf16),
        "b_fc": jnp.pad(b_fc, (0, EMIS_PAD - b_fc.shape[0])).reshape(1, -1).astype(f32),
        # passthrough for the plain-JAX glue
        "bert_emb": params["bert_emb"], "bert_pos": params["bert_pos"],
        "crf_start": params["crf_start"], "crf_end": params["crf_end"],
        "crf_trans": params["crf_trans"],
    }
    return prep


def siamner_forward(prep, input_ids, attention_mask, added_input_mask, images, weight,
                    *, H=64, nh=4, S=8, num_labels=5):
    B = input_ids.shape[0]

    # --- BERT text encoder ---
    # TODO(synk): pretrained BertModel not reproduced; deterministic token + position
    # embedding stand-in (its LayerNorm runs inside the fused Pallas kernel).
    tok_pos = (jnp.take(prep["bert_emb"], input_ids, axis=0)
               + prep["bert_pos"][None, :S, :]).astype(jnp.float32)

    # --- ResNet50 forward_features ---
    # TODO(synk): pretrained resnet50 trunk not reproduced; 4x4-patch linear projection
    # stand-in producing the same (B, 2048, 7, 7) -> (B, 49, 2048) token contract
    # (the projection matmul itself runs inside the fused Pallas kernel).
    Hp = images.shape[2] // 4
    patches = images.reshape(B, 3, Hp, 4, Hp, 4).transpose(0, 2, 4, 1, 3, 5).reshape(B, Hp * Hp, 48)
    patches = jnp.pad(patches, ((0, 0), (0, 0), (0, PATCH_K - 48))).astype(jnp.float32)

    img_mask = added_input_mask[:, :49].astype(jnp.float32).reshape(B, 1, 49)
    wscale = weight[:, 1].astype(jnp.float32).reshape(B, 1, 1)

    emis_pad = _fused_forward(prep, tok_pos, patches, img_mask, wscale, S=S, H=H, nh=nh)
    emissions = emis_pad[:, :, :num_labels]

    logits = crf_viterbi_decode(emissions, attention_mask.astype(bool),
                                prep["crf_start"], prep["crf_end"], prep["crf_trans"])
    return logits, emissions


if __name__ == "__main__":
    B, S, H, nh, L = 2, 8, 64, 4, 5
    key = jax.random.PRNGKey(0)
    pkey, k1, k2, k3 = jax.random.split(key, 4)

    params = init_params(pkey, vocab=100, H=H, S=S, L=L)
    prep = prepare_params(params, S=S, H=H, nh=nh, num_labels=L)

    input_ids = jax.random.randint(k1, (B, S), 0, 100)
    attention_mask = jnp.ones((B, S), jnp.int32)
    added_input_mask = jnp.ones((B, S + 49), jnp.int32)
    images = jax.random.normal(k2, (B, 3, 28, 28), jnp.float32)     # NCHW like PyTorch
    weight = jax.nn.softmax(jax.random.normal(k3, (B, 2), jnp.float32), axis=-1)

    fwd = jax.jit(functools.partial(siamner_forward, H=H, nh=nh, S=S, num_labels=L))
    logits, emissions = fwd(prep, input_ids, attention_mask, added_input_mask, images, weight)
    jax.block_until_ready((logits, emissions))
    print("KERNEL_OK")
</pallas_src>

<mosaic_0001>
module attributes {stable_mosaic.version = 11 : i64} {
  func.func @_siamner_fused_kernel(%arg0: i32, %arg1: memref<1x8x64xf32, #tpu.memory_space<vmem>>, %arg2: memref<1x49x64xf32, #tpu.memory_space<vmem>>, %arg3: memref<1x1x49xf32, #tpu.memory_space<vmem>>, %arg4: memref<1x1x1xf32, #tpu.memory_space<vmem>>, %arg5: memref<17x1x64xf32, #tpu.memory_space<vmem>>, %arg6: memref<64x2048xbf16, #tpu.memory_space<vmem>>, %arg7: memref<1x2048xf32, #tpu.memory_space<vmem>>, %arg8: memref<2048x64xbf16, #tpu.memory_space<vmem>>, %arg9: memref<2048x64xbf16, #tpu.memory_space<vmem>>, %arg10: memref<4x64x16xbf16, #tpu.memory_space<vmem>>, %arg11: memref<4x1x16xf32, #tpu.memory_space<vmem>>, %arg12: memref<4x64x16xbf16, #tpu.memory_space<vmem>>, %arg13: memref<4x1x16xf32, #tpu.memory_space<vmem>>, %arg14: memref<4x64x16xbf16, #tpu.memory_space<vmem>>, %arg15: memref<4x1x16xf32, #tpu.memory_space<vmem>>, %arg16: memref<4x16x64xbf16, #tpu.memory_space<vmem>>, %arg17: memref<64x64xbf16, #tpu.memory_space<vmem>>, %arg18: memref<64x64xbf16, #tpu.memory_space<vmem>>, %arg19: memref<64x64xbf16, #tpu.memory_space<vmem>>, %arg20: memref<64x256xbf16, #tpu.memory_space<vmem>>, %arg21: memref<1x256xf32, #tpu.memory_space<vmem>>, %arg22: memref<256x64xbf16, #tpu.memory_space<vmem>>, %arg23: memref<8x64x192xbf16, #tpu.memory_space<vmem>>, %arg24: memref<8x1x192xf32, #tpu.memory_space<vmem>>, %arg25: memref<64x64xbf16, #tpu.memory_space<vmem>>, %arg26: memref<64x64xbf16, #tpu.memory_space<vmem>>, %arg27: memref<192x64xbf16, #tpu.memory_space<vmem>>, %arg28: memref<64x1024xbf16, #tpu.memory_space<vmem>>, %arg29: memref<64x1024xbf16, #tpu.memory_space<vmem>>, %arg30: memref<1x1024xf32, #tpu.memory_space<vmem>>, %arg31: memref<1024x128xbf16, #tpu.memory_space<vmem>>, %arg32: memref<1x128xf32, #tpu.memory_space<vmem>>, %arg33: memref<1x8x128xf32, #tpu.memory_space<vmem>>) attributes {dimension_semantics = [#tpu.dimension_semantics<parallel>], iteration_bounds = array<i64: 2>, scalar_prefetch = 0 : i64, scratch_operands = 0 : i64, tpu.core_type = #tpu.core_type<tc>, window_params = [{transform_indices = @transform_0, window_bounds = array<i64: 1, 8, 64>}, {transform_indices = @transform_1, window_bounds = array<i64: 1, 49, 64>}, {transform_indices = @transform_2, window_bounds = array<i64: 1, 1, 49>}, {transform_indices = @transform_3, window_bounds = array<i64: 1, 1, 1>}, {pipeline_mode = #tpu.pipeline_mode<synchronous>, transform_indices = @transform_4, window_bounds = array<i64: 17, 1, 64>}, {pipeline_mode = #tpu.pipeline_mode<synchronous>, transform_indices = @transform_5, window_bounds = array<i64: 64, 2048>}, {pipeline_mode = #tpu.pipeline_mode<synchronous>, transform_indices = @transform_6, window_bounds = array<i64: 1, 2048>}, {pipeline_mode = #tpu.pipeline_mode<synchronous>, transform_indices = @transform_7, window_bounds = array<i64: 2048, 64>}, {pipeline_mode = #tpu.pipeline_mode<synchronous>, transform_indices = @transform_8, window_bounds = array<i64: 2048, 64>}, {pipeline_mode = #tpu.pipeline_mode<synchronous>, transform_indices = @transform_9, window_bounds = array<i64: 4, 64, 16>}, {pipeline_mode = #tpu.pipeline_mode<synchronous>, transform_indices = @transform_10, window_bounds = array<i64: 4, 1, 16>}, {pipeline_mode = #tpu.pipeline_mode<synchronous>, transform_indices = @transform_11, window_bounds = array<i64: 4, 64, 16>}, {pipeline_mode = #tpu.pipeline_mode<synchronous>, transform_indices = @transform_12, window_bounds = array<i64: 4, 1, 16>}, {pipeline_mode = #tpu.pipeline_mode<synchronous>, transform_indices = @transform_13, window_bounds = array<i64: 4, 64, 16>}, {pipeline_mode = #tpu.pipeline_mode<synchronous>, transform_indices = @transform_14, window_bounds = array<i64: 4, 1, 16>}, {pipeline_mode = #tpu.pipeline_mode<synchronous>, transform_indices = @transform_15, window_bounds = array<i64: 4, 16, 64>}, {pipeline_mode = #tpu.pipeline_mode<synchronous>, transform_indices = @transform_16, window_bounds = array<i64: 64, 64>}, {pipeline_mode = #tpu.pipeline_mode<synchronous>, transform_indices = @transform_17, window_bounds = array<i64: 64, 64>}, {pipeline_mode = #tpu.pipeline_mode<synchronous>, transform_indices = @transform_18, window_bounds = array<i64: 64, 64>}, {pipeline_mode = #tpu.pipeline_mode<synchronous>, transform_indices = @transform_19, window_bounds = array<i64: 64, 256>}, {pipeline_mode = #tpu.pipeline_mode<synchronous>, transform_indices = @transform_20, window_bounds = array<i64: 1, 256>}, {pipeline_mode = #tpu.pipeline_mode<synchronous>, transform_indices = @transform_21, window_bounds = array<i64: 256, 64>}, {pipeline_mode = #tpu.pipeline_mode<synchronous>, transform_indices = @transform_22, window_bounds = array<i64: 8, 64, 192>}, {pipeline_mode = #tpu.pipeline_mode<synchronous>, transform_indices = @transform_23, window_bounds = array<i64: 8, 1, 192>}, {pipeline_mode = #tpu.pipeline_mode<synchronous>, transform_indices = @transform_24, window_bounds = array<i64: 64, 64>}, {pipeline_mode = #tpu.pipeline_mode<synchronous>, transform_indices = @transform_25, window_bounds = array<i64: 64, 64>}, {pipeline_mode = #tpu.pipeline_mode<synchronous>, transform_indices = @transform_26, window_bounds = array<i64: 192, 64>}, {pipeline_mode = #tpu.pipeline_mode<synchronous>, transform_indices = @transform_27, window_bounds = array<i64: 64, 1024>}, {pipeline_mode = #tpu.pipeline_mode<synchronous>, transform_indices = @transform_28, window_bounds = array<i64: 64, 1024>}, {pipeline_mode = #tpu.pipeline_mode<synchronous>, transform_indices = @transform_29, window_bounds = array<i64: 1, 1024>}, {pipeline_mode = #tpu.pipeline_mode<synchronous>, transform_indices = @transform_30, window_bounds = array<i64: 1024, 128>}, {pipeline_mode = #tpu.pipeline_mode<synchronous>, transform_indices = @transform_31, window_bounds = array<i64: 1, 128>}, {transform_indices = @transform_32, window_bounds = array<i64: 1, 8, 128>}]} {
    %c0 = arith.constant 0 : index
    %c0_0 = arith.constant 0 : index
    %c0_1 = arith.constant 0 : index
    %0 = vector.load %arg1[%c0, %c0_0, %c0_1] : memref<1x8x64xf32, #tpu.memory_space<vmem>>, vector<1x8x64xf32>
    %1 = vector.shape_cast %0 : vector<1x8x64xf32> to vector<8x64xf32>
    %c0_2 = arith.constant 0 : index
    %c0_3 = arith.constant 0 : index
    %c0_4 = arith.constant 0 : index
    %2 = vector.load %arg5[%c0_2, %c0_3, %c0_4] : memref<17x1x64xf32, #tpu.memory_space<vmem>>, vector<1x1x64xf32>
    %3 = vector.shape_cast %2 : vector<1x1x64xf32> to vector<1x64xf32>
    %c1 = arith.constant 1 : index
    %c0_5 = arith.constant 0 : index
    %c0_6 = arith.constant 0 : index
    %4 = vector.load %arg5[%c1, %c0_5, %c0_6] : memref<17x1x64xf32, #tpu.memory_space<vmem>>, vector<1x1x64xf32>
    %5 = vector.shape_cast %4 : vector<1x1x64xf32> to vector<1x64xf32>
    %cst = arith.constant dense<0.000000e+00> : vector<8xf32>
    %6 = vector.multi_reduction <add>, %1, %cst [1] : vector<8x64xf32> to vector<8xf32>
    %7 = vector.shape_cast %6 : vector<8xf32> to vector<8x1xf32>
    %cst_7 = arith.constant 6.400000e+01 : f32
    %8 = vector.broadcast %cst_7 : f32 to vector<8x1xf32>
    %9 = arith.divf %7, %8 : vector<8x1xf32>
    %10 = vector.broadcast %9 : vector<8x1xf32> to vector<8x64xf32>
    %11 = arith.subf %1, %10 : vector<8x64xf32>
    %12 = arith.mulf %11, %11 : vector<8x64xf32>
    %cst_8 = arith.constant dense<0.000000e+00> : vector<8xf32>
    %13 = vector.multi_reduction <add>, %12, %cst_8 [1] : vector<8x64xf32> to vector<8xf32>
    %14 = vector.shape_cast %13 : vector<8xf32> to vector<8x1xf32>
    %cst_9 = arith.constant 6.400000e+01 : f32
    %15 = vector.broadcast %cst_9 : f32 to vector<8x1xf32>
    %16 = arith.divf %14, %15 : vector<8x1xf32>
    %17 = vector.broadcast %9 : vector<8x1xf32> to vector<8x64xf32>
    %18 = arith.subf %1, %17 : vector<8x64xf32>
    %cst_10 = arith.constant 9.99999996E-13 : f32
    %19 = vector.broadcast %cst_10 : f32 to vector<8x1xf32>
    %20 = arith.addf %16, %19 : vector<8x1xf32>
    %21 = math.rsqrt %20 : vector<8x1xf32>
    %22 = vector.broadcast %21 : vector<8x1xf32> to vector<8x64xf32>
    %23 = arith.mulf %18, %22 : vector<8x64xf32>
    %24 = vector.broadcast %3 : vector<1x64xf32> to vector<8x64xf32>
    %25 = arith.mulf %23, %24 : vector<8x64xf32>
    %26 = vector.broadcast %5 : vector<1x64xf32> to vector<8x64xf32>
    %27 = arith.addf %25, %26 : vector<8x64xf32>
    %c0_11 = arith.constant 0 : index
    %c0_12 = arith.constant 0 : index
    %c0_13 = arith.constant 0 : index
    %28 = vector.load %arg2[%c0_11, %c0_12, %c0_13] : memref<1x49x64xf32, #tpu.memory_space<vmem>>, vector<1x49x64xf32>
    %29 = vector.shape_cast %28 : vector<1x49x64xf32> to vector<49x64xf32>
    %c0_14 = arith.constant 0 : index
    %c0_15 = arith.constant 0 : index
    %30 = vector.load %arg6[%c0_14, %c0_15] : memref<64x2048xbf16, #tpu.memory_space<vmem>>, vector<64x2048xbf16>
    %31 = arith.truncf %29 : vector<49x64xf32> to vector<49x64xbf16>
    %cst_16 = arith.constant dense<0.000000e+00> : vector<49x2048xf32>
    %32 = tpu.matmul %31, %30, %cst_16 {dimension_numbers = #tpu.dot_dimension_numbers<[1], [0], [0], [1], [0, 0, 1, 1], [], []>} : vector<49x64xbf16>, vector<64x2048xbf16>, vector<49x2048xf32> -> vector<49x2048xf32>
    %c0_17 = arith.constant 0 : index
    %c0_18 = arith.constant 0 : index
    %33 = vector.load %arg7[%c0_17, %c0_18] : memref<1x2048xf32, #tpu.memory_space<vmem>>, vector<1x2048xf32>
    %34 = vector.broadcast %33 : vector<1x2048xf32> to vector<49x2048xf32>
    %35 = arith.addf %32, %34 : vector<49x2048xf32>
    %36 = arith.truncf %35 : vector<49x2048xf32> to vector<49x2048xbf16>
    %c0_19 = arith.constant 0 : index
    %c0_20 = arith.constant 0 : index
    %37 = vector.load %arg8[%c0_19, %c0_20] : memref<2048x64xbf16, #tpu.memory_space<vmem>>, vector<2048x64xbf16>
    %cst_21 = arith.constant dense<0.000000e+00> : vector<49x64xf32>
    %38 = tpu.matmul %36, %37, %cst_21 {dimension_numbers = #tpu.dot_dimension_numbers<[1], [0], [0], [1], [0, 0, 1, 1], [], []>} : vector<49x2048xbf16>, vector<2048x64xbf16>, vector<49x64xf32> -> vector<49x64xf32>
    %c2 = arith.constant 2 : index
    %c0_22 = arith.constant 0 : index
    %c0_23 = arith.constant 0 : index
    %39 = vector.load %arg5[%c2, %c0_22, %c0_23] : memref<17x1x64xf32, #tpu.memory_space<vmem>>, vector<1x1x64xf32>
    %40 = vector.shape_cast %39 : vector<1x1x64xf32> to vector<1x64xf32>
    %41 = vector.broadcast %40 : vector<1x64xf32> to vector<49x64xf32>
    %42 = arith.addf %38, %41 : vector<49x64xf32>
    %c0_24 = arith.constant 0 : index
    %c0_25 = arith.constant 0 : index
    %43 = vector.load %arg9[%c0_24, %c0_25] : memref<2048x64xbf16, #tpu.memory_space<vmem>>, vector<2048x64xbf16>
    %cst_26 = arith.constant dense<0.000000e+00> : vector<49x64xf32>
    %44 = tpu.matmul %36, %43, %cst_26 {dimension_numbers = #tpu.dot_dimension_numbers<[1], [0], [0], [1], [0, 0, 1, 1], [], []>} : vector<49x2048xbf16>, vector<2048x64xbf16>, vector<49x64xf32> -> vector<49x64xf32>
    %c3 = arith.constant 3 : index
    %c0_27 = arith.constant 0 : index
    %c0_28 = arith.constant 0 : index
    %45 = vector.load %arg5[%c3, %c0_27, %c0_28] : memref<17x1x64xf32, #tpu.memory_space<vmem>>, vector<1x1x64xf32>
    %46 = vector.shape_cast %45 : vector<1x1x64xf32> to vector<1x64xf32>
    %47 = vector.broadcast %46 : vector<1x64xf32> to vector<49x64xf32>
    %48 = arith.addf %44, %47 : vector<49x64xf32>
    %c0_29 = arith.constant 0 : index
    %c0_30 = arith.constant 0 : index
    %c0_31 = arith.constant 0 : index
    %49 = vector.load %arg3[%c0_29, %c0_30, %c0_31] : memref<1x1x49xf32, #tpu.memory_space<vmem>>, vector<1x1x49xf32>
    %50 = vector.shape_cast %49 : vector<1x1x49xf32> to vector<1x49xf32>
    %cst_32 = arith.constant 1.000000e+00 : f32
    %51 = vector.broadcast %cst_32 : f32 to vector<1x49xf32>
    %52 = arith.subf %51, %50 : vector<1x49xf32>
    %cst_33 = arith.constant -1.000000e+04 : f32
    %53 = vector.broadcast %cst_33 : f32 to vector<1x49xf32>
    %54 = arith.mulf %52, %53 : vector<1x49xf32>
    %cst_34 = arith.constant 0.000000e+00 : f32
    %55 = vector.broadcast %cst_34 : f32 to vector<8x64xf32>
    %c0_35 = arith.constant 0 : index
    %c0_36 = arith.constant 0 : index
    %c0_37 = arith.constant 0 : index
    %56 = vector.load %arg10[%c0_35, %c0_36, %c0_37] : memref<4x64x16xbf16, #tpu.memory_space<vmem>>, vector<1x64x16xbf16>
    %57 = vector.shape_cast %56 : vector<1x64x16xbf16> to vector<64x16xbf16>
    %58 = arith.truncf %27 : vector<8x64xf32> to vector<8x64xbf16>
    %cst_38 = arith.constant dense<0.000000e+00> : vector<8x16xf32>
    %59 = tpu.matmul %58, %57, %cst_38 {dimension_numbers = #tpu.dot_dimension_numbers<[1], [0], [0], [1], [0, 0, 1, 1], [], []>} : vector<8x64xbf16>, vector<64x16xbf16>, vector<8x16xf32> -> vector<8x16xf32>
    %c0_39 = arith.constant 0 : index
    %c0_40 = arith.constant 0 : index
    %c0_41 = arith.constant 0 : index
    %60 = vector.load %arg11[%c0_39, %c0_40, %c0_41] : memref<4x1x16xf32, #tpu.memory_space<vmem>>, vector<1x1x16xf32>
    %61 = vector.shape_cast %60 : vector<1x1x16xf32> to vector<1x16xf32>
    %62 = vector.broadcast %61 : vector<1x16xf32> to vector<8x16xf32>
    %63 = arith.addf %59, %62 : vector<8x16xf32>
    %c0_42 = arith.constant 0 : index
    %c0_43 = arith.constant 0 : index
    %c0_44 = arith.constant 0 : index
    %64 = vector.load %arg12[%c0_42, %c0_43, %c0_44] : memref<4x64x16xbf16, #tpu.memory_space<vmem>>, vector<1x64x16xbf16>
    %65 = vector.shape_cast %64 : vector<1x64x16xbf16> to vector<64x16xbf16>
    %66 = arith.truncf %48 : vector<49x64xf32> to vector<49x64xbf16>
    %cst_45 = arith.constant dense<0.000000e+00> : vector<49x16xf32>
    %67 = tpu.matmul %66, %65, %cst_45 {dimension_numbers = #tpu.dot_dimension_numbers<[1], [0], [0], [1], [0, 0, 1, 1], [], []>} : vector<49x64xbf16>, vector<64x16xbf16>, vector<49x16xf32> -> vector<49x16xf32>
    %c0_46 = arith.constant 0 : index
    %c0_47 = arith.constant 0 : index
    %c0_48 = arith.constant 0 : index
    %68 = vector.load %arg13[%c0_46, %c0_47, %c0_48] : memref<4x1x16xf32, #tpu.memory_space<vmem>>, vector<1x1x16xf32>
    %69 = vector.shape_cast %68 : vector<1x1x16xf32> to vector<1x16xf32>
    %70 = vector.broadcast %69 : vector<1x16xf32> to vector<49x16xf32>
    %71 = arith.addf %67, %70 : vector<49x16xf32>
    %c0_49 = arith.constant 0 : index
    %c0_50 = arith.constant 0 : index
    %c0_51 = arith.constant 0 : index
    %72 = vector.load %arg14[%c0_49, %c0_50, %c0_51] : memref<4x64x16xbf16, #tpu.memory_space<vmem>>, vector<1x64x16xbf16>
    %73 = vector.shape_cast %72 : vector<1x64x16xbf16> to vector<64x16xbf16>
    %74 = arith.truncf %48 : vector<49x64xf32> to vector<49x64xbf16>
    %cst_52 = arith.constant dense<0.000000e+00> : vector<49x16xf32>
    %75 = tpu.matmul %74, %73, %cst_52 {dimension_numbers = #tpu.dot_dimension_numbers<[1], [0], [0], [1], [0, 0, 1, 1], [], []>} : vector<49x64xbf16>, vector<64x16xbf16>, vector<49x16xf32> -> vector<49x16xf32>
    %c0_53 = arith.constant 0 : index
    %c0_54 = arith.constant 0 : index
    %c0_55 = arith.constant 0 : index
    %76 = vector.load %arg15[%c0_53, %c0_54, %c0_55] : memref<4x1x16xf32, #tpu.memory_space<vmem>>, vector<1x1x16xf32>
    %77 = vector.shape_cast %76 : vector<1x1x16xf32> to vector<1x16xf32>
    %78 = vector.broadcast %77 : vector<1x16xf32> to vector<49x16xf32>
    %79 = arith.addf %75, %78 : vector<49x16xf32>
    %80 = arith.truncf %63 : vector<8x16xf32> to vector<8x16xbf16>
    %81 = arith.truncf %71 : vector<49x16xf32> to vector<49x16xbf16>
    %cst_56 = arith.constant dense<0.000000e+00> : vector<8x49xf32>
    %82 = tpu.matmul %80, %81, %cst_56 {dimension_numbers = #tpu.dot_dimension_numbers<[1], [1], [0], [0], [0, 0, 1, 0], [], []>} : vector<8x16xbf16>, vector<49x16xbf16>, vector<8x49xf32> -> vector<8x49xf32>
    %cst_57 = arith.constant 2.500000e-01 : f32
    %83 = vector.broadcast %cst_57 : f32 to vector<8x49xf32>
    %84 = arith.mulf %82, %83 : vector<8x49xf32>
    %85 = vector.broadcast %54 : vector<1x49xf32> to vector<8x49xf32>
    %86 = arith.addf %84, %85 : vector<8x49xf32>
    %cst_58 = arith.constant dense<0xFF800000> : vector<8xf32>
    %87 = vector.multi_reduction <maximumf>, %86, %cst_58 [1] : vector<8x49xf32> to vector<8xf32>
    %88 = vector.shape_cast %87 : vector<8xf32> to vector<8x1xf32>
    %89 = vector.broadcast %88 : vector<8x1xf32> to vector<8x49xf32>
    %90 = arith.subf %86, %89 : vector<8x49xf32>
    %91 = math.exp %90 : vector<8x49xf32>
    %cst_59 = arith.constant dense<0.000000e+00> : vector<8xf32>
    %92 = vector.multi_reduction <add>, %91, %cst_59 [1] : vector<8x49xf32> to vector<8xf32>
    %93 = vector.shape_cast %92 : vector<8xf32> to vector<8x1xf32>
    %94 = tpu.reciprocal %93 {approx = true} : vector<8x1xf32> -> vector<8x1xf32>
    %95 = vector.broadcast %94 : vector<8x1xf32> to vector<8x49xf32>
    %96 = arith.mulf %91, %95 : vector<8x49xf32>
    %97 = arith.truncf %96 : vector<8x49xf32> to vector<8x49xbf16>
    %98 = arith.truncf %79 : vector<49x16xf32> to vector<49x16xbf16>
    %cst_60 = arith.constant dense<0.000000e+00> : vector<8x16xf32>
    %99 = tpu.matmul %97, %98, %cst_60 {dimension_numbers = #tpu.dot_dimension_numbers<[1], [0], [0], [1], [0, 0, 1, 1], [], []>} : vector<8x49xbf16>, vector<49x16xbf16>, vector<8x16xf32> -> vector<8x16xf32>
    %c0_61 = arith.constant 0 : index
    %c0_62 = arith.constant 0 : index
    %c0_63 = arith.constant 0 : index
    %100 = vector.load %arg16[%c0_61, %c0_62, %c0_63] : memref<4x16x64xbf16, #tpu.memory_space<vmem>>, vector<1x16x64xbf16>
    %101 = vector.shape_cast %100 : vector<1x16x64xbf16> to vector<16x64xbf16>
    %102 = arith.truncf %99 : vector<8x16xf32> to vector<8x16xbf16>
    %cst_64 = arith.constant dense<0.000000e+00> : vector<8x64xf32>
    %103 = tpu.matmul %102, %101, %cst_64 {dimension_numbers = #tpu.dot_dimension_numbers<[1], [0], [0], [1], [0, 0, 1, 1], [], []>} : vector<8x16xbf16>, vector<16x64xbf16>, vector<8x64xf32> -> vector<8x64xf32>
    %104 = arith.addf %55, %103 : vector<8x64xf32>
    %c1_65 = arith.constant 1 : index
    %c0_66 = arith.constant 0 : index
    %c0_67 = arith.constant 0 : index
    %105 = vector.load %arg10[%c1_65, %c0_66, %c0_67] : memref<4x64x16xbf16, #tpu.memory_space<vmem>>, vector<1x64x16xbf16>
    %106 = vector.shape_cast %105 : vector<1x64x16xbf16> to vector<64x16xbf16>
    %107 = arith.truncf %27 : vector<8x64xf32> to vector<8x64xbf16>
    %cst_68 = arith.constant dense<0.000000e+00> : vector<8x16xf32>
    %108 = tpu.matmul %107, %106, %cst_68 {dimension_numbers = #tpu.dot_dimension_numbers<[1], [0], [0], [1], [0, 0, 1, 1], [], []>} : vector<8x64xbf16>, vector<64x16xbf16>, vector<8x16xf32> -> vector<8x16xf32>
    %c1_69 = arith.constant 1 : index
    %c0_70 = arith.constant 0 : index
    %c0_71 = arith.constant 0 : index
    %109 = vector.load %arg11[%c1_69, %c0_70, %c0_71] : memref<4x1x16xf32, #tpu.memory_space<vmem>>, vector<1x1x16xf32>
    %110 = vector.shape_cast %109 : vector<1x1x16xf32> to vector<1x16xf32>
    %111 = vector.broadcast %110 : vector<1x16xf32> to vector<8x16xf32>
    %112 = arith.addf %108, %111 : vector<8x16xf32>
    %c1_72 = arith.constant 1 : index
    %c0_73 = arith.constant 0 : index
    %c0_74 = arith.constant 0 : index
    %113 = vector.load %arg12[%c1_72, %c0_73, %c0_74] : memref<4x64x16xbf16, #tpu.memory_space<vmem>>, vector<1x64x16xbf16>
    %114 = vector.shape_cast %113 : vector<1x64x16xbf16> to vector<64x16xbf16>
    %115 = arith.truncf %48 : vector<49x64xf32> to vector<49x64xbf16>
    %cst_75 = arith.constant dense<0.000000e+00> : vector<49x16xf32>
    %116 = tpu.matmul %115, %114, %cst_75 {dimension_numbers = #tpu.dot_dimension_numbers<[1], [0], [0], [1], [0, 0, 1, 1], [], []>} : vector<49x64xbf16>, vector<64x16xbf16>, vector<49x16xf32> -> vector<49x16xf32>
    %c1_76 = arith.constant 1 : index
    %c0_77 = arith.constant 0 : index
    %c0_78 = arith.constant 0 : index
    %117 = vector.load %arg13[%c1_76, %c0_77, %c0_78] : memref<4x1x16xf32, #tpu.memory_space<vmem>>, vector<1x1x16xf32>
    %118 = vector.shape_cast %117 : vector<1x1x16xf32> to vector<1x16xf32>
    %119 = vector.broadcast %118 : vector<1x16xf32> to vector<49x16xf32>
    %120 = arith.addf %116, %119 : vector<49x16xf32>
    %c1_79 = arith.constant 1 : index
    %c0_80 = arith.constant 0 : index
    %c0_81 = arith.constant 0 : index
    %121 = vector.load %arg14[%c1_79, %c0_80, %c0_81] : memref<4x64x16xbf16, #tpu.memory_space<vmem>>, vector<1x64x16xbf16>
    %122 = vector.shape_cast %121 : vector<1x64x16xbf16> to vector<64x16xbf16>
    %123 = arith.truncf %48 : vector<49x64xf32> to vector<49x64xbf16>
    %cst_82 = arith.constant dense<0.000000e+00> : vector<49x16xf32>
    %124 = tpu.matmul %123, %122, %cst_82 {dimension_numbers = #tpu.dot_dimension_numbers<[1], [0], [0], [1], [0, 0, 1, 1], [], []>} : vector<49x64xbf16>, vector<64x16xbf16>, vector<49x16xf32> -> vector<49x16xf32>
    %c1_83 = arith.constant 1 : index
    %c0_84 = arith.constant 0 : index
    %c0_85 = arith.constant 0 : index
    %125 = vector.load %arg15[%c1_83, %c0_84, %c0_85] : memref<4x1x16xf32, #tpu.memory_space<vmem>>, vector<1x1x16xf32>
    %126 = vector.shape_cast %125 : vector<1x1x16xf32> to vector<1x16xf32>
    %127 = vector.broadcast %126 : vector<1x16xf32> to vector<49x16xf32>
    %128 = arith.addf %124, %127 : vector<49x16xf32>
    %129 = arith.truncf %112 : vector<8x16xf32> to vector<8x16xbf16>
    %130 = arith.truncf %120 : vector<49x16xf32> to vector<49x16xbf16>
    %cst_86 = arith.constant dense<0.000000e+00> : vector<8x49xf32>
    %131 = tpu.matmul %129, %130, %cst_86 {dimension_numbers = #tpu.dot_dimension_numbers<[1], [1], [0], [0], [0, 0, 1, 0], [], []>} : vector<8x16xbf16>, vector<49x16xbf16>, vector<8x49xf32> -> vector<8x49xf32>
    %cst_87 = arith.constant 2.500000e-01 : f32
    %132 = vector.broadcast %cst_87 : f32 to vector<8x49xf32>
    %133 = arith.mulf %131, %132 : vector<8x49xf32>
    %134 = vector.broadcast %54 : vector<1x49xf32> to vector<8x49xf32>
    %135 = arith.addf %133, %134 : vector<8x49xf32>
    %cst_88 = arith.constant dense<0xFF800000> : vector<8xf32>
    %136 = vector.multi_reduction <maximumf>, %135, %cst_88 [1] : vector<8x49xf32> to vector<8xf32>
    %137 = vector.shape_cast %136 : vector<8xf32> to vector<8x1xf32>
    %138 = vector.broadcast %137 : vector<8x1xf32> to vector<8x49xf32>
    %139 = arith.subf %135, %138 : vector<8x49xf32>
    %140 = math.exp %139 : vector<8x49xf32>
    %cst_89 = arith.constant dense<0.000000e+00> : vector<8xf32>
    %141 = vector.multi_reduction <add>, %140, %cst_89 [1] : vector<8x49xf32> to vector<8xf32>
    %142 = vector.shape_cast %141 : vector<8xf32> to vector<8x1xf32>
    %143 = tpu.reciprocal %142 {approx = true} : vector<8x1xf32> -> vector<8x1xf32>
    %144 = vector.broadcast %143 : vector<8x1xf32> to vector<8x49xf32>
    %145 = arith.mulf %140, %144 : vector<8x49xf32>
    %146 = arith.truncf %145 : vector<8x49xf32> to vector<8x49xbf16>
    %147 = arith.truncf %128 : vector<49x16xf32> to vector<49x16xbf16>
    %cst_90 = arith.constant dense<0.000000e+00> : vector<8x16xf32>
    %148 = tpu.matmul %146, %147, %cst_90 {dimension_numbers = #tpu.dot_dimension_numbers<[1], [0], [0], [1], [0, 0, 1, 1], [], []>} : vector<8x49xbf16>, vector<49x16xbf16>, vector<8x16xf32> -> vector<8x16xf32>
    %c1_91 = arith.constant 1 : index
    %c0_92 = arith.constant 0 : index
    %c0_93 = arith.constant 0 : index
    %149 = vector.load %arg16[%c1_91, %c0_92, %c0_93] : memref<4x16x64xbf16, #tpu.memory_space<vmem>>, vector<1x16x64xbf16>
    %150 = vector.shape_cast %149 : vector<1x16x64xbf16> to vector<16x64xbf16>
    %151 = arith.truncf %148 : vector<8x16xf32> to vector<8x16xbf16>
    %cst_94 = arith.constant dense<0.000000e+00> : vector<8x64xf32>
    %152 = tpu.matmul %151, %150, %cst_94 {dimension_numbers = #tpu.dot_dimension_numbers<[1], [0], [0], [1], [0, 0, 1, 1], [], []>} : vector<8x16xbf16>, vector<16x64xbf16>, vector<8x64xf32> -> vector<8x64xf32>
    %153 = arith.addf %104, %152 : vector<8x64xf32>
    %c2_95 = arith.constant 2 : index
    %c0_96 = arith.constant 0 : index
    %c0_97 = arith.constant 0 : index
    %154 = vector.load %arg10[%c2_95, %c0_96, %c0_97] : memref<4x64x16xbf16, #tpu.memory_space<vmem>>, vector<1x64x16xbf16>
    %155 = vector.shape_cast %154 : vector<1x64x16xbf16> to vector<64x16xbf16>
    %156 = arith.truncf %27 : vector<8x64xf32> to vector<8x64xbf16>
    %cst_98 = arith.constant dense<0.000000e+00> : vector<8x16xf32>
    %157 = tpu.matmul %156, %155, %cst_98 {dimension_numbers = #tpu.dot_dimension_numbers<[1], [0], [0], [1], [0, 0, 1, 1], [], []>} : vector<8x64xbf16>, vector<64x16xbf16>, vector<8x16xf32> -> vector<8x16xf32>
    %c2_99 = arith.constant 2 : index
    %c0_100 = arith.constant 0 : index
    %c0_101 = arith.constant 0 : index
    %158 = vector.load %arg11[%c2_99, %c0_100, %c0_101] : memref<4x1x16xf32, #tpu.memory_space<vmem>>, vector<1x1x16xf32>
    %159 = vector.shape_cast %158 : vector<1x1x16xf32> to vector<1x16xf32>
    %160 = vector.broadcast %159 : vector<1x16xf32> to vector<8x16xf32>
    %161 = arith.addf %157, %160 : vector<8x16xf32>
    %c2_102 = arith.constant 2 : index
    %c0_103 = arith.constant 0 : index
    %c0_104 = arith.constant 0 : index
    %162 = vector.load %arg12[%c2_102, %c0_103, %c0_104] : memref<4x64x16xbf16, #tpu.memory_space<vmem>>, vector<1x64x16xbf16>
    %163 = vector.shape_cast %162 : vector<1x64x16xbf16> to vector<64x16xbf16>
    %164 = arith.truncf %48 : vector<49x64xf32> to vector<49x64xbf16>
    %cst_105 = arith.constant dense<0.000000e+00> : vector<49x16xf32>
    %165 = tpu.matmul %164, %163, %cst_105 {dimension_numbers = #tpu.dot_dimension_numbers<[1], [0], [0], [1], [0, 0, 1, 1], [], []>} : vector<49x64xbf16>, vector<64x16xbf16>, vector<49x16xf32> -> vector<49x16xf32>
    %c2_106 = arith.constant 2 : index
    %c0_107 = arith.constant 0 : index
    %c0_108 = arith.constant 0 : index
    %166 = vector.load %arg13[%c2_106, %c0_107, %c0_108] : memref<4x1x16xf32, #tpu.memory_space<vmem>>, vector<1x1x16xf32>
    %167 = vector.shape_cast %166 : vector<1x1x16xf32> to vector<1x16xf32>
    %168 = vector.broadcast %167 : vector<1x16xf32> to vector<49x16xf32>
    %169 = arith.addf %165, %168 : vector<49x16xf32>
    %c2_109 = arith.constant 2 : index
    %c0_110 = arith.constant 0 : index
    %c0_111 = arith.constant 0 : index
    %170 = vector.load %arg14[%c2_109, %c0_110, %c0_111] : memref<4x64x16xbf16, #tpu.memory_space<vmem>>, vector<1x64x16xbf16>
    %171 = vector.shape_cast %170 : vector<1x64x16xbf16> to vector<64x16xbf16>
    %172 = arith.truncf %48 : vector<49x64xf32> to vector<49x64xbf16>
    %cst_112 = arith.constant dense<0.000000e+00> : vector<49x16xf32>
    %173 = tpu.matmul %172, %171, %cst_112 {dimension_numbers = #tpu.dot_dimension_numbers<[1], [0], [0], [1], [0, 0, 1, 1], [], []>} : vector<49x64xbf16>, vector<64x16xbf16>, vector<49x16xf32> -> vector<49x16xf32>
    %c2_113 = arith.constant 2 : index
    %c0_114 = arith.constant 0 : index
    %c0_115 = arith.constant 0 : index
    %174 = vector.load %arg15[%c2_113, %c0_114, %c0_115] : memref<4x1x16xf32, #tpu.memory_space<vmem>>, vector<1x1x16xf32>
    %175 = vector.shape_cast %174 : vector<1x1x16xf32> to vector<1x16xf32>
    %176 = vector.broadcast %175 : vector<1x16xf32> to vector<49x16xf32>
    %177 = arith.addf %173, %176 : vector<49x16xf32>
    %178 = arith.truncf %161 : vector<8x16xf32> to vector<8x16xbf16>
    %179 = arith.truncf %169 : vector<49x16xf32> to vector<49x16xbf16>
    %cst_116 = arith.constant dense<0.000000e+00> : vector<8x49xf32>
    %180 = tpu.matmul %178, %179, %cst_116 {dimension_numbers = #tpu.dot_dimension_numbers<[1], [1], [0], [0], [0, 0, 1, 0], [], []>} : vector<8x16xbf16>, vector<49x16xbf16>, vector<8x49xf32> -> vector<8x49xf32>
    %cst_117 = arith.constant 2.500000e-01 : f32
    %181 = vector.broadcast %cst_117 : f32 to vector<8x49xf32>
    %182 = arith.mulf %180, %181 : vector<8x49xf32>
    %183 = vector.broadcast %54 : vector<1x49xf32> to vector<8x49xf32>
    %184 = arith.addf %182, %183 : vector<8x49xf32>
    %cst_118 = arith.constant dense<0xFF800000> : vector<8xf32>
    %185 = vector.multi_reduction <maximumf>, %184, %cst_118 [1] : vector<8x49xf32> to vector<8xf32>
    %186 = vector.shape_cast %185 : vector<8xf32> to vector<8x1xf32>
    %187 = vector.broadcast %186 : vector<8x1xf32> to vector<8x49xf32>
    %188 = arith.subf %184, %187 : vector<8x49xf32>
    %189 = math.exp %188 : vector<8x49xf32>
    %cst_119 = arith.constant dense<0.000000e+00> : vector<8xf32>
    %190 = vector.multi_reduction <add>, %189, %cst_119 [1] : vector<8x49xf32> to vector<8xf32>
    %191 = vector.shape_cast %190 : vector<8xf32> to vector<8x1xf32>
    %192 = tpu.reciprocal %191 {approx = true} : vector<8x1xf32> -> vector<8x1xf32>
    %193 = vector.broadcast %192 : vector<8x1xf32> to vector<8x49xf32>
    %194 = arith.mulf %189, %193 : vector<8x49xf32>
    %195 = arith.truncf %194 : vector<8x49xf32> to vector<8x49xbf16>
    %196 = arith.truncf %177 : vector<49x16xf32> to vector<49x16xbf16>
    %cst_120 = arith.constant dense<0.000000e+00> : vector<8x16xf32>
    %197 = tpu.matmul %195, %196, %cst_120 {dimension_numbers = #tpu.dot_dimension_numbers<[1], [0], [0], [1], [0, 0, 1, 1], [], []>} : vector<8x49xbf16>, vector<49x16xbf16>, vector<8x16xf32> -> vector<8x16xf32>
    %c2_121 = arith.constant 2 : index
    %c0_122 = arith.constant 0 : index
    %c0_123 = arith.constant 0 : index
    %198 = vector.load %arg16[%c2_121, %c0_122, %c0_123] : memref<4x16x64xbf16, #tpu.memory_space<vmem>>, vector<1x16x64xbf16>
    %199 = vector.shape_cast %198 : vector<1x16x64xbf16> to vector<16x64xbf16>
    %200 = arith.truncf %197 : vector<8x16xf32> to vector<8x16xbf16>
    %cst_124 = arith.constant dense<0.000000e+00> : vector<8x64xf32>
    %201 = tpu.matmul %200, %199, %cst_124 {dimension_numbers = #tpu.dot_dimension_numbers<[1], [0], [0], [1], [0, 0, 1, 1], [], []>} : vector<8x16xbf16>, vector<16x64xbf16>, vector<8x64xf32> -> vector<8x64xf32>
    %202 = arith.addf %153, %201 : vector<8x64xf32>
    %c3_125 = arith.constant 3 : index
    %c0_126 = arith.constant 0 : index
    %c0_127 = arith.constant 0 : index
    %203 = vector.load %arg10[%c3_125, %c0_126, %c0_127] : memref<4x64x16xbf16, #tpu.memory_space<vmem>>, vector<1x64x16xbf16>
    %204 = vector.shape_cast %203 : vector<1x64x16xbf16> to vector<64x16xbf16>
    %205 = arith.truncf %27 : vector<8x64xf32> to vector<8x64xbf16>
    %cst_128 = arith.constant dense<0.000000e+00> : vector<8x16xf32>
    %206 = tpu.matmul %205, %204, %cst_128 {dimension_numbers = #tpu.dot_dimension_numbers<[1], [0], [0], [1], [0, 0, 1, 1], [], []>} : vector<8x64xbf16>, vector<64x16xbf16>, vector<8x16xf32> -> vector<8x16xf32>
    %c3_129 = arith.constant 3 : index
    %c0_130 = arith.constant 0 : index
    %c0_131 = arith.constant 0 : index
    %207 = vector.load %arg11[%c3_129, %c0_130, %c0_131] : memref<4x1x16xf32, #tpu.memory_space<vmem>>, vector<1x1x16xf32>
    %208 = vector.shape_cast %207 : vector<1x1x16xf32> to vector<1x16xf32>
    %209 = vector.broadcast %208 : vector<1x16xf32> to vector<8x16xf32>
    %210 = arith.addf %206, %209 : vector<8x16xf32>
    %c3_132 = arith.constant 3 : index
    %c0_133 = arith.constant 0 : index
    %c0_134 = arith.constant 0 : index
    %211 = vector.load %arg12[%c3_132, %c0_133, %c0_134] : memref<4x64x16xbf16, #tpu.memory_space<vmem>>, vector<1x64x16xbf16>
    %212 = vector.shape_cast %211 : vector<1x64x16xbf16> to vector<64x16xbf16>
    %213 = arith.truncf %48 : vector<49x64xf32> to vector<49x64xbf16>
    %cst_135 = arith.constant dense<0.000000e+00> : vector<49x16xf32>
    %214 = tpu.matmul %213, %212, %cst_135 {dimension_numbers = #tpu.dot_dimension_numbers<[1], [0], [0], [1], [0, 0, 1, 1], [], []>} : vector<49x64xbf16>, vector<64x16xbf16>, vector<49x16xf32> -> vector<49x16xf32>
    %c3_136 = arith.constant 3 : index
    %c0_137 = arith.constant 0 : index
    %c0_138 = arith.constant 0 : index
    %215 = vector.load %arg13[%c3_136, %c0_137, %c0_138] : memref<4x1x16xf32, #tpu.memory_space<vmem>>, vector<1x1x16xf32>
    %216 = vector.shape_cast %215 : vector<1x1x16xf32> to vector<1x16xf32>
    %217 = vector.broadcast %216 : vector<1x16xf32> to vector<49x16xf32>
    %218 = arith.addf %214, %217 : vector<49x16xf32>
    %c3_139 = arith.constant 3 : index
    %c0_140 = arith.constant 0 : index
    %c0_141 = arith.constant 0 : index
    %219 = vector.load %arg14[%c3_139, %c0_140, %c0_141] : memref<4x64x16xbf16, #tpu.memory_space<vmem>>, vector<1x64x16xbf16>
    %220 = vector.shape_cast %219 : vector<1x64x16xbf16> to vector<64x16xbf16>
    %221 = arith.truncf %48 : vector<49x64xf32> to vector<49x64xbf16>
    %cst_142 = arith.constant dense<0.000000e+00> : vector<49x16xf32>
    %222 = tpu.matmul %221, %220, %cst_142 {dimension_numbers = #tpu.dot_dimension_numbers<[1], [0], [0], [1], [0, 0, 1, 1], [], []>} : vector<49x64xbf16>, vector<64x16xbf16>, vector<49x16xf32> -> vector<49x16xf32>
    %c3_143 = arith.constant 3 : index
    %c0_144 = arith.constant 0 : index
    %c0_145 = arith.constant 0 : index
    %223 = vector.load %arg15[%c3_143, %c0_144, %c0_145] : memref<4x1x16xf32, #tpu.memory_space<vmem>>, vector<1x1x16xf32>
    %224 = vector.shape_cast %223 : vector<1x1x16xf32> to vector<1x16xf32>
    %225 = vector.broadcast %224 : vector<1x16xf32> to vector<49x16xf32>
    %226 = arith.addf %222, %225 : vector<49x16xf32>
    %227 = arith.truncf %210 : vector<8x16xf32> to vector<8x16xbf16>
    %228 = arith.truncf %218 : vector<49x16xf32> to vector<49x16xbf16>
    %cst_146 = arith.constant dense<0.000000e+00> : vector<8x49xf32>
    %229 = tpu.matmul %227, %228, %cst_146 {dimension_numbers = #tpu.dot_dimension_numbers<[1], [1], [0], [0], [0, 0, 1, 0], [], []>} : vector<8x16xbf16>, vector<49x16xbf16>, vector<8x49xf32> -> vector<8x49xf32>
    %cst_147 = arith.constant 2.500000e-01 : f32
    %230 = vector.broadcast %cst_147 : f32 to vector<8x49xf32>
    %231 = arith.mulf %229, %230 : vector<8x49xf32>
    %232 = vector.broadcast %54 : vector<1x49xf32> to vector<8x49xf32>
    %233 = arith.addf %231, %232 : vector<8x49xf32>
    %cst_148 = arith.constant dense<0xFF800000> : vector<8xf32>
    %234 = vector.multi_reduction <maximumf>, %233, %cst_148 [1] : vector<8x49xf32> to vector<8xf32>
    %235 = vector.shape_cast %234 : vector<8xf32> to vector<8x1xf32>
    %236 = vector.broadcast %235 : vector<8x1xf32> to vector<8x49xf32>
    %237 = arith.subf %233, %236 : vector<8x49xf32>
    %238 = math.exp %237 : vector<8x49xf32>
    %cst_149 = arith.constant dense<0.000000e+00> : vector<8xf32>
    %239 = vector.multi_reduction <add>, %238, %cst_149 [1] : vector<8x49xf32> to vector<8xf32>
    %240 = vector.shape_cast %239 : vector<8xf32> to vector<8x1xf32>
    %241 = tpu.reciprocal %240 {approx = true} : vector<8x1xf32> -> vector<8x1xf32>
    %242 = vector.broadcast %241 : vector<8x1xf32> to vector<8x49xf32>
    %243 = arith.mulf %238, %242 : vector<8x49xf32>
    %244 = arith.truncf %243 : vector<8x49xf32> to vector<8x49xbf16>
    %245 = arith.truncf %226 : vector<49x16xf32> to vector<49x16xbf16>
    %cst_150 = arith.constant dense<0.000000e+00> : vector<8x16xf32>
    %246 = tpu.matmul %244, %245, %cst_150 {dimension_numbers = #tpu.dot_dimension_numbers<[1], [0], [0], [1], [0, 0, 1, 1], [], []>} : vector<8x49xbf16>, vector<49x16xbf16>, vector<8x16xf32> -> vector<8x16xf32>
    %c3_151 = arith.constant 3 : index
    %c0_152 = arith.constant 0 : index
    %c0_153 = arith.constant 0 : index
    %247 = vector.load %arg16[%c3_151, %c0_152, %c0_153] : memref<4x16x64xbf16, #tpu.memory_space<vmem>>, vector<1x16x64xbf16>
    %248 = vector.shape_cast %247 : vector<1x16x64xbf16> to vector<16x64xbf16>
    %249 = arith.truncf %246 : vector<8x16xf32> to vector<8x16xbf16>
    %cst_154 = arith.constant dense<0.000000e+00> : vector<8x64xf32>
    %250 = tpu.matmul %249, %248, %cst_154 {dimension_numbers = #tpu.dot_dimension_numbers<[1], [0], [0], [1], [0, 0, 1, 1], [], []>} : vector<8x16xbf16>, vector<16x64xbf16>, vector<8x64xf32> -> vector<8x64xf32>
    %251 = arith.addf %202, %250 : vector<8x64xf32>
    %c4 = arith.constant 4 : index
    %c0_155 = arith.constant 0 : index
    %c0_156 = arith.constant 0 : index
    %252 = vector.load %arg5[%c4, %c0_155, %c0_156] : memref<17x1x64xf32, #tpu.memory_space<vmem>>, vector<1x1x64xf32>
    %253 = vector.shape_cast %252 : vector<1x1x64xf32> to vector<1x64xf32>
    %254 = vector.broadcast %253 : vector<1x64xf32> to vector<8x64xf32>
    %255 = arith.addf %251, %254 : vector<8x64xf32>
    %256 = arith.addf %255, %27 : vector<8x64xf32>
    %c5 = arith.constant 5 : index
    %c0_157 = arith.constant 0 : index
    %c0_158 = arith.constant 0 : index
    %257 = vector.load %arg5[%c5, %c0_157, %c0_158] : memref<17x1x64xf32, #tpu.memory_space<vmem>>, vector<1x1x64xf32>
    %258 = vector.shape_cast %257 : vector<1x1x64xf32> to vector<1x64xf32>
    %c6 = arith.constant 6 : index
    %c0_159 = arith.constant 0 : index
    %c0_160 = arith.constant 0 : index
    %259 = vector.load %arg5[%c6, %c0_159, %c0_160] : memref<17x1x64xf32, #tpu.memory_space<vmem>>, vector<1x1x64xf32>
    %260 = vector.shape_cast %259 : vector<1x1x64xf32> to vector<1x64xf32>
    %cst_161 = arith.constant dense<0.000000e+00> : vector<8xf32>
    %261 = vector.multi_reduction <add>, %256, %cst_161 [1] : vector<8x64xf32> to vector<8xf32>
    %262 = vector.shape_cast %261 : vector<8xf32> to vector<8x1xf32>
    %cst_162 = arith.constant 6.400000e+01 : f32
    %263 = vector.broadcast %cst_162 : f32 to vector<8x1xf32>
    %264 = arith.divf %262, %263 : vector<8x1xf32>
    %265 = vector.broadcast %264 : vector<8x1xf32> to vector<8x64xf32>
    %266 = arith.subf %256, %265 : vector<8x64xf32>
    %267 = arith.mulf %266, %266 : vector<8x64xf32>
    %cst_163 = arith.constant dense<0.000000e+00> : vector<8xf32>
    %268 = vector.multi_reduction <add>, %267, %cst_163 [1] : vector<8x64xf32> to vector<8xf32>
    %269 = vector.shape_cast %268 : vector<8xf32> to vector<8x1xf32>
    %cst_164 = arith.constant 6.400000e+01 : f32
    %270 = vector.broadcast %cst_164 : f32 to vector<8x1xf32>
    %271 = arith.divf %269, %270 : vector<8x1xf32>
    %272 = vector.broadcast %264 : vector<8x1xf32> to vector<8x64xf32>
    %273 = arith.subf %256, %272 : vector<8x64xf32>
    %cst_165 = arith.constant 9.99999996E-13 : f32
    %274 = vector.broadcast %cst_165 : f32 to vector<8x1xf32>
    %275 = arith.addf %271, %274 : vector<8x1xf32>
    %276 = math.rsqrt %275 : vector<8x1xf32>
    %277 = vector.broadcast %276 : vector<8x1xf32> to vector<8x64xf32>
    %278 = arith.mulf %273, %277 : vector<8x64xf32>
    %279 = vector.broadcast %258 : vector<1x64xf32> to vector<8x64xf32>
    %280 = arith.mulf %278, %279 : vector<8x64xf32>
    %281 = vector.broadcast %260 : vector<1x64xf32> to vector<8x64xf32>
    %282 = arith.addf %280, %281 : vector<8x64xf32>
    %c0_166 = arith.constant 0 : index
    %c0_167 = arith.constant 0 : index
    %283 = vector.load %arg20[%c0_166, %c0_167] : memref<64x256xbf16, #tpu.memory_space<vmem>>, vector<64x256xbf16>
    %284 = arith.truncf %282 : vector<8x64xf32> to vector<8x64xbf16>
    %cst_168 = arith.constant dense<0.000000e+00> : vector<8x256xf32>
    %285 = tpu.matmul %284, %283, %cst_168 {dimension_numbers = #tpu.dot_dimension_numbers<[1], [0], [0], [1], [0, 0, 1, 1], [], []>} : vector<8x64xbf16>, vector<64x256xbf16>, vector<8x256xf32> -> vector<8x256xf32>
    %c0_169 = arith.constant 0 : index
    %c0_170 = arith.constant 0 : index
    %286 = vector.load %arg21[%c0_169, %c0_170] : memref<1x256xf32, #tpu.memory_space<vmem>>, vector<1x256xf32>
    %287 = vector.broadcast %286 : vector<1x256xf32> to vector<8x256xf32>
    %288 = arith.addf %285, %287 : vector<8x256xf32>
    %cst_171 = arith.constant 5.000000e-01 : f32
    %289 = vector.broadcast %cst_171 : f32 to vector<8x256xf32>
    %290 = arith.mulf %289, %288 : vector<8x256xf32>
    %cst_172 = arith.constant 4.471500e-02 : f32
    %291 = vector.broadcast %cst_172 : f32 to vector<8x256xf32>
    %292 = arith.mulf %291, %288 : vector<8x256xf32>
    %293 = arith.mulf %292, %288 : vector<8x256xf32>
    %294 = arith.mulf %293, %288 : vector<8x256xf32>
    %295 = arith.addf %288, %294 : vector<8x256xf32>
    %cst_173 = arith.constant 0.797884583 : f32
    %296 = vector.broadcast %cst_173 : f32 to vector<8x256xf32>
    %297 = arith.mulf %296, %295 : vector<8x256xf32>
    %298 = math.tanh %297 : vector<8x256xf32>
    %cst_174 = arith.constant 1.000000e+00 : f32
    %299 = vector.broadcast %cst_174 : f32 to vector<8x256xf32>
    %300 = arith.addf %299, %298 : vector<8x256xf32>
    %301 = arith.mulf %290, %300 : vector<8x256xf32>
    %c0_175 = arith.constant 0 : index
    %c0_176 = arith.constant 0 : index
    %302 = vector.load %arg22[%c0_175, %c0_176] : memref<256x64xbf16, #tpu.memory_space<vmem>>, vector<256x64xbf16>
    %303 = arith.truncf %301 : vector<8x256xf32> to vector<8x256xbf16>
    %cst_177 = arith.constant dense<0.000000e+00> : vector<8x64xf32>
    %304 = tpu.matmul %303, %302, %cst_177 {dimension_numbers = #tpu.dot_dimension_numbers<[1], [0], [0], [1], [0, 0, 1, 1], [], []>} : vector<8x256xbf16>, vector<256x64xbf16>, vector<8x64xf32> -> vector<8x64xf32>
    %c7 = arith.constant 7 : index
    %c0_178 = arith.constant 0 : index
    %c0_179 = arith.constant 0 : index
    %305 = vector.load %arg5[%c7, %c0_178, %c0_179] : memref<17x1x64xf32, #tpu.memory_space<vmem>>, vector<1x1x64xf32>
    %306 = vector.shape_cast %305 : vector<1x1x64xf32> to vector<1x64xf32>
    %307 = vector.broadcast %306 : vector<1x64xf32> to vector<8x64xf32>
    %308 = arith.addf %304, %307 : vector<8x64xf32>
    %309 = arith.addf %308, %282 : vector<8x64xf32>
    %c8 = arith.constant 8 : index
    %c0_180 = arith.constant 0 : index
    %c0_181 = arith.constant 0 : index
    %310 = vector.load %arg5[%c8, %c0_180, %c0_181] : memref<17x1x64xf32, #tpu.memory_space<vmem>>, vector<1x1x64xf32>
    %311 = vector.shape_cast %310 : vector<1x1x64xf32> to vector<1x64xf32>
    %c9 = arith.constant 9 : index
    %c0_182 = arith.constant 0 : index
    %c0_183 = arith.constant 0 : index
    %312 = vector.load %arg5[%c9, %c0_182, %c0_183] : memref<17x1x64xf32, #tpu.memory_space<vmem>>, vector<1x1x64xf32>
    %313 = vector.shape_cast %312 : vector<1x1x64xf32> to vector<1x64xf32>
    %cst_184 = arith.constant dense<0.000000e+00> : vector<8xf32>
    %314 = vector.multi_reduction <add>, %309, %cst_184 [1] : vector<8x64xf32> to vector<8xf32>
    %315 = vector.shape_cast %314 : vector<8xf32> to vector<8x1xf32>
    %cst_185 = arith.constant 6.400000e+01 : f32
    %316 = vector.broadcast %cst_185 : f32 to vector<8x1xf32>
    %317 = arith.divf %315, %316 : vector<8x1xf32>
    %318 = vector.broadcast %317 : vector<8x1xf32> to vector<8x64xf32>
    %319 = arith.subf %309, %318 : vector<8x64xf32>
    %320 = arith.mulf %319, %319 : vector<8x64xf32>
    %cst_186 = arith.constant dense<0.000000e+00> : vector<8xf32>
    %321 = vector.multi_reduction <add>, %320, %cst_186 [1] : vector<8x64xf32> to vector<8xf32>
    %322 = vector.shape_cast %321 : vector<8xf32> to vector<8x1xf32>
    %cst_187 = arith.constant 6.400000e+01 : f32
    %323 = vector.broadcast %cst_187 : f32 to vector<8x1xf32>
    %324 = arith.divf %322, %323 : vector<8x1xf32>
    %325 = vector.broadcast %317 : vector<8x1xf32> to vector<8x64xf32>
    %326 = arith.subf %309, %325 : vector<8x64xf32>
    %cst_188 = arith.constant 9.99999996E-13 : f32
    %327 = vector.broadcast %cst_188 : f32 to vector<8x1xf32>
    %328 = arith.addf %324, %327 : vector<8x1xf32>
    %329 = math.rsqrt %328 : vector<8x1xf32>
    %330 = vector.broadcast %329 : vector<8x1xf32> to vector<8x64xf32>
    %331 = arith.mulf %326, %330 : vector<8x64xf32>
    %332 = vector.broadcast %311 : vector<1x64xf32> to vector<8x64xf32>
    %333 = arith.mulf %331, %332 : vector<8x64xf32>
    %334 = vector.broadcast %313 : vector<1x64xf32> to vector<8x64xf32>
    %335 = arith.addf %333, %334 : vector<8x64xf32>
    %c0_189 = arith.constant 0 : index
    %c0_190 = arith.constant 0 : index
    %336 = vector.load %arg17[%c0_189, %c0_190] : memref<64x64xbf16, #tpu.memory_space<vmem>>, vector<64x64xbf16>
    %337 = arith.truncf %42 : vector<49x64xf32> to vector<49x64xbf16>
    %cst_191 = arith.constant dense<0.000000e+00> : vector<49x64xf32>
    %338 = tpu.matmul %337, %336, %cst_191 {dimension_numbers = #tpu.dot_dimension_numbers<[1], [0], [0], [1], [0, 0, 1, 1], [], []>} : vector<49x64xbf16>, vector<64x64xbf16>, vector<49x64xf32> -> vector<49x64xf32>
    %c10 = arith.constant 10 : index
    %c0_192 = arith.constant 0 : index
    %c0_193 = arith.constant 0 : index
    %339 = vector.load %arg5[%c10, %c0_192, %c0_193] : memref<17x1x64xf32, #tpu.memory_space<vmem>>, vector<1x1x64xf32>
    %340 = vector.shape_cast %339 : vector<1x1x64xf32> to vector<1x64xf32>
    %341 = vector.broadcast %340 : vector<1x64xf32> to vector<49x64xf32>
    %342 = arith.addf %338, %341 : vector<49x64xf32>
    %c0_194 = arith.constant 0 : index
    %c0_195 = arith.constant 0 : index
    %343 = vector.load %arg18[%c0_194, %c0_195] : memref<64x64xbf16, #tpu.memory_space<vmem>>, vector<64x64xbf16>
    %344 = arith.truncf %27 : vector<8x64xf32> to vector<8x64xbf16>
    %cst_196 = arith.constant dense<0.000000e+00> : vector<8x64xf32>
    %345 = tpu.matmul %344, %343, %cst_196 {dimension_numbers = #tpu.dot_dimension_numbers<[1], [0], [0], [1], [0, 0, 1, 1], [], []>} : vector<8x64xbf16>, vector<64x64xbf16>, vector<8x64xf32> -> vector<8x64xf32>
    %c11 = arith.constant 11 : index
    %c0_197 = arith.constant 0 : index
    %c0_198 = arith.constant 0 : index
    %346 = vector.load %arg5[%c11, %c0_197, %c0_198] : memref<17x1x64xf32, #tpu.memory_space<vmem>>, vector<1x1x64xf32>
    %347 = vector.shape_cast %346 : vector<1x1x64xf32> to vector<1x64xf32>
    %348 = vector.broadcast %347 : vector<1x64xf32> to vector<8x64xf32>
    %349 = arith.addf %345, %348 : vector<8x64xf32>
    %c0_199 = arith.constant 0 : index
    %c0_200 = arith.constant 0 : index
    %350 = vector.load %arg19[%c0_199, %c0_200] : memref<64x64xbf16, #tpu.memory_space<vmem>>, vector<64x64xbf16>
    %351 = arith.truncf %27 : vector<8x64xf32> to vector<8x64xbf16>
    %cst_201 = arith.constant dense<0.000000e+00> : vector<8x64xf32>
    %352 = tpu.matmul %351, %350, %cst_201 {dimension_numbers = #tpu.dot_dimension_numbers<[1], [0], [0], [1], [0, 0, 1, 1], [], []>} : vector<8x64xbf16>, vector<64x64xbf16>, vector<8x64xf32> -> vector<8x64xf32>
    %c12 = arith.constant 12 : index
    %c0_202 = arith.constant 0 : index
    %c0_203 = arith.constant 0 : index
    %353 = vector.load %arg5[%c12, %c0_202, %c0_203] : memref<17x1x64xf32, #tpu.memory_space<vmem>>, vector<1x1x64xf32>
    %354 = vector.shape_cast %353 : vector<1x1x64xf32> to vector<1x64xf32>
    %355 = vector.broadcast %354 : vector<1x64xf32> to vector<8x64xf32>
    %356 = arith.addf %352, %355 : vector<8x64xf32>
    %357 = arith.truncf %342 : vector<49x64xf32> to vector<49x64xbf16>
    %358 = arith.truncf %349 : vector<8x64xf32> to vector<8x64xbf16>
    %cst_204 = arith.constant dense<0.000000e+00> : vector<49x8xf32>
    %359 = tpu.matmul %357, %358, %cst_204 {dimension_numbers = #tpu.dot_dimension_numbers<[1], [1], [0], [0], [0, 0, 1, 0], [], []>} : vector<49x64xbf16>, vector<8x64xbf16>, vector<49x8xf32> -> vector<49x8xf32>
    %cst_205 = arith.constant 1.562500e-02 : f32
    %360 = vector.broadcast %cst_205 : f32 to vector<49x8xf32>
    %361 = arith.mulf %359, %360 : vector<49x8xf32>
    %cst_206 = arith.constant dense<0xFF800000> : vector<49xf32>
    %362 = vector.multi_reduction <maximumf>, %361, %cst_206 [1] : vector<49x8xf32> to vector<49xf32>
    %363 = vector.shape_cast %362 : vector<49xf32> to vector<49x1xf32>
    %364 = vector.broadcast %363 : vector<49x1xf32> to vector<49x8xf32>
    %365 = arith.subf %361, %364 : vector<49x8xf32>
    %366 = math.exp %365 : vector<49x8xf32>
    %cst_207 = arith.constant dense<0.000000e+00> : vector<49xf32>
    %367 = vector.multi_reduction <add>, %366, %cst_207 [1] : vector<49x8xf32> to vector<49xf32>
    %368 = vector.shape_cast %367 : vector<49xf32> to vector<49x1xf32>
    %369 = tpu.reciprocal %368 {approx = true} : vector<49x1xf32> -> vector<49x1xf32>
    %370 = vector.broadcast %369 : vector<49x1xf32> to vector<49x8xf32>
    %371 = arith.mulf %366, %370 : vector<49x8xf32>
    %372 = arith.truncf %371 : vector<49x8xf32> to vector<49x8xbf16>
    %373 = arith.truncf %356 : vector<8x64xf32> to vector<8x64xbf16>
    %cst_208 = arith.constant dense<0.000000e+00> : vector<49x64xf32>
    %374 = tpu.matmul %372, %373, %cst_208 {dimension_numbers = #tpu.dot_dimension_numbers<[1], [0], [0], [1], [0, 0, 1, 1], [], []>} : vector<49x8xbf16>, vector<8x64xbf16>, vector<49x64xf32> -> vector<49x64xf32>
    %375 = math.tanh %374 : vector<49x64xf32>
    %cst_209 = arith.constant dense<0.000000e+00> : vector<64xf32>
    %376 = vector.multi_reduction <add>, %375, %cst_209 [0] : vector<49x64xf32> to vector<64xf32>
    %377 = vector.shape_cast %376 : vector<64xf32> to vector<1x64xf32>
    %cst_210 = arith.constant dense<0.000000e+00> : vector<64xf32>
    %378 = vector.multi_reduction <add>, %42, %cst_210 [0] : vector<49x64xf32> to vector<64xf32>
    %379 = vector.shape_cast %378 : vector<64xf32> to vector<1x64xf32>
    %380 = arith.addf %377, %379 : vector<1x64xf32>
    %c0_211 = arith.constant 0 : index
    %c0_212 = arith.constant 0 : index
    %c0_213 = arith.constant 0 : index
    %381 = vector.load %arg4[%c0_211, %c0_212, %c0_213] : memref<1x1x1xf32, #tpu.memory_space<vmem>>, vector<1x1x1xf32>
    %382 = vector.shape_cast %381 : vector<1x1x1xf32> to vector<1x1xf32>
    %383 = vector.broadcast %382 : vector<1x1xf32> to vector<1x64xf32>
    %384 = arith.mulf %380, %383 : vector<1x64xf32>
    %c13 = arith.constant 13 : index
    %c0_214 = arith.constant 0 : index
    %c0_215 = arith.constant 0 : index
    %385 = vector.load %arg5[%c13, %c0_214, %c0_215] : memref<17x1x64xf32, #tpu.memory_space<vmem>>, vector<1x1x64xf32>
    %386 = vector.shape_cast %385 : vector<1x1x64xf32> to vector<1x64xf32>
    %c14 = arith.constant 14 : index
    %c0_216 = arith.constant 0 : index
    %c0_217 = arith.constant 0 : index
    %387 = vector.load %arg5[%c14, %c0_216, %c0_217] : memref<17x1x64xf32, #tpu.memory_space<vmem>>, vector<1x1x64xf32>
    %388 = vector.shape_cast %387 : vector<1x1x64xf32> to vector<1x64xf32>
    %cst_218 = arith.constant dense<0.000000e+00> : vector<1xf32>
    %389 = vector.multi_reduction <add>, %384, %cst_218 [1] : vector<1x64xf32> to vector<1xf32>
    %390 = vector.shape_cast %389 : vector<1xf32> to vector<1x1xf32>
    %cst_219 = arith.constant 6.400000e+01 : f32
    %391 = vector.broadcast %cst_219 : f32 to vector<1x1xf32>
    %392 = arith.divf %390, %391 : vector<1x1xf32>
    %393 = vector.broadcast %392 : vector<1x1xf32> to vector<1x64xf32>
    %394 = arith.subf %384, %393 : vector<1x64xf32>
    %395 = arith.mulf %394, %394 : vector<1x64xf32>
    %cst_220 = arith.constant dense<0.000000e+00> : vector<1xf32>
    %396 = vector.multi_reduction <add>, %395, %cst_220 [1] : vector<1x64xf32> to vector<1xf32>
    %397 = vector.shape_cast %396 : vector<1xf32> to vector<1x1xf32>
    %cst_221 = arith.constant 6.400000e+01 : f32
    %398 = vector.broadcast %cst_221 : f32 to vector<1x1xf32>
    %399 = arith.divf %397, %398 : vector<1x1xf32>
    %400 = vector.broadcast %392 : vector<1x1xf32> to vector<1x64xf32>
    %401 = arith.subf %384, %400 : vector<1x64xf32>
    %cst_222 = arith.constant 9.99999974E-6 : f32
    %402 = vector.broadcast %cst_222 : f32 to vector<1x1xf32>
    %403 = arith.addf %399, %402 : vector<1x1xf32>
    %404 = math.rsqrt %403 : vector<1x1xf32>
    %405 = vector.broadcast %404 : vector<1x1xf32> to vector<1x64xf32>
    %406 = arith.mulf %401, %405 : vector<1x64xf32>
    %407 = arith.mulf %406, %386 : vector<1x64xf32>
    %408 = arith.addf %407, %388 : vector<1x64xf32>
    %409 = vector.shape_cast %408 : vector<1x64xf32> to vector<1x64xf32>
    %410 = vector.broadcast %409 : vector<1x64xf32> to vector<8x64xf32>
    %411 = tpu.iota {dimensions = array<i32: 0>} : vector<8x1xi32>
    %cst_223 = arith.constant 0.000000e+00 : f32
    %412 = vector.broadcast %cst_223 : f32 to vector<8x192xf32>
    %c0_224 = arith.constant 0 : index
    %c0_225 = arith.constant 0 : index
    %c0_226 = arith.constant 0 : index
    %413 = vector.load %arg23[%c0_224, %c0_225, %c0_226] : memref<8x64x192xbf16, #tpu.memory_space<vmem>>, vector<1x64x192xbf16>
    %414 = vector.shape_cast %413 : vector<1x64x192xbf16> to vector<64x192xbf16>
    %415 = arith.truncf %410 : vector<8x64xf32> to vector<8x64xbf16>
    %cst_227 = arith.constant dense<0.000000e+00> : vector<8x192xf32>
    %416 = tpu.matmul %415, %414, %cst_227 {dimension_numbers = #tpu.dot_dimension_numbers<[1], [0], [0], [1], [0, 0, 1, 1], [], []>} : vector<8x64xbf16>, vector<64x192xbf16>, vector<8x192xf32> -> vector<8x192xf32>
    %c0_228 = arith.constant 0 : index
    %c0_229 = arith.constant 0 : index
    %c0_230 = arith.constant 0 : index
    %417 = vector.load %arg24[%c0_228, %c0_229, %c0_230] : memref<8x1x192xf32, #tpu.memory_space<vmem>>, vector<1x1x192xf32>
    %418 = vector.shape_cast %417 : vector<1x1x192xf32> to vector<1x192xf32>
    %419 = vector.broadcast %418 : vector<1x192xf32> to vector<8x192xf32>
    %420 = arith.addf %416, %419 : vector<8x192xf32>
    %421 = math.tanh %420 : vector<8x192xf32>
    %c0_i32 = arith.constant 0 : i32
    %422 = vector.broadcast %c0_i32 : i32 to vector<8x1xi32>
    %423 = arith.cmpi eq, %411, %422 : vector<8x1xi32>
    %cst_231 = arith.constant 0.000000e+00 : f32
    %424 = vector.shape_cast %423 : vector<8x1xi1> to vector<8x1xi1>
    %425 = vector.broadcast %424 : vector<8x1xi1> to vector<8x192xi1>
    %426 = vector.broadcast %cst_231 : f32 to vector<8x192xf32>
    %427 = arith.select %425, %421, %426 : vector<8x192xi1>, vector<8x192xf32>
    %428 = arith.addf %412, %427 : vector<8x192xf32>
    %c1_232 = arith.constant 1 : index
    %c0_233 = arith.constant 0 : index
    %c0_234 = arith.constant 0 : index
    %429 = vector.load %arg23[%c1_232, %c0_233, %c0_234] : memref<8x64x192xbf16, #tpu.memory_space<vmem>>, vector<1x64x192xbf16>
    %430 = vector.shape_cast %429 : vector<1x64x192xbf16> to vector<64x192xbf16>
    %431 = arith.truncf %410 : vector<8x64xf32> to vector<8x64xbf16>
    %cst_235 = arith.constant dense<0.000000e+00> : vector<8x192xf32>
    %432 = tpu.matmul %431, %430, %cst_235 {dimension_numbers = #tpu.dot_dimension_numbers<[1], [0], [0], [1], [0, 0, 1, 1], [], []>} : vector<8x64xbf16>, vector<64x192xbf16>, vector<8x192xf32> -> vector<8x192xf32>
    %c1_236 = arith.constant 1 : index
    %c0_237 = arith.constant 0 : index
    %c0_238 = arith.constant 0 : index
    %433 = vector.load %arg24[%c1_236, %c0_237, %c0_238] : memref<8x1x192xf32, #tpu.memory_space<vmem>>, vector<1x1x192xf32>
    %434 = vector.shape_cast %433 : vector<1x1x192xf32> to vector<1x192xf32>
    %435 = vector.broadcast %434 : vector<1x192xf32> to vector<8x192xf32>
    %436 = arith.addf %432, %435 : vector<8x192xf32>
    %437 = math.tanh %436 : vector<8x192xf32>
    %c1_i32 = arith.constant 1 : i32
    %438 = vector.broadcast %c1_i32 : i32 to vector<8x1xi32>
    %439 = arith.cmpi eq, %411, %438 : vector<8x1xi32>
    %cst_239 = arith.constant 0.000000e+00 : f32
    %440 = vector.shape_cast %439 : vector<8x1xi1> to vector<8x1xi1>
    %441 = vector.broadcast %440 : vector<8x1xi1> to vector<8x192xi1>
    %442 = vector.broadcast %cst_239 : f32 to vector<8x192xf32>
    %443 = arith.select %441, %437, %442 : vector<8x192xi1>, vector<8x192xf32>
    %444 = arith.addf %428, %443 : vector<8x192xf32>
    %c2_240 = arith.constant 2 : index
    %c0_241 = arith.constant 0 : index
    %c0_242 = arith.constant 0 : index
    %445 = vector.load %arg23[%c2_240, %c0_241, %c0_242] : memref<8x64x192xbf16, #tpu.memory_space<vmem>>, vector<1x64x192xbf16>
    %446 = vector.shape_cast %445 : vector<1x64x192xbf16> to vector<64x192xbf16>
    %447 = arith.truncf %410 : vector<8x64xf32> to vector<8x64xbf16>
    %cst_243 = arith.constant dense<0.000000e+00> : vector<8x192xf32>
    %448 = tpu.matmul %447, %446, %cst_243 {dimension_numbers = #tpu.dot_dimension_numbers<[1], [0], [0], [1], [0, 0, 1, 1], [], []>} : vector<8x64xbf16>, vector<64x192xbf16>, vector<8x192xf32> -> vector<8x192xf32>
    %c2_244 = arith.constant 2 : index
    %c0_245 = arith.constant 0 : index
    %c0_246 = arith.constant 0 : index
    %449 = vector.load %arg24[%c2_244, %c0_245, %c0_246] : memref<8x1x192xf32, #tpu.memory_space<vmem>>, vector<1x1x192xf32>
    %450 = vector.shape_cast %449 : vector<1x1x192xf32> to vector<1x192xf32>
    %451 = vector.broadcast %450 : vector<1x192xf32> to vector<8x192xf32>
    %452 = arith.addf %448, %451 : vector<8x192xf32>
    %453 = math.tanh %452 : vector<8x192xf32>
    %c2_i32 = arith.constant 2 : i32
    %454 = vector.broadcast %c2_i32 : i32 to vector<8x1xi32>
    %455 = arith.cmpi eq, %411, %454 : vector<8x1xi32>
    %cst_247 = arith.constant 0.000000e+00 : f32
    %456 = vector.shape_cast %455 : vector<8x1xi1> to vector<8x1xi1>
    %457 = vector.broadcast %456 : vector<8x1xi1> to vector<8x192xi1>
    %458 = vector.broadcast %cst_247 : f32 to vector<8x192xf32>
    %459 = arith.select %457, %453, %458 : vector<8x192xi1>, vector<8x192xf32>
    %460 = arith.addf %444, %459 : vector<8x192xf32>
    %c3_248 = arith.constant 3 : index
    %c0_249 = arith.constant 0 : index
    %c0_250 = arith.constant 0 : index
    %461 = vector.load %arg23[%c3_248, %c0_249, %c0_250] : memref<8x64x192xbf16, #tpu.memory_space<vmem>>, vector<1x64x192xbf16>
    %462 = vector.shape_cast %461 : vector<1x64x192xbf16> to vector<64x192xbf16>
    %463 = arith.truncf %410 : vector<8x64xf32> to vector<8x64xbf16>
    %cst_251 = arith.constant dense<0.000000e+00> : vector<8x192xf32>
    %464 = tpu.matmul %463, %462, %cst_251 {dimension_numbers = #tpu.dot_dimension_numbers<[1], [0], [0], [1], [0, 0, 1, 1], [], []>} : vector<8x64xbf16>, vector<64x192xbf16>, vector<8x192xf32> -> vector<8x192xf32>
    %c3_252 = arith.constant 3 : index
    %c0_253 = arith.constant 0 : index
    %c0_254 = arith.constant 0 : index
    %465 = vector.load %arg24[%c3_252, %c0_253, %c0_254] : memref<8x1x192xf32, #tpu.memory_space<vmem>>, vector<1x1x192xf32>
    %466 = vector.shape_cast %465 : vector<1x1x192xf32> to vector<1x192xf32>
    %467 = vector.broadcast %466 : vector<1x192xf32> to vector<8x192xf32>
    %468 = arith.addf %464, %467 : vector<8x192xf32>
    %469 = math.tanh %468 : vector<8x192xf32>
    %c3_i32 = arith.constant 3 : i32
    %470 = vector.broadcast %c3_i32 : i32 to vector<8x1xi32>
    %471 = arith.cmpi eq, %411, %470 : vector<8x1xi32>
    %cst_255 = arith.constant 0.000000e+00 : f32
    %472 = vector.shape_cast %471 : vector<8x1xi1> to vector<8x1xi1>
    %473 = vector.broadcast %472 : vector<8x1xi1> to vector<8x192xi1>
    %474 = vector.broadcast %cst_255 : f32 to vector<8x192xf32>
    %475 = arith.select %473, %469, %474 : vector<8x192xi1>, vector<8x192xf32>
    %476 = arith.addf %460, %475 : vector<8x192xf32>
    %c4_256 = arith.constant 4 : index
    %c0_257 = arith.constant 0 : index
    %c0_258 = arith.constant 0 : index
    %477 = vector.load %arg23[%c4_256, %c0_257, %c0_258] : memref<8x64x192xbf16, #tpu.memory_space<vmem>>, vector<1x64x192xbf16>
    %478 = vector.shape_cast %477 : vector<1x64x192xbf16> to vector<64x192xbf16>
    %479 = arith.truncf %410 : vector<8x64xf32> to vector<8x64xbf16>
    %cst_259 = arith.constant dense<0.000000e+00> : vector<8x192xf32>
    %480 = tpu.matmul %479, %478, %cst_259 {dimension_numbers = #tpu.dot_dimension_numbers<[1], [0], [0], [1], [0, 0, 1, 1], [], []>} : vector<8x64xbf16>, vector<64x192xbf16>, vector<8x192xf32> -> vector<8x192xf32>
    %c4_260 = arith.constant 4 : index
    %c0_261 = arith.constant 0 : index
    %c0_262 = arith.constant 0 : index
    %481 = vector.load %arg24[%c4_260, %c0_261, %c0_262] : memref<8x1x192xf32, #tpu.memory_space<vmem>>, vector<1x1x192xf32>
    %482 = vector.shape_cast %481 : vector<1x1x192xf32> to vector<1x192xf32>
    %483 = vector.broadcast %482 : vector<1x192xf32> to vector<8x192xf32>
    %484 = arith.addf %480, %483 : vector<8x192xf32>
    %485 = math.tanh %484 : vector<8x192xf32>
    %c4_i32 = arith.constant 4 : i32
    %486 = vector.broadcast %c4_i32 : i32 to vector<8x1xi32>
    %487 = arith.cmpi eq, %411, %486 : vector<8x1xi32>
    %cst_263 = arith.constant 0.000000e+00 : f32
    %488 = vector.shape_cast %487 : vector<8x1xi1> to vector<8x1xi1>
    %489 = vector.broadcast %488 : vector<8x1xi1> to vector<8x192xi1>
    %490 = vector.broadcast %cst_263 : f32 to vector<8x192xf32>
    %491 = arith.select %489, %485, %490 : vector<8x192xi1>, vector<8x192xf32>
    %492 = arith.addf %476, %491 : vector<8x192xf32>
    %c5_264 = arith.constant 5 : index
    %c0_265 = arith.constant 0 : index
    %c0_266 = arith.constant 0 : index
    %493 = vector.load %arg23[%c5_264, %c0_265, %c0_266] : memref<8x64x192xbf16, #tpu.memory_space<vmem>>, vector<1x64x192xbf16>
    %494 = vector.shape_cast %493 : vector<1x64x192xbf16> to vector<64x192xbf16>
    %495 = arith.truncf %410 : vector<8x64xf32> to vector<8x64xbf16>
    %cst_267 = arith.constant dense<0.000000e+00> : vector<8x192xf32>
    %496 = tpu.matmul %495, %494, %cst_267 {dimension_numbers = #tpu.dot_dimension_numbers<[1], [0], [0], [1], [0, 0, 1, 1], [], []>} : vector<8x64xbf16>, vector<64x192xbf16>, vector<8x192xf32> -> vector<8x192xf32>
    %c5_268 = arith.constant 5 : index
    %c0_269 = arith.constant 0 : index
    %c0_270 = arith.constant 0 : index
    %497 = vector.load %arg24[%c5_268, %c0_269, %c0_270] : memref<8x1x192xf32, #tpu.memory_space<vmem>>, vector<1x1x192xf32>
    %498 = vector.shape_cast %497 : vector<1x1x192xf32> to vector<1x192xf32>
    %499 = vector.broadcast %498 : vector<1x192xf32> to vector<8x192xf32>
    %500 = arith.addf %496, %499 : vector<8x192xf32>
    %501 = math.tanh %500 : vector<8x192xf32>
    %c5_i32 = arith.constant 5 : i32
    %502 = vector.broadcast %c5_i32 : i32 to vector<8x1xi32>
    %503 = arith.cmpi eq, %411, %502 : vector<8x1xi32>
    %cst_271 = arith.constant 0.000000e+00 : f32
    %504 = vector.shape_cast %503 : vector<8x1xi1> to vector<8x1xi1>
    %505 = vector.broadcast %504 : vector<8x1xi1> to vector<8x192xi1>
    %506 = vector.broadcast %cst_271 : f32 to vector<8x192xf32>
    %507 = arith.select %505, %501, %506 : vector<8x192xi1>, vector<8x192xf32>
    %508 = arith.addf %492, %507 : vector<8x192xf32>
    %c6_272 = arith.constant 6 : index
    %c0_273 = arith.constant 0 : index
    %c0_274 = arith.constant 0 : index
    %509 = vector.load %arg23[%c6_272, %c0_273, %c0_274] : memref<8x64x192xbf16, #tpu.memory_space<vmem>>, vector<1x64x192xbf16>
    %510 = vector.shape_cast %509 : vector<1x64x192xbf16> to vector<64x192xbf16>
    %511 = arith.truncf %410 : vector<8x64xf32> to vector<8x64xbf16>
    %cst_275 = arith.constant dense<0.000000e+00> : vector<8x192xf32>
    %512 = tpu.matmul %511, %510, %cst_275 {dimension_numbers = #tpu.dot_dimension_numbers<[1], [0], [0], [1], [0, 0, 1, 1], [], []>} : vector<8x64xbf16>, vector<64x192xbf16>, vector<8x192xf32> -> vector<8x192xf32>
    %c6_276 = arith.constant 6 : index
    %c0_277 = arith.constant 0 : index
    %c0_278 = arith.constant 0 : index
    %513 = vector.load %arg24[%c6_276, %c0_277, %c0_278] : memref<8x1x192xf32, #tpu.memory_space<vmem>>, vector<1x1x192xf32>
    %514 = vector.shape_cast %513 : vector<1x1x192xf32> to vector<1x192xf32>
    %515 = vector.broadcast %514 : vector<1x192xf32> to vector<8x192xf32>
    %516 = arith.addf %512, %515 : vector<8x192xf32>
    %517 = math.tanh %516 : vector<8x192xf32>
    %c6_i32 = arith.constant 6 : i32
    %518 = vector.broadcast %c6_i32 : i32 to vector<8x1xi32>
    %519 = arith.cmpi eq, %411, %518 : vector<8x1xi32>
    %cst_279 = arith.constant 0.000000e+00 : f32
    %520 = vector.shape_cast %519 : vector<8x1xi1> to vector<8x1xi1>
    %521 = vector.broadcast %520 : vector<8x1xi1> to vector<8x192xi1>
    %522 = vector.broadcast %cst_279 : f32 to vector<8x192xf32>
    %523 = arith.select %521, %517, %522 : vector<8x192xi1>, vector<8x192xf32>
    %524 = arith.addf %508, %523 : vector<8x192xf32>
    %c7_280 = arith.constant 7 : index
    %c0_281 = arith.constant 0 : index
    %c0_282 = arith.constant 0 : index
    %525 = vector.load %arg23[%c7_280, %c0_281, %c0_282] : memref<8x64x192xbf16, #tpu.memory_space<vmem>>, vector<1x64x192xbf16>
    %526 = vector.shape_cast %525 : vector<1x64x192xbf16> to vector<64x192xbf16>
    %527 = arith.truncf %410 : vector<8x64xf32> to vector<8x64xbf16>
    %cst_283 = arith.constant dense<0.000000e+00> : vector<8x192xf32>
    %528 = tpu.matmul %527, %526, %cst_283 {dimension_numbers = #tpu.dot_dimension_numbers<[1], [0], [0], [1], [0, 0, 1, 1], [], []>} : vector<8x64xbf16>, vector<64x192xbf16>, vector<8x192xf32> -> vector<8x192xf32>
    %c7_284 = arith.constant 7 : index
    %c0_285 = arith.constant 0 : index
    %c0_286 = arith.constant 0 : index
    %529 = vector.load %arg24[%c7_284, %c0_285, %c0_286] : memref<8x1x192xf32, #tpu.memory_space<vmem>>, vector<1x1x192xf32>
    %530 = vector.shape_cast %529 : vector<1x1x192xf32> to vector<1x192xf32>
    %531 = vector.broadcast %530 : vector<1x192xf32> to vector<8x192xf32>
    %532 = arith.addf %528, %531 : vector<8x192xf32>
    %533 = math.tanh %532 : vector<8x192xf32>
    %c7_i32 = arith.constant 7 : i32
    %534 = vector.broadcast %c7_i32 : i32 to vector<8x1xi32>
    %535 = arith.cmpi eq, %411, %534 : vector<8x1xi32>
    %cst_287 = arith.constant 0.000000e+00 : f32
    %536 = vector.shape_cast %535 : vector<8x1xi1> to vector<8x1xi1>
    %537 = vector.broadcast %536 : vector<8x1xi1> to vector<8x192xi1>
    %538 = vector.broadcast %cst_287 : f32 to vector<8x192xf32>
    %539 = arith.select %537, %533, %538 : vector<8x192xi1>, vector<8x192xf32>
    %540 = arith.addf %524, %539 : vector<8x192xf32>
    %c0_288 = arith.constant 0 : index
    %c0_289 = arith.constant 0 : index
    %541 = vector.load %arg25[%c0_288, %c0_289] : memref<64x64xbf16, #tpu.memory_space<vmem>>, vector<64x64xbf16>
    %542 = arith.truncf %335 : vector<8x64xf32> to vector<8x64xbf16>
    %cst_290 = arith.constant dense<0.000000e+00> : vector<8x64xf32>
    %543 = tpu.matmul %542, %541, %cst_290 {dimension_numbers = #tpu.dot_dimension_numbers<[1], [0], [0], [1], [0, 0, 1, 1], [], []>} : vector<8x64xbf16>, vector<64x64xbf16>, vector<8x64xf32> -> vector<8x64xf32>
    %c15 = arith.constant 15 : index
    %c0_291 = arith.constant 0 : index
    %c0_292 = arith.constant 0 : index
    %544 = vector.load %arg5[%c15, %c0_291, %c0_292] : memref<17x1x64xf32, #tpu.memory_space<vmem>>, vector<1x1x64xf32>
    %545 = vector.shape_cast %544 : vector<1x1x64xf32> to vector<1x64xf32>
    %546 = vector.broadcast %545 : vector<1x64xf32> to vector<8x64xf32>
    %547 = arith.addf %543, %546 : vector<8x64xf32>
    %c0_293 = arith.constant 0 : index
    %c0_294 = arith.constant 0 : index
    %548 = vector.load %arg26[%c0_293, %c0_294] : memref<64x64xbf16, #tpu.memory_space<vmem>>, vector<64x64xbf16>
    %549 = arith.truncf %547 : vector<8x64xf32> to vector<8x64xbf16>
    %cst_295 = arith.constant dense<0.000000e+00> : vector<8x64xf32>
    %550 = tpu.matmul %549, %548, %cst_295 {dimension_numbers = #tpu.dot_dimension_numbers<[1], [0], [0], [1], [0, 0, 1, 1], [], []>} : vector<8x64xbf16>, vector<64x64xbf16>, vector<8x64xf32> -> vector<8x64xf32>
    %c0_296 = arith.constant 0 : index
    %c0_297 = arith.constant 0 : index
    %551 = vector.load %arg27[%c0_296, %c0_297] : memref<192x64xbf16, #tpu.memory_space<vmem>>, vector<192x64xbf16>
    %552 = arith.truncf %540 : vector<8x192xf32> to vector<8x192xbf16>
    %cst_298 = arith.constant dense<0.000000e+00> : vector<8x64xf32>
    %553 = tpu.matmul %552, %551, %cst_298 {dimension_numbers = #tpu.dot_dimension_numbers<[1], [0], [0], [1], [0, 0, 1, 1], [], []>} : vector<8x192xbf16>, vector<192x64xbf16>, vector<8x64xf32> -> vector<8x64xf32>
    %554 = arith.addf %550, %553 : vector<8x64xf32>
    %c16 = arith.constant 16 : index
    %c0_299 = arith.constant 0 : index
    %c0_300 = arith.constant 0 : index
    %555 = vector.load %arg5[%c16, %c0_299, %c0_300] : memref<17x1x64xf32, #tpu.memory_space<vmem>>, vector<1x1x64xf32>
    %556 = vector.shape_cast %555 : vector<1x1x64xf32> to vector<1x64xf32>
    %557 = vector.broadcast %556 : vector<1x64xf32> to vector<8x64xf32>
    %558 = arith.addf %554, %557 : vector<8x64xf32>
    %cst_301 = arith.constant 0.000000e+00 : f32
    %559 = vector.broadcast %cst_301 : f32 to vector<8x64xf32>
    %560 = arith.subf %559, %558 : vector<8x64xf32>
    %561 = math.exp %560 : vector<8x64xf32>
    %cst_302 = arith.constant 1.000000e+00 : f32
    %562 = vector.broadcast %cst_302 : f32 to vector<8x64xf32>
    %563 = arith.addf %562, %561 : vector<8x64xf32>
    %cst_303 = arith.constant 1.000000e+00 : f32
    %564 = vector.broadcast %cst_303 : f32 to vector<8x64xf32>
    %565 = arith.divf %564, %563 : vector<8x64xf32>
    %c0_304 = arith.constant 0 : index
    %c0_305 = arith.constant 0 : index
    %566 = vector.load %arg28[%c0_304, %c0_305] : memref<64x1024xbf16, #tpu.memory_space<vmem>>, vector<64x1024xbf16>
    %567 = arith.truncf %27 : vector<8x64xf32> to vector<8x64xbf16>
    %cst_306 = arith.constant dense<0.000000e+00> : vector<8x1024xf32>
    %568 = tpu.matmul %567, %566, %cst_306 {dimension_numbers = #tpu.dot_dimension_numbers<[1], [0], [0], [1], [0, 0, 1, 1], [], []>} : vector<8x64xbf16>, vector<64x1024xbf16>, vector<8x1024xf32> -> vector<8x1024xf32>
    %c0_307 = arith.constant 0 : index
    %c0_308 = arith.constant 0 : index
    %569 = vector.load %arg29[%c0_307, %c0_308] : memref<64x1024xbf16, #tpu.memory_space<vmem>>, vector<64x1024xbf16>
    %570 = arith.truncf %565 : vector<8x64xf32> to vector<8x64xbf16>
    %cst_309 = arith.constant dense<0.000000e+00> : vector<8x1024xf32>
    %571 = tpu.matmul %570, %569, %cst_309 {dimension_numbers = #tpu.dot_dimension_numbers<[1], [0], [0], [1], [0, 0, 1, 1], [], []>} : vector<8x64xbf16>, vector<64x1024xbf16>, vector<8x1024xf32> -> vector<8x1024xf32>
    %572 = arith.addf %568, %571 : vector<8x1024xf32>
    %c0_310 = arith.constant 0 : index
    %c0_311 = arith.constant 0 : index
    %573 = vector.load %arg30[%c0_310, %c0_311] : memref<1x1024xf32, #tpu.memory_space<vmem>>, vector<1x1024xf32>
    %574 = vector.broadcast %573 : vector<1x1024xf32> to vector<8x1024xf32>
    %575 = arith.addf %572, %574 : vector<8x1024xf32>
    %cst_312 = arith.constant 0.000000e+00 : f32
    %576 = vector.broadcast %cst_312 : f32 to vector<8x1024xf32>
    %577 = arith.maximumf %575, %576 : vector<8x1024xf32>
    %c0_313 = arith.constant 0 : index
    %c0_314 = arith.constant 0 : index
    %578 = vector.load %arg31[%c0_313, %c0_314] : memref<1024x128xbf16, #tpu.memory_space<vmem>>, vector<1024x128xbf16>
    %579 = arith.truncf %577 : vector<8x1024xf32> to vector<8x1024xbf16>
    %cst_315 = arith.constant dense<0.000000e+00> : vector<8x128xf32>
    %580 = tpu.matmul %579, %578, %cst_315 {dimension_numbers = #tpu.dot_dimension_numbers<[1], [0], [0], [1], [0, 0, 1, 1], [], []>} : vector<8x1024xbf16>, vector<1024x128xbf16>, vector<8x128xf32> -> vector<8x128xf32>
    %c0_316 = arith.constant 0 : index
    %c0_317 = arith.constant 0 : index
    %581 = vector.load %arg32[%c0_316, %c0_317] : memref<1x128xf32, #tpu.memory_space<vmem>>, vector<1x128xf32>
    %582 = vector.broadcast %581 : vector<1x128xf32> to vector<8x128xf32>
    %583 = arith.addf %580, %582 : vector<8x128xf32>
    %c0_318 = arith.constant 0 : index
    %c0_319 = arith.constant 0 : index
    %c0_320 = arith.constant 0 : index
    %584 = vector.load %arg33[%c0_318, %c0_319, %c0_320] : memref<1x8x128xf32, #tpu.memory_space<vmem>>, vector<1x8x128xf32>
    %585 = vector.shape_cast %584 : vector<1x8x128xf32> to vector<8x128xf32>
    %586 = vector.shape_cast %583 : vector<8x128xf32> to vector<1x8x128xf32>
    tpu.vector_store %arg33[%c0_318, %c0_319, %c0_320], %586 {strides = array<i32>} : memref<1x8x128xf32, #tpu.memory_space<vmem>>, vector<1x8x128xf32>,
    return
  }
  func.func @transform_0(%arg0: i32) -> (i32, i32, i32) {
    %c0_i32 = arith.constant 0 : i32
    %c0_i32_0 = arith.constant 0 : i32
    %c0_i32_1 = arith.constant 0 : i32
    return %arg0, %c0_i32, %c0_i32_0 : i32, i32, i32
  }
  func.func @transform_1(%arg0: i32) -> (i32, i32, i32) {
    %c0_i32 = arith.constant 0 : i32
    %c0_i32_0 = arith.constant 0 : i32
    %c0_i32_1 = arith.constant 0 : i32
    return %arg0, %c0_i32, %c0_i32_0 : i32, i32, i32
  }
  func.func @transform_2(%arg0: i32) -> (i32, i32, i32) {
    %c0_i32 = arith.constant 0 : i32
    %c0_i32_0 = arith.constant 0 : i32
    %c0_i32_1 = arith.constant 0 : i32
    return %arg0, %c0_i32, %c0_i32_0 : i32, i32, i32
  }
  func.func @transform_3(%arg0: i32) -> (i32, i32, i32) {
    %c0_i32 = arith.constant 0 : i32
    %c0_i32_0 = arith.constant 0 : i32
    %c0_i32_1 = arith.constant 0 : i32
    return %arg0, %c0_i32, %c0_i32_0 : i32, i32, i32
  }
  func.func @transform_4(%arg0: i32) -> (i32, i32, i32) {
    %c0_i32 = arith.constant 0 : i32
    %c0_i32_0 = arith.constant 0 : i32
    %c0_i32_1 = arith.constant 0 : i32
    %c0_i32_2 = arith.constant 0 : i32
    return %c0_i32, %c0_i32_0, %c0_i32_1 : i32, i32, i32
  }
  func.func @transform_5(%arg0: i32) -> (i32, i32) {
    %c0_i32 = arith.constant 0 : i32
    %c0_i32_0 = arith.constant 0 : i32
    %c0_i32_1 = arith.constant 0 : i32
    return %c0_i32, %c0_i32_0 : i32, i32
  }
  func.func @transform_6(%arg0: i32) -> (i32, i32) {
    %c0_i32 = arith.constant 0 : i32
    %c0_i32_0 = arith.constant 0 : i32
    %c0_i32_1 = arith.constant 0 : i32
    return %c0_i32, %c0_i32_0 : i32, i32
  }
  func.func @transform_7(%arg0: i32) -> (i32, i32) {
    %c0_i32 = arith.constant 0 : i32
    %c0_i32_0 = arith.constant 0 : i32
    %c0_i32_1 = arith.constant 0 : i32
    return %c0_i32, %c0_i32_0 : i32, i32
  }
  func.func @transform_8(%arg0: i32) -> (i32, i32) {
    %c0_i32 = arith.constant 0 : i32
    %c0_i32_0 = arith.constant 0 : i32
    %c0_i32_1 = arith.constant 0 : i32
    return %c0_i32, %c0_i32_0 : i32, i32
  }
  func.func @transform_9(%arg0: i32) -> (i32, i32, i32) {
    %c0_i32 = arith.constant 0 : i32
    %c0_i32_0 = arith.constant 0 : i32
    %c0_i32_1 = arith.constant 0 : i32
    %c0_i32_2 = arith.constant 0 : i32
    return %c0_i32, %c0_i32_0, %c0_i32_1 : i32, i32, i32
  }
  func.func @transform_10(%arg0: i32) -> (i32, i32, i32) {
    %c0_i32 = arith.constant 0 : i32
    %c0_i32_0 = arith.constant 0 : i32
    %c0_i32_1 = arith.constant 0 : i32
    %c0_i32_2 = arith.constant 0 : i32
    return %c0_i32, %c0_i32_0, %c0_i32_1 : i32, i32, i32
  }
  func.func @transform_11(%arg0: i32) -> (i32, i32, i32) {
    %c0_i32 = arith.constant 0 : i32
    %c0_i32_0 = arith.constant 0 : i32
    %c0_i32_1 = arith.constant 0 : i32
    %c0_i32_2 = arith.constant 0 : i32
    return %c0_i32, %c0_i32_0, %c0_i32_1 : i32, i32, i32
  }
  func.func @transform_12(%arg0: i32) -> (i32, i32, i32) {
    %c0_i32 = arith.constant 0 : i32
    %c0_i32_0 = arith.constant 0 : i32
    %c0_i32_1 = arith.constant 0 : i32
    %c0_i32_2 = arith.constant 0 : i32
    return %c0_i32, %c0_i32_0, %c0_i32_1 : i32, i32, i32
  }
  func.func @transform_13(%arg0: i32) -> (i32, i32, i32) {
    %c0_i32 = arith.constant 0 : i32
    %c0_i32_0 = arith.constant 0 : i32
    %c0_i32_1 = arith.constant 0 : i32
    %c0_i32_2 = arith.constant 0 : i32
    return %c0_i32, %c0_i32_0, %c0_i32_1 : i32, i32, i32
  }
  func.func @transform_14(%arg0: i32) -> (i32, i32, i32) {
    %c0_i32 = arith.constant 0 : i32
    %c0_i32_0 = arith.constant 0 : i32
    %c0_i32_1 = arith.constant 0 : i32
    %c0_i32_2 = arith.constant 0 : i32
    return %c0_i32, %c0_i32_0, %c0_i32_1 : i32, i32, i32
  }
  func.func @transform_15(%arg0: i32) -> (i32, i32, i32) {
    %c0_i32 = arith.constant 0 : i32
    %c0_i32_0 = arith.constant 0 : i32
    %c0_i32_1 = arith.constant 0 : i32
    %c0_i32_2 = arith.constant 0 : i32
    return %c0_i32, %c0_i32_0, %c0_i32_1 : i32, i32, i32
  }
  func.func @transform_16(%arg0: i32) -> (i32, i32) {
    %c0_i32 = arith.constant 0 : i32
    %c0_i32_0 = arith.constant 0 : i32
    %c0_i32_1 = arith.constant 0 : i32
    return %c0_i32, %c0_i32_0 : i32, i32
  }
  func.func @transform_17(%arg0: i32) -> (i32, i32) {
    %c0_i32 = arith.constant 0 : i32
    %c0_i32_0 = arith.constant 0 : i32
    %c0_i32_1 = arith.constant 0 : i32
    return %c0_i32, %c0_i32_0 : i32, i32
  }
  func.func @transform_18(%arg0: i32) -> (i32, i32) {
    %c0_i32 = arith.constant 0 : i32
    %c0_i32_0 = arith.constant 0 : i32
    %c0_i32_1 = arith.constant 0 : i32
    return %c0_i32, %c0_i32_0 : i32, i32
  }
  func.func @transform_19(%arg0: i32) -> (i32, i32) {
    %c0_i32 = arith.constant 0 : i32
    %c0_i32_0 = arith.constant 0 : i32
    %c0_i32_1 = arith.constant 0 : i32
    return %c0_i32, %c0_i32_0 : i32, i32
  }
  func.func @transform_20(%arg0: i32) -> (i32, i32) {
    %c0_i32 = arith.constant 0 : i32
    %c0_i32_0 = arith.constant 0 : i32
    %c0_i32_1 = arith.constant 0 : i32
    return %c0_i32, %c0_i32_0 : i32, i32
  }
  func.func @transform_21(%arg0: i32) -> (i32, i32) {
    %c0_i32 = arith.constant 0 : i32
    %c0_i32_0 = arith.constant 0 : i32
    %c0_i32_1 = arith.constant 0 : i32
    return %c0_i32, %c0_i32_0 : i32, i32
  }
  func.func @transform_22(%arg0: i32) -> (i32, i32, i32) {
    %c0_i32 = arith.constant 0 : i32
    %c0_i32_0 = arith.constant 0 : i32
    %c0_i32_1 = arith.constant 0 : i32
    %c0_i32_2 = arith.constant 0 : i32
    return %c0_i32, %c0_i32_0, %c0_i32_1 : i32, i32, i32
  }
  func.func @transform_23(%arg0: i32) -> (i32, i32, i32) {
    %c0_i32 = arith.constant 0 : i32
    %c0_i32_0 = arith.constant 0 : i32
    %c0_i32_1 = arith.constant 0 : i32
    %c0_i32_2 = arith.constant 0 : i32
    return %c0_i32, %c0_i32_0, %c0_i32_1 : i32, i32, i32
  }
  func.func @transform_24(%arg0: i32) -> (i32, i32) {
    %c0_i32 = arith.constant 0 : i32
    %c0_i32_0 = arith.constant 0 : i32
    %c0_i32_1 = arith.constant 0 : i32
    return %c0_i32, %c0_i32_0 : i32, i32
  }
  func.func @transform_25(%arg0: i32) -> (i32, i32) {
    %c0_i32 = arith.constant 0 : i32
    %c0_i32_0 = arith.constant 0 : i32
    %c0_i32_1 = arith.constant 0 : i32
    return %c0_i32, %c0_i32_0 : i32, i32
  }
  func.func @transform_26(%arg0: i32) -> (i32, i32) {
    %c0_i32 = arith.constant 0 : i32
    %c0_i32_0 = arith.constant 0 : i32
    %c0_i32_1 = arith.constant 0 : i32
    return %c0_i32, %c0_i32_0 : i32, i32
  }
  func.func @transform_27(%arg0: i32) -> (i32, i32) {
    %c0_i32 = arith.constant 0 : i32
    %c0_i32_0 = arith.constant 0 : i32
    %c0_i32_1 = arith.constant 0 : i32
    return %c0_i32, %c0_i32_0 : i32, i32
  }
  func.func @transform_28(%arg0: i32) -> (i32, i32) {
    %c0_i32 = arith.constant 0 : i32
    %c0_i32_0 = arith.constant 0 : i32
    %c0_i32_1 = arith.constant 0 : i32
    return %c0_i32, %c0_i32_0 : i32, i32
  }
  func.func @transform_29(%arg0: i32) -> (i32, i32) {
    %c0_i32 = arith.constant 0 : i32
    %c0_i32_0 = arith.constant 0 : i32
    %c0_i32_1 = arith.constant 0 : i32
    return %c0_i32, %c0_i32_0 : i32, i32
  }
  func.func @transform_30(%arg0: i32) -> (i32, i32) {
    %c0_i32 = arith.constant 0 : i32
    %c0_i32_0 = arith.constant 0 : i32
    %c0_i32_1 = arith.constant 0 : i32
    return %c0_i32, %c0_i32_0 : i32, i32
  }
  func.func @transform_31(%arg0: i32) -> (i32, i32) {
    %c0_i32 = arith.constant 0 : i32
    %c0_i32_0 = arith.constant 0 : i32
    %c0_i32_1 = arith.constant 0 : i32
    return %c0_i32, %c0_i32_0 : i32, i32
  }
  func.func @transform_32(%arg0: i32) -> (i32, i32, i32) {
    %c0_i32 = arith.constant 0 : i32
    %c0_i32_0 = arith.constant 0 : i32
    %c0_i32_1 = arith.constant 0 : i32
    return %arg0, %c0_i32, %c0_i32_0 : i32, i32, i32
  }
}

</mosaic_0001>

<llo_original>
// kernel: custom-call.4
$region0: #{custom-call.4}
  %s0 = inlined_call_operand.vmem [shape: s32[7,2,5], index: 0, kind: output, shape index: {}]

// kernel: siamner_forward.1
$region0: #{siamner_forward.1}
  #allocation0 [shape = 'u32[]', space=smem, size = 0x4, offset = 0x4, fixed_abs, tag = 'smem constant byte address 0x4 - core index']
  #allocation1 [shape = 'u32[72,128]{1,0:T(1,128)}', space=vmem, size = 0x9000, scoped, tag = 'internal scratch']
  %s0 = inlined_call_operand.smem [shape: u32[33], index: -1, kind: input, shape index: {}]
  %s1 = sld [smem:[%s0]]
  %s2 = scalar_lea.smem %s0, 1
  %s3 = sld [smem:[%s2]]
  %s4 = scalar_lea.smem %s0, 2
  %s5 = sld [smem:[%s4]]
  %s6 = scalar_lea.smem %s0, 3
  %s7 = sld [smem:[%s6]]
  %s8 = scalar_lea.smem %s0, 4
  %s9 = sld [smem:[%s8]]
  %s10 = scalar_lea.smem %s0, 5
  %s11 = sld [smem:[%s10]]
  %s12 = scalar_lea.smem %s0, 6
  %s13 = sld [smem:[%s12]]
  %s14 = scalar_lea.smem %s0, 7
  %s15 = sld [smem:[%s14]]
  %s16 = scalar_lea.smem %s0, 8
  %s17 = sld [smem:[%s16]]
  %s18 = scalar_lea.smem %s0, 9
  %s19 = sld [smem:[%s18]]
  %s20 = scalar_lea.smem %s0, 10
  %s21 = sld [smem:[%s20]]
  %s22 = scalar_lea.smem %s0, 11
  %s23 = sld [smem:[%s22]]
  %s24 = scalar_lea.smem %s0, 12
  %s25 = sld [smem:[%s24]]
  %s26 = scalar_lea.smem %s0, 13
  %s27 = sld [smem:[%s26]]
  %s28 = scalar_lea.smem %s0, 14
  %s29 = sld [smem:[%s28]]
  %s30 = scalar_lea.smem %s0, 15
  %s31 = sld [smem:[%s30]]
  %s32 = scalar_lea.smem %s0, 16
  %s33 = sld [smem:[%s32]]
  %s34 = scalar_lea.smem %s0, 17
  %s35 = sld [smem:[%s34]]
  %s36 = scalar_lea.smem %s0, 18
  %s37 = sld [smem:[%s36]]
  %s38 = scalar_lea.smem %s0, 19
  %s39 = sld [smem:[%s38]]
  %s40 = scalar_lea.smem %s0, 20
  %s41 = sld [smem:[%s40]]
  %s42 = scalar_lea.smem %s0, 21
  %s43 = sld [smem:[%s42]]
  %s44 = scalar_lea.smem %s0, 22
  %s45 = sld [smem:[%s44]]
  %s46 = scalar_lea.smem %s0, 23
  %s47 = sld [smem:[%s46]]
  %s48 = scalar_lea.smem %s0, 24
  %s49 = sld [smem:[%s48]]
  %s50 = scalar_lea.smem %s0, 25
  %s51 = sld [smem:[%s50]]
  %s52 = scalar_lea.smem %s0, 26
  %s53 = sld [smem:[%s52]]
  %s54 = scalar_lea.smem %s0, 27
  %s55 = sld [smem:[%s54]]
  %s56 = scalar_lea.smem %s0, 28
  %s57 = sld [smem:[%s56]]
  %s58 = scalar_lea.smem %s0, 29
  %s59 = sld [smem:[%s58]]
  %s60 = scalar_lea.smem %s0, 30
  %s61 = sld [smem:[%s60]]
  %s62 = scalar_lea.smem %s0, 31
  %s63 = sld [smem:[%s62]]
  %s64 = scalar_lea.smem %s0, 32
  %s65 = sld [smem:[%s64]]
  %s66 = sld [smem:[#allocation0]]
  $region161: #{siamner_forward.1} parent=0
    _
  %s68 = ssub.s32 1, %s66
  %s69 = scalar_select 0, %s68, %s66
  loop: start=0, step=1, limit=4
  $region2: #{siamner_forward.1} parent=0 // loop_pre_header
    _
  $region3: #{siamner_forward.1} parent=0 // loop_header
    %s71 = sphi 0, %s75
    %p72 = scmp.ge.s32.totalorder %s71, 4
    %s81 = sphi 0, %s83
    %s84 = sphi 0, %s81
    %s85 = sphi 0, %s84
    %s101 = sphi 0, %s85
    %s107 = sphi 0, %s109
    %s110 = sphi 0, %s107
    %s111 = sphi 0, %s110
    %s127 = sphi 0, %s111
    %s133 = sphi 0, %s135
    %s136 = sphi 0, %s133
    %s137 = sphi 0, %s136
    %s153 = sphi 0, %s137
    %s159 = sphi 0, %s161
    %s162 = sphi 0, %s159
    %s163 = sphi 0, %s162
    %s179 = sphi 0, %s163
    %s183 = sphi 0, %s183
    %s185 = sphi 0, %s183
    %s186 = sphi 0, %s185
    %s200 = sphi 0, %s186
    %s204 = sphi 0, %s204
    %s206 = sphi 0, %s204
    %s207 = sphi 0, %s206
    %s221 = sphi 0, %s207
    %s225 = sphi 0, %s225
    %s227 = sphi 0, %s225
    %s228 = sphi 0, %s227
    %s242 = sphi 0, %s228
    %s246 = sphi 0, %s246
    %s248 = sphi 0, %s246
    %s249 = sphi 0, %s248
    %s263 = sphi 0, %s249
    %s267 = sphi 0, %s267
    %s269 = sphi 0, %s267
    %s270 = sphi 0, %s269
    %s284 = sphi 0, %s270
    %s288 = sphi 0, %s288
    %s290 = sphi 0, %s288
    %s291 = sphi 0, %s290
    %s305 = sphi 0, %s291
    %s309 = sphi 0, %s309
    %s311 = sphi 0, %s309
    %s312 = sphi 0, %s311
    %s326 = sphi 0, %s312
    %s330 = sphi 0, %s330
    %s332 = sphi 0, %s330
    %s333 = sphi 0, %s332
    %s347 = sphi 0, %s333
    %s351 = sphi 0, %s351
    %s353 = sphi 0, %s351
    %s354 = sphi 0, %s353
    %s368 = sphi 0, %s354
    %s372 = sphi 0, %s372
    %s374 = sphi 0, %s372
    %s375 = sphi 0, %s374
    %s389 = sphi 0, %s375
    %s393 = sphi 0, %s393
    %s395 = sphi 0, %s393
    %s396 = sphi 0, %s395
    %s410 = sphi 0, %s396
    %s414 = sphi 0, %s414
    %s416 = sphi 0, %s414
    %s417 = sphi 0, %s416
    %s431 = sphi 0, %s417
    %s435 = sphi 0, %s435
    %s437 = sphi 0, %s435
    %s438 = sphi 0, %s437
    %s452 = sphi 0, %s438
    %s456 = sphi 0, %s456
    %s458 = sphi 0, %s456
    %s459 = sphi 0, %s458
    %s473 = sphi 0, %s459
    %s477 = sphi 0, %s477
    %s479 = sphi 0, %s477
    %s480 = sphi 0, %s479
    %s494 = sphi 0, %s480
    %s498 = sphi 0, %s498
    %s500 = sphi 0, %s498
    %s501 = sphi 0, %s500
    %s515 = sphi 0, %s501
    %s519 = sphi 0, %s519
    %s521 = sphi 0, %s519
    %s522 = sphi 0, %s521
    %s536 = sphi 0, %s522
    %s540 = sphi 0, %s540
    %s542 = sphi 0, %s540
    %s543 = sphi 0, %s542
    %s557 = sphi 0, %s543
    %s561 = sphi 0, %s561
    %s563 = sphi 0, %s561
    %s564 = sphi 0, %s563
    %s578 = sphi 0, %s564
    %s582 = sphi 0, %s582
    %s584 = sphi 0, %s582
    %s585 = sphi 0, %s584
    %s599 = sphi 0, %s585
    %s603 = sphi 0, %s603
    %s605 = sphi 0, %s603
    %s606 = sphi 0, %s605
    %s620 = sphi 0, %s606
    %s624 = sphi 0, %s624
    %s626 = sphi 0, %s624
    %s627 = sphi 0, %s626
    %s641 = sphi 0, %s627
    %s645 = sphi 0, %s645
    %s647 = sphi 0, %s645
    %s648 = sphi 0, %s647
    %s662 = sphi 0, %s648
    %s666 = sphi 0, %s666
    %s668 = sphi 0, %s666
    %s669 = sphi 0, %s668
    %s683 = sphi 0, %s669
    %s687 = sphi 0, %s687
    %s689 = sphi 0, %s687
    %s690 = sphi 0, %s689
    %s704 = sphi 0, %s690
    %s708 = sphi 0, %s708
    %s710 = sphi 0, %s708
    %s711 = sphi 0, %s710
    %s725 = sphi 0, %s711
    %s729 = sphi 0, %s729
    %s731 = sphi 0, %s729
    %s732 = sphi 0, %s731
    %s746 = sphi 0, %s732
    %s750 = sphi 0, %s750
    %s752 = sphi 0, %s750
    %s753 = sphi 0, %s752
    %s767 = sphi 0, %s753
    %s773 = sphi 0, %s775
    %s776 = sphi 0, %s773
    %s777 = sphi 0, %s776
    %s793 = sphi 0, %s777
  $region4: #{siamner_forward.1} parent=0 // loop_header_branch
    %74 = sbr.rel (%p72) target = $region8
  $region5: #{siamner_forward.1} parent=0 // loop_body
    %s76 = ssub.s32 %s71, 1
    %s77 = ssub.s32 %s71, 2
    %s78 = sadd.s32 %s71, 1
    %s79 = ssub.s32 %s71, %s78
    %p80 = scmp.eq.s32.totalorder %s79, 0
    %s82 = sadd.s32 %s81, 1
    %s83 = scalar_select %p80, %s81, %s82
    %p86 = pneg %p80
    %p87 = scmp.eq.s32.totalorder %s71, 1
    %p88 = por %p86, %p87
    %p89 = scmp.ne.s32.totalorder %s81, %s84
    %p90 = scmp.eq.s32.totalorder %s71, 0
    %p91 = por %p89, %p90
    %p92 = scmp.ne.s32.totalorder %s81, %s84
    %p93 = scmp.eq.s32.totalorder %s76, 1
    %p94 = por %p92, %p93
    %p95 = scmp.ne.s32.totalorder %s84, %s85
    %p96 = scmp.eq.s32.totalorder %s76, 0
    %p97 = por %p95, %p96
    %p98 = scmp.ne.s32.totalorder %s84, %s85
    %p99 = scmp.eq.s32.totalorder %s77, 1
    %p100 = por %p98, %p99
    %p102 = scmp.ne.s32.totalorder %s85, %s101
    %p103 = scmp.eq.s32.totalorder %s77, 0
    %p104 = por %p102, %p103
    %s105 = ssub.s32 %s71, %s78
    %p106 = scmp.eq.s32.totalorder %s105, 0
    %s108 = sadd.s32 %s107, 1
    %s109 = scalar_select %p106, %s107, %s108
    %p112 = pneg %p106
    %p113 = scmp.eq.s32.totalorder %s71, 1
    %p114 = por %p112, %p113
    %p115 = scmp.ne.s32.totalorder %s107, %s110
    %p116 = scmp.eq.s32.totalorder %s71, 0
    %p117 = por %p115, %p116
    %p118 = scmp.ne.s32.totalorder %s107, %s110
    %p119 = scmp.eq.s32.totalorder %s76, 1
    %p120 = por %p118, %p119
    %p121 = scmp.ne.s32.totalorder %s110, %s111
    %p122 = scmp.eq.s32.totalorder %s76, 0
    %p123 = por %p121, %p122
    %p124 = scmp.ne.s32.totalorder %s110, %s111
    %p125 = scmp.eq.s32.totalorder %s77, 1
    %p126 = por %p124, %p125
    %p128 = scmp.ne.s32.totalorder %s111, %s127
    %p129 = scmp.eq.s32.totalorder %s77, 0
    %p130 = por %p128, %p129
    %s131 = ssub.s32 %s71, %s78
    %p132 = scmp.eq.s32.totalorder %s131, 0
    %s134 = sadd.s32 %s133, 1
    %s135 = scalar_select %p132, %s133, %s134
    %p138 = pneg %p132
    %p139 = scmp.eq.s32.totalorder %s71, 1
    %p140 = por %p138, %p139
    %p141 = scmp.ne.s32.totalorder %s133, %s136
    %p142 = scmp.eq.s32.totalorder %s71, 0
    %p143 = por %p141, %p142
    %p144 = scmp.ne.s32.totalorder %s133, %s136
    %p145 = scmp.eq.s32.totalorder %s76, 1
    %p146 = por %p144, %p145
    %p147 = scmp.ne.s32.totalorder %s136, %s137
    %p148 = scmp.eq.s32.totalorder %s76, 0
    %p149 = por %p147, %p148
    %p150 = scmp.ne.s32.totalorder %s136, %s137
    %p151 = scmp.eq.s32.totalorder %s77, 1
    %p152 = por %p150, %p151
    %p154 = scmp.ne.s32.totalorder %s137, %s153
    %p155 = scmp.eq.s32.totalorder %s77, 0
    %p156 = por %p154, %p155
    %s157 = ssub.s32 %s71, %s78
    %p158 = scmp.eq.s32.totalorder %s157, 0
    %s160 = sadd.s32 %s159, 1
    %s161 = scalar_select %p158, %s159, %s160
    %p164 = pneg %p158
    %p165 = scmp.eq.s32.totalorder %s71, 1
    %p166 = por %p164, %p165
    %p167 = scmp.ne.s32.totalorder %s159, %s162
    %p168 = scmp.eq.s32.totalorder %s71, 0
    %p169 = por %p167, %p168
    %p170 = scmp.ne.s32.totalorder %s159, %s162
    %p171 = scmp.eq.s32.totalorder %s76, 1
    %p172 = por %p170, %p171
    %p173 = scmp.ne.s32.totalorder %s162, %s163
    %p174 = scmp.eq.s32.totalorder %s76, 0
    %p175 = por %p173, %p174
    %p176 = scmp.ne.s32.totalorder %s162, %s163
    %p177 = scmp.eq.s32.totalorder %s77, 1
    %p178 = por %p176, %p177
    %p180 = scmp.ne.s32.totalorder %s163, %s179
    %p181 = scmp.eq.s32.totalorder %s77, 0
    %p182 = por %p180, %p181
    %s184 = sadd.s32 %s183, 1
    %p187 = scmp.eq.s32.totalorder %s71, 1
    %p188 = scmp.ne.s32.totalorder %s183, %s185
    %p189 = scmp.eq.s32.totalorder %s71, 0
    %p190 = por %p188, %p189
    %p191 = scmp.ne.s32.totalorder %s183, %s185
    %p192 = scmp.eq.s32.totalorder %s76, 1
    %p193 = por %p191, %p192
    %p194 = scmp.ne.s32.totalorder %s185, %s186
    %p195 = scmp.eq.s32.totalorder %s76, 0
    %p196 = por %p194, %p195
    %p197 = scmp.ne.s32.totalorder %s185, %s186
    %p198 = scmp.eq.s32.totalorder %s77, 1
    %p199 = por %p197, %p198
    %p201 = scmp.ne.s32.totalorder %s186, %s200
    %p202 = scmp.eq.s32.totalorder %s77, 0
    %p203 = por %p201, %p202
    %s205 = sadd.s32 %s204, 1
    %p208 = scmp.eq.s32.totalorder %s71, 1
    %p209 = scmp.ne.s32.totalorder %s204, %s206
    %p210 = scmp.eq.s32.totalorder %s71, 0
    %p211 = por %p209, %p210
    %p212 = scmp.ne.s32.totalorder %s204, %s206
    %p213 = scmp.eq.s32.totalorder %s76, 1
    %p214 = por %p212, %p213
    %p215 = scmp.ne.s32.totalorder %s206, %s207
    %p216 = scmp.eq.s32.totalorder %s76, 0
    %p217 = por %p215, %p216
    %p218 = scmp.ne.s32.totalorder %s206, %s207
    %p219 = scmp.eq.s32.totalorder %s77, 1
    %p220 = por %p218, %p219
    %p222 = scmp.ne.s32.totalorder %s207, %s221
    %p223 = scmp.eq.s32.totalorder %s77, 0
    %p224 = por %p222, %p223
    %s226 = sadd.s32 %s225, 1
    %p229 = scmp.eq.s32.totalorder %s71, 1
    %p230 = scmp.ne.s32.totalorder %s225, %s227
    %p231 = scmp.eq.s32.totalorder %s71, 0
    %p232 = por %p230, %p231
    %p233 = scmp.ne.s32.totalorder %s225, %s227
    %p234 = scmp.eq.s32.totalorder %s76, 1
    %p235 = por %p233, %p234
    %p236 = scmp.ne.s32.totalorder %s227, %s228
    %p237 = scmp.eq.s32.totalorder %s76, 0
    %p238 = por %p236, %p237
    %p239 = scmp.ne.s32.totalorder %s227, %s228
    %p240 = scmp.eq.s32.totalorder %s77, 1
    %p241 = por %p239, %p240
    %p243 = scmp.ne.s32.totalorder %s228, %s242
    %p244 = scmp.eq.s32.totalorder %s77, 0
    %p245 = por %p243, %p244
    %s247 = sadd.s32 %s246, 1
    %p250 = scmp.eq.s32.totalorder %s71, 1
    %p251 = scmp.ne.s32.totalorder %s246, %s248
    %p252 = scmp.eq.s32.totalorder %s71, 0
    %p253 = por %p251, %p252
    %p254 = scmp.ne.s32.totalorder %s246, %s248
    %p255 = scmp.eq.s32.totalorder %s76, 1
    %p256 = por %p254, %p255
    %p257 = scmp.ne.s32.totalorder %s248, %s249
    %p258 = scmp.eq.s32.totalorder %s76, 0
    %p259 = por %p257, %p258
    %p260 = scmp.ne.s32.totalorder %s248, %s249
    %p261 = scmp.eq.s32.totalorder %s77, 1
    %p262 = por %p260, %p261
    %p264 = scmp.ne.s32.totalorder %s249, %s263
    %p265 = scmp.eq.s32.totalorder %s77, 0
    %p266 = por %p264, %p265
    %s268 = sadd.s32 %s267, 1
    %p271 = scmp.eq.s32.totalorder %s71, 1
    %p272 = scmp.ne.s32.totalorder %s267, %s269
    %p273 = scmp.eq.s32.totalorder %s71, 0
    %p274 = por %p272, %p273
    %p275 = scmp.ne.s32.totalorder %s267, %s269
    %p276 = scmp.eq.s32.totalorder %s76, 1
    %p277 = por %p275, %p276
    %p278 = scmp.ne.s32.totalorder %s269, %s270
    %p279 = scmp.eq.s32.totalorder %s76, 0
    %p280 = por %p278, %p279
    %p281 = scmp.ne.s32.totalorder %s269, %s270
    %p282 = scmp.eq.s32.totalorder %s77, 1
    %p283 = por %p281, %p282
    %p285 = scmp.ne.s32.totalorder %s270, %s284
    %p286 = scmp.eq.s32.totalorder %s77, 0
    %p287 = por %p285, %p286
    %s289 = sadd.s32 %s288, 1
    %p292 = scmp.eq.s32.totalorder %s71, 1
    %p293 = scmp.ne.s32.totalorder %s288, %s290
    %p294 = scmp.eq.s32.totalorder %s71, 0
    %p295 = por %p293, %p294
    %p296 = scmp.ne.s32.totalorder %s288, %s290
    %p297 = scmp.eq.s32.totalorder %s76, 1
    %p298 = por %p296, %p297
    %p299 = scmp.ne.s32.totalorder %s290, %s291
    %p300 = scmp.eq.s32.totalorder %s76, 0
    %p301 = por %p299, %p300
    %p302 = scmp.ne.s32.totalorder %s290, %s291
    %p303 = scmp.eq.s32.totalorder %s77, 1
    %p304 = por %p302, %p303
    %p306 = scmp.ne.s32.totalorder %s291, %s305
    %p307 = scmp.eq.s32.totalorder %s77, 0
    %p308 = por %p306, %p307
    %s310 = sadd.s32 %s309, 1
    %p313 = scmp.eq.s32.totalorder %s71, 1
    %p314 = scmp.ne.s32.totalorder %s309, %s311
    %p315 = scmp.eq.s32.totalorder %s71, 0
    %p316 = por %p314, %p315
    %p317 = scmp.ne.s32.totalorder %s309, %s311
    %p318 = scmp.eq.s32.totalorder %s76, 1
    %p319 = por %p317, %p318
    %p320 = scmp.ne.s32.totalorder %s311, %s312
    %p321 = scmp.eq.s32.totalorder %s76, 0
    %p322 = por %p320, %p321
    %p323 = scmp.ne.s32.totalorder %s311, %s312
    %p324 = scmp.eq.s32.totalorder %s77, 1
    %p325 = por %p323, %p324
    %p327 = scmp.ne.s32.totalorder %s312, %s326
    %p328 = scmp.eq.s32.totalorder %s77, 0
    %p329 = por %p327, %p328
    %s331 = sadd.s32 %s330, 1
    %p334 = scmp.eq.s32.totalorder %s71, 1
    %p335 = scmp.ne.s32.totalorder %s330, %s332
    %p336 = scmp.eq.s32.totalorder %s71, 0
    %p337 = por %p335, %p336
    %p338 = scmp.ne.s32.totalorder %s330, %s332
    %p339 = scmp.eq.s32.totalorder %s76, 1
    %p340 = por %p338, %p339
    %p341 = scmp.ne.s32.totalorder %s332, %s333
    %p342 = scmp.eq.s32.totalorder %s76, 0
    %p343 = por %p341, %p342
    %p344 = scmp.ne.s32.totalorder %s332, %s333
    %p345 = scmp.eq.s32.totalorder %s77, 1
    %p346 = por %p344, %p345
    %p348 = scmp.ne.s32.totalorder %s333, %s347
    %p349 = scmp.eq.s32.totalorder %s77, 0
    %p350 = por %p348, %p349
    %s352 = sadd.s32 %s351, 1
    %p355 = scmp.eq.s32.totalorder %s71, 1
    %p356 = scmp.ne.s32.totalorder %s351, %s353
    %p357 = scmp.eq.s32.totalorder %s71, 0
    %p358 = por %p356, %p357
    %p359 = scmp.ne.s32.totalorder %s351, %s353
    %p360 = scmp.eq.s32.totalorder %s76, 1
    %p361 = por %p359, %p360
    %p362 = scmp.ne.s32.totalorder %s353, %s354
    %p363 = scmp.eq.s32.totalorder %s76, 0
    %p364 = por %p362, %p363
    %p365 = scmp.ne.s32.totalorder %s353, %s354
    %p366 = scmp.eq.s32.totalorder %s77, 1
    %p367 = por %p365, %p366
    %p369 = scmp.ne.s32.totalorder %s354, %s368
    %p370 = scmp.eq.s32.totalorder %s77, 0
    %p371 = por %p369, %p370
    %s373 = sadd.s32 %s372, 1
    %p376 = scmp.eq.s32.totalorder %s71, 1
    %p377 = scmp.ne.s32.totalorder %s372, %s374
    %p378 = scmp.eq.s32.totalorder %s71, 0
    %p379 = por %p377, %p378
    %p380 = scmp.ne.s32.totalorder %s372, %s374
    %p381 = scmp.eq.s32.totalorder %s76, 1
    %p382 = por %p380, %p381
    %p383 = scmp.ne.s32.totalorder %s374, %s375
    %p384 = scmp.eq.s32.totalorder %s76, 0
    %p385 = por %p383, %p384
    %p386 = scmp.ne.s32.totalorder %s374, %s375
    %p387 = scmp.eq.s32.totalorder %s77, 1
    %p388 = por %p386, %p387
    %p390 = scmp.ne.s32.totalorder %s375, %s389
    %p391 = scmp.eq.s32.totalorder %s77, 0
    %p392 = por %p390, %p391
    %s394 = sadd.s32 %s393, 1
    %p397 = scmp.eq.s32.totalorder %s71, 1
    %p398 = scmp.ne.s32.totalorder %s393, %s395
    %p399 = scmp.eq.s32.totalorder %s71, 0
    %p400 = por %p398, %p399
    %p401 = scmp.ne.s32.totalorder %s393, %s395
    %p402 = scmp.eq.s32.totalorder %s76, 1
    %p403 = por %p401, %p402
    %p404 = scmp.ne.s32.totalorder %s395, %s396
    %p405 = scmp.eq.s32.totalorder %s76, 0
    %p406 = por %p404, %p405
    %p407 = scmp.ne.s32.totalorder %s395, %s396
    %p408 = scmp.eq.s32.totalorder %s77, 1
    %p409 = por %p407, %p408
    %p411 = scmp.ne.s32.totalorder %s396, %s410
    %p412 = scmp.eq.s32.totalorder %s77, 0
    %p413 = por %p411, %p412
    %s415 = sadd.s32 %s414, 1
    %p418 = scmp.eq.s32.totalorder %s71, 1
    %p419 = scmp.ne.s32.totalorder %s414, %s416
    %p420 = scmp.eq.s32.totalorder %s71, 0
    %p421 = por %p419, %p420
    %p422 = scmp.ne.s32.totalorder %s414, %s416
    %p423 = scmp.eq.s32.totalorder %s76, 1
    %p424 = por %p422, %p423
    %p425 = scmp.ne.s32.totalorder %s416, %s417
    %p426 = scmp.eq.s32.totalorder %s76, 0
    %p427 = por %p425, %p426
    %p428 = scmp.ne.s32.totalorder %s416, %s417
    %p429 = scmp.eq.s32.totalorder %s77, 1
    %p430 = por %p428, %p429
    %p432 = scmp.ne.s32.totalorder %s417, %s431
    %p433 = scmp.eq.s32.totalorder %s77, 0
    %p434 = por %p432, %p433
    %s436 = sadd.s32 %s435, 1
    %p439 = scmp.eq.s32.totalorder %s71, 1
    %p440 = scmp.ne.s32.totalorder %s435, %s437
    %p441 = scmp.eq.s32.totalorder %s71, 0
    %p442 = por %p440, %p441
    %p443 = scmp.ne.s32.totalorder %s435, %s437
    %p444 = scmp.eq.s32.totalorder %s76, 1
    %p445 = por %p443, %p444
    %p446 = scmp.ne.s32.totalorder %s437, %s438
    %p447 = scmp.eq.s32.totalorder %s76, 0
    %p448 = por %p446, %p447
    %p449 = scmp.ne.s32.totalorder %s437, %s438
    %p450 = scmp.eq.s32.totalorder %s77, 1
    %p451 = por %p449, %p450
    %p453 = scmp.ne.s32.totalorder %s438, %s452
    %p454 = scmp.eq.s32.totalorder %s77, 0
    %p455 = por %p453, %p454
    %s457 = sadd.s32 %s456, 1
    %p460 = scmp.eq.s32.totalorder %s71, 1
    %p461 = scmp.ne.s32.totalorder %s456, %s458
    %p462 = scmp.eq.s32.totalorder %s71, 0
    %p463 = por %p461, %p462
    %p464 = scmp.ne.s32.totalorder %s456, %s458
    %p465 = scmp.eq.s32.totalorder %s76, 1
    %p466 = por %p464, %p465
    %p467 = scmp.ne.s32.totalorder %s458, %s459
    %p468 = scmp.eq.s32.totalorder %s76, 0
    %p469 = por %p467, %p468
    %p470 = scmp.ne.s32.totalorder %s458, %s459
    %p471 = scmp.eq.s32.totalorder %s77, 1
    %p472 = por %p470, %p471
    %p474 = scmp.ne.s32.totalorder %s459, %s473
    %p475 = scmp.eq.s32.totalorder %s77, 0
    %p476 = por %p474, %p475
    %s478 = sadd.s32 %s477, 1
    %p481 = scmp.eq.s32.totalorder %s71, 1
    %p482 = scmp.ne.s32.totalorder %s477, %s479
    %p483 = scmp.eq.s32.totalorder %s71, 0
    %p484 = por %p482, %p483
    %p485 = scmp.ne.s32.totalorder %s477, %s479
    %p486 = scmp.eq.s32.totalorder %s76, 1
    %p487 = por %p485, %p486
    %p488 = scmp.ne.s32.totalorder %s479, %s480
    %p489 = scmp.eq.s32.totalorder %s76, 0
    %p490 = por %p488, %p489
    %p491 = scmp.ne.s32.totalorder %s479, %s480
    %p492 = scmp.eq.s32.totalorder %s77, 1
    %p493 = por %p491, %p492
    %p495 = scmp.ne.s32.totalorder %s480, %s494
    %p496 = scmp.eq.s32.totalorder %s77, 0
    %p497 = por %p495, %p496
    %s499 = sadd.s32 %s498, 1
    %p502 = scmp.eq.s32.totalorder %s71, 1
    %p503 = scmp.ne.s32.totalorder %s498, %s500
    %p504 = scmp.eq.s32.totalorder %s71, 0
    %p505 = por %p503, %p504
    %p506 = scmp.ne.s32.totalorder %s498, %s500
    %p507 = scmp.eq.s32.totalorder %s76, 1
    %p508 = por %p506, %p507
    %p509 = scmp.ne.s32.totalorder %s500, %s501
    %p510 = scmp.eq.s32.totalorder %s76, 0
    %p511 = por %p509, %p510
    %p512 = scmp.ne.s32.totalorder %s500, %s501
    %p513 = scmp.eq.s32.totalorder %s77, 1
    %p514 = por %p512, %p513
    %p516 = scmp.ne.s32.totalorder %s501, %s515
    %p517 = scmp.eq.s32.totalorder %s77, 0
    %p518 = por %p516, %p517
    %s520 = sadd.s32 %s519, 1
    %p523 = scmp.eq.s32.totalorder %s71, 1
    %p524 = scmp.ne.s32.totalorder %s519, %s521
    %p525 = scmp.eq.s32.totalorder %s71, 0
    %p526 = por %p524, %p525
    %p527 = scmp.ne.s32.totalorder %s519, %s521
    %p528 = scmp.eq.s32.totalorder %s76, 1
    %p529 = por %p527, %p528
    %p530 = scmp.ne.s32.totalorder %s521, %s522
    %p531 = scmp.eq.s32.totalorder %s76, 0
    %p532 = por %p530, %p531
    %p533 = scmp.ne.s32.totalorder %s521, %s522
    %p534 = scmp.eq.s32.totalorder %s77, 1
    %p535 = por %p533, %p534
    %p537 = scmp.ne.s32.totalorder %s522, %s536
    %p538 = scmp.eq.s32.totalorder %s77, 0
    %p539 = por %p537, %p538
    %s541 = sadd.s32 %s540, 1
    %p544 = scmp.eq.s32.totalorder %s71, 1
    %p545 = scmp.ne.s32.totalorder %s540, %s542
    %p546 = scmp.eq.s32.totalorder %s71, 0
    %p547 = por %p545, %p546
    %p548 = scmp.ne.s32.totalorder %s540, %s542
    %p549 = scmp.eq.s32.totalorder %s76, 1
    %p550 = por %p548, %p549
    %p551 = scmp.ne.s32.totalorder %s542, %s543
    %p552 = scmp.eq.s32.totalorder %s76, 0
    %p553 = por %p551, %p552
    %p554 = scmp.ne.s32.totalorder %s542, %s543
    %p555 = scmp.eq.s32.totalorder %s77, 1
    %p556 = por %p554, %p555
    %p558 = scmp.ne.s32.totalorder %s543, %s557
    %p559 = scmp.eq.s32.totalorder %s77, 0
    %p560 = por %p558, %p559
    %s562 = sadd.s32 %s561, 1
    %p565 = scmp.eq.s32.totalorder %s71, 1
    %p566 = scmp.ne.s32.totalorder %s561, %s563
    %p567 = scmp.eq.s32.totalorder %s71, 0
    %p568 = por %p566, %p567
    %p569 = scmp.ne.s32.totalorder %s561, %s563
    %p570 = scmp.eq.s32.totalorder %s76, 1
    %p571 = por %p569, %p570
    %p572 = scmp.ne.s32.totalorder %s563, %s564
    %p573 = scmp.eq.s32.totalorder %s76, 0
    %p574 = por %p572, %p573
    %p575 = scmp.ne.s32.totalorder %s563, %s564
    %p576 = scmp.eq.s32.totalorder %s77, 1
    %p577 = por %p575, %p576
    %p579 = scmp.ne.s32.totalorder %s564, %s578
    %p580 = scmp.eq.s32.totalorder %s77, 0
    %p581 = por %p579, %p580
    %s583 = sadd.s32 %s582, 1
    %p586 = scmp.eq.s32.totalorder %s71, 1
    %p587 = scmp.ne.s32.totalorder %s582, %s584
    %p588 = scmp.eq.s32.totalorder %s71, 0
    %p589 = por %p587, %p588
    %p590 = scmp.ne.s32.totalorder %s582, %s584
    %p591 = scmp.eq.s32.totalorder %s76, 1
    %p592 = por %p590, %p591
    %p593 = scmp.ne.s32.totalorder %s584, %s585
    %p594 = scmp.eq.s32.totalorder %s76, 0
    %p595 = por %p593, %p594
    %p596 = scmp.ne.s32.totalorder %s584, %s585
    %p597 = scmp.eq.s32.totalorder %s77, 1
    %p598 = por %p596, %p597
    %p600 = scmp.ne.s32.totalorder %s585, %s599
    %p601 = scmp.eq.s32.totalorder %s77, 0
    %p602 = por %p600, %p601
    %s604 = sadd.s32 %s603, 1
    %p607 = scmp.eq.s32.totalorder %s71, 1
    %p608 = scmp.ne.s32.totalorder %s603, %s605
    %p609 = scmp.eq.s32.totalorder %s71, 0
    %p610 = por %p608, %p609
    %p611 = scmp.ne.s32.totalorder %s603, %s605
    %p612 = scmp.eq.s32.totalorder %s76, 1
    %p613 = por %p611, %p612
    %p614 = scmp.ne.s32.totalorder %s605, %s606
    %p615 = scmp.eq.s32.totalorder %s76, 0
    %p616 = por %p614, %p615
    %p617 = scmp.ne.s32.totalorder %s605, %s606
    %p618 = scmp.eq.s32.totalorder %s77, 1
    %p619 = por %p617, %p618
    %p621 = scmp.ne.s32.totalorder %s606, %s620
    %p622 = scmp.eq.s32.totalorder %s77, 0
    %p623 = por %p621, %p622
    %s625 = sadd.s32 %s624, 1
    %p628 = scmp.eq.s32.totalorder %s71, 1
    %p629 = scmp.ne.s32.totalorder %s624, %s626
    %p630 = scmp.eq.s32.totalorder %s71, 0
    %p631 = por %p629, %p630
    %p632 = scmp.ne.s32.totalorder %s624, %s626
    %p633 = scmp.eq.s32.totalorder %s76, 1
    %p634 = por %p632, %p633
    %p635 = scmp.ne.s32.totalorder %s626, %s627
    %p636 = scmp.eq.s32.totalorder %s76, 0
    %p637 = por %p635, %p636
    %p638 = scmp.ne.s32.totalorder %s626, %s627
    %p639 = scmp.eq.s32.totalorder %s77, 1
    %p640 = por %p638, %p639
    %p642 = scmp.ne.s32.totalorder %s627, %s641
    %p643 = scmp.eq.s32.totalorder %s77, 0
    %p644 = por %p642, %p643
    %s646 = sadd.s32 %s645, 1
    %p649 = scmp.eq.s32.totalorder %s71, 1
    %p650 = scmp.ne.s32.totalorder %s645, %s647
    %p651 = scmp.eq.s32.totalorder %s71, 0
    %p652 = por %p650, %p651
    %p653 = scmp.ne.s32.totalorder %s645, %s647
    %p654 = scmp.eq.s32.totalorder %s76, 1
    %p655 = por %p653, %p654
    %p656 = scmp.ne.s32.totalorder %s647, %s648
    %p657 = scmp.eq.s32.totalorder %s76, 0
    %p658 = por %p656, %p657
    %p659 = scmp.ne.s32.totalorder %s647, %s648
    %p660 = scmp.eq.s32.totalorder %s77, 1
    %p661 = por %p659, %p660
    %p663 = scmp.ne.s32.totalorder %s648, %s662
    %p664 = scmp.eq.s32.totalorder %s77, 0
    %p665 = por %p663, %p664
    %s667 = sadd.s32 %s666, 1
    %p670 = scmp.eq.s32.totalorder %s71, 1
    %p671 = scmp.ne.s32.totalorder %s666, %s668
    %p672 = scmp.eq.s32.totalorder %s71, 0
    %p673 = por %p671, %p672
    %p674 = scmp.ne.s32.totalorder %s666, %s668
    %p675 = scmp.eq.s32.totalorder %s76, 1
    %p676 = por %p674, %p675
    %p677 = scmp.ne.s32.totalorder %s668, %s669
    %p678 = scmp.eq.s32.totalorder %s76, 0
    %p679 = por %p677, %p678
    %p680 = scmp.ne.s32.totalorder %s668, %s669
    %p681 = scmp.eq.s32.totalorder %s77, 1
    %p682 = por %p680, %p681
    %p684 = scmp.ne.s32.totalorder %s669, %s683
    %p685 = scmp.eq.s32.totalorder %s77, 0
    %p686 = por %p684, %p685
    %s688 = sadd.s32 %s687, 1
    %p691 = scmp.eq.s32.totalorder %s71, 1
    %p692 = scmp.ne.s32.totalorder %s687, %s689
    %p693 = scmp.eq.s32.totalorder %s71, 0
    %p694 = por %p692, %p693
    %p695 = scmp.ne.s32.totalorder %s687, %s689
    %p696 = scmp.eq.s32.totalorder %s76, 1
    %p697 = por %p695, %p696
    %p698 = scmp.ne.s32.totalorder %s689, %s690
    %p699 = scmp.eq.s32.totalorder %s76, 0
    %p700 = por %p698, %p699
    %p701 = scmp.ne.s32.totalorder %s689, %s690
    %p702 = scmp.eq.s32.totalorder %s77, 1
    %p703 = por %p701, %p702
    %p705 = scmp.ne.s32.totalorder %s690, %s704
    %p706 = scmp.eq.s32.totalorder %s77, 0
    %p707 = por %p705, %p706
    %s709 = sadd.s32 %s708, 1
    %p712 = scmp.eq.s32.totalorder %s71, 1
    %p713 = scmp.ne.s32.totalorder %s708, %s710
    %p714 = scmp.eq.s32.totalorder %s71, 0
    %p715 = por %p713, %p714
    %p716 = scmp.ne.s32.totalorder %s708, %s710
    %p717 = scmp.eq.s32.totalorder %s76, 1
    %p718 = por %p716, %p717
    %p719 = scmp.ne.s32.totalorder %s710, %s711
    %p720 = scmp.eq.s32.totalorder %s76, 0
    %p721 = por %p719, %p720
    %p722 = scmp.ne.s32.totalorder %s710, %s711
    %p723 = scmp.eq.s32.totalorder %s77, 1
    %p724 = por %p722, %p723
    %p726 = scmp.ne.s32.totalorder %s711, %s725
    %p727 = scmp.eq.s32.totalorder %s77, 0
    %p728 = por %p726, %p727
    %s730 = sadd.s32 %s729, 1
    %p733 = scmp.eq.s32.totalorder %s71, 1
    %p734 = scmp.ne.s32.totalorder %s729, %s731
    %p735 = scmp.eq.s32.totalorder %s71, 0
    %p736 = por %p734, %p735
    %p737 = scmp.ne.s32.totalorder %s729, %s731
    %p738 = scmp.eq.s32.totalorder %s76, 1
    %p739 = por %p737, %p738
    %p740 = scmp.ne.s32.totalorder %s731, %s732
    %p741 = scmp.eq.s32.totalorder %s76, 0
    %p742 = por %p740, %p741
    %p743 = scmp.ne.s32.totalorder %s731, %s732
    %p744 = scmp.eq.s32.totalorder %s77, 1
    %p745 = por %p743, %p744
    %p747 = scmp.ne.s32.totalorder %s732, %s746
    %p748 = scmp.eq.s32.totalorder %s77, 0
    %p749 = por %p747, %p748
    %s751 = sadd.s32 %s750, 1
    %p754 = scmp.eq.s32.totalorder %s71, 1
    %p755 = scmp.ne.s32.totalorder %s750, %s752
    %p756 = scmp.eq.s32.totalorder %s71, 0
    %p757 = por %p755, %p756
    %p758 = scmp.ne.s32.totalorder %s750, %s752
    %p759 = scmp.eq.s32.totalorder %s76, 1
    %p760 = por %p758, %p759
    %p761 = scmp.ne.s32.totalorder %s752, %s753
    %p762 = scmp.eq.s32.totalorder %s76, 0
    %p763 = por %p761, %p762
    %p764 = scmp.ne.s32.totalorder %s752, %s753
    %p765 = scmp.eq.s32.totalorder %s77, 1
    %p766 = por %p764, %p765
    %p768 = scmp.ne.s32.totalorder %s753, %s767
    %p769 = scmp.eq.s32.totalorder %s77, 0
    %p770 = por %p768, %p769
    %s771 = ssub.s32 %s71, %s78
    %p772 = scmp.eq.s32.totalorder %s771, 0
    %s774 = sadd.s32 %s773, 1
    %s775 = scalar_select %p772, %s773, %s774
    %p778 = pneg %p772
    %p779 = scmp.eq.s32.totalorder %s71, 1
    %p780 = por %p778, %p779
    %p781 = scmp.ne.s32.totalorder %s773, %s776
    %p782 = scmp.eq.s32.totalorder %s71, 0
    %p783 = por %p781, %p782
    %p784 = scmp.ne.s32.totalorder %s773, %s776
    %p785 = scmp.eq.s32.totalorder %s76, 1
    %p786 = por %p784, %p785
    %p787 = scmp.ne.s32.totalorder %s776, %s777
    %p788 = scmp.eq.s32.totalorder %s76, 0
    %p789 = por %p787, %p788
    %p790 = scmp.ne.s32.totalorder %s776, %s777
    %p791 = scmp.eq.s32.totalorder %s77, 1
    %p792 = por %p790, %p791
    %p794 = scmp.ne.s32.totalorder %s777, %s793
    %p795 = scmp.eq.s32.totalorder %s77, 0
    %p796 = por %p794, %p795
    %p797 = scmp.le.s32.totalorder 1, %s71
    %p798 = scmp.lt.s32.totalorder %s71, 3
    %p799 = pnand %p797, %p798
    %p800 = pneg %p799
    // Predicated region
    $region9: #{siamner_forward.1} parent=5 // pred_check
      _
    $region10: #{siamner_forward.1} parent=5 // pred_check_branch
      %802 = sbr.rel (%p799) target = $region12
    $region11: #{siamner_forward.1} parent=5 // pred_region
      %s803 = ssub.s32 %s71, 1
      // Predicated region
      $region13: #{siamner_forward.1} parent=11 // pred_check
        %p804 = pneg %p196
      $region14: #{siamner_forward.1} parent=11 // pred_check_branch
        %806 = sbr.rel (%p804) target = $region16
      $region15: #{siamner_forward.1} parent=11 // pred_region
        _
      $region16: #{siamner_forward.1} parent=11 // pred_fallthru
        _
      // Predicated region
      $region17: #{siamner_forward.1} parent=11 // pred_check
        %p807 = pneg %p217
      $region18: #{siamner_forward.1} parent=11 // pred_check_branch
        %809 = sbr.rel (%p807) target = $region20
      $region19: #{siamner_forward.1} parent=11 // pred_region
        _
      $region20: #{siamner_forward.1} parent=11 // pred_fallthru
        _
      // Predicated region
      $region21: #{siamner_forward.1} parent=11 // pred_check
        %p810 = pneg %p238
      $region22: #{siamner_forward.1} parent=11 // pred_check_branch
        %812 = sbr.rel (%p810) target = $region24
      $region23: #{siamner_forward.1} parent=11 // pred_region
        _
      $region24: #{siamner_forward.1} parent=11 // pred_fallthru
        _
      // Predicated region
      $region25: #{siamner_forward.1} parent=11 // pred_check
        %p813 = pneg %p259
      $region26: #{siamner_forward.1} parent=11 // pred_check_branch
        %815 = sbr.rel (%p813) target = $region28
      $region27: #{siamner_forward.1} parent=11 // pred_region
        _
      $region28: #{siamner_forward.1} parent=11 // pred_fallthru
        _
      // Predicated region
      $region29: #{siamner_forward.1} parent=11 // pred_check
        %p816 = pneg %p280
      $region30: #{siamner_forward.1} parent=11 // pred_check_branch
        %818 = sbr.rel (%p816) target = $region32
      $region31: #{siamner_forward.1} parent=11 // pred_region
        _
      $region32: #{siamner_forward.1} parent=11 // pred_fallthru
        _
      // Predicated region
      $region33: #{siamner_forward.1} parent=11 // pred_check
        %p819 = pneg %p301
      $region34: #{siamner_forward.1} parent=11 // pred_check_branch
        %821 = sbr.rel (%p819) target = $region36
      $region35: #{siamner_forward.1} parent=11 // pred_region
        _
      $region36: #{siamner_forward.1} parent=11 // pred_fallthru
        _
      // Predicated region
      $region37: #{siamner_forward.1} parent=11 // pred_check
        %p822 = pneg %p322
      $region38: #{siamner_forward.1} parent=11 // pred_check_branch
        %824 = sbr.rel (%p822) target = $region40
      $region39: #{siamner_forward.1} parent=11 // pred_region
        _
      $region40: #{siamner_forward.1} parent=11 // pred_fallthru
        _
      // Predicated region
      $region41: #{siamner_forward.1} parent=11 // pred_check
        %p825 = pneg %p343
      $region42: #{siamner_forward.1} parent=11 // pred_check_branch
        %827 = sbr.rel (%p825) target = $region44
      $region43: #{siamner_forward.1} parent=11 // pred_region
        _
      $region44: #{siamner_forward.1} parent=11 // pred_fallthru
        _
      // Predicated region
      $region45: #{siamner_forward.1} parent=11 // pred_check
        %p828 = pneg %p364
      $region46: #{siamner_forward.1} parent=11 // pred_check_branch
        %830 = sbr.rel (%p828) target = $region48
      $region47: #{siamner_forward.1} parent=11 // pred_region
        _
      $region48: #{siamner_forward.1} parent=11 // pred_fallthru
        _
      // Predicated region
      $region49: #{siamner_forward.1} parent=11 // pred_check
        %p831 = pneg %p385
      $region50: #{siamner_forward.1} parent=11 // pred_check_branch
        %833 = sbr.rel (%p831) target = $region52
      $region51: #{siamner_forward.1} parent=11 // pred_region
        _
      $region52: #{siamner_forward.1} parent=11 // pred_fallthru
        _
      // Predicated region
      $region53: #{siamner_forward.1} parent=11 // pred_check
        %p834 = pneg %p406
      $region54: #{siamner_forward.1} parent=11 // pred_check_branch
        %836 = sbr.rel (%p834) target = $region56
      $region55: #{siamner_forward.1} parent=11 // pred_region
        _
      $region56: #{siamner_forward.1} parent=11 // pred_fallthru
        _
      // Predicated region
      $region57: #{siamner_forward.1} parent=11 // pred_check
        %p837 = pneg %p427
      $region58: #{siamner_forward.1} parent=11 // pred_check_branch
        %839 = sbr.rel (%p837) target = $region60
      $region59: #{siamner_forward.1} parent=11 // pred_region
        _
      $region60: #{siamner_forward.1} parent=11 // pred_fallthru
        _
      // Predicated region
      $region61: #{siamner_forward.1} parent=11 // pred_check
        %p840 = pneg %p448
      $region62: #{siamner_forward.1} parent=11 // pred_check_branch
        %842 = sbr.rel (%p840) target = $region64
      $region63: #{siamner_forward.1} parent=11 // pred_region
        _
      $region64: #{siamner_forward.1} parent=11 // pred_fallthru
        _
      // Predicated region
      $region65: #{siamner_forward.1} parent=11 // pred_check
        %p843 = pneg %p469
      $region66: #{siamner_forward.1} parent=11 // pred_check_branch
        %845 = sbr.rel (%p843) target = $region68
      $region67: #{siamner_forward.1} parent=11 // pred_region
        _
      $region68: #{siamner_forward.1} parent=11 // pred_fallthru
        _
      // Predicated region
      $region69: #{siamner_forward.1} parent=11 // pred_check
        %p846 = pneg %p490
      $region70: #{siamner_forward.1} parent=11 // pred_check_branch
        %848 = sbr.rel (%p846) target = $region72
      $region71: #{siamner_forward.1} parent=11 // pred_region
        _
      $region72: #{siamner_forward.1} parent=11 // pred_fallthru
        _
      // Predicated region
      $region73: #{siamner_forward.1} parent=11 // pred_check
        %p849 = pneg %p511
      $region74: #{siamner_forward.1} parent=11 // pred_check_branch
        %851 = sbr.rel (%p849) target = $region76
      $region75: #{siamner_forward.1} parent=11 // pred_region
        _
      $region76: #{siamner_forward.1} parent=11 // pred_fallthru
        _
      // Predicated region
      $region77: #{siamner_forward.1} parent=11 // pred_check
        %p852 = pneg %p532
      $region78: #{siamner_forward.1} parent=11 // pred_check_branch
        %854 = sbr.rel (%p852) target = $region80
      $region79: #{siamner_forward.1} parent=11 // pred_region
        _
      $region80: #{siamner_forward.1} parent=11 // pred_fallthru
        _
      // Predicated region
      $region81: #{siamner_forward.1} parent=11 // pred_check
        %p855 = pneg %p553
      $region82: #{siamner_forward.1} parent=11 // pred_check_branch
        %857 = sbr.rel (%p855) target = $region84
      $region83: #{siamner_forward.1} parent=11 // pred_region
        _
      $region84: #{siamner_forward.1} parent=11 // pred_fallthru
        _
      // Predicated region
      $region85: #{siamner_forward.1} parent=11 // pred_check
        %p858 = pneg %p574
      $region86: #{siamner_forward.1} parent=11 // pred_check_branch
        %860 = sbr.rel (%p858) target = $region88
      $region87: #{siamner_forward.1} parent=11 // pred_region
        _
      $region88: #{siamner_forward.1} parent=11 // pred_fallthru
        _
      // Predicated region
      $region89: #{siamner_forward.1} parent=11 // pred_check
        %p861 = pneg %p595
      $region90: #{siamner_forward.1} parent=11 // pred_check_branch
        %863 = sbr.rel (%p861) target = $region92
      $region91: #{siamner_forward.1} parent=11 // pred_region
        _
      $region92: #{siamner_forward.1} parent=11 // pred_fallthru
        _
      // Predicated region
      $region93: #{siamner_forward.1} parent=11 // pred_check
        %p864 = pneg %p616
      $region94: #{siamner_forward.1} parent=11 // pred_check_branch
        %866 = sbr.rel (%p864) target = $region96
      $region95: #{siamner_forward.1} parent=11 // pred_region
        _
      $region96: #{siamner_forward.1} parent=11 // pred_fallthru
        _
      // Predicated region
      $region97: #{siamner_forward.1} parent=11 // pred_check
        %p867 = pneg %p637
      $region98: #{siamner_forward.1} parent=11 // pred_check_branch
        %869 = sbr.rel (%p867) target = $region100
      $region99: #{siamner_forward.1} parent=11 // pred_region
        _
      $region100: #{siamner_forward.1} parent=11 // pred_fallthru
        _
      // Predicated region
      $region101: #{siamner_forward.1} parent=11 // pred_check
        %p870 = pneg %p658
      $region102: #{siamner_forward.1} parent=11 // pred_check_branch
        %872 = sbr.rel (%p870) target = $region104
      $region103: #{siamner_forward.1} parent=11 // pred_region
        _
      $region104: #{siamner_forward.1} parent=11 // pred_fallthru
        _
      // Predicated region
      $region105: #{siamner_forward.1} parent=11 // pred_check
        %p873 = pneg %p679
      $region106: #{siamner_forward.1} parent=11 // pred_check_branch
        %875 = sbr.rel (%p873) target = $region108
      $region107: #{siamner_forward.1} parent=11 // pred_region
        _
      $region108: #{siamner_forward.1} parent=11 // pred_fallthru
        _
      // Predicated region
      $region109: #{siamner_forward.1} parent=11 // pred_check
        %p876 = pneg %p700
      $region110: #{siamner_forward.1} parent=11 // pred_check_branch
        %878 = sbr.rel (%p876) target = $region112
      $region111: #{siamner_forward.1} parent=11 // pred_region
        _
      $region112: #{siamner_forward.1} parent=11 // pred_fallthru
        _
      // Predicated region
      $region113: #{siamner_forward.1} parent=11 // pred_check
        %p879 = pneg %p721
      $region114: #{siamner_forward.1} parent=11 // pred_check_branch
        %881 = sbr.rel (%p879) target = $region116
      $region115: #{siamner_forward.1} parent=11 // pred_region
        _
      $region116: #{siamner_forward.1} parent=11 // pred_fallthru
        _
      // Predicated region
      $region117: #{siamner_forward.1} parent=11 // pred_check
        %p882 = pneg %p742
      $region118: #{siamner_forward.1} parent=11 // pred_check_branch
        %884 = sbr.rel (%p882) target = $region120
      $region119: #{siamner_forward.1} parent=11 // pred_region
        _
      $region120: #{siamner_forward.1} parent=11 // pred_fallthru
        _
      // Predicated region
      $region121: #{siamner_forward.1} parent=11 // pred_check
        %p885 = pneg %p763
      $region122: #{siamner_forward.1} parent=11 // pred_check_branch
        %887 = sbr.rel (%p885) target = $region124
      $region123: #{siamner_forward.1} parent=11 // pred_region
        _
      $region124: #{siamner_forward.1} parent=11 // pred_fallthru
        _
    $region12: #{siamner_forward.1} parent=5 // pred_fallthru
      _
    %p888 = scmp.lt.s32.totalorder %s71, 2
    // Predicated region
    $region125: #{siamner_forward.1} parent=5 // pred_check
      %p889 = pneg %p888
    $region126: #{siamner_forward.1} parent=5 // pred_check_branch
      %891 = sbr.rel (%p889) target = $region128
    $region127: #{siamner_forward.1} parent=5 // pred_region
      // Predicated region
      $region129: #{siamner_forward.1} parent=127 // pred_check
        %p892 = pneg %p91
      $region130: #{siamner_forward.1} parent=127 // pred_check_branch
        %894 = sbr.rel (%p892) target = $region132
      $region131: #{siamner_forward.1} parent=127 // pred_region
        %p895 = scmp.lt.s32.totalorder %s71, 1
        %s896 = scalar_select %p895, %s71, 1
        %s897 = smul.addr %s896, 8
        %s898 = scalar_lea.vmem %s1, %s897
      $region132: #{siamner_forward.1} parent=127 // pred_fallthru
        _
      // Predicated region
      $region133: #{siamner_forward.1} parent=127 // pred_check
        %p899 = pneg %p117
      $region134: #{siamner_forward.1} parent=127 // pred_check_branch
        %901 = sbr.rel (%p899) target = $region136
      $region135: #{siamner_forward.1} parent=127 // pred_region
        %p902 = scmp.lt.s32.totalorder %s71, 1
        %s903 = scalar_select %p902, %s71, 1
        %s904 = smul.addr %s903, 7
        %s905 = smul.addr %s904, 8
        %s906 = scalar_lea.vmem %s3, %s905
      $region136: #{siamner_forward.1} parent=127 // pred_fallthru
        _
      // Predicated region
      $region137: #{siamner_forward.1} parent=127 // pred_check
        %p907 = pneg %p143
      $region138: #{siamner_forward.1} parent=127 // pred_check_branch
        %909 = sbr.rel (%p907) target = $region140
      $region139: #{siamner_forward.1} parent=127 // pred_region
        %p910 = scmp.lt.s32.totalorder %s71, 1
        %s911 = scalar_select %p910, %s71, 1
        %s912 = scalar_lea.vmem %s5, %s911
      $region140: #{siamner_forward.1} parent=127 // pred_fallthru
        _
      // Predicated region
      $region141: #{siamner_forward.1} parent=127 // pred_check
        %p913 = pneg %p169
      $region142: #{siamner_forward.1} parent=127 // pred_check_branch
        %915 = sbr.rel (%p913) target = $region144
      $region143: #{siamner_forward.1} parent=127 // pred_region
        %p916 = scmp.lt.s32.totalorder %s71, 1
        %s917 = scalar_select %p916, %s71, 1
        %s918 = scalar_lea.vmem %s7, %s917
      $region144: #{siamner_forward.1} parent=127 // pred_fallthru
        _
    $region128: #{siamner_forward.1} parent=5 // pred_fallthru
      _
    %p919 = scmp.le.s32.totalorder 1, %s71
    %p920 = scmp.lt.s32.totalorder %s71, 3
    %p921 = pnand %p919, %p920
    %p922 = pneg %p921
    // Predicated region
    $region145: #{siamner_forward.1} parent=5 // pred_check
      _
    $region146: #{siamner_forward.1} parent=5 // pred_check_branch
      %924 = sbr.rel (%p921) target = $region148
    $region147: #{siamner_forward.1} parent=5 // pred_region
      %s925 = ssub.s32 %s71, 1
      %p926 = scmp.lt.s32.totalorder %s76, 1
      %s927 = scalar_select %p926, %s76, 1
      %s928 = smul.addr %s927, 8
      %s929 = scalar_lea.vmem %s1, %s928
      %p930 = pneg %p97
      %p931 = pneg %p94
      %p932 = scmp.lt.s32.totalorder %s76, 1
      %s933 = scalar_select %p932, %s76, 1
      %s934 = smul.addr %s933, 7
      %s935 = smul.addr %s934, 8
      %s936 = scalar_lea.vmem %s3, %s935
      %p937 = pneg %p123
      %p938 = pneg %p120
      %p939 = scmp.lt.s32.totalorder %s76, 1
      %s940 = scalar_select %p939, %s76, 1
      %s941 = scalar_lea.vmem %s5, %s940
      %p942 = pneg %p149
      %p943 = pneg %p146
      %p944 = scmp.lt.s32.totalorder %s76, 1
      %s945 = scalar_select %p944, %s76, 1
      %s946 = scalar_lea.vmem %s7, %s945
      %p947 = pneg %p175
      %p948 = pneg %p172
      %p949 = pneg %p196
      %p950 = pneg %p193
      %p951 = pneg %p217
      %p952 = pneg %p214
      %p953 = pneg %p238
      %p954 = pneg %p235
      %p955 = pneg %p259
      %p956 = pneg %p256
      %p957 = pneg %p280
      %p958 = pneg %p277
      %p959 = pneg %p301
      %p960 = pneg %p298
      %p961 = pneg %p322
      %p962 = pneg %p319
      %p963 = pneg %p343
      %p964 = pneg %p340
      %p965 = pneg %p364
      %p966 = pneg %p361
      %p967 = pneg %p385
      %p968 = pneg %p382
      %p969 = pneg %p406
      %p970 = pneg %p403
      %p971 = pneg %p427
      %p972 = pneg %p424
      %p973 = pneg %p448
      %p974 = pneg %p445
      %p975 = pneg %p469
      %p976 = pneg %p466
      %p977 = pneg %p490
      %p978 = pneg %p487
      %p979 = pneg %p511
      %p980 = pneg %p508
      %p981 = pneg %p532
      %p982 = pneg %p529
      %p983 = pneg %p553
      %p984 = pneg %p550
      %p985 = pneg %p574
      %p986 = pneg %p571
      %p987 = pneg %p595
      %p988 = pneg %p592
      %p989 = pneg %p616
      %p990 = pneg %p613
      %p991 = pneg %p637
      %p992 = pneg %p634
      %p993 = pneg %p658
      %p994 = pneg %p655
      %p995 = pneg %p679
      %p996 = pneg %p676
      %p997 = pneg %p700
      %p998 = pneg %p697
      %p999 = pneg %p721
      %p1000 = pneg %p718
      %p1001 = pneg %p742
      %p1002 = pneg %p739
      %p1003 = pneg %p763
      %p1004 = pneg %p760
      %p1005 = pneg %p789
      %p1006 = pneg %p786
      %p1007 = scmp.lt.s32.totalorder %s76, 1
      %s1008 = scalar_select %p1007, %s76, 1
      %s1009 = smul.addr %s1008, 8
      %s1010 = scalar_lea.vmem %s65, %s1009
      %p1011 = scmp.lt.s32.totalorder %s76, 1
      %s1012 = scalar_select %p1011, %s76, 1
      %s1013 = smul.addr %s1012, 8
      %s1014 = scalar_lea.vmem %s1, %s1013
      %p1015 = scmp.lt.s32.totalorder %s76, 1
      %s1016 = scalar_select %p1015, %s76, 1
      %s1017 = smul.addr %s1016, 7
      %s1018 = smul.addr %s1017, 8
      %s1019 = scalar_lea.vmem %s3, %s1018
      %p1020 = scmp.lt.s32.totalorder %s76, 1
      %s1021 = scalar_select %p1020, %s76, 1
      %s1022 = scalar_lea.vmem %s5, %s1021
      %p1023 = scmp.lt.s32.totalorder %s76, 1
      %s1024 = scalar_select %p1023, %s76, 1
      %s1025 = scalar_lea.vmem %s7, %s1024
      %p1026 = scmp.lt.s32.totalorder %s76, 1
      %s1027 = scalar_select %p1026, %s76, 1
      %s1028 = smul.addr %s1027, 8
      %s1029 = scalar_lea.vmem %s65, %s1028
      %v1031 = vld [vmem:[%s1014] sm:$0xff]
      %v1032 = vld [vmem:[%s9] sm:$0x1]
      %s1033 = scalar_lea.vmem %s9, 1
      %v1034 = vld [vmem:[%s1033] sm:$0x1]
      %vm1035 = vcmask 523264
      %v1036 = vsel %vm1035, %v1031, 0.0
      %1037 = vadd.xlane.f32.xlu0 %v1036
      %v1038 = vpop.xlane.xlu0 %1037
      %v1039 = vrcp.pop 64.0
      %v1040 = vmul.f32 64.0, %v1039
      %v1041 = vsub.f32 1.0, %v1040
      %v1042 = vmul.f32 %v1039, %v1041
      %v1043 = vadd.f32 %v1039, %v1042
      %vm1044 = vweird.f32 %v1039
      %v1045 = vsel %vm1044, %v1039, %v1043
      %v1046 = vmul.f32 %v1038, %v1045
      %v1047 = vsub.f32 %v1031, %v1046
      %v1048 = vmul.f32 %v1047, %v1047
      %v1049 = vsel %vm1035, %v1048, 0.0
      %1050 = vadd.xlane.f32.xlu0 %v1049
      %v1051 = vpop.xlane.xlu0 %1050
      %v1052 = vmul.f32 %v1051, %v1045
      %v1053 = vadd.f32 %v1052, 1e-12
      %v1054 = vrsqrt.pop %v1053
      %v1055 = vmul.f32 %v1054, %v1053
      %v1056 = vmul.f32 %v1055, %v1054
      %v1057 = vmul.f32 0.5, %v1056
      %v1058 = vsub.f32 1.5, %v1057
      %v1059 = vmul.f32 %v1054, %v1058
      %vm1060 = vweird.f32 %v1053
      %vm1061 = vweird.f32 %v1054
      %vm1062 = vmor %vm1060, %vm1061
      %v1063 = vsel %vm1062, %v1054, %v1059
      %v1064 = vmul.f32 %v1047, %v1063
      %v1066 = vperm.slane %v1032, 0
      %v1068 = vmul.f32 %v1064, %v1066
      %v1070 = vperm.slane %v1034, 0
      %v1072 = vadd.f32 %v1068, %v1070
      %v1073 = vld [vmem:[%s1019] sm:$0xff]
      %v1074 = vld [vmem:[%s1019 + $0x8] sm:$0xff]
      %v1075 = vld [vmem:[%s1019 + $0x10] sm:$0xff]
      %v1076 = vld [vmem:[%s1019 + $0x18] sm:$0xff]
      %v1077 = vld [vmem:[%s1019 + $0x20] sm:$0xff]
      %v1078 = vld [vmem:[%s1019 + $0x28] sm:$0xff]
      %v1079 = vld [vmem:[%s1019 + $0x30] sm:$0x1]
      %v1080 = vld [vmem:[%s11] sm:$0xff]
      %v1081 = vld [vmem:[%s11 + $0x8] sm:$0xff]
      %v1082 = vld [vmem:[%s11 + $0x10] sm:$0xff]
      %v1083 = vld [vmem:[%s11 + $0x18] sm:$0xff]
      %v1084 = vld [vmem:[%s11 + $0x20] sm:$0xff]
      %v1085 = vld [vmem:[%s11 + $0x28] sm:$0xff]
      %v1086 = vld [vmem:[%s11 + $0x30] sm:$0xff]
      %v1087 = vld [vmem:[%s11 + $0x38] sm:$0xff]
      %v1088 = vld [vmem:[%s11 + $0x40] sm:$0xff]
      %v1089 = vld [vmem:[%s11 + $0x48] sm:$0xff]
      %v1090 = vld [vmem:[%s11 + $0x50] sm:$0xff]
      %v1091 = vld [vmem:[%s11 + $0x58] sm:$0xff]
      %v1092 = vld [vmem:[%s11 + $0x60] sm:$0xff]
      %v1093 = vld [vmem:[%s11 + $0x68] sm:$0xff]
      %v1094 = vld [vmem:[%s11 + $0x70] sm:$0xff]
      %v1095 = vld [vmem:[%s11 + $0x78] sm:$0xff]
      %v1096 = vld [vmem:[%s11 + $0x80] sm:$0xff]
      %v1097 = vld [vmem:[%s11 + $0x88] sm:$0xff]
      %v1098 = vld [vmem:[%s11 + $0x90] sm:$0xff]
      %v1099 = vld [vmem:[%s11 + $0x98] sm:$0xff]
      %v1100 = vld [vmem:[%s11 + $0xa0] sm:$0xff]
      %v1101 = vld [vmem:[%s11 + $0xa8] sm:$0xff]
      %v1102 = vld [vmem:[%s11 + $0xb0] sm:$0xff]
      %v1103 = vld [vmem:[%s11 + $0xb8] sm:$0xff]
      %v1104 = vld [vmem:[%s11 + $0xc0] sm:$0xff]
      %v1105 = vld [vmem:[%s11 + $0xc8] sm:$0xff]
      %v1106 = vld [vmem:[%s11 + $0xd0] sm:$0xff]
      %v1107 = vld [vmem:[%s11 + $0xd8] sm:$0xff]
      %v1108 = vld [vmem:[%s11 + $0xe0] sm:$0xff]
      %v1109 = vld [vmem:[%s11 + $0xe8] sm:$0xff]
      %v1110 = vld [vmem:[%s11 + $0xf0] sm:$0xff]
      %v1111 = vld [vmem:[%s11 + $0xf8] sm:$0xff]
      %v1112 = vld [vmem:[%s11 + $0x100] sm:$0xff]
      %v1113 = vld [vmem:[%s11 + $0x108] sm:$0xff]
      %v1114 = vld [vmem:[%s11 + $0x110] sm:$0xff]
      %v1115 = vld [vmem:[%s11 + $0x118] sm:$0xff]
      %v1116 = vld [vmem:[%s11 + $0x120] sm:$0xff]
      %v1117 = vld [vmem:[%s11 + $0x128] sm:$0xff]
      %v1118 = vld [vmem:[%s11 + $0x130] sm:$0xff]
      %v1119 = vld [vmem:[%s11 + $0x138] sm:$0xff]
      %v1120 = vld [vmem:[%s11 + $0x140] sm:$0xff]
      %v1121 = vld [vmem:[%s11 + $0x148] sm:$0xff]
      %v1122 = vld [vmem:[%s11 + $0x150] sm:$0xff]
      %v1123 = vld [vmem:[%s11 + $0x158] sm:$0xff]
      %v1124 = vld [vmem:[%s11 + $0x160] sm:$0xff]
      %v1125 = vld [vmem:[%s11 + $0x168] sm:$0xff]
      %v1126 = vld [vmem:[%s11 + $0x170] sm:$0xff]
      %v1127 = vld [vmem:[%s11 + $0x178] sm:$0xff]
      %v1128 = vld [vmem:[%s11 + $0x180] sm:$0xff]
      %v1129 = vld [vmem:[%s11 + $0x188] sm:$0xff]
      %v1130 = vld [vmem:[%s11 + $0x190] sm:$0xff]
      %v1131 = vld [vmem:[%s11 + $0x198] sm:$0xff]
      %v1132 = vld [vmem:[%s11 + $0x1a0] sm:$0xff]
      %v1133 = vld [vmem:[%s11 + $0x1a8] sm:$0xff]
      %v1134 = vld [vmem:[%s11 + $0x1b0] sm:$0xff]
      %v1135 = vld [vmem:[%s11 + $0x1b8] sm:$0xff]
      %v1136 = vld [vmem:[%s11 + $0x1c0] sm:$0xff]
      %v1137 = vld [vmem:[%s11 + $0x1c8] sm:$0xff]
      %v1138 = vld [vmem:[%s11 + $0x1d0] sm:$0xff]
      %v1139 = vld [vmem:[%s11 + $0x1d8] sm:$0xff]
      %v1140 = vld [vmem:[%s11 + $0x1e0] sm:$0xff]
      %v1141 = vld [vmem:[%s11 + $0x1e8] sm:$0xff]
      %v1142 = vld [vmem:[%s11 + $0x1f0] sm:$0xff]
      %v1143 = vld [vmem:[%s11 + $0x1f8] sm:$0xff]
      %v1144 = vpack.c.bf16 %v1074, %v1073
      %v1145 = vpack.c.bf16 %v1076, %v1075
      %v1146 = vpack.c.bf16 %v1078, %v1077
      %v1147 = vpack.c.bf16 %v1079, %v1079
      %v1148 = vld [vmem:[%s13] sm:$0xff]
      %v1149 = vld [vmem:[%s13 + $0x8] sm:$0xff]
      %v1152 = vperm.slane %v1148, 0
      %v1153 = vperm.slane %v1148, 1
      %v1154 = vperm.slane %v1148, 2
      %v1155 = vperm.slane %v1148, 3
      %v1156 = vperm.slane %v1148, 4
      %v1157 = vperm.slane %v1148, 5
      %v1158 = vperm.slane %v1148, 6
      %v1159 = vperm.slane %v1148, 7
      %v1160 = vperm.slane %v1149, 0
      %v1161 = vperm.slane %v1149, 1
      %v1162 = vperm.slane %v1149, 2
      %v1163 = vperm.slane %v1149, 3
      %v1164 = vperm.slane %v1149, 4
      %v1165 = vperm.slane %v1149, 5
      %v1166 = vperm.slane %v1149, 6
      %v1167 = vperm.slane %v1149, 7
      %v1248 = vunpack.c.l.b16 %v1080
      %v1249 = vunpack.c.h.b16 %v1080
      %v1250 = vunpack.c.l.b16 %v1081
      %v1251 = vunpack.c.h.b16 %v1081
      %v1252 = vunpack.c.l.b16 %v1082
      %v1253 = vunpack.c.h.b16 %v1082
      %v1254 = vunpack.c.l.b16 %v1083
      %v1255 = vunpack.c.h.b16 %v1083
      %v1256 = vunpack.c.l.b16 %v1084
      %v1257 = vunpack.c.h.b16 %v1084
      %v1258 = vunpack.c.l.b16 %v1085
      %v1259 = vunpack.c.h.b16 %v1085
      %v1260 = vunpack.c.l.b16 %v1086
      %v1261 = vunpack.c.h.b16 %v1086
      %v1262 = vunpack.c.l.b16 %v1087
      %v1263 = vunpack.c.h.b16 %v1087
      %v1264 = vunpack.c.l.b16 %v1088
      %v1265 = vunpack.c.h.b16 %v1088
      %v1266 = vunpack.c.l.b16 %v1089
      %v1267 = vunpack.c.h.b16 %v1089
      %v1268 = vunpack.c.l.b16 %v1090
      %v1269 = vunpack.c.h.b16 %v1090
      %v1270 = vunpack.c.l.b16 %v1091
      %v1271 = vunpack.c.h.b16 %v1091
      %v1272 = vunpack.c.l.b16 %v1092
      %v1273 = vunpack.c.h.b16 %v1092
      %v1274 = vunpack.c.l.b16 %v1093
      %v1275 = vunpack.c.h.b16 %v1093
      %v1276 = vunpack.c.l.b16 %v1094
      %v1277 = vunpack.c.h.b16 %v1094
      %v1278 = vunpack.c.l.b16 %v1095
      %v1279 = vunpack.c.h.b16 %v1095
      %v1280 = vunpack.c.l.b16 %v1096
      %v1281 = vunpack.c.h.b16 %v1096
      %v1282 = vunpack.c.l.b16 %v1097
      %v1283 = vunpack.c.h.b16 %v1097
      %v1284 = vunpack.c.l.b16 %v1098
      %v1285 = vunpack.c.h.b16 %v1098
      %v1286 = vunpack.c.l.b16 %v1099
      %v1287 = vunpack.c.h.b16 %v1099
      %v1288 = vunpack.c.l.b16 %v1100
      %v1289 = vunpack.c.h.b16 %v1100
      %v1290 = vunpack.c.l.b16 %v1101
      %v1291 = vunpack.c.h.b16 %v1101
      %v1292 = vunpack.c.l.b16 %v1102
      %v1293 = vunpack.c.h.b16 %v1102
      %v1294 = vunpack.c.l.b16 %v1103
      %v1295 = vunpack.c.h.b16 %v1103
      %v1296 = vunpack.c.l.b16 %v1104
      %v1297 = vunpack.c.h.b16 %v1104
      %v1298 = vunpack.c.l.b16 %v1105
      %v1299 = vunpack.c.h.b16 %v1105
      %v1300 = vunpack.c.l.b16 %v1106
      %v1301 = vunpack.c.h.b16 %v1106
      %v1302 = vunpack.c.l.b16 %v1107
      %v1303 = vunpack.c.h.b16 %v1107
      %v1304 = vunpack.c.l.b16 %v1108
      %v1305 = vunpack.c.h.b16 %v1108
      %v1306 = vunpack.c.l.b16 %v1109
      %v1307 = vunpack.c.h.b16 %v1109
      %v1308 = vunpack.c.l.b16 %v1110
      %v1309 = vunpack.c.h.b16 %v1110
      %v1310 = vunpack.c.l.b16 %v1111
      %v1311 = vunpack.c.h.b16 %v1111
      %v1312 = vunpack.c.l.b16 %v1112
      %v1313 = vunpack.c.h.b16 %v1112
      %v1314 = vunpack.c.l.b16 %v1113
      %v1315 = vunpack.c.h.b16 %v1113
      %v1316 = vunpack.c.l.b16 %v1114
      %v1317 = vunpack.c.h.b16 %v1114
      %v1318 = vunpack.c.l.b16 %v1115
      %v1319 = vunpack.c.h.b16 %v1115
      %v1320 = vunpack.c.l.b16 %v1116
      %v1321 = vunpack.c.h.b16 %v1116
      %v1322 = vunpack.c.l.b16 %v1117
      %v1323 = vunpack.c.h.b16 %v1117
      %v1324 = vunpack.c.l.b16 %v1118
      %v1325 = vunpack.c.h.b16 %v1118
      %v1326 = vunpack.c.l.b16 %v1119
      %v1327 = vunpack.c.h.b16 %v1119
      %v1328 = vunpack.c.l.b16 %v1120
      %v1329 = vunpack.c.h.b16 %v1120
      %v1330 = vunpack.c.l.b16 %v1121
      %v1331 = vunpack.c.h.b16 %v1121
      %v1332 = vunpack.c.l.b16 %v1122
      %v1333 = vunpack.c.h.b16 %v1122
      %v1334 = vunpack.c.l.b16 %v1123
      %v1335 = vunpack.c.h.b16 %v1123
      %v1336 = vunpack.c.l.b16 %v1124
      %v1337 = vunpack.c.h.b16 %v1124
      %v1338 = vunpack.c.l.b16 %v1125
      %v1339 = vunpack.c.h.b16 %v1125
      %v1340 = vunpack.c.l.b16 %v1126
      %v1341 = vunpack.c.h.b16 %v1126
      %v1342 = vunpack.c.l.b16 %v1127
      %v1343 = vunpack.c.h.b16 %v1127
      %v1344 = vunpack.c.l.b16 %v1128
      %v1345 = vunpack.c.h.b16 %v1128
      %v1346 = vunpack.c.l.b16 %v1129
      %v1347 = vunpack.c.h.b16 %v1129
      %v1348 = vunpack.c.l.b16 %v1130
      %v1349 = vunpack.c.h.b16 %v1130
      %v1350 = vunpack.c.l.b16 %v1131
      %v1351 = vunpack.c.h.b16 %v1131
      %v1352 = vunpack.c.l.b16 %v1132
      %v1353 = vunpack.c.h.b16 %v1132
      %v1354 = vunpack.c.l.b16 %v1133
      %v1355 = vunpack.c.h.b16 %v1133
      %v1356 = vunpack.c.l.b16 %v1134
      %v1357 = vunpack.c.h.b16 %v1134
      %v1358 = vunpack.c.l.b16 %v1135
      %v1359 = vunpack.c.h.b16 %v1135
      %v1360 = vunpack.c.l.b16 %v1136
      %v1361 = vunpack.c.h.b16 %v1136
      %v1362 = vunpack.c.l.b16 %v1137
      %v1363 = vunpack.c.h.b16 %v1137
      %v1364 = vunpack.c.l.b16 %v1138
      %v1365 = vunpack.c.h.b16 %v1138
      %v1366 = vunpack.c.l.b16 %v1139
      %v1367 = vunpack.c.h.b16 %v1139
      %v1368 = vunpack.c.l.b16 %v1140
      %v1369 = vunpack.c.h.b16 %v1140
      %v1370 = vunpack.c.l.b16 %v1141
      %v1371 = vunpack.c.h.b16 %v1141
      %v1372 = vunpack.c.l.b16 %v1142
      %v1373 = vunpack.c.h.b16 %v1142
      %v1374 = vunpack.c.l.b16 %v1143
      %v1375 = vunpack.c.h.b16 %v1143
      %v1376 = vpack.c.b16 %v1264, %v1248
      %v1377 = vpack.c.b16 %v1265, %v1249
      %v1378 = vpack.c.b16 %v1266, %v1250
      %v1379 = vpack.c.b16 %v1267, %v1251
      %v1380 = vpack.c.b16 %v1268, %v1252
      %v1381 = vpack.c.b16 %v1269, %v1253
      %v1382 = vpack.c.b16 %v1270, %v1254
      %v1383 = vpack.c.b16 %v1271, %v1255
      %v1384 = vpack.c.b16 %v1272, %v1256
      %v1385 = vpack.c.b16 %v1273, %v1257
      %v1386 = vpack.c.b16 %v1274, %v1258
      %v1387 = vpack.c.b16 %v1275, %v1259
      %v1388 = vpack.c.b16 %v1276, %v1260
      %v1389 = vpack.c.b16 %v1277, %v1261
      %v1390 = vpack.c.b16 %v1278, %v1262
      %v1391 = vpack.c.b16 %v1279, %v1263
      %v1392 = vpack.c.b16 %v1296, %v1280
      %v1393 = vpack.c.b16 %v1297, %v1281
      %v1394 = vpack.c.b16 %v1298, %v1282
      %v1395 = vpack.c.b16 %v1299, %v1283
      %v1396 = vpack.c.b16 %v1300, %v1284
      %v1397 = vpack.c.b16 %v1301, %v1285
      %v1398 = vpack.c.b16 %v1302, %v1286
      %v1399 = vpack.c.b16 %v1303, %v1287
      %v1400 = vpack.c.b16 %v1304, %v1288
      %v1401 = vpack.c.b16 %v1305, %v1289
      %v1402 = vpack.c.b16 %v1306, %v1290
      %v1403 = vpack.c.b16 %v1307, %v1291
      %v1404 = vpack.c.b16 %v1308, %v1292
      %v1405 = vpack.c.b16 %v1309, %v1293
      %v1406 = vpack.c.b16 %v1310, %v1294
      %v1407 = vpack.c.b16 %v1311, %v1295
      %v1408 = vpack.c.b16 %v1328, %v1312
      %v1409 = vpack.c.b16 %v1329, %v1313
      %v1410 = vpack.c.b16 %v1330, %v1314
      %v1411 = vpack.c.b16 %v1331, %v1315
      %v1412 = vpack.c.b16 %v1332, %v1316
      %v1413 = vpack.c.b16 %v1333, %v1317
      %v1414 = vpack.c.b16 %v1334, %v1318
      %v1415 = vpack.c.b16 %v1335, %v1319
      %v1416 = vpack.c.b16 %v1336, %v1320
      %v1417 = vpack.c.b16 %v1337, %v1321
      %v1418 = vpack.c.b16 %v1338, %v1322
      %v1419 = vpack.c.b16 %v1339, %v1323
      %v1420 = vpack.c.b16 %v1340, %v1324
      %v1421 = vpack.c.b16 %v1341, %v1325
      %v1422 = vpack.c.b16 %v1342, %v1326
      %v1423 = vpack.c.b16 %v1343, %v1327
      %v1424 = vpack.c.b16 %v1360, %v1344
      %v1425 = vpack.c.b16 %v1361, %v1345
      %v1426 = vpack.c.b16 %v1362, %v1346
      %v1427 = vpack.c.b16 %v1363, %v1347
      %v1428 = vpack.c.b16 %v1364, %v1348
      %v1429 = vpack.c.b16 %v1365, %v1349
      %v1430 = vpack.c.b16 %v1366, %v1350
      %v1431 = vpack.c.b16 %v1367, %v1351
      %v1432 = vpack.c.b16 %v1368, %v1352
      %v1433 = vpack.c.b16 %v1369, %v1353
      %v1434 = vpack.c.b16 %v1370, %v1354
      %v1435 = vpack.c.b16 %v1371, %v1355
      %v1436 = vpack.c.b16 %v1372, %v1356
      %v1437 = vpack.c.b16 %v1373, %v1357
      %v1438 = vpack.c.b16 %v1374, %v1358
      %v1439 = vpack.c.b16 %v1375, %v1359
      %v1505 = vsel %vm1035, %v1144, 0
      %v1508 = vsel %vm1035, %v1145, 0
      %v1511 = vsel %vm1035, %v1146, 0
      %v1514 = vsel %vm1035, %v1147, 0
      %1516 = vmatpush.bf16.msra.mxu0 0
      %1517 = vmatpush.bf16.msra.mxu0 0
      %1518 = vmatpush.bf16.msra.mxu0 0
      %1519 = vmatpush.bf16.msra.mxu0 0
      %1520 = vmatpush.bf16.msra.mxu0 %v1424
      %1521 = vmatpush.bf16.msra.mxu0 %v1408
      %1522 = vmatpush.bf16.msra.mxu0 %v1392
      %1523 = vmatpush.bf16.msra.mxu0 %v1376
      %1524 = vmatmul.bf16.gmra.mxu0 %v1505
      %v1525 = vpop.f32.mrf.mxu0
      %v1526 = vadd.f32 %v1152, %v1525
      %v1527 = vpop.f32.mrf.mxu0
      %v1528 = vadd.f32 %v1152, %v1527
      %1529 = vmatmul.bf16.gmra.mxu0 %v1508
      %v1530 = vpop.f32.mrf.mxu0
      %v1531 = vadd.f32 %v1152, %v1530
      %v1532 = vpop.f32.mrf.mxu0
      %v1533 = vadd.f32 %v1152, %v1532
      %1534 = vmatmul.bf16.gmra.mxu0 %v1511
      %v1535 = vpop.f32.mrf.mxu0
      %v1536 = vadd.f32 %v1152, %v1535
      %v1537 = vpop.f32.mrf.mxu0
      %v1538 = vadd.f32 %v1152, %v1537
      %1539 = vmatmul.bf16.gmra.mxu0 %v1514
      %v1540 = vpop.f32.mrf.mxu0
      %v1541 = vadd.f32 %v1152, %v1540
      %v1542 = vpop.f32.mrf.mxu0
      %1543 = vdwg.mxu0
      %1544 = vmatpush.bf16.msra.mxu0 0
      %1545 = vmatpush.bf16.msra.mxu0 0
      %1546 = vmatpush.bf16.msra.mxu0 0
      %1547 = vmatpush.bf16.msra.mxu0 0
      %1548 = vmatpush.bf16.msra.mxu0 %v1425
      %1549 = vmatpush.bf16.msra.mxu0 %v1409
      %1550 = vmatpush.bf16.msra.mxu0 %v1393
      %1551 = vmatpush.bf16.msra.mxu0 %v1377
      %1552 = vmatmul.bf16.gmra.mxu0 %v1505
      %v1553 = vpop.f32.mrf.mxu0
      %v1554 = vadd.f32 %v1153, %v1553
      %v1555 = vpop.f32.mrf.mxu0
      %v1556 = vadd.f32 %v1153, %v1555
      %1557 = vmatmul.bf16.gmra.mxu0 %v1508
      %v1558 = vpop.f32.mrf.mxu0
      %v1559 = vadd.f32 %v1153, %v1558
      %v1560 = vpop.f32.mrf.mxu0
      %v1561 = vadd.f32 %v1153, %v1560
      %1562 = vmatmul.bf16.gmra.mxu0 %v1511
      %v1563 = vpop.f32.mrf.mxu0
      %v1564 = vadd.f32 %v1153, %v1563
      %v1565 = vpop.f32.mrf.mxu0
      %v1566 = vadd.f32 %v1153, %v1565
      %1567 = vmatmul.bf16.gmra.mxu0 %v1514
      %v1568 = vpop.f32.mrf.mxu0
      %v1569 = vadd.f32 %v1153, %v1568
      %v1570 = vpop.f32.mrf.mxu0
      %1571 = vdwg.mxu0
      %1572 = vmatpush.bf16.msra.mxu0 0
      %1573 = vmatpush.bf16.msra.mxu0 0
      %1574 = vmatpush.bf16.msra.mxu0 0
      %1575 = vmatpush.bf16.msra.mxu0 0
      %1576 = vmatpush.bf16.msra.mxu0 %v1426
      %1577 = vmatpush.bf16.msra.mxu0 %v1410
      %1578 = vmatpush.bf16.msra.mxu0 %v1394
      %1579 = vmatpush.bf16.msra.mxu0 %v1378
      %1580 = vmatmul.bf16.gmra.mxu0 %v1505
      %v1581 = vpop.f32.mrf.mxu0
      %v1582 = vadd.f32 %v1154, %v1581
      %v1583 = vpop.f32.mrf.mxu0
      %v1584 = vadd.f32 %v1154, %v1583
      %1585 = vmatmul.bf16.gmra.mxu0 %v1508
      %v1586 = vpop.f32.mrf.mxu0
      %v1587 = vadd.f32 %v1154, %v1586
      %v1588 = vpop.f32.mrf.mxu0
      %v1589 = vadd.f32 %v1154, %v1588
      %1590 = vmatmul.bf16.gmra.mxu0 %v1511
      %v1591 = vpop.f32.mrf.mxu0
      %v1592 = vadd.f32 %v1154, %v1591
      %v1593 = vpop.f32.mrf.mxu0
      %v1594 = vadd.f32 %v1154, %v1593
      %1595 = vmatmul.bf16.gmra.mxu0 %v1514
      %v1596 = vpop.f32.mrf.mxu0
      %v1597 = vadd.f32 %v1154, %v1596
      %v1598 = vpop.f32.mrf.mxu0
      %1599 = vdwg.mxu0
      %1600 = vmatpush.bf16.msra.mxu0 0
      %1601 = vmatpush.bf16.msra.mxu0 0
      %1602 = vmatpush.bf16.msra.mxu0 0
      %1603 = vmatpush.bf16.msra.mxu0 0
      %1604 = vmatpush.bf16.msra.mxu0 %v1427
      %1605 = vmatpush.bf16.msra.mxu0 %v1411
      %1606 = vmatpush.bf16.msra.mxu0 %v1395
      %1607 = vmatpush.bf16.msra.mxu0 %v1379
      %1608 = vmatmul.bf16.gmra.mxu0 %v1505
      %v1609 = vpop.f32.mrf.mxu0
      %v1610 = vadd.f32 %v1155, %v1609
      %v1611 = vpop.f32.mrf.mxu0
      %v1612 = vadd.f32 %v1155, %v1611
      %1613 = vmatmul.bf16.gmra.mxu0 %v1508
      %v1614 = vpop.f32.mrf.mxu0
      %v1615 = vadd.f32 %v1155, %v1614
      %v1616 = vpop.f32.mrf.mxu0
      %v1617 = vadd.f32 %v1155, %v1616
      %1618 = vmatmul.bf16.gmra.mxu0 %v1511
      %v1619 = vpop.f32.mrf.mxu0
      %v1620 = vadd.f32 %v1155, %v1619
      %v1621 = vpop.f32.mrf.mxu0
      %v1622 = vadd.f32 %v1155, %v1621
      %1623 = vmatmul.bf16.gmra.mxu0 %v1514
      %v1624 = vpop.f32.mrf.mxu0
      %v1625 = vadd.f32 %v1155, %v1624
      %v1626 = vpop.f32.mrf.mxu0
      %1627 = vdwg.mxu0
      %1628 = vmatpush.bf16.msra.mxu0 0
      %1629 = vmatpush.bf16.msra.mxu0 0
      %1630 = vmatpush.bf16.msra.mxu0 0
      %1631 = vmatpush.bf16.msra.mxu0 0
      %1632 = vmatpush.bf16.msra.mxu0 %v1428
      %1633 = vmatpush.bf16.msra.mxu0 %v1412
      %1634 = vmatpush.bf16.msra.mxu0 %v1396
      %1635 = vmatpush.bf16.msra.mxu0 %v1380
      %1636 = vmatmul.bf16.gmra.mxu0 %v1505
      %v1637 = vpop.f32.mrf.mxu0
      %v1638 = vadd.f32 %v1156, %v1637
      %v1639 = vpop.f32.mrf.mxu0
      %v1640 = vadd.f32 %v1156, %v1639
      %1641 = vmatmul.bf16.gmra.mxu0 %v1508
      %v1642 = vpop.f32.mrf.mxu0
      %v1643 = vadd.f32 %v1156, %v1642
      %v1644 = vpop.f32.mrf.mxu0
      %v1645 = vadd.f32 %v1156, %v1644
      %1646 = vmatmul.bf16.gmra.mxu0 %v1511
      %v1647 = vpop.f32.mrf.mxu0
      %v1648 = vadd.f32 %v1156, %v1647
      %v1649 = vpop.f32.mrf.mxu0
      %v1650 = vadd.f32 %v1156, %v1649
      %1651 = vmatmul.bf16.gmra.mxu0 %v1514
      %v1652 = vpop.f32.mrf.mxu0
      %v1653 = vadd.f32 %v1156, %v1652
      %v1654 = vpop.f32.mrf.mxu0
      %1655 = vdwg.mxu0
      %1656 = vmatpush.bf16.msra.mxu0 0
      %1657 = vmatpush.bf16.msra.mxu0 0
      %1658 = vmatpush.bf16.msra.mxu0 0
      %1659 = vmatpush.bf16.msra.mxu0 0
      %1660 = vmatpush.bf16.msra.mxu0 %v1429
      %1661 = vmatpush.bf16.msra.mxu0 %v1413
      %1662 = vmatpush.bf16.msra.mxu0 %v1397
      %1663 = vmatpush.bf16.msra.mxu0 %v1381
      %1664 = vmatmul.bf16.gmra.mxu0 %v1505
      %v1665 = vpop.f32.mrf.mxu0
      %v1666 = vadd.f32 %v1157, %v1665
      %v1667 = vpop.f32.mrf.mxu0
      %v1668 = vadd.f32 %v1157, %v1667
      %1669 = vmatmul.bf16.gmra.mxu0 %v1508
      %v1670 = vpop.f32.mrf.mxu0
      %v1671 = vadd.f32 %v1157, %v1670
      %v1672 = vpop.f32.mrf.mxu0
      %v1673 = vadd.f32 %v1157, %v1672
      %1674 = vmatmul.bf16.gmra.mxu0 %v1511
      %v1675 = vpop.f32.mrf.mxu0
      %v1676 = vadd.f32 %v1157, %v1675
      %v1677 = vpop.f32.mrf.mxu0
      %v1678 = vadd.f32 %v1157, %v1677
      %1679 = vmatmul.bf16.gmra.mxu0 %v1514
      %v1680 = vpop.f32.mrf.mxu0
      %v1681 = vadd.f32 %v1157, %v1680
      %v1682 = vpop.f32.mrf.mxu0
      %1683 = vdwg.mxu0
      %1684 = vmatpush.bf16.msra.mxu0 0
      %1685 = vmatpush.bf16.msra.mxu0 0
      %1686 = vmatpush.bf16.msra.mxu0 0
      %1687 = vmatpush.bf16.msra.mxu0 0
      %1688 = vmatpush.bf16.msra.mxu0 %v1430
      %1689 = vmatpush.bf16.msra.mxu0 %v1414
      %1690 = vmatpush.bf16.msra.mxu0 %v1398
      %1691 = vmatpush.bf16.msra.mxu0 %v1382
      %1692 = vmatmul.bf16.gmra.mxu0 %v1505
      %v1693 = vpop.f32.mrf.mxu0
      %v1694 = vadd.f32 %v1158, %v1693
      %v1695 = vpop.f32.mrf.mxu0
      %v1696 = vadd.f32 %v1158, %v1695
      %1697 = vmatmul.bf16.gmra.mxu0 %v1508
      %v1698 = vpop.f32.mrf.mxu0
      %v1699 = vadd.f32 %v1158, %v1698
      %v1700 = vpop.f32.mrf.mxu0
      %v1701 = vadd.f32 %v1158, %v1700
      %1702 = vmatmul.bf16.gmra.mxu0 %v1511
      %v1703 = vpop.f32.mrf.mxu0
      %v1704 = vadd.f32 %v1158, %v1703
      %v1705 = vpop.f32.mrf.mxu0
      %v1706 = vadd.f32 %v1158, %v1705
      %1707 = vmatmul.bf16.gmra.mxu0 %v1514
      %v1708 = vpop.f32.mrf.mxu0
      %v1709 = vadd.f32 %v1158, %v1708
      %v1710 = vpop.f32.mrf.mxu0
      %1711 = vdwg.mxu0
      %1712 = vmatpush.bf16.msra.mxu0 0
      %1713 = vmatpush.bf16.msra.mxu0 0
      %1714 = vmatpush.bf16.msra.mxu0 0
      %1715 = vmatpush.bf16.msra.mxu0 0
      %1716 = vmatpush.bf16.msra.mxu0 %v1431
      %1717 = vmatpush.bf16.msra.mxu0 %v1415
      %1718 = vmatpush.bf16.msra.mxu0 %v1399
      %1719 = vmatpush.bf16.msra.mxu0 %v1383
      %1720 = vmatmul.bf16.gmra.mxu0 %v1505
      %v1721 = vpop.f32.mrf.mxu0
      %v1722 = vadd.f32 %v1159, %v1721
      %v1723 = vpop.f32.mrf.mxu0
      %v1724 = vadd.f32 %v1159, %v1723
      %1725 = vmatmul.bf16.gmra.mxu0 %v1508
      %v1726 = vpop.f32.mrf.mxu0
      %v1727 = vadd.f32 %v1159, %v1726
      %v1728 = vpop.f32.mrf.mxu0
      %v1729 = vadd.f32 %v1159, %v1728
      %1730 = vmatmul.bf16.gmra.mxu0 %v1511
      %v1731 = vpop.f32.mrf.mxu0
      %v1732 = vadd.f32 %v1159, %v1731
      %v1733 = vpop.f32.mrf.mxu0
      %v1734 = vadd.f32 %v1159, %v1733
      %1735 = vmatmul.bf16.gmra.mxu0 %v1514
      %v1736 = vpop.f32.mrf.mxu0
      %v1737 = vadd.f32 %v1159, %v1736
      %v1738 = vpop.f32.mrf.mxu0
      %1739 = vdwg.mxu0
      %1740 = vmatpush.bf16.msra.mxu0 0
      %1741 = vmatpush.bf16.msra.mxu0 0
      %1742 = vmatpush.bf16.msra.mxu0 0
      %1743 = vmatpush.bf16.msra.mxu0 0
      %1744 = vmatpush.bf16.msra.mxu0 %v1432
      %1745 = vmatpush.bf16.msra.mxu0 %v1416
      %1746 = vmatpush.bf16.msra.mxu0 %v1400
      %1747 = vmatpush.bf16.msra.mxu0 %v1384
      %1748 = vmatmul.bf16.gmra.mxu0 %v1505
      %v1749 = vpop.f32.mrf.mxu0
      %v1750 = vadd.f32 %v1160, %v1749
      %v1751 = vpop.f32.mrf.mxu0
      %v1752 = vadd.f32 %v1160, %v1751
      %1753 = vmatmul.bf16.gmra.mxu0 %v1508
      %v1754 = vpop.f32.mrf.mxu0
      %v1755 = vadd.f32 %v1160, %v1754
      %v1756 = vpop.f32.mrf.mxu0
      %v1757 = vadd.f32 %v1160, %v1756
      %1758 = vmatmul.bf16.gmra.mxu0 %v1511
      %v1759 = vpop.f32.mrf.mxu0
      %v1760 = vadd.f32 %v1160, %v1759
      %v1761 = vpop.f32.mrf.mxu0
      %v1762 = vadd.f32 %v1160, %v1761
      %1763 = vmatmul.bf16.gmra.mxu0 %v1514
      %v1764 = vpop.f32.mrf.mxu0
      %v1765 = vadd.f32 %v1160, %v1764
      %v1766 = vpop.f32.mrf.mxu0
      %1767 = vdwg.mxu0
      %1768 = vmatpush.bf16.msra.mxu0 0
      %1769 = vmatpush.bf16.msra.mxu0 0
      %1770 = vmatpush.bf16.msra.mxu0 0
      %1771 = vmatpush.bf16.msra.mxu0 0
      %1772 = vmatpush.bf16.msra.mxu0 %v1433
      %1773 = vmatpush.bf16.msra.mxu0 %v1417
      %1774 = vmatpush.bf16.msra.mxu0 %v1401
      %1775 = vmatpush.bf16.msra.mxu0 %v1385
      %1776 = vmatmul.bf16.gmra.mxu0 %v1505
      %v1777 = vpop.f32.mrf.mxu0
      %v1778 = vadd.f32 %v1161, %v1777
      %v1779 = vpop.f32.mrf.mxu0
      %v1780 = vadd.f32 %v1161, %v1779
      %1781 = vmatmul.bf16.gmra.mxu0 %v1508
      %v1782 = vpop.f32.mrf.mxu0
      %v1783 = vadd.f32 %v1161, %v1782
      %v1784 = vpop.f32.mrf.mxu0
      %v1785 = vadd.f32 %v1161, %v1784
      %1786 = vmatmul.bf16.gmra.mxu0 %v1511
      %v1787 = vpop.f32.mrf.mxu0
      %v1788 = vadd.f32 %v1161, %v1787
      %v1789 = vpop.f32.mrf.mxu0
      %v1790 = vadd.f32 %v1161, %v1789
      %1791 = vmatmul.bf16.gmra.mxu0 %v1514
      %v1792 = vpop.f32.mrf.mxu0
      %v1793 = vadd.f32 %v1161, %v1792
      %v1794 = vpop.f32.mrf.mxu0
      %1795 = vdwg.mxu0
      %1796 = vmatpush.bf16.msra.mxu0 0
      %1797 = vmatpush.bf16.msra.mxu0 0
      %1798 = vmatpush.bf16.msra.mxu0 0
      %1799 = vmatpush.bf16.msra.mxu0 0
      %1800 = vmatpush.bf16.msra.mxu0 %v1434
      %1801 = vmatpush.bf16.msra.mxu0 %v1418
      %1802 = vmatpush.bf16.msra.mxu0 %v1402
      %1803 = vmatpush.bf16.msra.mxu0 %v1386
      %1804 = vmatmul.bf16.gmra.mxu0 %v1505
      %v1805 = vpop.f32.mrf.mxu0
      %v1806 = vadd.f32 %v1162, %v1805
      %v1807 = vpop.f32.mrf.mxu0
      %v1808 = vadd.f32 %v1162, %v1807
      %1809 = vmatmul.bf16.gmra.mxu0 %v1508
      %v1810 = vpop.f32.mrf.mxu0
      %v1811 = vadd.f32 %v1162, %v1810
      %v1812 = vpop.f32.mrf.mxu0
      %v1813 = vadd.f32 %v1162, %v1812
      %1814 = vmatmul.bf16.gmra.mxu0 %v1511
      %v1815 = vpop.f32.mrf.mxu0
      %v1816 = vadd.f32 %v1162, %v1815
      %v1817 = vpop.f32.mrf.mxu0
      %v1818 = vadd.f32 %v1162, %v1817
      %1819 = vmatmul.bf16.gmra.mxu0 %v1514
      %v1820 = vpop.f32.mrf.mxu0
      %v1821 = vadd.f32 %v1162, %v1820
      %v1822 = vpop.f32.mrf.mxu0
      %1823 = vdwg.mxu0
      %1824 = vmatpush.bf16.msra.mxu0 0
      %1825 = vmatpush.bf16.msra.mxu0 0
      %1826 = vmatpush.bf16.msra.mxu0 0
      %1827 = vmatpush.bf16.msra.mxu0 0
      %1828 = vmatpush.bf16.msra.mxu0 %v1435
      %1829 = vmatpush.bf16.msra.mxu0 %v1419
      %1830 = vmatpush.bf16.msra.mxu0 %v1403
      %1831 = vmatpush.bf16.msra.mxu0 %v1387
      %1832 = vmatmul.bf16.gmra.mxu0 %v1505
      %v1833 = vpop.f32.mrf.mxu0
      %v1834 = vadd.f32 %v1163, %v1833
      %v1835 = vpop.f32.mrf.mxu0
      %v1836 = vadd.f32 %v1163, %v1835
      %1837 = vmatmul.bf16.gmra.mxu0 %v1508
      %v1838 = vpop.f32.mrf.mxu0
      %v1839 = vadd.f32 %v1163, %v1838
      %v1840 = vpop.f32.mrf.mxu0
      %v1841 = vadd.f32 %v1163, %v1840
      %1842 = vmatmul.bf16.gmra.mxu0 %v1511
      %v1843 = vpop.f32.mrf.mxu0
      %v1844 = vadd.f32 %v1163, %v1843
      %v1845 = vpop.f32.mrf.mxu0
      %v1846 = vadd.f32 %v1163, %v1845
      %1847 = vmatmul.bf16.gmra.mxu0 %v1514
      %v1848 = vpop.f32.mrf.mxu0
      %v1849 = vadd.f32 %v1163, %v1848
      %v1850 = vpop.f32.mrf.mxu0
      %1851 = vdwg.mxu0
      %1852 = vmatpush.bf16.msra.mxu0 0
      %1853 = vmatpush.bf16.msra.mxu0 0
      %1854 = vmatpush.bf16.msra.mxu0 0
      %1855 = vmatpush.bf16.msra.mxu0 0
      %1856 = vmatpush.bf16.msra.mxu0 %v1436
      %1857 = vmatpush.bf16.msra.mxu0 %v1420
      %1858 = vmatpush.bf16.msra.mxu0 %v1404
      %1859 = vmatpush.bf16.msra.mxu0 %v1388
      %1860 = vmatmul.bf16.gmra.mxu0 %v1505
      %v1861 = vpop.f32.mrf.mxu0
      %v1862 = vadd.f32 %v1164, %v1861
      %v1863 = vpop.f32.mrf.mxu0
      %v1864 = vadd.f32 %v1164, %v1863
      %1865 = vmatmul.bf16.gmra.mxu0 %v1508
      %v1866 = vpop.f32.mrf.mxu0
      %v1867 = vadd.f32 %v1164, %v1866
      %v1868 = vpop.f32.mrf.mxu0
      %v1869 = vadd.f32 %v1164, %v1868
      %1870 = vmatmul.bf16.gmra.mxu0 %v1511
      %v1871 = vpop.f32.mrf.mxu0
      %v1872 = vadd.f32 %v1164, %v1871
      %v1873 = vpop.f32.mrf.mxu0
      %v1874 = vadd.f32 %v1164, %v1873
      %1875 = vmatmul.bf16.gmra.mxu0 %v1514
      %v1876 = vpop.f32.mrf.mxu0
      %v1877 = vadd.f32 %v1164, %v1876
      %v1878 = vpop.f32.mrf.mxu0
      %1879 = vdwg.mxu0
      %1880 = vmatpush.bf16.msra.mxu0 0
      %1881 = vmatpush.bf16.msra.mxu0 0
      %1882 = vmatpush.bf16.msra.mxu0 0
      %1883 = vmatpush.bf16.msra.mxu0 0
      %1884 = vmatpush.bf16.msra.mxu0 %v1437
      %1885 = vmatpush.bf16.msra.mxu0 %v1421
      %1886 = vmatpush.bf16.msra.mxu0 %v1405
      %1887 = vmatpush.bf16.msra.mxu0 %v1389
      %1888 = vmatmul.bf16.gmra.mxu0 %v1505
      %v1889 = vpop.f32.mrf.mxu0
      %v1890 = vadd.f32 %v1165, %v1889
      %v1891 = vpop.f32.mrf.mxu0
      %v1892 = vadd.f32 %v1165, %v1891
      %1893 = vmatmul.bf16.gmra.mxu0 %v1508
      %v1894 = vpop.f32.mrf.mxu0
      %v1895 = vadd.f32 %v1165, %v1894
      %v1896 = vpop.f32.mrf.mxu0
      %v1897 = vadd.f32 %v1165, %v1896
      %1898 = vmatmul.bf16.gmra.mxu0 %v1511
      %v1899 = vpop.f32.mrf.mxu0
      %v1900 = vadd.f32 %v1165, %v1899
      %v1901 = vpop.f32.mrf.mxu0
      %v1902 = vadd.f32 %v1165, %v1901
      %1903 = vmatmul.bf16.gmra.mxu0 %v1514
      %v1904 = vpop.f32.mrf.mxu0
      %v1905 = vadd.f32 %v1165, %v1904
      %v1906 = vpop.f32.mrf.mxu0
      %1907 = vdwg.mxu0
      %1908 = vmatpush.bf16.msra.mxu0 0
      %1909 = vmatpush.bf16.msra.mxu0 0
      %1910 = vmatpush.bf16.msra.mxu0 0
      %1911 = vmatpush.bf16.msra.mxu0 0
      %1912 = vmatpush.bf16.msra.mxu0 %v1438
      %1913 = vmatpush.bf16.msra.mxu0 %v1422
      %1914 = vmatpush.bf16.msra.mxu0 %v1406
      %1915 = vmatpush.bf16.msra.mxu0 %v1390
      %1916 = vmatmul.bf16.gmra.mxu0 %v1505
      %v1917 = vpop.f32.mrf.mxu0
      %v1918 = vadd.f32 %v1166, %v1917
      %v1919 = vpop.f32.mrf.mxu0
      %v1920 = vadd.f32 %v1166, %v1919
      %1921 = vmatmul.bf16.gmra.mxu0 %v1508
      %v1922 = vpop.f32.mrf.mxu0
      %v1923 = vadd.f32 %v1166, %v1922
      %v1924 = vpop.f32.mrf.mxu0
      %v1925 = vadd.f32 %v1166, %v1924
      %1926 = vmatmul.bf16.gmra.mxu0 %v1511
      %v1927 = vpop.f32.mrf.mxu0
      %v1928 = vadd.f32 %v1166, %v1927
      %v1929 = vpop.f32.mrf.mxu0
      %v1930 = vadd.f32 %v1166, %v1929
      %1931 = vmatmul.bf16.gmra.mxu0 %v1514
      %v1932 = vpop.f32.mrf.mxu0
      %v1933 = vadd.f32 %v1166, %v1932
      %v1934 = vpop.f32.mrf.mxu0
      %1935 = vdwg.mxu0
      %1936 = vmatpush.bf16.msra.mxu0 0
      %1937 = vmatpush.bf16.msra.mxu0 0
      %1938 = vmatpush.bf16.msra.mxu0 0
      %1939 = vmatpush.bf16.msra.mxu0 0
      %1940 = vmatpush.bf16.msra.mxu0 %v1439
      %1941 = vmatpush.bf16.msra.mxu0 %v1423
      %1942 = vmatpush.bf16.msra.mxu0 %v1407
      %1943 = vmatpush.bf16.msra.mxu0 %v1391
      %1944 = vmatmul.bf16.gmra.mxu0 %v1505
      %v1945 = vpop.f32.mrf.mxu0
      %v1946 = vadd.f32 %v1167, %v1945
      %v1947 = vpop.f32.mrf.mxu0
      %v1948 = vadd.f32 %v1167, %v1947
      %1949 = vmatmul.bf16.gmra.mxu0 %v1508
      %v1950 = vpop.f32.mrf.mxu0
      %v1951 = vadd.f32 %v1167, %v1950
      %v1952 = vpop.f32.mrf.mxu0
      %v1953 = vadd.f32 %v1167, %v1952
      %1954 = vmatmul.bf16.gmra.mxu0 %v1511
      %v1955 = vpop.f32.mrf.mxu0
      %v1956 = vadd.f32 %v1167, %v1955
      %v1957 = vpop.f32.mrf.mxu0
      %v1958 = vadd.f32 %v1167, %v1957
      %1959 = vmatmul.bf16.gmra.mxu0 %v1514
      %v1960 = vpop.f32.mrf.mxu0
      %v1961 = vadd.f32 %v1167, %v1960
      %v1962 = vpop.f32.mrf.mxu0
      %1963 = vdwg.mxu0
      %v1964 = vpack.c.bf16 %v1528, %v1526
      %v1965 = vpack.c.bf16 %v1556, %v1554
      %v1966 = vpack.c.bf16 %v1584, %v1582
      %v1967 = vpack.c.bf16 %v1612, %v1610
      %v1968 = vpack.c.bf16 %v1640, %v1638
      %v1969 = vpack.c.bf16 %v1668, %v1666
      %v1970 = vpack.c.bf16 %v1696, %v1694
      %v1971 = vpack.c.bf16 %v1724, %v1722
      %v1972 = vpack.c.bf16 %v1752, %v1750
      %v1973 = vpack.c.bf16 %v1780, %v1778
      %v1974 = vpack.c.bf16 %v1808, %v1806
      %v1975 = vpack.c.bf16 %v1836, %v1834
      %v1976 = vpack.c.bf16 %v1864, %v1862
      %v1977 = vpack.c.bf16 %v1892, %v1890
      %v1978 = vpack.c.bf16 %v1920, %v1918
      %v1979 = vpack.c.bf16 %v1948, %v1946
      %v1980 = vpack.c.bf16 %v1533, %v1531
      %v1981 = vpack.c.bf16 %v1561, %v1559
      %v1982 = vpack.c.bf16 %v1589, %v1587
      %v1983 = vpack.c.bf16 %v1617, %v1615
      %v1984 = vpack.c.bf16 %v1645, %v1643
      %v1985 = vpack.c.bf16 %v1673, %v1671
      %v1986 = vpack.c.bf16 %v1701, %v1699
      %v1987 = vpack.c.bf16 %v1729, %v1727
      %v1988 = vpack.c.bf16 %v1757, %v1755
      %v1989 = vpack.c.bf16 %v1785, %v1783
      %v1990 = vpack.c.bf16 %v1813, %v1811
      %v1991 = vpack.c.bf16 %v1841, %v1839
      %v1992 = vpack.c.bf16 %v1869, %v1867
      %v1993 = vpack.c.bf16 %v1897, %v1895
      %v1994 = vpack.c.bf16 %v1925, %v1923
      %v1995 = vpack.c.bf16 %v1953, %v1951
      %v1996 = vpack.c.bf16 %v1538, %v1536
      %v1997 = vpack.c.bf16 %v1566, %v1564
      %v1998 = vpack.c.bf16 %v1594, %v1592
      %v1999 = vpack.c.bf16 %v1622, %v1620
      %v2000 = vpack.c.bf16 %v1650, %v1648
      %v2001 = vpack.c.bf16 %v1678, %v1676
      %v2002 = vpack.c.bf16 %v1706, %v1704
      %v2003 = vpack.c.bf16 %v1734, %v1732
      %v2004 = vpack.c.bf16 %v1762, %v1760
      %v2005 = vpack.c.bf16 %v1790, %v1788
      %v2006 = vpack.c.bf16 %v1818, %v1816
      %v2007 = vpack.c.bf16 %v1846, %v1844
      %v2008 = vpack.c.bf16 %v1874, %v1872
      %v2009 = vpack.c.bf16 %v1902, %v1900
      %v2010 = vpack.c.bf16 %v1930, %v1928
      %v2011 = vpack.c.bf16 %v1958, %v1956
      %v2012 = vpack.c.bf16 %v1541, %v1541
      %v2013 = vpack.c.bf16 %v1569, %v1569
      %v2014 = vpack.c.bf16 %v1597, %v1597
      %v2015 = vpack.c.bf16 %v1625, %v1625
      %v2016 = vpack.c.bf16 %v1653, %v1653
      %v2017 = vpack.c.bf16 %v1681, %v1681
      %v2018 = vpack.c.bf16 %v1709, %v1709
      %v2019 = vpack.c.bf16 %v1737, %v1737
      %v2020 = vpack.c.bf16 %v1765, %v1765
      %v2021 = vpack.c.bf16 %v1793, %v1793
      %v2022 = vpack.c.bf16 %v1821, %v1821
      %v2023 = vpack.c.bf16 %v1849, %v1849
      %v2024 = vpack.c.bf16 %v1877, %v1877
      %v2025 = vpack.c.bf16 %v1905, %v1905
      %v2026 = vpack.c.bf16 %v1933, %v1933
      %v2027 = vpack.c.bf16 %v1961, %v1961
      %v2028 = vld [vmem:[%s15] sm:$0xf]
      %v2029 = vld [vmem:[%s15 + $0x4] sm:$0xf]
      %v2030 = vld [vmem:[%s15 + $0x8] sm:$0xf]
      %v2031 = vld [vmem:[%s15 + $0xc] sm:$0xf]
      %v2032 = vld [vmem:[%s15 + $0x10] sm:$0xf]
      %v2033 = vld [vmem:[%s15 + $0x14] sm:$0xf]
      %v2034 = vld [vmem:[%s15 + $0x18] sm:$0xf]
      %v2035 = vld [vmem:[%s15 + $0x1c] sm:$0xf]
      %v2036 = vld [vmem:[%s15 + $0x20] sm:$0xf]
      %v2037 = vld [vmem:[%s15 + $0x24] sm:$0xf]
      %v2038 = vld [vmem:[%s15 + $0x28] sm:$0xf]
      %v2039 = vld [vmem:[%s15 + $0x2c] sm:$0xf]
      %v2040 = vld [vmem:[%s15 + $0x30] sm:$0xf]
      %v2041 = vld [vmem:[%s15 + $0x34] sm:$0xf]
      %v2042 = vld [vmem:[%s15 + $0x38] sm:$0xf]
      %v2043 = vld [vmem:[%s15 + $0x3c] sm:$0xf]
      %v2044 = vld [vmem:[%s15 + $0x40] sm:$0xf]
      %v2045 = vld [vmem:[%s15 + $0x44] sm:$0xf]
      %v2046 = vld [vmem:[%s15 + $0x48] sm:$0xf]
      %v2047 = vld [vmem:[%s15 + $0x4c] sm:$0xf]
      %v2048 = vld [vmem:[%s15 + $0x50] sm:$0xf]
      %v2049 = vld [vmem:[%s15 + $0x54] sm:$0xf]
      %v2050 = vld [vmem:[%s15 + $0x58] sm:$0xf]
      %v2051 = vld [vmem:[%s15 + $0x5c] sm:$0xf]
      %v2052 = vld [vmem:[%s15 + $0x60] sm:$0xf]
      %v2053 = vld [vmem:[%s15 + $0x64] sm:$0xf]
      %v2054 = vld [vmem:[%s15 + $0x68] sm:$0xf]
      %v2055 = vld [vmem:[%s15 + $0x6c] sm:$0xf]
      %v2056 = vld [vmem:[%s15 + $0x70] sm:$0xf]
      %v2057 = vld [vmem:[%s15 + $0x74] sm:$0xf]
      %v2058 = vld [vmem:[%s15 + $0x78] sm:$0xf]
      %v2059 = vld [vmem:[%s15 + $0x7c] sm:$0xf]
      %v2060 = vld [vmem:[%s15 + $0x80] sm:$0xf]
      %v2061 = vld [vmem:[%s15 + $0x84] sm:$0xf]
      %v2062 = vld [vmem:[%s15 + $0x88] sm:$0xf]
      %v2063 = vld [vmem:[%s15 + $0x8c] sm:$0xf]
      %v2064 = vld [vmem:[%s15 + $0x90] sm:$0xf]
      %v2065 = vld [vmem:[%s15 + $0x94] sm:$0xf]
      %v2066 = vld [vmem:[%s15 + $0x98] sm:$0xf]
      %v2067 = vld [vmem:[%s15 + $0x9c] sm:$0xf]
      %v2068 = vld [vmem:[%s15 + $0xa0] sm:$0xf]
      %v2069 = vld [vmem:[%s15 + $0xa4] sm:$0xf]
      %v2070 = vld [vmem:[%s15 + $0xa8] sm:$0xf]
      %v2071 = vld [vmem:[%s15 + $0xac] sm:$0xf]
      %v2072 = vld [vmem:[%s15 + $0xb0] sm:$0xf]
      %v2073 = vld [vmem:[%s15 + $0xb4] sm:$0xf]
      %v2074 = vld [vmem:[%s15 + $0xb8] sm:$0xf]
      %v2075 = vld [vmem:[%s15 + $0xbc] sm:$0xf]
      %v2076 = vld [vmem:[%s15 + $0xc0] sm:$0xf]
      %v2077 = vld [vmem:[%s15 + $0xc4] sm:$0xf]
      %v2078 = vld [vmem:[%s15 + $0xc8] sm:$0xf]
      %v2079 = vld [vmem:[%s15 + $0xcc] sm:$0xf]
      %v2080 = vld [vmem:[%s15 + $0xd0] sm:$0xf]
      %v2081 = vld [vmem:[%s15 + $0xd4] sm:$0xf]
      %v2082 = vld [vmem:[%s15 + $0xd8] sm:$0xf]
      %v2083 = vld [vmem:[%s15 + $0xdc] sm:$0xf]
      %v2084 = vld [vmem:[%s15 + $0xe0] sm:$0xf]
      %v2085 = vld [vmem:[%s15 + $0xe4] sm:$0xf]
      %v2086 = vld [vmem:[%s15 + $0xe8] sm:$0xf]
      %v2087 = vld [vmem:[%s15 + $0xec] sm:$0xf]
      %v2088 = vld [vmem:[%s15 + $0xf0] sm:$0xf]
      %v2089 = vld [vmem:[%s15 + $0xf4] sm:$0xf]
      %v2090 = vld [vmem:[%s15 + $0xf8] sm:$0xf]
      %v2091 = vld [vmem:[%s15 + $0xfc] sm:$0xf]
      %v2092 = vld [vmem:[%s15 + $0x100] sm:$0xf]
      %v2093 = vld [vmem:[%s15 + $0x104] sm:$0xf]
      %v2094 = vld [vmem:[%s15 + $0x108] sm:$0xf]
      %v2095 = vld [vmem:[%s15 + $0x10c] sm:$0xf]
      %v2096 = vld [vmem:[%s15 + $0x110] sm:$0xf]
      %v2097 = vld [vmem:[%s15 + $0x114] sm:$0xf]
      %v2098 = vld [vmem:[%s15 + $0x118] sm:$0xf]
      %v2099 = vld [vmem:[%s15 + $0x11c] sm:$0xf]
      %v2100 = vld [vmem:[%s15 + $0x120] sm:$0xf]
      %v2101 = vld [vmem:[%s15 + $0x124] sm:$0xf]
      %v2102 = vld [vmem:[%s15 + $0x128] sm:$0xf]
      %v2103 = vld [vmem:[%s15 + $0x12c] sm:$0xf]
      %v2104 = vld [vmem:[%s15 + $0x130] sm:$0xf]
      %v2105 = vld [vmem:[%s15 + $0x134] sm:$0xf]
      %v2106 = vld [vmem:[%s15 + $0x138] sm:$0xf]
      %v2107 = vld [vmem:[%s15 + $0x13c] sm:$0xf]
      %v2108 = vld [vmem:[%s15 + $0x140] sm:$0xf]
      %v2109 = vld [vmem:[%s15 + $0x144] sm:$0xf]
      %v2110 = vld [vmem:[%s15 + $0x148] sm:$0xf]
      %v2111 = vld [vmem:[%s15 + $0x14c] sm:$0xf]
      %v2112 = vld [vmem:[%s15 + $0x150] sm:$0xf]
      %v2113 = vld [vmem:[%s15 + $0x154] sm:$0xf]
      %v2114 = vld [vmem:[%s15 + $0x158] sm:$0xf]
      %v2115 = vld [vmem:[%s15 + $0x15c] sm:$0xf]
      %v2116 = vld [vmem:[%s15 + $0x160] sm:$0xf]
      %v2117 = vld [vmem:[%s15 + $0x164] sm:$0xf]
      %v2118 = vld [vmem:[%s15 + $0x168] sm:$0xf]
      %v2119 = vld [vmem:[%s15 + $0x16c] sm:$0xf]
      %v2120 = vld [vmem:[%s15 + $0x170] sm:$0xf]
      %v2121 = vld [vmem:[%s15 + $0x174] sm:$0xf]
      %v2122 = vld [vmem:[%s15 + $0x178] sm:$0xf]
      %v2123 = vld [vmem:[%s15 + $0x17c] sm:$0xf]
      %v2124 = vld [vmem:[%s15 + $0x180] sm:$0xf]
      %v2125 = vld [vmem:[%s15 + $0x184] sm:$0xf]
      %v2126 = vld [vmem:[%s15 + $0x188] sm:$0xf]
      %v2127 = vld [vmem:[%s15 + $0x18c] sm:$0xf]
      %v2128 = vld [vmem:[%s15 + $0x190] sm:$0xf]
      %v2129 = vld [vmem:[%s15 + $0x194] sm:$0xf]
      %v2130 = vld [vmem:[%s15 + $0x198] sm:$0xf]
      %v2131 = vld [vmem:[%s15 + $0x19c] sm:$0xf]
      %v2132 = vld [vmem:[%s15 + $0x1a0] sm:$0xf]
      %v2133 = vld [vmem:[%s15 + $0x1a4] sm:$0xf]
      %v2134 = vld [vmem:[%s15 + $0x1a8] sm:$0xf]
      %v2135 = vld [vmem:[%s15 + $0x1ac] sm:$0xf]
      %v2136 = vld [vmem:[%s15 + $0x1b0] sm:$0xf]
      %v2137 = vld [vmem:[%s15 + $0x1b4] sm:$0xf]
      %v2138 = vld [vmem:[%s15 + $0x1b8] sm:$0xf]
      %v2139 = vld [vmem:[%s15 + $0x1bc] sm:$0xf]
      %v2140 = vld [vmem:[%s15 + $0x1c0] sm:$0xf]
      %v2141 = vld [vmem:[%s15 + $0x1c4] sm:$0xf]
      %v2142 = vld [vmem:[%s15 + $0x1c8] sm:$0xf]
      %v2143 = vld [vmem:[%s15 + $0x1cc] sm:$0xf]
      %v2144 = vld [vmem:[%s15 + $0x1d0] sm:$0xf]
      %v2145 = vld [vmem:[%s15 + $0x1d4] sm:$0xf]
      %v2146 = vld [vmem:[%s15 + $0x1d8] sm:$0xf]
      %v2147 = vld [vmem:[%s15 + $0x1dc] sm:$0xf]
      %v2148 = vld [vmem:[%s15 + $0x1e0] sm:$0xf]
      %v2149 = vld [vmem:[%s15 + $0x1e4] sm:$0xf]
      %v2150 = vld [vmem:[%s15 + $0x1e8] sm:$0xf]
      %v2151 = vld [vmem:[%s15 + $0x1ec] sm:$0xf]
      %v2152 = vld [vmem:[%s15 + $0x1f0] sm:$0xf]
      %v2153 = vld [vmem:[%s15 + $0x1f4] sm:$0xf]
      %v2154 = vld [vmem:[%s15 + $0x1f8] sm:$0xf]
      %v2155 = vld [vmem:[%s15 + $0x1fc] sm:$0xf]
      %v2156 = vld [vmem:[%s15 + $0x200] sm:$0xf]
      %v2157 = vld [vmem:[%s15 + $0x204] sm:$0xf]
      %v2158 = vld [vmem:[%s15 + $0x208] sm:$0xf]
      %v2159 = vld [vmem:[%s15 + $0x20c] sm:$0xf]
      %v2160 = vld [vmem:[%s15 + $0x210] sm:$0xf]
      %v2161 = vld [vmem:[%s15 + $0x214] sm:$0xf]
      %v2162 = vld [vmem:[%s15 + $0x218] sm:$0xf]
      %v2163 = vld [vmem:[%s15 + $0x21c] sm:$0xf]
      %v2164 = vld [vmem:[%s15 + $0x220] sm:$0xf]
      %v2165 = vld [vmem:[%s15 + $0x224] sm:$0xf]
      %v2166 = vld [vmem:[%s15 + $0x228] sm:$0xf]
      %v2167 = vld [vmem:[%s15 + $0x22c] sm:$0xf]
      %v2168 = vld [vmem:[%s15 + $0x230] sm:$0xf]
      %v2169 = vld [vmem:[%s15 + $0x234] sm:$0xf]
      %v2170 = vld [vmem:[%s15 + $0x238] sm:$0xf]
      %v2171 = vld [vmem:[%s15 + $0x23c] sm:$0xf]
      %v2172 = vld [vmem:[%s15 + $0x240] sm:$0xf]
      %v2173 = vld [vmem:[%s15 + $0x244] sm:$0xf]
      %v2174 = vld [vmem:[%s15 + $0x248] sm:$0xf]
      %v2175 = vld [vmem:[%s15 + $0x24c] sm:$0xf]
      %v2176 = vld [vmem:[%s15 + $0x250] sm:$0xf]
      %v2177 = vld [vmem:[%s15 + $0x254] sm:$0xf]
      %v2178 = vld [vmem:[%s15 + $0x258] sm:$0xf]
      %v2179 = vld [vmem:[%s15 + $0x25c] sm:$0xf]
      %v2180 = vld [vmem:[%s15 + $0x260] sm:$0xf]
      %v2181 = vld [vmem:[%s15 + $0x264] sm:$0xf]
      %v2182 = vld [vmem:[%s15 + $0x268] sm:$0xf]
      %v2183 = vld [vmem:[%s15 + $0x26c] sm:$0xf]
      %v2184 = vld [vmem:[%s15 + $0x270] sm:$0xf]
      %v2185 = vld [vmem:[%s15 + $0x274] sm:$0xf]
      %v2186 = vld [vmem:[%s15 + $0x278] sm:$0xf]
      %v2187 = vld [vmem:[%s15 + $0x27c] sm:$0xf]
      %v2188 = vld [vmem:[%s15 + $0x280] sm:$0xf]
      %v2189 = vld [vmem:[%s15 + $0x284] sm:$0xf]
      %v2190 = vld [vmem:[%s15 + $0x288] sm:$0xf]
      %v2191 = vld [vmem:[%s15 + $0x28c] sm:$0xf]
      %v2192 = vld [vmem:[%s15 + $0x290] sm:$0xf]
      %v2193 = vld [vmem:[%s15 + $0x294] sm:$0xf]
      %v2194 = vld [vmem:[%s15 + $0x298] sm:$0xf]
      %v2195 = vld [vmem:[%s15 + $0x29c] sm:$0xf]
      %v2196 = vld [vmem:[%s15 + $0x2a0] sm:$0xf]
      %v2197 = vld [vmem:[%s15 + $0x2a4] sm:$0xf]
      %v2198 = vld [vmem:[%s15 + $0x2a8] sm:$0xf]
      %v2199 = vld [vmem:[%s15 + $0x2ac] sm:$0xf]
      %v2200 = vld [vmem:[%s15 + $0x2b0] sm:$0xf]
      %v2201 = vld [vmem:[%s15 + $0x2b4] sm:$0xf]
      %v2202 = vld [vmem:[%s15 + $0x2b8] sm:$0xf]
      %v2203 = vld [vmem:[%s15 + $0x2bc] sm:$0xf]
      %v2204 = vld [vmem:[%s15 + $0x2c0] sm:$0xf]
      %v2205 = vld [vmem:[%s15 + $0x2c4] sm:$0xf]
      %v2206 = vld [vmem:[%s15 + $0x2c8] sm:$0xf]
      %v2207 = vld [vmem:[%s15 + $0x2cc] sm:$0xf]
      %v2208 = vld [vmem:[%s15 + $0x2d0] sm:$0xf]
      %v2209 = vld [vmem:[%s15 + $0x2d4] sm:$0xf]
      %v2210 = vld [vmem:[%s15 + $0x2d8] sm:$0xf]
      %v2211 = vld [vmem:[%s15 + $0x2dc] sm:$0xf]
      %v2212 = vld [vmem:[%s15 + $0x2e0] sm:$0xf]
      %v2213 = vld [vmem:[%s15 + $0x2e4] sm:$0xf]
      %v2214 = vld [vmem:[%s15 + $0x2e8] sm:$0xf]
      %v2215 = vld [vmem:[%s15 + $0x2ec] sm:$0xf]
      %v2216 = vld [vmem:[%s15 + $0x2f0] sm:$0xf]
      %v2217 = vld [vmem:[%s15 + $0x2f4] sm:$0xf]
      %v2218 = vld [vmem:[%s15 + $0x2f8] sm:$0xf]
      %v2219 = vld [vmem:[%s15 + $0x2fc] sm:$0xf]
      %v2220 = vld [vmem:[%s15 + $0x300] sm:$0xf]
      %v2221 = vld [vmem:[%s15 + $0x304] sm:$0xf]
      %v2222 = vld [vmem:[%s15 + $0x308] sm:$0xf]
      %v2223 = vld [vmem:[%s15 + $0x30c] sm:$0xf]
      %v2224 = vld [vmem:[%s15 + $0x310] sm:$0xf]
      %v2225 = vld [vmem:[%s15 + $0x314] sm:$0xf]
      %v2226 = vld [vmem:[%s15 + $0x318] sm:$0xf]
      %v2227 = vld [vmem:[%s15 + $0x31c] sm:$0xf]
      %v2228 = vld [vmem:[%s15 + $0x320] sm:$0xf]
      %v2229 = vld [vmem:[%s15 + $0x324] sm:$0xf]
      %v2230 = vld [vmem:[%s15 + $0x328] sm:$0xf]
      %v2231 = vld [vmem:[%s15 + $0x32c] sm:$0xf]
      %v2232 = vld [vmem:[%s15 + $0x330] sm:$0xf]
      %v2233 = vld [vmem:[%s15 + $0x334] sm:$0xf]
      %v2234 = vld [vmem:[%s15 + $0x338] sm:$0xf]
      %v2235 = vld [vmem:[%s15 + $0x33c] sm:$0xf]
      %v2236 = vld [vmem:[%s15 + $0x340] sm:$0xf]
      %v2237 = vld [vmem:[%s15 + $0x344] sm:$0xf]
      %v2238 = vld [vmem:[%s15 + $0x348] sm:$0xf]
      %v2239 = vld [vmem:[%s15 + $0x34c] sm:$0xf]
      %v2240 = vld [vmem:[%s15 + $0x350] sm:$0xf]
      %v2241 = vld [vmem:[%s15 + $0x354] sm:$0xf]
      %v2242 = vld [vmem:[%s15 + $0x358] sm:$0xf]
      %v2243 = vld [vmem:[%s15 + $0x35c] sm:$0xf]
      %v2244 = vld [vmem:[%s15 + $0x360] sm:$0xf]
      %v2245 = vld [vmem:[%s15 + $0x364] sm:$0xf]
      %v2246 = vld [vmem:[%s15 + $0x368] sm:$0xf]
      %v2247 = vld [vmem:[%s15 + $0x36c] sm:$0xf]
      %v2248 = vld [vmem:[%s15 + $0x370] sm:$0xf]
      %v2249 = vld [vmem:[%s15 + $0x374] sm:$0xf]
      %v2250 = vld [vmem:[%s15 + $0x378] sm:$0xf]
      %v2251 = vld [vmem:[%s15 + $0x37c] sm:$0xf]
      %v2252 = vld [vmem:[%s15 + $0x380] sm:$0xf]
      %v2253 = vld [vmem:[%s15 + $0x384] sm:$0xf]
      %v2254 = vld [vmem:[%s15 + $0x388] sm:$0xf]
      %v2255 = vld [vmem:[%s15 + $0x38c] sm:$0xf]
      %v2256 = vld [vmem:[%s15 + $0x390] sm:$0xf]
      %v2257 = vld [vmem:[%s15 + $0x394] sm:$0xf]
      %v2258 = vld [vmem:[%s15 + $0x398] sm:$0xf]
      %v2259 = vld [vmem:[%s15 + $0x39c] sm:$0xf]
      %v2260 = vld [vmem:[%s15 + $0x3a0] sm:$0xf]
      %v2261 = vld [vmem:[%s15 + $0x3a4] sm:$0xf]
      %v2262 = vld [vmem:[%s15 + $0x3a8] sm:$0xf]
      %v2263 = vld [vmem:[%s15 + $0x3ac] sm:$0xf]
      %v2264 = vld [vmem:[%s15 + $0x3b0] sm:$0xf]
      %v2265 = vld [vmem:[%s15 + $0x3b4] sm:$0xf]
      %v2266 = vld [vmem:[%s15 + $0x3b8] sm:$0xf]
      %v2267 = vld [vmem:[%s15 + $0x3bc] sm:$0xf]
      %v2268 = vld [vmem:[%s15 + $0x3c0] sm:$0xf]
      %v2269 = vld [vmem:[%s15 + $0x3c4] sm:$0xf]
      %v2270 = vld [vmem:[%s15 + $0x3c8] sm:$0xf]
      %v2271 = vld [vmem:[%s15 + $0x3cc] sm:$0xf]
      %v2272 = vld [vmem:[%s15 + $0x3d0] sm:$0xf]
      %v2273 = vld [vmem:[%s15 + $0x3d4] sm:$0xf]
      %v2274 = vld [vmem:[%s15 + $0x3d8] sm:$0xf]
      %v2275 = vld [vmem:[%s15 + $0x3dc] sm:$0xf]
      %v2276 = vld [vmem:[%s15 + $0x3e0] sm:$0xf]
      %v2277 = vld [vmem:[%s15 + $0x3e4] sm:$0xf]
      %v2278 = vld [vmem:[%s15 + $0x3e8] sm:$0xf]
      %v2279 = vld [vmem:[%s15 + $0x3ec] sm:$0xf]
      %v2280 = vld [vmem:[%s15 + $0x3f0] sm:$0xf]
      %v2281 = vld [vmem:[%s15 + $0x3f4] sm:$0xf]
      %v2282 = vld [vmem:[%s15 + $0x3f8] sm:$0xf]
      %v2283 = vld [vmem:[%s15 + $0x3fc] sm:$0xf]
      %s2284 = scalar_lea.vmem %s9, 2
      %v2285 = vld [vmem:[%s2284] sm:$0x1]
      %v2287 = vperm.slane %v2285, 0
      %v2545 = vunpack.c.l.b16 %v2028
      %v2546 = vunpack.c.l.b16 %v2029
      %v2547 = vunpack.c.l.b16 %v2030
      %v2548 = vunpack.c.l.b16 %v2031
      %v2549 = vunpack.c.l.b16 %v2032
      %v2550 = vunpack.c.l.b16 %v2033
      %v2551 = vunpack.c.l.b16 %v2034
      %v2552 = vunpack.c.l.b16 %v2035
      %v2553 = vunpack.c.l.b16 %v2036
      %v2554 = vunpack.c.l.b16 %v2037
      %v2555 = vunpack.c.l.b16 %v2038
      %v2556 = vunpack.c.l.b16 %v2039
      %v2557 = vunpack.c.l.b16 %v2040
      %v2558 = vunpack.c.l.b16 %v2041
      %v2559 = vunpack.c.l.b16 %v2042
      %v2560 = vunpack.c.l.b16 %v2043
      %v2561 = vunpack.c.l.b16 %v2044
      %v2562 = vunpack.c.l.b16 %v2045
      %v2563 = vunpack.c.l.b16 %v2046
      %v2564 = vunpack.c.l.b16 %v2047
      %v2565 = vunpack.c.l.b16 %v2048
      %v2566 = vunpack.c.l.b16 %v2049
      %v2567 = vunpack.c.l.b16 %v2050
      %v2568 = vunpack.c.l.b16 %v2051
      %v2569 = vunpack.c.l.b16 %v2052
      %v2570 = vunpack.c.l.b16 %v2053
      %v2571 = vunpack.c.l.b16 %v2054
      %v2572 = vunpack.c.l.b16 %v2055
      %v2573 = vunpack.c.l.b16 %v2056
      %v2574 = vunpack.c.l.b16 %v2057
      %v2575 = vunpack.c.l.b16 %v2058
      %v2576 = vunpack.c.l.b16 %v2059
      %v2577 = vunpack.c.l.b16 %v2060
      %v2578 = vunpack.c.l.b16 %v2061
      %v2579 = vunpack.c.l.b16 %v2062
      %v2580 = vunpack.c.l.b16 %v2063
      %v2581 = vunpack.c.l.b16 %v2064
      %v2582 = vunpack.c.l.b16 %v2065
      %v2583 = vunpack.c.l.b16 %v2066
      %v2584 = vunpack.c.l.b16 %v2067
      %v2585 = vunpack.c.l.b16 %v2068
      %v2586 = vunpack.c.l.b16 %v2069
      %v2587 = vunpack.c.l.b16 %v2070
      %v2588 = vunpack.c.l.b16 %v2071
      %v2589 = vunpack.c.l.b16 %v2072
      %v2590 = vunpack.c.l.b16 %v2073
      %v2591 = vunpack.c.l.b16 %v2074
      %v2592 = vunpack.c.l.b16 %v2075
      %v2593 = vunpack.c.l.b16 %v2076
      %v2594 = vunpack.c.l.b16 %v2077
      %v2595 = vunpack.c.l.b16 %v2078
      %v2596 = vunpack.c.l.b16 %v2079
      %v2597 = vunpack.c.l.b16 %v2080
      %v2598 = vunpack.c.l.b16 %v2081
      %v2599 = vunpack.c.l.b16 %v2082
      %v2600 = vunpack.c.l.b16 %v2083
      %v2601 = vunpack.c.l.b16 %v2084
      %v2602 = vunpack.c.l.b16 %v2085
      %v2603 = vunpack.c.l.b16 %v2086
      %v2604 = vunpack.c.l.b16 %v2087
      %v2605 = vunpack.c.l.b16 %v2088
      %v2606 = vunpack.c.l.b16 %v2089
      %v2607 = vunpack.c.l.b16 %v2090
      %v2608 = vunpack.c.l.b16 %v2091
      %v2609 = vunpack.c.l.b16 %v2092
      %v2610 = vunpack.c.l.b16 %v2093
      %v2611 = vunpack.c.l.b16 %v2094
      %v2612 = vunpack.c.l.b16 %v2095
      %v2613 = vunpack.c.l.b16 %v2096
      %v2614 = vunpack.c.l.b16 %v2097
      %v2615 = vunpack.c.l.b16 %v2098
      %v2616 = vunpack.c.l.b16 %v2099
      %v2617 = vunpack.c.l.b16 %v2100
      %v2618 = vunpack.c.l.b16 %v2101
      %v2619 = vunpack.c.l.b16 %v2102
      %v2620 = vunpack.c.l.b16 %v2103
      %v2621 = vunpack.c.l.b16 %v2104
      %v2622 = vunpack.c.l.b16 %v2105
      %v2623 = vunpack.c.l.b16 %v2106
      %v2624 = vunpack.c.l.b16 %v2107
      %v2625 = vunpack.c.l.b16 %v2108
      %v2626 = vunpack.c.l.b16 %v2109
      %v2627 = vunpack.c.l.b16 %v2110
      %v2628 = vunpack.c.l.b16 %v2111
      %v2629 = vunpack.c.l.b16 %v2112
      %v2630 = vunpack.c.l.b16 %v2113
      %v2631 = vunpack.c.l.b16 %v2114
      %v2632 = vunpack.c.l.b16 %v2115
      %v2633 = vunpack.c.l.b16 %v2116
      %v2634 = vunpack.c.l.b16 %v2117
      %v2635 = vunpack.c.l.b16 %v2118
      %v2636 = vunpack.c.l.b16 %v2119
      %v2637 = vunpack.c.l.b16 %v2120
      %v2638 = vunpack.c.l.b16 %v2121
      %v2639 = vunpack.c.l.b16 %v2122
      %v2640 = vunpack.c.l.b16 %v2123
      %v2641 = vunpack.c.l.b16 %v2124
      %v2642 = vunpack.c.l.b16 %v2125
      %v2643 = vunpack.c.l.b16 %v2126
      %v2644 = vunpack.c.l.b16 %v2127
      %v2645 = vunpack.c.l.b16 %v2128
      %v2646 = vunpack.c.l.b16 %v2129
      %v2647 = vunpack.c.l.b16 %v2130
      %v2648 = vunpack.c.l.b16 %v2131
      %v2649 = vunpack.c.l.b16 %v2132
      %v2650 = vunpack.c.l.b16 %v2133
      %v2651 = vunpack.c.l.b16 %v2134
      %v2652 = vunpack.c.l.b16 %v2135
      %v2653 = vunpack.c.l.b16 %v2136
      %v2654 = vunpack.c.l.b16 %v2137
      %v2655 = vunpack.c.l.b16 %v2138
      %v2656 = vunpack.c.l.b16 %v2139
      %v2657 = vunpack.c.l.b16 %v2140
      %v2658 = vunpack.c.l.b16 %v2141
      %v2659 = vunpack.c.l.b16 %v2142
      %v2660 = vunpack.c.l.b16 %v2143
      %v2661 = vunpack.c.l.b16 %v2144
      %v2662 = vunpack.c.l.b16 %v2145
      %v2663 = vunpack.c.l.b16 %v2146
      %v2664 = vunpack.c.l.b16 %v2147
      %v2665 = vunpack.c.l.b16 %v2148
      %v2666 = vunpack.c.l.b16 %v2149
      %v2667 = vunpack.c.l.b16 %v2150
      %v2668 = vunpack.c.l.b16 %v2151
      %v2669 = vunpack.c.l.b16 %v2152
      %v2670 = vunpack.c.l.b16 %v2153
      %v2671 = vunpack.c.l.b16 %v2154
      %v2672 = vunpack.c.l.b16 %v2155
      %v2673 = vunpack.c.l.b16 %v2156
      %v2674 = vunpack.c.l.b16 %v2157
      %v2675 = vunpack.c.l.b16 %v2158
      %v2676 = vunpack.c.l.b16 %v2159
      %v2677 = vunpack.c.l.b16 %v2160
      %v2678 = vunpack.c.l.b16 %v2161
      %v2679 = vunpack.c.l.b16 %v2162
      %v2680 = vunpack.c.l.b16 %v2163
      %v2681 = vunpack.c.l.b16 %v2164
      %v2682 = vunpack.c.l.b16 %v2165
      %v2683 = vunpack.c.l.b16 %v2166
      %v2684 = vunpack.c.l.b16 %v2167
      %v2685 = vunpack.c.l.b16 %v2168
      %v2686 = vunpack.c.l.b16 %v2169
      %v2687 = vunpack.c.l.b16 %v2170
      %v2688 = vunpack.c.l.b16 %v2171
      %v2689 = vunpack.c.l.b16 %v2172
      %v2690 = vunpack.c.l.b16 %v2173
      %v2691 = vunpack.c.l.b16 %v2174
      %v2692 = vunpack.c.l.b16 %v2175
      %v2693 = vunpack.c.l.b16 %v2176
      %v2694 = vunpack.c.l.b16 %v2177
      %v2695 = vunpack.c.l.b16 %v2178
      %v2696 = vunpack.c.l.b16 %v2179
      %v2697 = vunpack.c.l.b16 %v2180
      %v2698 = vunpack.c.l.b16 %v2181
      %v2699 = vunpack.c.l.b16 %v2182
      %v2700 = vunpack.c.l.b16 %v2183
      %v2701 = vunpack.c.l.b16 %v2184
      %v2702 = vunpack.c.l.b16 %v2185
      %v2703 = vunpack.c.l.b16 %v2186
      %v2704 = vunpack.c.l.b16 %v2187
      %v2705 = vunpack.c.l.b16 %v2188
      %v2706 = vunpack.c.l.b16 %v2189
      %v2707 = vunpack.c.l.b16 %v2190
      %v2708 = vunpack.c.l.b16 %v2191
      %v2709 = vunpack.c.l.b16 %v2192
      %v2710 = vunpack.c.l.b16 %v2193
      %v2711 = vunpack.c.l.b16 %v2194
      %v2712 = vunpack.c.l.b16 %v2195
      %v2713 = vunpack.c.l.b16 %v2196
      %v2714 = vunpack.c.l.b16 %v2197
      %v2715 = vunpack.c.l.b16 %v2198
      %v2716 = vunpack.c.l.b16 %v2199
      %v2717 = vunpack.c.l.b16 %v2200
      %v2718 = vunpack.c.l.b16 %v2201
      %v2719 = vunpack.c.l.b16 %v2202
      %v2720 = vunpack.c.l.b16 %v2203
      %v2721 = vunpack.c.l.b16 %v2204
      %v2722 = vunpack.c.l.b16 %v2205
      %v2723 = vunpack.c.l.b16 %v2206
      %v2724 = vunpack.c.l.b16 %v2207
      %v2725 = vunpack.c.l.b16 %v2208
      %v2726 = vunpack.c.l.b16 %v2209
      %v2727 = vunpack.c.l.b16 %v2210
      %v2728 = vunpack.c.l.b16 %v2211
      %v2729 = vunpack.c.l.b16 %v2212
      %v2730 = vunpack.c.l.b16 %v2213
      %v2731 = vunpack.c.l.b16 %v2214
      %v2732 = vunpack.c.l.b16 %v2215
      %v2733 = vunpack.c.l.b16 %v2216
      %v2734 = vunpack.c.l.b16 %v2217
      %v2735 = vunpack.c.l.b16 %v2218
      %v2736 = vunpack.c.l.b16 %v2219
      %v2737 = vunpack.c.l.b16 %v2220
      %v2738 = vunpack.c.l.b16 %v2221
      %v2739 = vunpack.c.l.b16 %v2222
      %v2740 = vunpack.c.l.b16 %v2223
      %v2741 = vunpack.c.l.b16 %v2224
      %v2742 = vunpack.c.l.b16 %v2225
      %v2743 = vunpack.c.l.b16 %v2226
      %v2744 = vunpack.c.l.b16 %v2227
      %v2745 = vunpack.c.l.b16 %v2228
      %v2746 = vunpack.c.l.b16 %v2229
      %v2747 = vunpack.c.l.b16 %v2230
      %v2748 = vunpack.c.l.b16 %v2231
      %v2749 = vunpack.c.l.b16 %v2232
      %v2750 = vunpack.c.l.b16 %v2233
      %v2751 = vunpack.c.l.b16 %v2234
      %v2752 = vunpack.c.l.b16 %v2235
      %v2753 = vunpack.c.l.b16 %v2236
      %v2754 = vunpack.c.l.b16 %v2237
      %v2755 = vunpack.c.l.b16 %v2238
      %v2756 = vunpack.c.l.b16 %v2239
      %v2757 = vunpack.c.l.b16 %v2240
      %v2758 = vunpack.c.l.b16 %v2241
      %v2759 = vunpack.c.l.b16 %v2242
      %v2760 = vunpack.c.l.b16 %v2243
      %v2761 = vunpack.c.l.b16 %v2244
      %v2762 = vunpack.c.l.b16 %v2245
      %v2763 = vunpack.c.l.b16 %v2246
      %v2764 = vunpack.c.l.b16 %v2247
      %v2765 = vunpack.c.l.b16 %v2248
      %v2766 = vunpack.c.l.b16 %v2249
      %v2767 = vunpack.c.l.b16 %v2250
      %v2768 = vunpack.c.l.b16 %v2251
      %v2769 = vunpack.c.l.b16 %v2252
      %v2770 = vunpack.c.l.b16 %v2253
      %v2771 = vunpack.c.l.b16 %v2254
      %v2772 = vunpack.c.l.b16 %v2255
      %v2773 = vunpack.c.l.b16 %v2256
      %v2774 = vunpack.c.l.b16 %v2257
      %v2775 = vunpack.c.l.b16 %v2258
      %v2776 = vunpack.c.l.b16 %v2259
      %v2777 = vunpack.c.l.b16 %v2260
      %v2778 = vunpack.c.l.b16 %v2261
      %v2779 = vunpack.c.l.b16 %v2262
      %v2780 = vunpack.c.l.b16 %v2263
      %v2781 = vunpack.c.l.b16 %v2264
      %v2782 = vunpack.c.l.b16 %v2265
      %v2783 = vunpack.c.l.b16 %v2266
      %v2784 = vunpack.c.l.b16 %v2267
      %v2785 = vunpack.c.l.b16 %v2268
      %v2786 = vunpack.c.l.b16 %v2269
      %v2787 = vunpack.c.l.b16 %v2270
      %v2788 = vunpack.c.l.b16 %v2271
      %v2789 = vunpack.c.l.b16 %v2272
      %v2790 = vunpack.c.l.b16 %v2273
      %v2791 = vunpack.c.l.b16 %v2274
      %v2792 = vunpack.c.l.b16 %v2275
      %v2793 = vunpack.c.l.b16 %v2276
      %v2794 = vunpack.c.l.b16 %v2277
      %v2795 = vunpack.c.l.b16 %v2278
      %v2796 = vunpack.c.l.b16 %v2279
      %v2797 = vunpack.c.l.b16 %v2280
      %v2798 = vunpack.c.l.b16 %v2281
      %v2799 = vunpack.c.l.b16 %v2282
      %v2800 = vunpack.c.l.b16 %v2283
      %v2801 = vpack.c.b16 %v2546, %v2545
      %v2802 = vpack.c.b16 %v2548, %v2547
      %v2803 = vpack.c.b16 %v2550, %v2549
      %v2804 = vpack.c.b16 %v2552, %v2551
      %v2805 = vpack.c.b16 %v2554, %v2553
      %v2806 = vpack.c.b16 %v2556, %v2555
      %v2807 = vpack.c.b16 %v2558, %v2557
      %v2808 = vpack.c.b16 %v2560, %v2559
      %v2809 = vpack.c.b16 %v2562, %v2561
      %v2810 = vpack.c.b16 %v2564, %v2563
      %v2811 = vpack.c.b16 %v2566, %v2565
      %v2812 = vpack.c.b16 %v2568, %v2567
      %v2813 = vpack.c.b16 %v2570, %v2569
      %v2814 = vpack.c.b16 %v2572, %v2571
      %v2815 = vpack.c.b16 %v2574, %v2573
      %v2816 = vpack.c.b16 %v2576, %v2575
      %v2817 = vpack.c.b16 %v2578, %v2577
      %v2818 = vpack.c.b16 %v2580, %v2579
      %v2819 = vpack.c.b16 %v2582, %v2581
      %v2820 = vpack.c.b16 %v2584, %v2583
      %v2821 = vpack.c.b16 %v2586, %v2585
      %v2822 = vpack.c.b16 %v2588, %v2587
      %v2823 = vpack.c.b16 %v2590, %v2589
      %v2824 = vpack.c.b16 %v2592, %v2591
      %v2825 = vpack.c.b16 %v2594, %v2593
      %v2826 = vpack.c.b16 %v2596, %v2595
      %v2827 = vpack.c.b16 %v2598, %v2597
      %v2828 = vpack.c.b16 %v2600, %v2599
      %v2829 = vpack.c.b16 %v2602, %v2601
      %v2830 = vpack.c.b16 %v2604, %v2603
      %v2831 = vpack.c.b16 %v2606, %v2605
      %v2832 = vpack.c.b16 %v2608, %v2607
      %v2833 = vpack.c.b16 %v2610, %v2609
      %v2834 = vpack.c.b16 %v2612, %v2611
      %v2835 = vpack.c.b16 %v2614, %v2613
      %v2836 = vpack.c.b16 %v2616, %v2615
      %v2837 = vpack.c.b16 %v2618, %v2617
      %v2838 = vpack.c.b16 %v2620, %v2619
      %v2839 = vpack.c.b16 %v2622, %v2621
      %v2840 = vpack.c.b16 %v2624, %v2623
      %v2841 = vpack.c.b16 %v2626, %v2625
      %v2842 = vpack.c.b16 %v2628, %v2627
      %v2843 = vpack.c.b16 %v2630, %v2629
      %v2844 = vpack.c.b16 %v2632, %v2631
      %v2845 = vpack.c.b16 %v2634, %v2633
      %v2846 = vpack.c.b16 %v2636, %v2635
      %v2847 = vpack.c.b16 %v2638, %v2637
      %v2848 = vpack.c.b16 %v2640, %v2639
      %v2849 = vpack.c.b16 %v2642, %v2641
      %v2850 = vpack.c.b16 %v2644, %v2643
      %v2851 = vpack.c.b16 %v2646, %v2645
      %v2852 = vpack.c.b16 %v2648, %v2647
      %v2853 = vpack.c.b16 %v2650, %v2649
      %v2854 = vpack.c.b16 %v2652, %v2651
      %v2855 = vpack.c.b16 %v2654, %v2653
      %v2856 = vpack.c.b16 %v2656, %v2655
      %v2857 = vpack.c.b16 %v2658, %v2657
      %v2858 = vpack.c.b16 %v2660, %v2659
      %v2859 = vpack.c.b16 %v2662, %v2661
      %v2860 = vpack.c.b16 %v2664, %v2663
      %v2861 = vpack.c.b16 %v2666, %v2665
      %v2862 = vpack.c.b16 %v2668, %v2667
      %v2863 = vpack.c.b16 %v2670, %v2669
      %v2864 = vpack.c.b16 %v2672, %v2671
      %v2865 = vpack.c.b16 %v2674, %v2673
      %v2866 = vpack.c.b16 %v2676, %v2675
      %v2867 = vpack.c.b16 %v2678, %v2677
      %v2868 = vpack.c.b16 %v2680, %v2679
      %v2869 = vpack.c.b16 %v2682, %v2681
      %v2870 = vpack.c.b16 %v2684, %v2683
      %v2871 = vpack.c.b16 %v2686, %v2685
      %v2872 = vpack.c.b16 %v2688, %v2687
      %v2873 = vpack.c.b16 %v2690, %v2689
      %v2874 = vpack.c.b16 %v2692, %v2691
      %v2875 = vpack.c.b16 %v2694, %v2693
      %v2876 = vpack.c.b16 %v2696, %v2695
      %v2877 = vpack.c.b16 %v2698, %v2697
      %v2878 = vpack.c.b16 %v2700, %v2699
      %v2879 = vpack.c.b16 %v2702, %v2701
      %v2880 = vpack.c.b16 %v2704, %v2703
      %v2881 = vpack.c.b16 %v2706, %v2705
      %v2882 = vpack.c.b16 %v2708, %v2707
      %v2883 = vpack.c.b16 %v2710, %v2709
      %v2884 = vpack.c.b16 %v2712, %v2711
      %v2885 = vpack.c.b16 %v2714, %v2713
      %v2886 = vpack.c.b16 %v2716, %v2715
      %v2887 = vpack.c.b16 %v2718, %v2717
      %v2888 = vpack.c.b16 %v2720, %v2719
      %v2889 = vpack.c.b16 %v2722, %v2721
      %v2890 = vpack.c.b16 %v2724, %v2723
      %v2891 = vpack.c.b16 %v2726, %v2725
      %v2892 = vpack.c.b16 %v2728, %v2727
      %v2893 = vpack.c.b16 %v2730, %v2729
      %v2894 = vpack.c.b16 %v2732, %v2731
      %v2895 = vpack.c.b16 %v2734, %v2733
      %v2896 = vpack.c.b16 %v2736, %v2735
      %v2897 = vpack.c.b16 %v2738, %v2737
      %v2898 = vpack.c.b16 %v2740, %v2739
      %v2899 = vpack.c.b16 %v2742, %v2741
      %v2900 = vpack.c.b16 %v2744, %v2743
      %v2901 = vpack.c.b16 %v2746, %v2745
      %v2902 = vpack.c.b16 %v2748, %v2747
      %v2903 = vpack.c.b16 %v2750, %v2749
      %v2904 = vpack.c.b16 %v2752, %v2751
      %v2905 = vpack.c.b16 %v2754, %v2753
      %v2906 = vpack.c.b16 %v2756, %v2755
      %v2907 = vpack.c.b16 %v2758, %v2757
      %v2908 = vpack.c.b16 %v2760, %v2759
      %v2909 = vpack.c.b16 %v2762, %v2761
      %v2910 = vpack.c.b16 %v2764, %v2763
      %v2911 = vpack.c.b16 %v2766, %v2765
      %v2912 = vpack.c.b16 %v2768, %v2767
      %v2913 = vpack.c.b16 %v2770, %v2769
      %v2914 = vpack.c.b16 %v2772, %v2771
      %v2915 = vpack.c.b16 %v2774, %v2773
      %v2916 = vpack.c.b16 %v2776, %v2775
      %v2917 = vpack.c.b16 %v2778, %v2777
      %v2918 = vpack.c.b16 %v2780, %v2779
      %v2919 = vpack.c.b16 %v2782, %v2781
      %v2920 = vpack.c.b16 %v2784, %v2783
      %v2921 = vpack.c.b16 %v2786, %v2785
      %v2922 = vpack.c.b16 %v2788, %v2787
      %v2923 = vpack.c.b16 %v2790, %v2789
      %v2924 = vpack.c.b16 %v2792, %v2791
      %v2925 = vpack.c.b16 %v2794, %v2793
      %v2926 = vpack.c.b16 %v2796, %v2795
      %v2927 = vpack.c.b16 %v2798, %v2797
      %v2928 = vpack.c.b16 %v2800, %v2799
      %3057 = vmatpush.bf16.msra.mxu0 %v2808
      %3058 = vmatpush.bf16.msra.mxu0 %v2807
      %3059 = vmatpush.bf16.msra.mxu0 %v2806
      %3060 = vmatpush.bf16.msra.mxu0 %v2805
      %3061 = vmatpush.bf16.msra.mxu0 %v2804
      %3062 = vmatpush.bf16.msra.mxu0 %v2803
      %3063 = vmatpush.bf16.msra.mxu0 %v2802
      %3064 = vmatpush.bf16.msra.mxu0 %v2801
      %3065 = vmatmul.bf16.gmra.mxu0 %v1964
      %v3066 = vpop.f32.mrf.mxu0
      %v3067 = vadd.f32 %v2287, %v3066
      %v3068 = vpop.f32.mrf.mxu0
      %v3069 = vadd.f32 %v2287, %v3068
      %3070 = vmatmul.bf16.gmra.mxu0 %v1980
      %v3071 = vpop.f32.mrf.mxu0
      %v3072 = vadd.f32 %v2287, %v3071
      %v3073 = vpop.f32.mrf.mxu0
      %v3074 = vadd.f32 %v2287, %v3073
      %3075 = vmatmul.bf16.gmra.mxu0 %v1996
      %v3076 = vpop.f32.mrf.mxu0
      %v3077 = vadd.f32 %v2287, %v3076
      %v3078 = vpop.f32.mrf.mxu0
      %v3079 = vadd.f32 %v2287, %v3078
      %3080 = vmatmul.bf16.gmra.mxu0 %v2012
      %v3081 = vpop.f32.mrf.mxu0
      %v3082 = vadd.f32 %v2287, %v3081
      %v3083 = vpop.f32.mrf.mxu0
      %3084 = vdwg.mxu0
      %3085 = vmatpush.bf16.msra.mxu0 %v2816
      %3086 = vmatpush.bf16.msra.mxu0 %v2815
      %3087 = vmatpush.bf16.msra.mxu0 %v2814
      %3088 = vmatpush.bf16.msra.mxu0 %v2813
      %3089 = vmatpush.bf16.msra.mxu0 %v2812
      %3090 = vmatpush.bf16.msra.mxu0 %v2811
      %3091 = vmatpush.bf16.msra.mxu0 %v2810
      %3092 = vmatpush.bf16.msra.mxu0 %v2809
      %3093 = vmatmul.bf16.gmra.mxu0 %v1965
      %v3094 = vpop.f32.mrf.mxu0
      %v3095 = vadd.f32 %v3067, %v3094
      %v3096 = vpop.f32.mrf.mxu0
      %v3097 = vadd.f32 %v3069, %v3096
      %3098 = vmatmul.bf16.gmra.mxu0 %v1981
      %v3099 = vpop.f32.mrf.mxu0
      %v3100 = vadd.f32 %v3072, %v3099
      %v3101 = vpop.f32.mrf.mxu0
      %v3102 = vadd.f32 %v3074, %v3101
      %3103 = vmatmul.bf16.gmra.mxu0 %v1997
      %v3104 = vpop.f32.mrf.mxu0
      %v3105 = vadd.f32 %v3077, %v3104
      %v3106 = vpop.f32.mrf.mxu0
      %v3107 = vadd.f32 %v3079, %v3106
      %3108 = vmatmul.bf16.gmra.mxu0 %v2013
      %v3109 = vpop.f32.mrf.mxu0
      %v3110 = vadd.f32 %v3082, %v3109
      %v3111 = vpop.f32.mrf.mxu0
      %3112 = vdwg.mxu0
      %3113 = vmatpush.bf16.msra.mxu0 %v2824
      %3114 = vmatpush.bf16.msra.mxu0 %v2823
      %3115 = vmatpush.bf16.msra.mxu0 %v2822
      %3116 = vmatpush.bf16.msra.mxu0 %v2821
      %3117 = vmatpush.bf16.msra.mxu0 %v2820
      %3118 = vmatpush.bf16.msra.mxu0 %v2819
      %3119 = vmatpush.bf16.msra.mxu0 %v2818
      %3120 = vmatpush.bf16.msra.mxu0 %v2817
      %3121 = vmatmul.bf16.gmra.mxu0 %v1966
      %v3122 = vpop.f32.mrf.mxu0
      %v3123 = vadd.f32 %v3095, %v3122
      %v3124 = vpop.f32.mrf.mxu0
      %v3125 = vadd.f32 %v3097, %v3124
      %3126 = vmatmul.bf16.gmra.mxu0 %v1982
      %v3127 = vpop.f32.mrf.mxu0
      %v3128 = vadd.f32 %v3100, %v3127
      %v3129 = vpop.f32.mrf.mxu0
      %v3130 = vadd.f32 %v3102, %v3129
      %3131 = vmatmul.bf16.gmra.mxu0 %v1998
      %v3132 = vpop.f32.mrf.mxu0
      %v3133 = vadd.f32 %v3105, %v3132
      %v3134 = vpop.f32.mrf.mxu0
      %v3135 = vadd.f32 %v3107, %v3134
      %3136 = vmatmul.bf16.gmra.mxu0 %v2014
      %v3137 = vpop.f32.mrf.mxu0
      %v3138 = vadd.f32 %v3110, %v3137
      %v3139 = vpop.f32.mrf.mxu0
      %3140 = vdwg.mxu0
      %3141 = vmatpush.bf16.msra.mxu0 %v2832
      %3142 = vmatpush.bf16.msra.mxu0 %v2831
      %3143 = vmatpush.bf16.msra.mxu0 %v2830
      %3144 = vmatpush.bf16.msra.mxu0 %v2829
      %3145 = vmatpush.bf16.msra.mxu0 %v2828
      %3146 = vmatpush.bf16.msra.mxu0 %v2827
      %3147 = vmatpush.bf16.msra.mxu0 %v2826
      %3148 = vmatpush.bf16.msra.mxu0 %v2825
      %3149 = vmatmul.bf16.gmra.mxu0 %v1967
      %v3150 = vpop.f32.mrf.mxu0
      %v3151 = vadd.f32 %v3123, %v3150
      %v3152 = vpop.f32.mrf.mxu0
      %v3153 = vadd.f32 %v3125, %v3152
      %3154 = vmatmul.bf16.gmra.mxu0 %v1983
      %v3155 = vpop.f32.mrf.mxu0
      %v3156 = vadd.f32 %v3128, %v3155
      %v3157 = vpop.f32.mrf.mxu0
      %v3158 = vadd.f32 %v3130, %v3157
      %3159 = vmatmul.bf16.gmra.mxu0 %v1999
      %v3160 = vpop.f32.mrf.mxu0
      %v3161 = vadd.f32 %v3133, %v3160
      %v3162 = vpop.f32.mrf.mxu0
      %v3163 = vadd.f32 %v3135, %v3162
      %3164 = vmatmul.bf16.gmra.mxu0 %v2015
      %v3165 = vpop.f32.mrf.mxu0
      %v3166 = vadd.f32 %v3138, %v3165
      %v3167 = vpop.f32.mrf.mxu0
      %3168 = vdwg.mxu0
      %3169 = vmatpush.bf16.msra.mxu0 %v2840
      %3170 = vmatpush.bf16.msra.mxu0 %v2839
      %3171 = vmatpush.bf16.msra.mxu0 %v2838
      %3172 = vmatpush.bf16.msra.mxu0 %v2837
      %3173 = vmatpush.bf16.msra.mxu0 %v2836
      %3174 = vmatpush.bf16.msra.mxu0 %v2835
      %3175 = vmatpush.bf16.msra.mxu0 %v2834
      %3176 = vmatpush.bf16.msra.mxu0 %v2833
      %3177 = vmatmul.bf16.gmra.mxu0 %v1968
      %v3178 = vpop.f32.mrf.mxu0
      %v3179 = vadd.f32 %v3151, %v3178
      %v3180 = vpop.f32.mrf.mxu0
      %v3181 = vadd.f32 %v3153, %v3180
      %3182 = vmatmul.bf16.gmra.mxu0 %v1984
      %v3183 = vpop.f32.mrf.mxu0
      %v3184 = vadd.f32 %v3156, %v3183
      %v3185 = vpop.f32.mrf.mxu0
      %v3186 = vadd.f32 %v3158, %v3185
      %3187 = vmatmul.bf16.gmra.mxu0 %v2000
      %v3188 = vpop.f32.mrf.mxu0
      %v3189 = vadd.f32 %v3161, %v3188
      %v3190 = vpop.f32.mrf.mxu0
      %v3191 = vadd.f32 %v3163, %v3190
      %3192 = vmatmul.bf16.gmra.mxu0 %v2016
      %v3193 = vpop.f32.mrf.mxu0
      %v3194 = vadd.f32 %v3166, %v3193
      %v3195 = vpop.f32.mrf.mxu0
      %3196 = vdwg.mxu0
      %3197 = vmatpush.bf16.msra.mxu0 %v2848
      %3198 = vmatpush.bf16.msra.mxu0 %v2847
      %3199 = vmatpush.bf16.msra.mxu0 %v2846
      %3200 = vmatpush.bf16.msra.mxu0 %v2845
      %3201 = vmatpush.bf16.msra.mxu0 %v2844
      %3202 = vmatpush.bf16.msra.mxu0 %v2843
      %3203 = vmatpush.bf16.msra.mxu0 %v2842
      %3204 = vmatpush.bf16.msra.mxu0 %v2841
      %3205 = vmatmul.bf16.gmra.mxu0 %v1969
      %v3206 = vpop.f32.mrf.mxu0
      %v3207 = vadd.f32 %v3179, %v3206
      %v3208 = vpop.f32.mrf.mxu0
      %v3209 = vadd.f32 %v3181, %v3208
      %3210 = vmatmul.bf16.gmra.mxu0 %v1985
      %v3211 = vpop.f32.mrf.mxu0
      %v3212 = vadd.f32 %v3184, %v3211
      %v3213 = vpop.f32.mrf.mxu0
      %v3214 = vadd.f32 %v3186, %v3213
      %3215 = vmatmul.bf16.gmra.mxu0 %v2001
      %v3216 = vpop.f32.mrf.mxu0
      %v3217 = vadd.f32 %v3189, %v3216
      %v3218 = vpop.f32.mrf.mxu0
      %v3219 = vadd.f32 %v3191, %v3218
      %3220 = vmatmul.bf16.gmra.mxu0 %v2017
      %v3221 = vpop.f32.mrf.mxu0
      %v3222 = vadd.f32 %v3194, %v3221
      %v3223 = vpop.f32.mrf.mxu0
      %3224 = vdwg.mxu0
      %3225 = vmatpush.bf16.msra.mxu0 %v2856
      %3226 = vmatpush.bf16.msra.mxu0 %v2855
      %3227 = vmatpush.bf16.msra.mxu0 %v2854
      %3228 = vmatpush.bf16.msra.mxu0 %v2853
      %3229 = vmatpush.bf16.msra.mxu0 %v2852
      %3230 = vmatpush.bf16.msra.mxu0 %v2851
      %3231 = vmatpush.bf16.msra.mxu0 %v2850
      %3232 = vmatpush.bf16.msra.mxu0 %v2849
      %3233 = vmatmul.bf16.gmra.mxu0 %v1970
      %v3234 = vpop.f32.mrf.mxu0
      %v3235 = vadd.f32 %v3207, %v3234
      %v3236 = vpop.f32.mrf.mxu0
      %v3237 = vadd.f32 %v3209, %v3236
      %3238 = vmatmul.bf16.gmra.mxu0 %v1986
      %v3239 = vpop.f32.mrf.mxu0
      %v3240 = vadd.f32 %v3212, %v3239
      %v3241 = vpop.f32.mrf.mxu0
      %v3242 = vadd.f32 %v3214, %v3241
      %3243 = vmatmul.bf16.gmra.mxu0 %v2002
      %v3244 = vpop.f32.mrf.mxu0
      %v3245 = vadd.f32 %v3217, %v3244
      %v3246 = vpop.f32.mrf.mxu0
      %v3247 = vadd.f32 %v3219, %v3246
      %3248 = vmatmul.bf16.gmra.mxu0 %v2018
      %v3249 = vpop.f32.mrf.mxu0
      %v3250 = vadd.f32 %v3222, %v3249
      %v3251 = vpop.f32.mrf.mxu0
      %3252 = vdwg.mxu0
      %3253 = vmatpush.bf16.msra.mxu0 %v2864
      %3254 = vmatpush.bf16.msra.mxu0 %v2863
      %3255 = vmatpush.bf16.msra.mxu0 %v2862
      %3256 = vmatpush.bf16.msra.mxu0 %v2861
      %3257 = vmatpush.bf16.msra.mxu0 %v2860
      %3258 = vmatpush.bf16.msra.mxu0 %v2859
      %3259 = vmatpush.bf16.msra.mxu0 %v2858
      %3260 = vmatpush.bf16.msra.mxu0 %v2857
      %3261 = vmatmul.bf16.gmra.mxu0 %v1971
      %v3262 = vpop.f32.mrf.mxu0
      %v3263 = vadd.f32 %v3235, %v3262
      %v3264 = vpop.f32.mrf.mxu0
      %v3265 = vadd.f32 %v3237, %v3264
      %3266 = vmatmul.bf16.gmra.mxu0 %v1987
      %v3267 = vpop.f32.mrf.mxu0
      %v3268 = vadd.f32 %v3240, %v3267
      %v3269 = vpop.f32.mrf.mxu0
      %v3270 = vadd.f32 %v3242, %v3269
      %3271 = vmatmul.bf16.gmra.mxu0 %v2003
      %v3272 = vpop.f32.mrf.mxu0
      %v3273 = vadd.f32 %v3245, %v3272
      %v3274 = vpop.f32.mrf.mxu0
      %v3275 = vadd.f32 %v3247, %v3274
      %3276 = vmatmul.bf16.gmra.mxu0 %v2019
      %v3277 = vpop.f32.mrf.mxu0
      %v3278 = vadd.f32 %v3250, %v3277
      %v3279 = vpop.f32.mrf.mxu0
      %3280 = vdwg.mxu0
      %3281 = vmatpush.bf16.msra.mxu0 %v2872
      %3282 = vmatpush.bf16.msra.mxu0 %v2871
      %3283 = vmatpush.bf16.msra.mxu0 %v2870
      %3284 = vmatpush.bf16.msra.mxu0 %v2869
      %3285 = vmatpush.bf16.msra.mxu0 %v2868
      %3286 = vmatpush.bf16.msra.mxu0 %v2867
      %3287 = vmatpush.bf16.msra.mxu0 %v2866
      %3288 = vmatpush.bf16.msra.mxu0 %v2865
      %3289 = vmatmul.bf16.gmra.mxu0 %v1972
      %v3290 = vpop.f32.mrf.mxu0
      %v3291 = vadd.f32 %v3263, %v3290
      %v3292 = vpop.f32.mrf.mxu0
      %v3293 = vadd.f32 %v3265, %v3292
      %3294 = vmatmul.bf16.gmra.mxu0 %v1988
      %v3295 = vpop.f32.mrf.mxu0
      %v3296 = vadd.f32 %v3268, %v3295
      %v3297 = vpop.f32.mrf.mxu0
      %v3298 = vadd.f32 %v3270, %v3297
      %3299 = vmatmul.bf16.gmra.mxu0 %v2004
      %v3300 = vpop.f32.mrf.mxu0
      %v3301 = vadd.f32 %v3273, %v3300
      %v3302 = vpop.f32.mrf.mxu0
      %v3303 = vadd.f32 %v3275, %v3302
      %3304 = vmatmul.bf16.gmra.mxu0 %v2020
      %v3305 = vpop.f32.mrf.mxu0
      %v3306 = vadd.f32 %v3278, %v3305
      %v3307 = vpop.f32.mrf.mxu0
      %3308 = vdwg.mxu0
      %3309 = vmatpush.bf16.msra.mxu0 %v2880
      %3310 = vmatpush.bf16.msra.mxu0 %v2879
      %3311 = vmatpush.bf16.msra.mxu0 %v2878
      %3312 = vmatpush.bf16.msra.mxu0 %v2877
      %3313 = vmatpush.bf16.msra.mxu0 %v2876
      %3314 = vmatpush.bf16.msra.mxu0 %v2875
      %3315 = vmatpush.bf16.msra.mxu0 %v2874
      %3316 = vmatpush.bf16.msra.mxu0 %v2873
      %3317 = vmatmul.bf16.gmra.mxu0 %v1973
      %v3318 = vpop.f32.mrf.mxu0
      %v3319 = vadd.f32 %v3291, %v3318
      %v3320 = vpop.f32.mrf.mxu0
      %v3321 = vadd.f32 %v3293, %v3320
      %3322 = vmatmul.bf16.gmra.mxu0 %v1989
      %v3323 = vpop.f32.mrf.mxu0
      %v3324 = vadd.f32 %v3296, %v3323
      %v3325 = vpop.f32.mrf.mxu0
      %v3326 = vadd.f32 %v3298, %v3325
      %3327 = vmatmul.bf16.gmra.mxu0 %v2005
      %v3328 = vpop.f32.mrf.mxu0
      %v3329 = vadd.f32 %v3301, %v3328
      %v3330 = vpop.f32.mrf.mxu0
      %v3331 = vadd.f32 %v3303, %v3330
      %3332 = vmatmul.bf16.gmra.mxu0 %v2021
      %v3333 = vpop.f32.mrf.mxu0
      %v3334 = vadd.f32 %v3306, %v3333
      %v3335 = vpop.f32.mrf.mxu0
      %3336 = vdwg.mxu0
      %3337 = vmatpush.bf16.msra.mxu0 %v2888
      %3338 = vmatpush.bf16.msra.mxu0 %v2887
      %3339 = vmatpush.bf16.msra.mxu0 %v2886
      %3340 = vmatpush.bf16.msra.mxu0 %v2885
      %3341 = vmatpush.bf16.msra.mxu0 %v2884
      %3342 = vmatpush.bf16.msra.mxu0 %v2883
      %3343 = vmatpush.bf16.msra.mxu0 %v2882
      %3344 = vmatpush.bf16.msra.mxu0 %v2881
      %3345 = vmatmul.bf16.gmra.mxu0 %v1974
      %v3346 = vpop.f32.mrf.mxu0
      %v3347 = vadd.f32 %v3319, %v3346
      %v3348 = vpop.f32.mrf.mxu0
      %v3349 = vadd.f32 %v3321, %v3348
      %3350 = vmatmul.bf16.gmra.mxu0 %v1990
      %v3351 = vpop.f32.mrf.mxu0
      %v3352 = vadd.f32 %v3324, %v3351
      %v3353 = vpop.f32.mrf.mxu0
      %v3354 = vadd.f32 %v3326, %v3353
      %3355 = vmatmul.bf16.gmra.mxu0 %v2006
      %v3356 = vpop.f32.mrf.mxu0
      %v3357 = vadd.f32 %v3329, %v3356
      %v3358 = vpop.f32.mrf.mxu0
      %v3359 = vadd.f32 %v3331, %v3358
      %3360 = vmatmul.bf16.gmra.mxu0 %v2022
      %v3361 = vpop.f32.mrf.mxu0
      %v3362 = vadd.f32 %v3334, %v3361
      %v3363 = vpop.f32.mrf.mxu0
      %3364 = vdwg.mxu0
      %3365 = vmatpush.bf16.msra.mxu0 %v2896
      %3366 = vmatpush.bf16.msra.mxu0 %v2895
      %3367 = vmatpush.bf16.msra.mxu0 %v2894
      %3368 = vmatpush.bf16.msra.mxu0 %v2893
      %3369 = vmatpush.bf16.msra.mxu0 %v2892
      %3370 = vmatpush.bf16.msra.mxu0 %v2891
      %3371 = vmatpush.bf16.msra.mxu0 %v2890
      %3372 = vmatpush.bf16.msra.mxu0 %v2889
      %3373 = vmatmul.bf16.gmra.mxu0 %v1975
      %v3374 = vpop.f32.mrf.mxu0
      %v3375 = vadd.f32 %v3347, %v3374
      %v3376 = vpop.f32.mrf.mxu0
      %v3377 = vadd.f32 %v3349, %v3376
      %3378 = vmatmul.bf16.gmra.mxu0 %v1991
      %v3379 = vpop.f32.mrf.mxu0
      %v3380 = vadd.f32 %v3352, %v3379
      %v3381 = vpop.f32.mrf.mxu0
      %v3382 = vadd.f32 %v3354, %v3381
      %3383 = vmatmul.bf16.gmra.mxu0 %v2007
      %v3384 = vpop.f32.mrf.mxu0
      %v3385 = vadd.f32 %v3357, %v3384
      %v3386 = vpop.f32.mrf.mxu0
      %v3387 = vadd.f32 %v3359, %v3386
      %3388 = vmatmul.bf16.gmra.mxu0 %v2023
      %v3389 = vpop.f32.mrf.mxu0
      %v3390 = vadd.f32 %v3362, %v3389
      %v3391 = vpop.f32.mrf.mxu0
      %3392 = vdwg.mxu0
      %3393 = vmatpush.bf16.msra.mxu0 %v2904
      %3394 = vmatpush.bf16.msra.mxu0 %v2903
      %3395 = vmatpush.bf16.msra.mxu0 %v2902
      %3396 = vmatpush.bf16.msra.mxu0 %v2901
      %3397 = vmatpush.bf16.msra.mxu0 %v2900
      %3398 = vmatpush.bf16.msra.mxu0 %v2899
      %3399 = vmatpush.bf16.msra.mxu0 %v2898
      %3400 = vmatpush.bf16.msra.mxu0 %v2897
      %3401 = vmatmul.bf16.gmra.mxu0 %v1976
      %v3402 = vpop.f32.mrf.mxu0
      %v3403 = vadd.f32 %v3375, %v3402
      %v3404 = vpop.f32.mrf.mxu0
      %v3405 = vadd.f32 %v3377, %v3404
      %3406 = vmatmul.bf16.gmra.mxu0 %v1992
      %v3407 = vpop.f32.mrf.mxu0
      %v3408 = vadd.f32 %v3380, %v3407
      %v3409 = vpop.f32.mrf.mxu0
      %v3410 = vadd.f32 %v3382, %v3409
      %3411 = vmatmul.bf16.gmra.mxu0 %v2008
      %v3412 = vpop.f32.mrf.mxu0
      %v3413 = vadd.f32 %v3385, %v3412
      %v3414 = vpop.f32.mrf.mxu0
      %v3415 = vadd.f32 %v3387, %v3414
      %3416 = vmatmul.bf16.gmra.mxu0 %v2024
      %v3417 = vpop.f32.mrf.mxu0
      %v3418 = vadd.f32 %v3390, %v3417
      %v3419 = vpop.f32.mrf.mxu0
      %3420 = vdwg.mxu0
      %3421 = vmatpush.bf16.msra.mxu0 %v2912
      %3422 = vmatpush.bf16.msra.mxu0 %v2911
      %3423 = vmatpush.bf16.msra.mxu0 %v2910
      %3424 = vmatpush.bf16.msra.mxu0 %v2909
      %3425 = vmatpush.bf16.msra.mxu0 %v2908
      %3426 = vmatpush.bf16.msra.mxu0 %v2907
      %3427 = vmatpush.bf16.msra.mxu0 %v2906
      %3428 = vmatpush.bf16.msra.mxu0 %v2905
      %3429 = vmatmul.bf16.gmra.mxu0 %v1977
      %v3430 = vpop.f32.mrf.mxu0
      %v3431 = vadd.f32 %v3403, %v3430
      %v3432 = vpop.f32.mrf.mxu0
      %v3433 = vadd.f32 %v3405, %v3432
      %3434 = vmatmul.bf16.gmra.mxu0 %v1993
      %v3435 = vpop.f32.mrf.mxu0
      %v3436 = vadd.f32 %v3408, %v3435
      %v3437 = vpop.f32.mrf.mxu0
      %v3438 = vadd.f32 %v3410, %v3437
      %3439 = vmatmul.bf16.gmra.mxu0 %v2009
      %v3440 = vpop.f32.mrf.mxu0
      %v3441 = vadd.f32 %v3413, %v3440
      %v3442 = vpop.f32.mrf.mxu0
      %v3443 = vadd.f32 %v3415, %v3442
      %3444 = vmatmul.bf16.gmra.mxu0 %v2025
      %v3445 = vpop.f32.mrf.mxu0
      %v3446 = vadd.f32 %v3418, %v3445
      %v3447 = vpop.f32.mrf.mxu0
      %3448 = vdwg.mxu0
      %3449 = vmatpush.bf16.msra.mxu0 %v2920
      %3450 = vmatpush.bf16.msra.mxu0 %v2919
      %3451 = vmatpush.bf16.msra.mxu0 %v2918
      %3452 = vmatpush.bf16.msra.mxu0 %v2917
      %3453 = vmatpush.bf16.msra.mxu0 %v2916
      %3454 = vmatpush.bf16.msra.mxu0 %v2915
      %3455 = vmatpush.bf16.msra.mxu0 %v2914
      %3456 = vmatpush.bf16.msra.mxu0 %v2913
      %3457 = vmatmul.bf16.gmra.mxu0 %v1978
      %v3458 = vpop.f32.mrf.mxu0
      %v3459 = vadd.f32 %v3431, %v3458
      %v3460 = vpop.f32.mrf.mxu0
      %v3461 = vadd.f32 %v3433, %v3460
      %3462 = vmatmul.bf16.gmra.mxu0 %v1994
      %v3463 = vpop.f32.mrf.mxu0
      %v3464 = vadd.f32 %v3436, %v3463
      %v3465 = vpop.f32.mrf.mxu0
      %v3466 = vadd.f32 %v3438, %v3465
      %3467 = vmatmul.bf16.gmra.mxu0 %v2010
      %v3468 = vpop.f32.mrf.mxu0
      %v3469 = vadd.f32 %v3441, %v3468
      %v3470 = vpop.f32.mrf.mxu0
      %v3471 = vadd.f32 %v3443, %v3470
      %3472 = vmatmul.bf16.gmra.mxu0 %v2026
      %v3473 = vpop.f32.mrf.mxu0
      %v3474 = vadd.f32 %v3446, %v3473
      %v3475 = vpop.f32.mrf.mxu0
      %3476 = vdwg.mxu0
      %3477 = vmatpush.bf16.msra.mxu0 %v2928
      %3478 = vmatpush.bf16.msra.mxu0 %v2927
      %3479 = vmatpush.bf16.msra.mxu0 %v2926
      %3480 = vmatpush.bf16.msra.mxu0 %v2925
      %3481 = vmatpush.bf16.msra.mxu0 %v2924
      %3482 = vmatpush.bf16.msra.mxu0 %v2923
      %3483 = vmatpush.bf16.msra.mxu0 %v2922
      %3484 = vmatpush.bf16.msra.mxu0 %v2921
      %3485 = vmatmul.bf16.gmra.mxu0 %v1979
      %v3486 = vpop.f32.mrf.mxu0
      %v3487 = vadd.f32 %v3459, %v3486
      %v3488 = vpop.f32.mrf.mxu0
      %v3489 = vadd.f32 %v3461, %v3488
      %3490 = vmatmul.bf16.gmra.mxu0 %v1995
      %v3491 = vpop.f32.mrf.mxu0
      %v3492 = vadd.f32 %v3464, %v3491
      %v3493 = vpop.f32.mrf.mxu0
      %v3494 = vadd.f32 %v3466, %v3493
      %3495 = vmatmul.bf16.gmra.mxu0 %v2011
      %v3496 = vpop.f32.mrf.mxu0
      %v3497 = vadd.f32 %v3469, %v3496
      %v3498 = vpop.f32.mrf.mxu0
      %v3499 = vadd.f32 %v3471, %v3498
      %3500 = vmatmul.bf16.gmra.mxu0 %v2027
      %v3501 = vpop.f32.mrf.mxu0
      %v3502 = vadd.f32 %v3474, %v3501
      %v3503 = vpop.f32.mrf.mxu0
      %3504 = vdwg.mxu0
      %v3505 = vld [vmem:[%s17] sm:$0xf]
      %v3506 = vld [vmem:[%s17 + $0x4] sm:$0xf]
      %v3507 = vld [vmem:[%s17 + $0x8] sm:$0xf]
      %v3508 = vld [vmem:[%s17 + $0xc] sm:$0xf]
      %v3509 = vld [vmem:[%s17 + $0x10] sm:$0xf]
      %v3510 = vld [vmem:[%s17 + $0x14] sm:$0xf]
      %v3511 = vld [vmem:[%s17 + $0x18] sm:$0xf]
      %v3512 = vld [vmem:[%s17 + $0x1c] sm:$0xf]
      %v3513 = vld [vmem:[%s17 + $0x20] sm:$0xf]
      %v3514 = vld [vmem:[%s17 + $0x24] sm:$0xf]
      %v3515 = vld [vmem:[%s17 + $0x28] sm:$0xf]
      %v3516 = vld [vmem:[%s17 + $0x2c] sm:$0xf]
      %v3517 = vld [vmem:[%s17 + $0x30] sm:$0xf]
      %v3518 = vld [vmem:[%s17 + $0x34] sm:$0xf]
      %v3519 = vld [vmem:[%s17 + $0x38] sm:$0xf]
      %v3520 = vld [vmem:[%s17 + $0x3c] sm:$0xf]
      %v3521 = vld [vmem:[%s17 + $0x40] sm:$0xf]
      %v3522 = vld [vmem:[%s17 + $0x44] sm:$0xf]
      %v3523 = vld [vmem:[%s17 + $0x48] sm:$0xf]
      %v3524 = vld [vmem:[%s17 + $0x4c] sm:$0xf]
      %v3525 = vld [vmem:[%s17 + $0x50] sm:$0xf]
      %v3526 = vld [vmem:[%s17 + $0x54] sm:$0xf]
      %v3527 = vld [vmem:[%s17 + $0x58] sm:$0xf]
      %v3528 = vld [vmem:[%s17 + $0x5c] sm:$0xf]
      %v3529 = vld [vmem:[%s17 + $0x60] sm:$0xf]
      %v3530 = vld [vmem:[%s17 + $0x64] sm:$0xf]
      %v3531 = vld [vmem:[%s17 + $0x68] sm:$0xf]
      %v3532 = vld [vmem:[%s17 + $0x6c] sm:$0xf]
      %v3533 = vld [vmem:[%s17 + $0x70] sm:$0xf]
      %v3534 = vld [vmem:[%s17 + $0x74] sm:$0xf]
      %v3535 = vld [vmem:[%s17 + $0x78] sm:$0xf]
      %v3536 = vld [vmem:[%s17 + $0x7c] sm:$0xf]
      %v3537 = vld [vmem:[%s17 + $0x80] sm:$0xf]
      %v3538 = vld [vmem:[%s17 + $0x84] sm:$0xf]
      %v3539 = vld [vmem:[%s17 + $0x88] sm:$0xf]
      %v3540 = vld [vmem:[%s17 + $0x8c] sm:$0xf]
      %v3541 = vld [vmem:[%s17 + $0x90] sm:$0xf]
      %v3542 = vld [vmem:[%s17 + $0x94] sm:$0xf]
      %v3543 = vld [vmem:[%s17 + $0x98] sm:$0xf]
      %v3544 = vld [vmem:[%s17 + $0x9c] sm:$0xf]
      %v3545 = vld [vmem:[%s17 + $0xa0] sm:$0xf]
      %v3546 = vld [vmem:[%s17 + $0xa4] sm:$0xf]
      %v3547 = vld [vmem:[%s17 + $0xa8] sm:$0xf]
      %v3548 = vld [vmem:[%s17 + $0xac] sm:$0xf]
      %v3549 = vld [vmem:[%s17 + $0xb0] sm:$0xf]
      %v3550 = vld [vmem:[%s17 + $0xb4] sm:$0xf]
      %v3551 = vld [vmem:[%s17 + $0xb8] sm:$0xf]
      %v3552 = vld [vmem:[%s17 + $0xbc] sm:$0xf]
      %v3553 = vld [vmem:[%s17 + $0xc0] sm:$0xf]
      %v3554 = vld [vmem:[%s17 + $0xc4] sm:$0xf]
      %v3555 = vld [vmem:[%s17 + $0xc8] sm:$0xf]
      %v3556 = vld [vmem:[%s17 + $0xcc] sm:$0xf]
      %v3557 = vld [vmem:[%s17 + $0xd0] sm:$0xf]
      %v3558 = vld [vmem:[%s17 + $0xd4] sm:$0xf]
      %v3559 = vld [vmem:[%s17 + $0xd8] sm:$0xf]
      %v3560 = vld [vmem:[%s17 + $0xdc] sm:$0xf]
      %v3561 = vld [vmem:[%s17 + $0xe0] sm:$0xf]
      %v3562 = vld [vmem:[%s17 + $0xe4] sm:$0xf]
      %v3563 = vld [vmem:[%s17 + $0xe8] sm:$0xf]
      %v3564 = vld [vmem:[%s17 + $0xec] sm:$0xf]
      %v3565 = vld [vmem:[%s17 + $0xf0] sm:$0xf]
      %v3566 = vld [vmem:[%s17 + $0xf4] sm:$0xf]
      %v3567 = vld [vmem:[%s17 + $0xf8] sm:$0xf]
      %v3568 = vld [vmem:[%s17 + $0xfc] sm:$0xf]
      %v3569 = vld [vmem:[%s17 + $0x100] sm:$0xf]
      %v3570 = vld [vmem:[%s17 + $0x104] sm:$0xf]
      %v3571 = vld [vmem:[%s17 + $0x108] sm:$0xf]
      %v3572 = vld [vmem:[%s17 + $0x10c] sm:$0xf]
      %v3573 = vld [vmem:[%s17 + $0x110] sm:$0xf]
      %v3574 = vld [vmem:[%s17 + $0x114] sm:$0xf]
      %v3575 = vld [vmem:[%s17 + $0x118] sm:$0xf]
      %v3576 = vld [vmem:[%s17 + $0x11c] sm:$0xf]
      %v3577 = vld [vmem:[%s17 + $0x120] sm:$0xf]
      %v3578 = vld [vmem:[%s17 + $0x124] sm:$0xf]
      %v3579 = vld [vmem:[%s17 + $0x128] sm:$0xf]
      %v3580 = vld [vmem:[%s17 + $0x12c] sm:$0xf]
      %v3581 = vld [vmem:[%s17 + $0x130] sm:$0xf]
      %v3582 = vld [vmem:[%s17 + $0x134] sm:$0xf]
      %v3583 = vld [vmem:[%s17 + $0x138] sm:$0xf]
      %v3584 = vld [vmem:[%s17 + $0x13c] sm:$0xf]
      %v3585 = vld [vmem:[%s17 + $0x140] sm:$0xf]
      %v3586 = vld [vmem:[%s17 + $0x144] sm:$0xf]
      %v3587 = vld [vmem:[%s17 + $0x148] sm:$0xf]
      %v3588 = vld [vmem:[%s17 + $0x14c] sm:$0xf]
      %v3589 = vld [vmem:[%s17 + $0x150] sm:$0xf]
      %v3590 = vld [vmem:[%s17 + $0x154] sm:$0xf]
      %v3591 = vld [vmem:[%s17 + $0x158] sm:$0xf]
      %v3592 = vld [vmem:[%s17 + $0x15c] sm:$0xf]
      %v3593 = vld [vmem:[%s17 + $0x160] sm:$0xf]
      %v3594 = vld [vmem:[%s17 + $0x164] sm:$0xf]
      %v3595 = vld [vmem:[%s17 + $0x168] sm:$0xf]
      %v3596 = vld [vmem:[%s17 + $0x16c] sm:$0xf]
      %v3597 = vld [vmem:[%s17 + $0x170] sm:$0xf]
      %v3598 = vld [vmem:[%s17 + $0x174] sm:$0xf]
      %v3599 = vld [vmem:[%s17 + $0x178] sm:$0xf]
      %v3600 = vld [vmem:[%s17 + $0x17c] sm:$0xf]
      %v3601 = vld [vmem:[%s17 + $0x180] sm:$0xf]
      %v3602 = vld [vmem:[%s17 + $0x184] sm:$0xf]
      %v3603 = vld [vmem:[%s17 + $0x188] sm:$0xf]
      %v3604 = vld [vmem:[%s17 + $0x18c] sm:$0xf]
      %v3605 = vld [vmem:[%s17 + $0x190] sm:$0xf]
      %v3606 = vld [vmem:[%s17 + $0x194] sm:$0xf]
      %v3607 = vld [vmem:[%s17 + $0x198] sm:$0xf]
      %v3608 = vld [vmem:[%s17 + $0x19c] sm:$0xf]
      %v3609 = vld [vmem:[%s17 + $0x1a0] sm:$0xf]
      %v3610 = vld [vmem:[%s17 + $0x1a4] sm:$0xf]
      %v3611 = vld [vmem:[%s17 + $0x1a8] sm:$0xf]
      %v3612 = vld [vmem:[%s17 + $0x1ac] sm:$0xf]
      %v3613 = vld [vmem:[%s17 + $0x1b0] sm:$0xf]
      %v3614 = vld [vmem:[%s17 + $0x1b4] sm:$0xf]
      %v3615 = vld [vmem:[%s17 + $0x1b8] sm:$0xf]
      %v3616 = vld [vmem:[%s17 + $0x1bc] sm:$0xf]
      %v3617 = vld [vmem:[%s17 + $0x1c0] sm:$0xf]
      %v3618 = vld [vmem:[%s17 + $0x1c4] sm:$0xf]
      %v3619 = vld [vmem:[%s17 + $0x1c8] sm:$0xf]
      %v3620 = vld [vmem:[%s17 + $0x1cc] sm:$0xf]
      %v3621 = vld [vmem:[%s17 + $0x1d0] sm:$0xf]
      %v3622 = vld [vmem:[%s17 + $0x1d4] sm:$0xf]
      %v3623 = vld [vmem:[%s17 + $0x1d8] sm:$0xf]
      %v3624 = vld [vmem:[%s17 + $0x1dc] sm:$0xf]
      %v3625 = vld [vmem:[%s17 + $0x1e0] sm:$0xf]
      %v3626 = vld [vmem:[%s17 + $0x1e4] sm:$0xf]
      %v3627 = vld [vmem:[%s17 + $0x1e8] sm:$0xf]
      %v3628 = vld [vmem:[%s17 + $0x1ec] sm:$0xf]
      %v3629 = vld [vmem:[%s17 + $0x1f0] sm:$0xf]
      %v3630 = vld [vmem:[%s17 + $0x1f4] sm:$0xf]
      %v3631 = vld [vmem:[%s17 + $0x1f8] sm:$0xf]
      %v3632 = vld [vmem:[%s17 + $0x1fc] sm:$0xf]
      %v3633 = vld [vmem:[%s17 + $0x200] sm:$0xf]
      %v3634 = vld [vmem:[%s17 + $0x204] sm:$0xf]
      %v3635 = vld [vmem:[%s17 + $0x208] sm:$0xf]
      %v3636 = vld [vmem:[%s17 + $0x20c] sm:$0xf]
      %v3637 = vld [vmem:[%s17 + $0x210] sm:$0xf]
      %v3638 = vld [vmem:[%s17 + $0x214] sm:$0xf]
      %v3639 = vld [vmem:[%s17 + $0x218] sm:$0xf]
      %v3640 = vld [vmem:[%s17 + $0x21c] sm:$0xf]
      %v3641 = vld [vmem:[%s17 + $0x220] sm:$0xf]
      %v3642 = vld [vmem:[%s17 + $0x224] sm:$0xf]
      %v3643 = vld [vmem:[%s17 + $0x228] sm:$0xf]
      %v3644 = vld [vmem:[%s17 + $0x22c] sm:$0xf]
      %v3645 = vld [vmem:[%s17 + $0x230] sm:$0xf]
      %v3646 = vld [vmem:[%s17 + $0x234] sm:$0xf]
      %v3647 = vld [vmem:[%s17 + $0x238] sm:$0xf]
      %v3648 = vld [vmem:[%s17 + $0x23c] sm:$0xf]
      %v3649 = vld [vmem:[%s17 + $0x240] sm:$0xf]
      %v3650 = vld [vmem:[%s17 + $0x244] sm:$0xf]
      %v3651 = vld [vmem:[%s17 + $0x248] sm:$0xf]
      %v3652 = vld [vmem:[%s17 + $0x24c] sm:$0xf]
      %v3653 = vld [vmem:[%s17 + $0x250] sm:$0xf]
      %v3654 = vld [vmem:[%s17 + $0x254] sm:$0xf]
      %v3655 = vld [vmem:[%s17 + $0x258] sm:$0xf]
      %v3656 = vld [vmem:[%s17 + $0x25c] sm:$0xf]
      %v3657 = vld [vmem:[%s17 + $0x260] sm:$0xf]
      %v3658 = vld [vmem:[%s17 + $0x264] sm:$0xf]
      %v3659 = vld [vmem:[%s17 + $0x268] sm:$0xf]
      %v3660 = vld [vmem:[%s17 + $0x26c] sm:$0xf]
      %v3661 = vld [vmem:[%s17 + $0x270] sm:$0xf]
      %v3662 = vld [vmem:[%s17 + $0x274] sm:$0xf]
      %v3663 = vld [vmem:[%s17 + $0x278] sm:$0xf]
      %v3664 = vld [vmem:[%s17 + $0x27c] sm:$0xf]
      %v3665 = vld [vmem:[%s17 + $0x280] sm:$0xf]
      %v3666 = vld [vmem:[%s17 + $0x284] sm:$0xf]
      %v3667 = vld [vmem:[%s17 + $0x288] sm:$0xf]
      %v3668 = vld [vmem:[%s17 + $0x28c] sm:$0xf]
      %v3669 = vld [vmem:[%s17 + $0x290] sm:$0xf]
      %v3670 = vld [vmem:[%s17 + $0x294] sm:$0xf]
      %v3671 = vld [vmem:[%s17 + $0x298] sm:$0xf]
      %v3672 = vld [vmem:[%s17 + $0x29c] sm:$0xf]
      %v3673 = vld [vmem:[%s17 + $0x2a0] sm:$0xf]
      %v3674 = vld [vmem:[%s17 + $0x2a4] sm:$0xf]
      %v3675 = vld [vmem:[%s17 + $0x2a8] sm:$0xf]
      %v3676 = vld [vmem:[%s17 + $0x2ac] sm:$0xf]
      %v3677 = vld [vmem:[%s17 + $0x2b0] sm:$0xf]
      %v3678 = vld [vmem:[%s17 + $0x2b4] sm:$0xf]
      %v3679 = vld [vmem:[%s17 + $0x2b8] sm:$0xf]
      %v3680 = vld [vmem:[%s17 + $0x2bc] sm:$0xf]
      %v3681 = vld [vmem:[%s17 + $0x2c0] sm:$0xf]
      %v3682 = vld [vmem:[%s17 + $0x2c4] sm:$0xf]
      %v3683 = vld [vmem:[%s17 + $0x2c8] sm:$0xf]
      %v3684 = vld [vmem:[%s17 + $0x2cc] sm:$0xf]
      %v3685 = vld [vmem:[%s17 + $0x2d0] sm:$0xf]
      %v3686 = vld [vmem:[%s17 + $0x2d4] sm:$0xf]
      %v3687 = vld [vmem:[%s17 + $0x2d8] sm:$0xf]
      %v3688 = vld [vmem:[%s17 + $0x2dc] sm:$0xf]
      %v3689 = vld [vmem:[%s17 + $0x2e0] sm:$0xf]
      %v3690 = vld [vmem:[%s17 + $0x2e4] sm:$0xf]
      %v3691 = vld [vmem:[%s17 + $0x2e8] sm:$0xf]
      %v3692 = vld [vmem:[%s17 + $0x2ec] sm:$0xf]
      %v3693 = vld [vmem:[%s17 + $0x2f0] sm:$0xf]
      %v3694 = vld [vmem:[%s17 + $0x2f4] sm:$0xf]
      %v3695 = vld [vmem:[%s17 + $0x2f8] sm:$0xf]
      %v3696 = vld [vmem:[%s17 + $0x2fc] sm:$0xf]
      %v3697 = vld [vmem:[%s17 + $0x300] sm:$0xf]
      %v3698 = vld [vmem:[%s17 + $0x304] sm:$0xf]
      %v3699 = vld [vmem:[%s17 + $0x308] sm:$0xf]
      %v3700 = vld [vmem:[%s17 + $0x30c] sm:$0xf]
      %v3701 = vld [vmem:[%s17 + $0x310] sm:$0xf]
      %v3702 = vld [vmem:[%s17 + $0x314] sm:$0xf]
      %v3703 = vld [vmem:[%s17 + $0x318] sm:$0xf]
      %v3704 = vld [vmem:[%s17 + $0x31c] sm:$0xf]
      %v3705 = vld [vmem:[%s17 + $0x320] sm:$0xf]
      %v3706 = vld [vmem:[%s17 + $0x324] sm:$0xf]
      %v3707 = vld [vmem:[%s17 + $0x328] sm:$0xf]
      %v3708 = vld [vmem:[%s17 + $0x32c] sm:$0xf]
      %v3709 = vld [vmem:[%s17 + $0x330] sm:$0xf]
      %v3710 = vld [vmem:[%s17 + $0x334] sm:$0xf]
      %v3711 = vld [vmem:[%s17 + $0x338] sm:$0xf]
      %v3712 = vld [vmem:[%s17 + $0x33c] sm:$0xf]
      %v3713 = vld [vmem:[%s17 + $0x340] sm:$0xf]
      %v3714 = vld [vmem:[%s17 + $0x344] sm:$0xf]
      %v3715 = vld [vmem:[%s17 + $0x348] sm:$0xf]
      %v3716 = vld [vmem:[%s17 + $0x34c] sm:$0xf]
      %v3717 = vld [vmem:[%s17 + $0x350] sm:$0xf]
      %v3718 = vld [vmem:[%s17 + $0x354] sm:$0xf]
      %v3719 = vld [vmem:[%s17 + $0x358] sm:$0xf]
      %v3720 = vld [vmem:[%s17 + $0x35c] sm:$0xf]
      %v3721 = vld [vmem:[%s17 + $0x360] sm:$0xf]
      %v3722 = vld [vmem:[%s17 + $0x364] sm:$0xf]
      %v3723 = vld [vmem:[%s17 + $0x368] sm:$0xf]
      %v3724 = vld [vmem:[%s17 + $0x36c] sm:$0xf]
      %v3725 = vld [vmem:[%s17 + $0x370] sm:$0xf]
      %v3726 = vld [vmem:[%s17 + $0x374] sm:$0xf]
      %v3727 = vld [vmem:[%s17 + $0x378] sm:$0xf]
      %v3728 = vld [vmem:[%s17 + $0x37c] sm:$0xf]
      %v3729 = vld [vmem:[%s17 + $0x380] sm:$0xf]
      %v3730 = vld [vmem:[%s17 + $0x384] sm:$0xf]
      %v3731 = vld [vmem:[%s17 + $0x388] sm:$0xf]
      %v3732 = vld [vmem:[%s17 + $0x38c] sm:$0xf]
      %v3733 = vld [vmem:[%s17 + $0x390] sm:$0xf]
      %v3734 = vld [vmem:[%s17 + $0x394] sm:$0xf]
      %v3735 = vld [vmem:[%s17 + $0x398] sm:$0xf]
      %v3736 = vld [vmem:[%s17 + $0x39c] sm:$0xf]
      %v3737 = vld [vmem:[%s17 + $0x3a0] sm:$0xf]
      %v3738 = vld [vmem:[%s17 + $0x3a4] sm:$0xf]
      %v3739 = vld [vmem:[%s17 + $0x3a8] sm:$0xf]
      %v3740 = vld [vmem:[%s17 + $0x3ac] sm:$0xf]
      %v3741 = vld [vmem:[%s17 + $0x3b0] sm:$0xf]
      %v3742 = vld [vmem:[%s17 + $0x3b4] sm:$0xf]
      %v3743 = vld [vmem:[%s17 + $0x3b8] sm:$0xf]
      %v3744 = vld [vmem:[%s17 + $0x3bc] sm:$0xf]
      %v3745 = vld [vmem:[%s17 + $0x3c0] sm:$0xf]
      %v3746 = vld [vmem:[%s17 + $0x3c4] sm:$0xf]
      %v3747 = vld [vmem:[%s17 + $0x3c8] sm:$0xf]
      %v3748 = vld [vmem:[%s17 + $0x3cc] sm:$0xf]
      %v3749 = vld [vmem:[%s17 + $0x3d0] sm:$0xf]
      %v3750 = vld [vmem:[%s17 + $0x3d4] sm:$0xf]
      %v3751 = vld [vmem:[%s17 + $0x3d8] sm:$0xf]
      %v3752 = vld [vmem:[%s17 + $0x3dc] sm:$0xf]
      %v3753 = vld [vmem:[%s17 + $0x3e0] sm:$0xf]
      %v3754 = vld [vmem:[%s17 + $0x3e4] sm:$0xf]
      %v3755 = vld [vmem:[%s17 + $0x3e8] sm:$0xf]
      %v3756 = vld [vmem:[%s17 + $0x3ec] sm:$0xf]
      %v3757 = vld [vmem:[%s17 + $0x3f0] sm:$0xf]
      %v3758 = vld [vmem:[%s17 + $0x3f4] sm:$0xf]
      %v3759 = vld [vmem:[%s17 + $0x3f8] sm:$0xf]
      %v3760 = vld [vmem:[%s17 + $0x3fc] sm:$0xf]
      %s3761 = scalar_lea.vmem %s9, 3
      %v3762 = vld [vmem:[%s3761] sm:$0x1]
      %v3764 = vperm.slane %v3762, 0
      %v4022 = vunpack.c.l.b16 %v3505
      %v4023 = vunpack.c.l.b16 %v3506
      %v4024 = vunpack.c.l.b16 %v3507
      %v4025 = vunpack.c.l.b16 %v3508
      %v4026 = vunpack.c.l.b16 %v3509
      %v4027 = vunpack.c.l.b16 %v3510
      %v4028 = vunpack.c.l.b16 %v3511
      %v4029 = vunpack.c.l.b16 %v3512
      %v4030 = vunpack.c.l.b16 %v3513
      %v4031 = vunpack.c.l.b16 %v3514
      %v4032 = vunpack.c.l.b16 %v3515
      %v4033 = vunpack.c.l.b16 %v3516
      %v4034 = vunpack.c.l.b16 %v3517
      %v4035 = vunpack.c.l.b16 %v3518
      %v4036 = vunpack.c.l.b16 %v3519
      %v4037 = vunpack.c.l.b16 %v3520
      %v4038 = vunpack.c.l.b16 %v3521
      %v4039 = vunpack.c.l.b16 %v3522
      %v4040 = vunpack.c.l.b16 %v3523
      %v4041 = vunpack.c.l.b16 %v3524
      %v4042 = vunpack.c.l.b16 %v3525
      %v4043 = vunpack.c.l.b16 %v3526
      %v4044 = vunpack.c.l.b16 %v3527
      %v4045 = vunpack.c.l.b16 %v3528
      %v4046 = vunpack.c.l.b16 %v3529
      %v4047 = vunpack.c.l.b16 %v3530
      %v4048 = vunpack.c.l.b16 %v3531
      %v4049 = vunpack.c.l.b16 %v3532
      %v4050 = vunpack.c.l.b16 %v3533
      %v4051 = vunpack.c.l.b16 %v3534
      %v4052 = vunpack.c.l.b16 %v3535
      %v4053 = vunpack.c.l.b16 %v3536
      %v4054 = vunpack.c.l.b16 %v3537
      %v4055 = vunpack.c.l.b16 %v3538
      %v4056 = vunpack.c.l.b16 %v3539
      %v4057 = vunpack.c.l.b16 %v3540
      %v4058 = vunpack.c.l.b16 %v3541
      %v4059 = vunpack.c.l.b16 %v3542
      %v4060 = vunpack.c.l.b16 %v3543
      %v4061 = vunpack.c.l.b16 %v3544
      %v4062 = vunpack.c.l.b16 %v3545
      %v4063 = vunpack.c.l.b16 %v3546
      %v4064 = vunpack.c.l.b16 %v3547
      %v4065 = vunpack.c.l.b16 %v3548
      %v4066 = vunpack.c.l.b16 %v3549
      %v4067 = vunpack.c.l.b16 %v3550
      %v4068 = vunpack.c.l.b16 %v3551
      %v4069 = vunpack.c.l.b16 %v3552
      %v4070 = vunpack.c.l.b16 %v3553
      %v4071 = vunpack.c.l.b16 %v3554
      %v4072 = vunpack.c.l.b16 %v3555
      %v4073 = vunpack.c.l.b16 %v3556
      %v4074 = vunpack.c.l.b16 %v3557
      %v4075 = vunpack.c.l.b16 %v3558
      %v4076 = vunpack.c.l.b16 %v3559
      %v4077 = vunpack.c.l.b16 %v3560
      %v4078 = vunpack.c.l.b16 %v3561
      %v4079 = vunpack.c.l.b16 %v3562
      %v4080 = vunpack.c.l.b16 %v3563
      %v4081 = vunpack.c.l.b16 %v3564
      %v4082 = vunpack.c.l.b16 %v3565
      %v4083 = vunpack.c.l.b16 %v3566
      %v4084 = vunpack.c.l.b16 %v3567
      %v4085 = vunpack.c.l.b16 %v3568
      %v4086 = vunpack.c.l.b16 %v3569
      %v4087 = vunpack.c.l.b16 %v3570
      %v4088 = vunpack.c.l.b16 %v3571
      %v4089 = vunpack.c.l.b16 %v3572
      %v4090 = vunpack.c.l.b16 %v3573
      %v4091 = vunpack.c.l.b16 %v3574
      %v4092 = vunpack.c.l.b16 %v3575
      %v4093 = vunpack.c.l.b16 %v3576
      %v4094 = vunpack.c.l.b16 %v3577
      %v4095 = vunpack.c.l.b16 %v3578
      %v4096 = vunpack.c.l.b16 %v3579
      %v4097 = vunpack.c.l.b16 %v3580
      %v4098 = vunpack.c.l.b16 %v3581
      %v4099 = vunpack.c.l.b16 %v3582
      %v4100 = vunpack.c.l.b16 %v3583
      %v4101 = vunpack.c.l.b16 %v3584
      %v4102 = vunpack.c.l.b16 %v3585
      %v4103 = vunpack.c.l.b16 %v3586
      %v4104 = vunpack.c.l.b16 %v3587
      %v4105 = vunpack.c.l.b16 %v3588
      %v4106 = vunpack.c.l.b16 %v3589
      %v4107 = vunpack.c.l.b16 %v3590
      %v4108 = vunpack.c.l.b16 %v3591
      %v4109 = vunpack.c.l.b16 %v3592
      %v4110 = vunpack.c.l.b16 %v3593
      %v4111 = vunpack.c.l.b16 %v3594
      %v4112 = vunpack.c.l.b16 %v3595
      %v4113 = vunpack.c.l.b16 %v3596
      %v4114 = vunpack.c.l.b16 %v3597
      %v4115 = vunpack.c.l.b16 %v3598
      %v4116 = vunpack.c.l.b16 %v3599
      %v4117 = vunpack.c.l.b16 %v3600
      %v4118 = vunpack.c.l.b16 %v3601
      %v4119 = vunpack.c.l.b16 %v3602
      %v4120 = vunpack.c.l.b16 %v3603
      %v4121 = vunpack.c.l.b16 %v3604
      %v4122 = vunpack.c.l.b16 %v3605
      %v4123 = vunpack.c.l.b16 %v3606
      %v4124 = vunpack.c.l.b16 %v3607
      %v4125 = vunpack.c.l.b16 %v3608
      %v4126 = vunpack.c.l.b16 %v3609
      %v4127 = vunpack.c.l.b16 %v3610
      %v4128 = vunpack.c.l.b16 %v3611
      %v4129 = vunpack.c.l.b16 %v3612
      %v4130 = vunpack.c.l.b16 %v3613
      %v4131 = vunpack.c.l.b16 %v3614
      %v4132 = vunpack.c.l.b16 %v3615
      %v4133 = vunpack.c.l.b16 %v3616
      %v4134 = vunpack.c.l.b16 %v3617
      %v4135 = vunpack.c.l.b16 %v3618
      %v4136 = vunpack.c.l.b16 %v3619
      %v4137 = vunpack.c.l.b16 %v3620
      %v4138 = vunpack.c.l.b16 %v3621
      %v4139 = vunpack.c.l.b16 %v3622
      %v4140 = vunpack.c.l.b16 %v3623
      %v4141 = vunpack.c.l.b16 %v3624
      %v4142 = vunpack.c.l.b16 %v3625
      %v4143 = vunpack.c.l.b16 %v3626
      %v4144 = vunpack.c.l.b16 %v3627
      %v4145 = vunpack.c.l.b16 %v3628
      %v4146 = vunpack.c.l.b16 %v3629
      %v4147 = vunpack.c.l.b16 %v3630
      %v4148 = vunpack.c.l.b16 %v3631
      %v4149 = vunpack.c.l.b16 %v3632
      %v4150 = vunpack.c.l.b16 %v3633
      %v4151 = vunpack.c.l.b16 %v3634
      %v4152 = vunpack.c.l.b16 %v3635
      %v4153 = vunpack.c.l.b16 %v3636
      %v4154 = vunpack.c.l.b16 %v3637
      %v4155 = vunpack.c.l.b16 %v3638
      %v4156 = vunpack.c.l.b16 %v3639
      %v4157 = vunpack.c.l.b16 %v3640
      %v4158 = vunpack.c.l.b16 %v3641
      %v4159 = vunpack.c.l.b16 %v3642
      %v4160 = vunpack.c.l.b16 %v3643
      %v4161 = vunpack.c.l.b16 %v3644
      %v4162 = vunpack.c.l.b16 %v3645
      %v4163 = vunpack.c.l.b16 %v3646
      %v4164 = vunpack.c.l.b16 %v3647
      %v4165 = vunpack.c.l.b16 %v3648
      %v4166 = vunpack.c.l.b16 %v3649
      %v4167 = vunpack.c.l.b16 %v3650
      %v4168 = vunpack.c.l.b16 %v3651
      %v4169 = vunpack.c.l.b16 %v3652
      %v4170 = vunpack.c.l.b16 %v3653
      %v4171 = vunpack.c.l.b16 %v3654
      %v4172 = vunpack.c.l.b16 %v3655
      %v4173 = vunpack.c.l.b16 %v3656
      %v4174 = vunpack.c.l.b16 %v3657
      %v4175 = vunpack.c.l.b16 %v3658
      %v4176 = vunpack.c.l.b16 %v3659
      %v4177 = vunpack.c.l.b16 %v3660
      %v4178 = vunpack.c.l.b16 %v3661
      %v4179 = vunpack.c.l.b16 %v3662
      %v4180 = vunpack.c.l.b16 %v3663
      %v4181 = vunpack.c.l.b16 %v3664
      %v4182 = vunpack.c.l.b16 %v3665
      %v4183 = vunpack.c.l.b16 %v3666
      %v4184 = vunpack.c.l.b16 %v3667
      %v4185 = vunpack.c.l.b16 %v3668
      %v4186 = vunpack.c.l.b16 %v3669
      %v4187 = vunpack.c.l.b16 %v3670
      %v4188 = vunpack.c.l.b16 %v3671
      %v4189 = vunpack.c.l.b16 %v3672
      %v4190 = vunpack.c.l.b16 %v3673
      %v4191 = vunpack.c.l.b16 %v3674
      %v4192 = vunpack.c.l.b16 %v3675
      %v4193 = vunpack.c.l.b16 %v3676
      %v4194 = vunpack.c.l.b16 %v3677
      %v4195 = vunpack.c.l.b16 %v3678
      %v4196 = vunpack.c.l.b16 %v3679
      %v4197 = vunpack.c.l.b16 %v3680
      %v4198 = vunpack.c.l.b16 %v3681
      %v4199 = vunpack.c.l.b16 %v3682
      %v4200 = vunpack.c.l.b16 %v3683
      %v4201 = vunpack.c.l.b16 %v3684
      %v4202 = vunpack.c.l.b16 %v3685
      %v4203 = vunpack.c.l.b16 %v3686
      %v4204 = vunpack.c.l.b16 %v3687
      %v4205 = vunpack.c.l.b16 %v3688
      %v4206 = vunpack.c.l.b16 %v3689
      %v4207 = vunpack.c.l.b16 %v3690
      %v4208 = vunpack.c.l.b16 %v3691
      %v4209 = vunpack.c.l.b16 %v3692
      %v4210 = vunpack.c.l.b16 %v3693
      %v4211 = vunpack.c.l.b16 %v3694
      %v4212 = vunpack.c.l.b16 %v3695
      %v4213 = vunpack.c.l.b16 %v3696
      %v4214 = vunpack.c.l.b16 %v3697
      %v4215 = vunpack.c.l.b16 %v3698
      %v4216 = vunpack.c.l.b16 %v3699
      %v4217 = vunpack.c.l.b16 %v3700
      %v4218 = vunpack.c.l.b16 %v3701
      %v4219 = vunpack.c.l.b16 %v3702
      %v4220 = vunpack.c.l.b16 %v3703
      %v4221 = vunpack.c.l.b16 %v3704
      %v4222 = vunpack.c.l.b16 %v3705
      %v4223 = vunpack.c.l.b16 %v3706
      %v4224 = vunpack.c.l.b16 %v3707
      %v4225 = vunpack.c.l.b16 %v3708
      %v4226 = vunpack.c.l.b16 %v3709
      %v4227 = vunpack.c.l.b16 %v3710
      %v4228 = vunpack.c.l.b16 %v3711
      %v4229 = vunpack.c.l.b16 %v3712
      %v4230 = vunpack.c.l.b16 %v3713
      %v4231 = vunpack.c.l.b16 %v3714
      %v4232 = vunpack.c.l.b16 %v3715
      %v4233 = vunpack.c.l.b16 %v3716
      %v4234 = vunpack.c.l.b16 %v3717
      %v4235 = vunpack.c.l.b16 %v3718
      %v4236 = vunpack.c.l.b16 %v3719
      %v4237 = vunpack.c.l.b16 %v3720
      %v4238 = vunpack.c.l.b16 %v3721
      %v4239 = vunpack.c.l.b16 %v3722
      %v4240 = vunpack.c.l.b16 %v3723
      %v4241 = vunpack.c.l.b16 %v3724
      %v4242 = vunpack.c.l.b16 %v3725
      %v4243 = vunpack.c.l.b16 %v3726
      %v4244 = vunpack.c.l.b16 %v3727
      %v4245 = vunpack.c.l.b16 %v3728
      %v4246 = vunpack.c.l.b16 %v3729
      %v4247 = vunpack.c.l.b16 %v3730
      %v4248 = vunpack.c.l.b16 %v3731
      %v4249 = vunpack.c.l.b16 %v3732
      %v4250 = vunpack.c.l.b16 %v3733
      %v4251 = vunpack.c.l.b16 %v3734
      %v4252 = vunpack.c.l.b16 %v3735
      %v4253 = vunpack.c.l.b16 %v3736
      %v4254 = vunpack.c.l.b16 %v3737
      %v4255 = vunpack.c.l.b16 %v3738
      %v4256 = vunpack.c.l.b16 %v3739
      %v4257 = vunpack.c.l.b16 %v3740
      %v4258 = vunpack.c.l.b16 %v3741
      %v4259 = vunpack.c.l.b16 %v3742
      %v4260 = vunpack.c.l.b16 %v3743
      %v4261 = vunpack.c.l.b16 %v3744
      %v4262 = vunpack.c.l.b16 %v3745
      %v4263 = vunpack.c.l.b16 %v3746
      %v4264 = vunpack.c.l.b16 %v3747
      %v4265 = vunpack.c.l.b16 %v3748
      %v4266 = vunpack.c.l.b16 %v3749
      %v4267 = vunpack.c.l.b16 %v3750
      %v4268 = vunpack.c.l.b16 %v3751
      %v4269 = vunpack.c.l.b16 %v3752
      %v4270 = vunpack.c.l.b16 %v3753
      %v4271 = vunpack.c.l.b16 %v3754
      %v4272 = vunpack.c.l.b16 %v3755
      %v4273 = vunpack.c.l.b16 %v3756
      %v4274 = vunpack.c.l.b16 %v3757
      %v4275 = vunpack.c.l.b16 %v3758
      %v4276 = vunpack.c.l.b16 %v3759
      %v4277 = vunpack.c.l.b16 %v3760
      %v4278 = vpack.c.b16 %v4023, %v4022
      %v4279 = vpack.c.b16 %v4025, %v4024
      %v4280 = vpack.c.b16 %v4027, %v4026
      %v4281 = vpack.c.b16 %v4029, %v4028
      %v4282 = vpack.c.b16 %v4031, %v4030
      %v4283 = vpack.c.b16 %v4033, %v4032
      %v4284 = vpack.c.b16 %v4035, %v4034
      %v4285 = vpack.c.b16 %v4037, %v4036
      %v4286 = vpack.c.b16 %v4039, %v4038
      %v4287 = vpack.c.b16 %v4041, %v4040
      %v4288 = vpack.c.b16 %v4043, %v4042
      %v4289 = vpack.c.b16 %v4045, %v4044
      %v4290 = vpack.c.b16 %v4047, %v4046
      %v4291 = vpack.c.b16 %v4049, %v4048
      %v4292 = vpack.c.b16 %v4051, %v4050
      %v4293 = vpack.c.b16 %v4053, %v4052
      %v4294 = vpack.c.b16 %v4055, %v4054
      %v4295 = vpack.c.b16 %v4057, %v4056
      %v4296 = vpack.c.b16 %v4059, %v4058
      %v4297 = vpack.c.b16 %v4061, %v4060
      %v4298 = vpack.c.b16 %v4063, %v4062
      %v4299 = vpack.c.b16 %v4065, %v4064
      %v4300 = vpack.c.b16 %v4067, %v4066
      %v4301 = vpack.c.b16 %v4069, %v4068
      %v4302 = vpack.c.b16 %v4071, %v4070
      %v4303 = vpack.c.b16 %v4073, %v4072
      %v4304 = vpack.c.b16 %v4075, %v4074
      %v4305 = vpack.c.b16 %v4077, %v4076
      %v4306 = vpack.c.b16 %v4079, %v4078
      %v4307 = vpack.c.b16 %v4081, %v4080
      %v4308 = vpack.c.b16 %v4083, %v4082
      %v4309 = vpack.c.b16 %v4085, %v4084
      %v4310 = vpack.c.b16 %v4087, %v4086
      %v4311 = vpack.c.b16 %v4089, %v4088
      %v4312 = vpack.c.b16 %v4091, %v4090
      %v4313 = vpack.c.b16 %v4093, %v4092
      %v4314 = vpack.c.b16 %v4095, %v4094
      %v4315 = vpack.c.b16 %v4097, %v4096
      %v4316 = vpack.c.b16 %v4099, %v4098
      %v4317 = vpack.c.b16 %v4101, %v4100
      %v4318 = vpack.c.b16 %v4103, %v4102
      %v4319 = vpack.c.b16 %v4105, %v4104
      %v4320 = vpack.c.b16 %v4107, %v4106
      %v4321 = vpack.c.b16 %v4109, %v4108
      %v4322 = vpack.c.b16 %v4111, %v4110
      %v4323 = vpack.c.b16 %v4113, %v4112
      %v4324 = vpack.c.b16 %v4115, %v4114
      %v4325 = vpack.c.b16 %v4117, %v4116
      %v4326 = vpack.c.b16 %v4119, %v4118
      %v4327 = vpack.c.b16 %v4121, %v4120
      %v4328 = vpack.c.b16 %v4123, %v4122
      %v4329 = vpack.c.b16 %v4125, %v4124
      %v4330 = vpack.c.b16 %v4127, %v4126
      %v4331 = vpack.c.b16 %v4129, %v4128
      %v4332 = vpack.c.b16 %v4131, %v4130
      %v4333 = vpack.c.b16 %v4133, %v4132
      %v4334 = vpack.c.b16 %v4135, %v4134
      %v4335 = vpack.c.b16 %v4137, %v4136
      %v4336 = vpack.c.b16 %v4139, %v4138
      %v4337 = vpack.c.b16 %v4141, %v4140
      %v4338 = vpack.c.b16 %v4143, %v4142
      %v4339 = vpack.c.b16 %v4145, %v4144
      %v4340 = vpack.c.b16 %v4147, %v4146
      %v4341 = vpack.c.b16 %v4149, %v4148
      %v4342 = vpack.c.b16 %v4151, %v4150
      %v4343 = vpack.c.b16 %v4153, %v4152
      %v4344 = vpack.c.b16 %v4155, %v4154
      %v4345 = vpack.c.b16 %v4157, %v4156
      %v4346 = vpack.c.b16 %v4159, %v4158
      %v4347 = vpack.c.b16 %v4161, %v4160
      %v4348 = vpack.c.b16 %v4163, %v4162
      %v4349 = vpack.c.b16 %v4165, %v4164
      %v4350 = vpack.c.b16 %v4167, %v4166
      %v4351 = vpack.c.b16 %v4169, %v4168
      %v4352 = vpack.c.b16 %v4171, %v4170
      %v4353 = vpack.c.b16 %v4173, %v4172
      %v4354 = vpack.c.b16 %v4175, %v4174
      %v4355 = vpack.c.b16 %v4177, %v4176
      %v4356 = vpack.c.b16 %v4179, %v4178
      %v4357 = vpack.c.b16 %v4181, %v4180
      %v4358 = vpack.c.b16 %v4183, %v4182
      %v4359 = vpack.c.b16 %v4185, %v4184
      %v4360 = vpack.c.b16 %v4187, %v4186
      %v4361 = vpack.c.b16 %v4189, %v4188
      %v4362 = vpack.c.b16 %v4191, %v4190
      %v4363 = vpack.c.b16 %v4193, %v4192
      %v4364 = vpack.c.b16 %v4195, %v4194
      %v4365 = vpack.c.b16 %v4197, %v4196
      %v4366 = vpack.c.b16 %v4199, %v4198
      %v4367 = vpack.c.b16 %v4201, %v4200
      %v4368 = vpack.c.b16 %v4203, %v4202
      %v4369 = vpack.c.b16 %v4205, %v4204
      %v4370 = vpack.c.b16 %v4207, %v4206
      %v4371 = vpack.c.b16 %v4209, %v4208
      %v4372 = vpack.c.b16 %v4211, %v4210
      %v4373 = vpack.c.b16 %v4213, %v4212
      %v4374 = vpack.c.b16 %v4215, %v4214
      %v4375 = vpack.c.b16 %v4217, %v4216
      %v4376 = vpack.c.b16 %v4219, %v4218
      %v4377 = vpack.c.b16 %v4221, %v4220
      %v4378 = vpack.c.b16 %v4223, %v4222
      %v4379 = vpack.c.b16 %v4225, %v4224
      %v4380 = vpack.c.b16 %v4227, %v4226
      %v4381 = vpack.c.b16 %v4229, %v4228
      %v4382 = vpack.c.b16 %v4231, %v4230
      %v4383 = vpack.c.b16 %v4233, %v4232
      %v4384 = vpack.c.b16 %v4235, %v4234
      %v4385 = vpack.c.b16 %v4237, %v4236
      %v4386 = vpack.c.b16 %v4239, %v4238
      %v4387 = vpack.c.b16 %v4241, %v4240
      %v4388 = vpack.c.b16 %v4243, %v4242
      %v4389 = vpack.c.b16 %v4245, %v4244
      %v4390 = vpack.c.b16 %v4247, %v4246
      %v4391 = vpack.c.b16 %v4249, %v4248
      %v4392 = vpack.c.b16 %v4251, %v4250
      %v4393 = vpack.c.b16 %v4253, %v4252
      %v4394 = vpack.c.b16 %v4255, %v4254
      %v4395 = vpack.c.b16 %v4257, %v4256
      %v4396 = vpack.c.b16 %v4259, %v4258
      %v4397 = vpack.c.b16 %v4261, %v4260
      %v4398 = vpack.c.b16 %v4263, %v4262
      %v4399 = vpack.c.b16 %v4265, %v4264
      %v4400 = vpack.c.b16 %v4267, %v4266
      %v4401 = vpack.c.b16 %v4269, %v4268
      %v4402 = vpack.c.b16 %v4271, %v4270
      %v4403 = vpack.c.b16 %v4273, %v4272
      %v4404 = vpack.c.b16 %v4275, %v4274
      %v4405 = vpack.c.b16 %v4277, %v4276
      %4534 = vmatpush.bf16.msra.mxu0 %v4285
      %4535 = vmatpush.bf16.msra.mxu0 %v4284
      %4536 = vmatpush.bf16.msra.mxu0 %v4283
      %4537 = vmatpush.bf16.msra.mxu0 %v4282
      %4538 = vmatpush.bf16.msra.mxu0 %v4281
      %4539 = vmatpush.bf16.msra.mxu0 %v4280
      %4540 = vmatpush.bf16.msra.mxu0 %v4279
      %4541 = vmatpush.bf16.msra.mxu0 %v4278
      %4542 = vmatmul.bf16.gmra.mxu0 %v1964
      %v4543 = vpop.f32.mrf.mxu0
      %v4544 = vadd.f32 %v3764, %v4543
      %v4545 = vpop.f32.mrf.mxu0
      %v4546 = vadd.f32 %v3764, %v4545
      %4547 = vmatmul.bf16.gmra.mxu0 %v1980
      %v4548 = vpop.f32.mrf.mxu0
      %v4549 = vadd.f32 %v3764, %v4548
      %v4550 = vpop.f32.mrf.mxu0
      %v4551 = vadd.f32 %v3764, %v4550
      %4552 = vmatmul.bf16.gmra.mxu0 %v1996
      %v4553 = vpop.f32.mrf.mxu0
      %v4554 = vadd.f32 %v3764, %v4553
      %v4555 = vpop.f32.mrf.mxu0
      %v4556 = vadd.f32 %v3764, %v4555
      %4557 = vmatmul.bf16.gmra.mxu0 %v2012
      %v4558 = vpop.f32.mrf.mxu0
      %v4559 = vadd.f32 %v3764, %v4558
      %v4560 = vpop.f32.mrf.mxu0
      %4561 = vdwg.mxu0
      %4562 = vmatpush.bf16.msra.mxu0 %v4293
      %4563 = vmatpush.bf16.msra.mxu0 %v4292
      %4564 = vmatpush.bf16.msra.mxu0 %v4291
      %4565 = vmatpush.bf16.msra.mxu0 %v4290
      %4566 = vmatpush.bf16.msra.mxu0 %v4289
      %4567 = vmatpush.bf16.msra.mxu0 %v4288
      %4568 = vmatpush.bf16.msra.mxu0 %v4287
      %4569 = vmatpush.bf16.msra.mxu0 %v4286
      %4570 = vmatmul.bf16.gmra.mxu0 %v1965
      %v4571 = vpop.f32.mrf.mxu0
      %v4572 = vadd.f32 %v4544, %v4571
      %v4573 = vpop.f32.mrf.mxu0
      %v4574 = vadd.f32 %v4546, %v4573
      %4575 = vmatmul.bf16.gmra.mxu0 %v1981
      %v4576 = vpop.f32.mrf.mxu0
      %v4577 = vadd.f32 %v4549, %v4576
      %v4578 = vpop.f32.mrf.mxu0
      %v4579 = vadd.f32 %v4551, %v4578
      %4580 = vmatmul.bf16.gmra.mxu0 %v1997
      %v4581 = vpop.f32.mrf.mxu0
      %v4582 = vadd.f32 %v4554, %v4581
      %v4583 = vpop.f32.mrf.mxu0
      %v4584 = vadd.f32 %v4556, %v4583
      %4585 = vmatmul.bf16.gmra.mxu0 %v2013
      %v4586 = vpop.f32.mrf.mxu0
      %v4587 = vadd.f32 %v4559, %v4586
      %v4588 = vpop.f32.mrf.mxu0
      %4589 = vdwg.mxu0
      %4590 = vmatpush.bf16.msra.mxu0 %v4301
      %4591 = vmatpush.bf16.msra.mxu0 %v4300
      %4592 = vmatpush.bf16.msra.mxu0 %v4299
      %4593 = vmatpush.bf16.msra.mxu0 %v4298
      %4594 = vmatpush.bf16.msra.mxu0 %v4297
      %4595 = vmatpush.bf16.msra.mxu0 %v4296
      %4596 = vmatpush.bf16.msra.mxu0 %v4295
      %4597 = vmatpush.bf16.msra.mxu0 %v4294
      %4598 = vmatmul.bf16.gmra.mxu0 %v1966
      %v4599 = vpop.f32.mrf.mxu0
      %v4600 = vadd.f32 %v4572, %v4599
      %v4601 = vpop.f32.mrf.mxu0
      %v4602 = vadd.f32 %v4574, %v4601
      %4603 = vmatmul.bf16.gmra.mxu0 %v1982
      %v4604 = vpop.f32.mrf.mxu0
      %v4605 = vadd.f32 %v4577, %v4604
      %v4606 = vpop.f32.mrf.mxu0
      %v4607 = vadd.f32 %v4579, %v4606
      %4608 = vmatmul.bf16.gmra.mxu0 %v1998
      %v4609 = vpop.f32.mrf.mxu0
      %v4610 = vadd.f32 %v4582, %v4609
      %v4611 = vpop.f32.mrf.mxu0
      %v4612 = vadd.f32 %v4584, %v4611
      %4613 = vmatmul.bf16.gmra.mxu0 %v2014
      %v4614 = vpop.f32.mrf.mxu0
      %v4615 = vadd.f32 %v4587, %v4614
      %v4616 = vpop.f32.mrf.mxu0
      %4617 = vdwg.mxu0
      %4618 = vmatpush.bf16.msra.mxu0 %v4309
      %4619 = vmatpush.bf16.msra.mxu0 %v4308
      %4620 = vmatpush.bf16.msra.mxu0 %v4307
      %4621 = vmatpush.bf16.msra.mxu0 %v4306
      %4622 = vmatpush.bf16.msra.mxu0 %v4305
      %4623 = vmatpush.bf16.msra.mxu0 %v4304
      %4624 = vmatpush.bf16.msra.mxu0 %v4303
      %4625 = vmatpush.bf16.msra.mxu0 %v4302
      %4626 = vmatmul.bf16.gmra.mxu0 %v1967
      %v4627 = vpop.f32.mrf.mxu0
      %v4628 = vadd.f32 %v4600, %v4627
      %v4629 = vpop.f32.mrf.mxu0
      %v4630 = vadd.f32 %v4602, %v4629
      %4631 = vmatmul.bf16.gmra.mxu0 %v1983
      %v4632 = vpop.f32.mrf.mxu0
      %v4633 = vadd.f32 %v4605, %v4632
      %v4634 = vpop.f32.mrf.mxu0
      %v4635 = vadd.f32 %v4607, %v4634
      %4636 = vmatmul.bf16.gmra.mxu0 %v1999
      %v4637 = vpop.f32.mrf.mxu0
      %v4638 = vadd.f32 %v4610, %v4637
      %v4639 = vpop.f32.mrf.mxu0
      %v4640 = vadd.f32 %v4612, %v4639
      %4641 = vmatmul.bf16.gmra.mxu0 %v2015
      %v4642 = vpop.f32.mrf.mxu0
      %v4643 = vadd.f32 %v4615, %v4642
      %v4644 = vpop.f32.mrf.mxu0
      %4645 = vdwg.mxu0
      %4646 = vmatpush.bf16.msra.mxu0 %v4317
      %4647 = vmatpush.bf16.msra.mxu0 %v4316
      %4648 = vmatpush.bf16.msra.mxu0 %v4315
      %4649 = vmatpush.bf16.msra.mxu0 %v4314
      %4650 = vmatpush.bf16.msra.mxu0 %v4313
      %4651 = vmatpush.bf16.msra.mxu0 %v4312
      %4652 = vmatpush.bf16.msra.mxu0 %v4311
      %4653 = vmatpush.bf16.msra.mxu0 %v4310
      %4654 = vmatmul.bf16.gmra.mxu0 %v1968
      %v4655 = vpop.f32.mrf.mxu0
      %v4656 = vadd.f32 %v4628, %v4655
      %v4657 = vpop.f32.mrf.mxu0
      %v4658 = vadd.f32 %v4630, %v4657
      %4659 = vmatmul.bf16.gmra.mxu0 %v1984
      %v4660 = vpop.f32.mrf.mxu0
      %v4661 = vadd.f32 %v4633, %v4660
      %v4662 = vpop.f32.mrf.mxu0
      %v4663 = vadd.f32 %v4635, %v4662
      %4664 = vmatmul.bf16.gmra.mxu0 %v2000
      %v4665 = vpop.f32.mrf.mxu0
      %v4666 = vadd.f32 %v4638, %v4665
      %v4667 = vpop.f32.mrf.mxu0
      %v4668 = vadd.f32 %v4640, %v4667
      %4669 = vmatmul.bf16.gmra.mxu0 %v2016
      %v4670 = vpop.f32.mrf.mxu0
      %v4671 = vadd.f32 %v4643, %v4670
      %v4672 = vpop.f32.mrf.mxu0
      %4673 = vdwg.mxu0
      %4674 = vmatpush.bf16.msra.mxu0 %v4325
      %4675 = vmatpush.bf16.msra.mxu0 %v4324
      %4676 = vmatpush.bf16.msra.mxu0 %v4323
      %4677 = vmatpush.bf16.msra.mxu0 %v4322
      %4678 = vmatpush.bf16.msra.mxu0 %v4321
      %4679 = vmatpush.bf16.msra.mxu0 %v4320
      %4680 = vmatpush.bf16.msra.mxu0 %v4319
      %4681 = vmatpush.bf16.msra.mxu0 %v4318
      %4682 = vmatmul.bf16.gmra.mxu0 %v1969
      %v4683 = vpop.f32.mrf.mxu0
      %v4684 = vadd.f32 %v4656, %v4683
      %v4685 = vpop.f32.mrf.mxu0
      %v4686 = vadd.f32 %v4658, %v4685
      %4687 = vmatmul.bf16.gmra.mxu0 %v1985
      %v4688 = vpop.f32.mrf.mxu0
      %v4689 = vadd.f32 %v4661, %v4688
      %v4690 = vpop.f32.mrf.mxu0
      %v4691 = vadd.f32 %v4663, %v4690
      %4692 = vmatmul.bf16.gmra.mxu0 %v2001
      %v4693 = vpop.f32.mrf.mxu0
      %v4694 = vadd.f32 %v4666, %v4693
      %v4695 = vpop.f32.mrf.mxu0
      %v4696 = vadd.f32 %v4668, %v4695
      %4697 = vmatmul.bf16.gmra.mxu0 %v2017
      %v4698 = vpop.f32.mrf.mxu0
      %v4699 = vadd.f32 %v4671, %v4698
      %v4700 = vpop.f32.mrf.mxu0
      %4701 = vdwg.mxu0
      %4702 = vmatpush.bf16.msra.mxu0 %v4333
      %4703 = vmatpush.bf16.msra.mxu0 %v4332
      %4704 = vmatpush.bf16.msra.mxu0 %v4331
      %4705 = vmatpush.bf16.msra.mxu0 %v4330
      %4706 = vmatpush.bf16.msra.mxu0 %v4329
      %4707 = vmatpush.bf16.msra.mxu0 %v4328
      %4708 = vmatpush.bf16.msra.mxu0 %v4327
      %4709 = vmatpush.bf16.msra.mxu0 %v4326
      %4710 = vmatmul.bf16.gmra.mxu0 %v1970
      %v4711 = vpop.f32.mrf.mxu0
      %v4712 = vadd.f32 %v4684, %v4711
      %v4713 = vpop.f32.mrf.mxu0
      %v4714 = vadd.f32 %v4686, %v4713
      %4715 = vmatmul.bf16.gmra.mxu0 %v1986
      %v4716 = vpop.f32.mrf.mxu0
      %v4717 = vadd.f32 %v4689, %v4716
      %v4718 = vpop.f32.mrf.mxu0
      %v4719 = vadd.f32 %v4691, %v4718
      %4720 = vmatmul.bf16.gmra.mxu0 %v2002
      %v4721 = vpop.f32.mrf.mxu0
      %v4722 = vadd.f32 %v4694, %v4721
      %v4723 = vpop.f32.mrf.mxu0
      %v4724 = vadd.f32 %v4696, %v4723
      %4725 = vmatmul.bf16.gmra.mxu0 %v2018
      %v4726 = vpop.f32.mrf.mxu0
      %v4727 = vadd.f32 %v4699, %v4726
      %v4728 = vpop.f32.mrf.mxu0
      %4729 = vdwg.mxu0
      %4730 = vmatpush.bf16.msra.mxu0 %v4341
      %4731 = vmatpush.bf16.msra.mxu0 %v4340
      %4732 = vmatpush.bf16.msra.mxu0 %v4339
      %4733 = vmatpush.bf16.msra.mxu0 %v4338
      %4734 = vmatpush.bf16.msra.mxu0 %v4337
      %4735 = vmatpush.bf16.msra.mxu0 %v4336
      %4736 = vmatpush.bf16.msra.mxu0 %v4335
      %4737 = vmatpush.bf16.msra.mxu0 %v4334
      %4738 = vmatmul.bf16.gmra.mxu0 %v1971
      %v4739 = vpop.f32.mrf.mxu0
      %v4740 = vadd.f32 %v4712, %v4739
      %v4741 = vpop.f32.mrf.mxu0
      %v4742 = vadd.f32 %v4714, %v4741
      %4743 = vmatmul.bf16.gmra.mxu0 %v1987
      %v4744 = vpop.f32.mrf.mxu0
      %v4745 = vadd.f32 %v4717, %v4744
      %v4746 = vpop.f32.mrf.mxu0
      %v4747 = vadd.f32 %v4719, %v4746
      %4748 = vmatmul.bf16.gmra.mxu0 %v2003
      %v4749 = vpop.f32.mrf.mxu0
      %v4750 = vadd.f32 %v4722, %v4749
      %v4751 = vpop.f32.mrf.mxu0
      %v4752 = vadd.f32 %v4724, %v4751
      %4753 = vmatmul.bf16.gmra.mxu0 %v2019
      %v4754 = vpop.f32.mrf.mxu0
      %v4755 = vadd.f32 %v4727, %v4754
      %v4756 = vpop.f32.mrf.mxu0
      %4757 = vdwg.mxu0
      %4758 = vmatpush.bf16.msra.mxu0 %v4349
      %4759 = vmatpush.bf16.msra.mxu0 %v4348
      %4760 = vmatpush.bf16.msra.mxu0 %v4347
      %4761 = vmatpush.bf16.msra.mxu0 %v4346
      %4762 = vmatpush.bf16.msra.mxu0 %v4345
      %4763 = vmatpush.bf16.msra.mxu0 %v4344
      %4764 = vmatpush.bf16.msra.mxu0 %v4343
      %4765 = vmatpush.bf16.msra.mxu0 %v4342
      %4766 = vmatmul.bf16.gmra.mxu0 %v1972
      %v4767 = vpop.f32.mrf.mxu0
      %v4768 = vadd.f32 %v4740, %v4767
      %v4769 = vpop.f32.mrf.mxu0
      %v4770 = vadd.f32 %v4742, %v4769
      %4771 = vmatmul.bf16.gmra.mxu0 %v1988
      %v4772 = vpop.f32.mrf.mxu0
      %v4773 = vadd.f32 %v4745, %v4772
      %v4774 = vpop.f32.mrf.mxu0
      %v4775 = vadd.f32 %v4747, %v4774
      %4776 = vmatmul.bf16.gmra.mxu0 %v2004
      %v4777 = vpop.f32.mrf.mxu0
      %v4778 = vadd.f32 %v4750, %v4777
      %v4779 = vpop.f32.mrf.mxu0
      %v4780 = vadd.f32 %v4752, %v4779
      %4781 = vmatmul.bf16.gmra.mxu0 %v2020
      %v4782 = vpop.f32.mrf.mxu0
      %v4783 = vadd.f32 %v4755, %v4782
      %v4784 = vpop.f32.mrf.mxu0
      %4785 = vdwg.mxu0
      %4786 = vmatpush.bf16.msra.mxu0 %v4357
      %4787 = vmatpush.bf16.msra.mxu0 %v4356
      %4788 = vmatpush.bf16.msra.mxu0 %v4355
      %4789 = vmatpush.bf16.msra.mxu0 %v4354
      %4790 = vmatpush.bf16.msra.mxu0 %v4353
      %4791 = vmatpush.bf16.msra.mxu0 %v4352
      %4792 = vmatpush.bf16.msra.mxu0 %v4351
      %4793 = vmatpush.bf16.msra.mxu0 %v4350
      %4794 = vmatmul.bf16.gmra.mxu0 %v1973
      %v4795 = vpop.f32.mrf.mxu0
      %v4796 = vadd.f32 %v4768, %v4795
      %v4797 = vpop.f32.mrf.mxu0
      %v4798 = vadd.f32 %v4770, %v4797
      %4799 = vmatmul.bf16.gmra.mxu0 %v1989
      %v4800 = vpop.f32.mrf.mxu0
      %v4801 = vadd.f32 %v4773, %v4800
      %v4802 = vpop.f32.mrf.mxu0
      %v4803 = vadd.f32 %v4775, %v4802
      %4804 = vmatmul.bf16.gmra.mxu0 %v2005
      %v4805 = vpop.f32.mrf.mxu0
      %v4806 = vadd.f32 %v4778, %v4805
      %v4807 = vpop.f32.mrf.mxu0
      %v4808 = vadd.f32 %v4780, %v4807
      %4809 = vmatmul.bf16.gmra.mxu0 %v2021
      %v4810 = vpop.f32.mrf.mxu0
      %v4811 = vadd.f32 %v4783, %v4810
      %v4812 = vpop.f32.mrf.mxu0
      %4813 = vdwg.mxu0
      %4814 = vmatpush.bf16.msra.mxu0 %v4365
      %4815 = vmatpush.bf16.msra.mxu0 %v4364
      %4816 = vmatpush.bf16.msra.mxu0 %v4363
      %4817 = vmatpush.bf16.msra.mxu0 %v4362
      %4818 = vmatpush.bf16.msra.mxu0 %v4361
      %4819 = vmatpush.bf16.msra.mxu0 %v4360
      %4820 = vmatpush.bf16.msra.mxu0 %v4359
      %4821 = vmatpush.bf16.msra.mxu0 %v4358
      %4822 = vmatmul.bf16.gmra.mxu0 %v1974
      %v4823 = vpop.f32.mrf.mxu0
      %v4824 = vadd.f32 %v4796, %v4823
      %v4825 = vpop.f32.mrf.mxu0
      %v4826 = vadd.f32 %v4798, %v4825
      %4827 = vmatmul.bf16.gmra.mxu0 %v1990
      %v4828 = vpop.f32.mrf.mxu0
      %v4829 = vadd.f32 %v4801, %v4828
      %v4830 = vpop.f32.mrf.mxu0
      %v4831 = vadd.f32 %v4803, %v4830
      %4832 = vmatmul.bf16.gmra.mxu0 %v2006
      %v4833 = vpop.f32.mrf.mxu0
      %v4834 = vadd.f32 %v4806, %v4833
      %v4835 = vpop.f32.mrf.mxu0
      %v4836 = vadd.f32 %v4808, %v4835
      %4837 = vmatmul.bf16.gmra.mxu0 %v2022
      %v4838 = vpop.f32.mrf.mxu0
      %v4839 = vadd.f32 %v4811, %v4838
      %v4840 = vpop.f32.mrf.mxu0
      %4841 = vdwg.mxu0
      %4842 = vmatpush.bf16.msra.mxu0 %v4373
      %4843 = vmatpush.bf16.msra.mxu0 %v4372
      %4844 = vmatpush.bf16.msra.mxu0 %v4371
      %4845 = vmatpush.bf16.msra.mxu0 %v4370
      %4846 = vmatpush.bf16.msra.mxu0 %v4369
      %4847 = vmatpush.bf16.msra.mxu0 %v4368
      %4848 = vmatpush.bf16.msra.mxu0 %v4367
      %4849 = vmatpush.bf16.msra.mxu0 %v4366
      %4850 = vmatmul.bf16.gmra.mxu0 %v1975
      %v4851 = vpop.f32.mrf.mxu0
      %v4852 = vadd.f32 %v4824, %v4851
      %v4853 = vpop.f32.mrf.mxu0
      %v4854 = vadd.f32 %v4826, %v4853
      %4855 = vmatmul.bf16.gmra.mxu0 %v1991
      %v4856 = vpop.f32.mrf.mxu0
      %v4857 = vadd.f32 %v4829, %v4856
      %v4858 = vpop.f32.mrf.mxu0
      %v4859 = vadd.f32 %v4831, %v4858
      %4860 = vmatmul.bf16.gmra.mxu0 %v2007
      %v4861 = vpop.f32.mrf.mxu0
      %v4862 = vadd.f32 %v4834, %v4861
      %v4863 = vpop.f32.mrf.mxu0
      %v4864 = vadd.f32 %v4836, %v4863
      %4865 = vmatmul.bf16.gmra.mxu0 %v2023
      %v4866 = vpop.f32.mrf.mxu0
      %v4867 = vadd.f32 %v4839, %v4866
      %v4868 = vpop.f32.mrf.mxu0
      %4869 = vdwg.mxu0
      %4870 = vmatpush.bf16.msra.mxu0 %v4381
      %4871 = vmatpush.bf16.msra.mxu0 %v4380
      %4872 = vmatpush.bf16.msra.mxu0 %v4379
      %4873 = vmatpush.bf16.msra.mxu0 %v4378
      %4874 = vmatpush.bf16.msra.mxu0 %v4377
      %4875 = vmatpush.bf16.msra.mxu0 %v4376
      %4876 = vmatpush.bf16.msra.mxu0 %v4375
      %4877 = vmatpush.bf16.msra.mxu0 %v4374
      %4878 = vmatmul.bf16.gmra.mxu0 %v1976
      %v4879 = vpop.f32.mrf.mxu0
      %v4880 = vadd.f32 %v4852, %v4879
      %v4881 = vpop.f32.mrf.mxu0
      %v4882 = vadd.f32 %v4854, %v4881
      %4883 = vmatmul.bf16.gmra.mxu0 %v1992
      %v4884 = vpop.f32.mrf.mxu0
      %v4885 = vadd.f32 %v4857, %v4884
      %v4886 = vpop.f32.mrf.mxu0
      %v4887 = vadd.f32 %v4859, %v4886
      %4888 = vmatmul.bf16.gmra.mxu0 %v2008
      %v4889 = vpop.f32.mrf.mxu0
      %v4890 = vadd.f32 %v4862, %v4889
      %v4891 = vpop.f32.mrf.mxu0
      %v4892 = vadd.f32 %v4864, %v4891
      %4893 = vmatmul.bf16.gmra.mxu0 %v2024
      %v4894 = vpop.f32.mrf.mxu0
      %v4895 = vadd.f32 %v4867, %v4894
      %v4896 = vpop.f32.mrf.mxu0
      %4897 = vdwg.mxu0
      %4898 = vmatpush.bf16.msra.mxu0 %v4389
      %4899 = vmatpush.bf16.msra.mxu0 %v4388
      %4900 = vmatpush.bf16.msra.mxu0 %v4387
      %4901 = vmatpush.bf16.msra.mxu0 %v4386
      %4902 = vmatpush.bf16.msra.mxu0 %v4385
      %4903 = vmatpush.bf16.msra.mxu0 %v4384
      %4904 = vmatpush.bf16.msra.mxu0 %v4383
      %4905 = vmatpush.bf16.msra.mxu0 %v4382
      %4906 = vmatmul.bf16.gmra.mxu0 %v1977
      %v4907 = vpop.f32.mrf.mxu0
      %v4908 = vadd.f32 %v4880, %v4907
      %v4909 = vpop.f32.mrf.mxu0
      %v4910 = vadd.f32 %v4882, %v4909
      %4911 = vmatmul.bf16.gmra.mxu0 %v1993
      %v4912 = vpop.f32.mrf.mxu0
      %v4913 = vadd.f32 %v4885, %v4912
      %v4914 = vpop.f32.mrf.mxu0
      %v4915 = vadd.f32 %v4887, %v4914
      %4916 = vmatmul.bf16.gmra.mxu0 %v2009
      %v4917 = vpop.f32.mrf.mxu0
      %v4918 = vadd.f32 %v4890, %v4917
      %v4919 = vpop.f32.mrf.mxu0
      %v4920 = vadd.f32 %v4892, %v4919
      %4921 = vmatmul.bf16.gmra.mxu0 %v2025
      %v4922 = vpop.f32.mrf.mxu0
      %v4923 = vadd.f32 %v4895, %v4922
      %v4924 = vpop.f32.mrf.mxu0
      %4925 = vdwg.mxu0
      %4926 = vmatpush.bf16.msra.mxu0 %v4397
      %4927 = vmatpush.bf16.msra.mxu0 %v4396
      %4928 = vmatpush.bf16.msra.mxu0 %v4395
      %4929 = vmatpush.bf16.msra.mxu0 %v4394
      %4930 = vmatpush.bf16.msra.mxu0 %v4393
      %4931 = vmatpush.bf16.msra.mxu0 %v4392
      %4932 = vmatpush.bf16.msra.mxu0 %v4391
      %4933 = vmatpush.bf16.msra.mxu0 %v4390
      %4934 = vmatmul.bf16.gmra.mxu0 %v1978
      %v4935 = vpop.f32.mrf.mxu0
      %v4936 = vadd.f32 %v4908, %v4935
      %v4937 = vpop.f32.mrf.mxu0
      %v4938 = vadd.f32 %v4910, %v4937
      %4939 = vmatmul.bf16.gmra.mxu0 %v1994
      %v4940 = vpop.f32.mrf.mxu0
      %v4941 = vadd.f32 %v4913, %v4940
      %v4942 = vpop.f32.mrf.mxu0
      %v4943 = vadd.f32 %v4915, %v4942
      %4944 = vmatmul.bf16.gmra.mxu0 %v2010
      %v4945 = vpop.f32.mrf.mxu0
      %v4946 = vadd.f32 %v4918, %v4945
      %v4947 = vpop.f32.mrf.mxu0
      %v4948 = vadd.f32 %v4920, %v4947
      %4949 = vmatmul.bf16.gmra.mxu0 %v2026
      %v4950 = vpop.f32.mrf.mxu0
      %v4951 = vadd.f32 %v4923, %v4950
      %v4952 = vpop.f32.mrf.mxu0
      %4953 = vdwg.mxu0
      %4954 = vmatpush.bf16.msra.mxu0 %v4405
      %4955 = vmatpush.bf16.msra.mxu0 %v4404
      %4956 = vmatpush.bf16.msra.mxu0 %v4403
      %4957 = vmatpush.bf16.msra.mxu0 %v4402
      %4958 = vmatpush.bf16.msra.mxu0 %v4401
      %4959 = vmatpush.bf16.msra.mxu0 %v4400
      %4960 = vmatpush.bf16.msra.mxu0 %v4399
      %4961 = vmatpush.bf16.msra.mxu0 %v4398
      %4962 = vmatmul.bf16.gmra.mxu0 %v1979
      %v4963 = vpop.f32.mrf.mxu0
      %v4964 = vadd.f32 %v4936, %v4963
      %v4965 = vpop.f32.mrf.mxu0
      %v4966 = vadd.f32 %v4938, %v4965
      %4967 = vmatmul.bf16.gmra.mxu0 %v1995
      %v4968 = vpop.f32.mrf.mxu0
      %v4969 = vadd.f32 %v4941, %v4968
      %v4970 = vpop.f32.mrf.mxu0
      %v4971 = vadd.f32 %v4943, %v4970
      %4972 = vmatmul.bf16.gmra.mxu0 %v2011
      %v4973 = vpop.f32.mrf.mxu0
      %v4974 = vadd.f32 %v4946, %v4973
      %v4975 = vpop.f32.mrf.mxu0
      %v4976 = vadd.f32 %v4948, %v4975
      %4977 = vmatmul.bf16.gmra.mxu0 %v2027
      %v4978 = vpop.f32.mrf.mxu0
      %v4979 = vadd.f32 %v4951, %v4978
      %v4980 = vpop.f32.mrf.mxu0
      %4981 = vdwg.mxu0
      %v4982 = vld [vmem:[%s1022] sm:$0x1]
      %v4983 = vsub.f32 1.0, %v4982
      %v4984 = vmul.f32 %v4983, -10000.0
      %v4985 = vld [vmem:[%s19] sm:$0xf]
      %v4986 = vld [vmem:[%s19 + $0x4] sm:$0xf]
      %v4987 = vld [vmem:[%s19 + $0x8] sm:$0xf]
      %v4988 = vld [vmem:[%s19 + $0xc] sm:$0xf]
      %v4989 = vld [vmem:[%s19 + $0x10] sm:$0xf]
      %v4990 = vld [vmem:[%s19 + $0x14] sm:$0xf]
      %v4991 = vld [vmem:[%s19 + $0x18] sm:$0xf]
      %v4992 = vld [vmem:[%s19 + $0x1c] sm:$0xf]
      %v4993 = vpack.c.bf16 %v1072, %v1072
      %v4994 = vld [vmem:[%s21] sm:$0x1]
      %v4996 = vperm.slane %v4994, 0
      %v5006 = vunpack.c.l.b16 %v4985
      %v5007 = vunpack.c.l.b16 %v4986
      %v5008 = vunpack.c.l.b16 %v4987
      %v5009 = vunpack.c.l.b16 %v4988
      %v5010 = vunpack.c.l.b16 %v4989
      %v5011 = vunpack.c.l.b16 %v4990
      %v5012 = vunpack.c.l.b16 %v4991
      %v5013 = vunpack.c.l.b16 %v4992
      %v5014 = vpack.c.b16 %v5007, %v5006
      %v5015 = vpack.c.b16 %v5009, %v5008
      %v5016 = vpack.c.b16 %v5011, %v5010
      %v5017 = vpack.c.b16 %v5013, %v5012
      %v5023 = vsel %vm1035, %v4993, 0
      %5025 = vmatpush.bf16.msra.mxu0 0
      %5026 = vmatpush.bf16.msra.mxu0 0
      %5027 = vmatpush.bf16.msra.mxu0 0
      %5028 = vmatpush.bf16.msra.mxu0 0
      %5029 = vmatpush.bf16.msra.mxu0 %v5017
      %5030 = vmatpush.bf16.msra.mxu0 %v5016
      %5031 = vmatpush.bf16.msra.mxu0 %v5015
      %5032 = vmatpush.bf16.msra.mxu0 %v5014
      %5033 = vmatmul.bf16.gmra.mxu0 %v5023
      %v5034 = vpop.f32.mrf.mxu0
      %v5035 = vadd.f32 %v4996, %v5034
      %v5036 = vpop.f32.mrf.mxu0
      %5037 = vdwg.mxu0
      %v5038 = vld [vmem:[%s23] sm:$0xf]
      %v5039 = vld [vmem:[%s23 + $0x4] sm:$0xf]
      %v5040 = vld [vmem:[%s23 + $0x8] sm:$0xf]
      %v5041 = vld [vmem:[%s23 + $0xc] sm:$0xf]
      %v5042 = vld [vmem:[%s23 + $0x10] sm:$0xf]
      %v5043 = vld [vmem:[%s23 + $0x14] sm:$0xf]
      %v5044 = vld [vmem:[%s23 + $0x18] sm:$0xf]
      %v5045 = vld [vmem:[%s23 + $0x1c] sm:$0xf]
      %v5046 = vpack.c.bf16 %v4966, %v4964
      %v5047 = vpack.c.bf16 %v4971, %v4969
      %v5048 = vpack.c.bf16 %v4976, %v4974
      %v5049 = vpack.c.bf16 %v4979, %v4979
      %v5050 = vld [vmem:[%s25] sm:$0x1]
      %v5052 = vperm.slane %v5050, 0
      %v5062 = vunpack.c.l.b16 %v5038
      %v5063 = vunpack.c.l.b16 %v5039
      %v5064 = vunpack.c.l.b16 %v5040
      %v5065 = vunpack.c.l.b16 %v5041
      %v5066 = vunpack.c.l.b16 %v5042
      %v5067 = vunpack.c.l.b16 %v5043
      %v5068 = vunpack.c.l.b16 %v5044
      %v5069 = vunpack.c.l.b16 %v5045
      %v5070 = vpack.c.b16 %v5063, %v5062
      %v5071 = vpack.c.b16 %v5065, %v5064
      %v5072 = vpack.c.b16 %v5067, %v5066
      %v5073 = vpack.c.b16 %v5069, %v5068
      %v5079 = vsel %vm1035, %v5046, 0
      %v5082 = vsel %vm1035, %v5047, 0
      %v5085 = vsel %vm1035, %v5048, 0
      %v5088 = vsel %vm1035, %v5049, 0
      %5090 = vmatpush.bf16.msra.mxu0 0
      %5091 = vmatpush.bf16.msra.mxu0 0
      %5092 = vmatpush.bf16.msra.mxu0 0
      %5093 = vmatpush.bf16.msra.mxu0 0
      %5094 = vmatpush.bf16.msra.mxu0 %v5073
      %5095 = vmatpush.bf16.msra.mxu0 %v5072
      %5096 = vmatpush.bf16.msra.mxu0 %v5071
      %5097 = vmatpush.bf16.msra.mxu0 %v5070
      %5098 = vmatmul.bf16.gmra.mxu0 %v5079
      %v5099 = vpop.f32.mrf.mxu0
      %v5100 = vadd.f32 %v5052, %v5099
      %v5101 = vpop.f32.mrf.mxu0
      %v5102 = vadd.f32 %v5052, %v5101
      %5103 = vmatmul.bf16.gmra.mxu0 %v5082
      %v5104 = vpop.f32.mrf.mxu0
      %v5105 = vadd.f32 %v5052, %v5104
      %v5106 = vpop.f32.mrf.mxu0
      %v5107 = vadd.f32 %v5052, %v5106
      %5108 = vmatmul.bf16.gmra.mxu0 %v5085
      %v5109 = vpop.f32.mrf.mxu0
      %v5110 = vadd.f32 %v5052, %v5109
      %v5111 = vpop.f32.mrf.mxu0
      %v5112 = vadd.f32 %v5052, %v5111
      %5113 = vmatmul.bf16.gmra.mxu0 %v5088
      %v5114 = vpop.f32.mrf.mxu0
      %v5115 = vadd.f32 %v5052, %v5114
      %v5116 = vpop.f32.mrf.mxu0
      %5117 = vdwg.mxu0
      %v5118 = vld [vmem:[%s27] sm:$0xf]
      %v5119 = vld [vmem:[%s27 + $0x4] sm:$0xf]
      %v5120 = vld [vmem:[%s27 + $0x8] sm:$0xf]
      %v5121 = vld [vmem:[%s27 + $0xc] sm:$0xf]
      %v5122 = vld [vmem:[%s27 + $0x10] sm:$0xf]
      %v5123 = vld [vmem:[%s27 + $0x14] sm:$0xf]
      %v5124 = vld [vmem:[%s27 + $0x18] sm:$0xf]
      %v5125 = vld [vmem:[%s27 + $0x1c] sm:$0xf]
      %v5126 = vld [vmem:[%s29] sm:$0x1]
      %v5128 = vperm.slane %v5126, 0
      %v5138 = vunpack.c.l.b16 %v5118
      %v5139 = vunpack.c.l.b16 %v5119
      %v5140 = vunpack.c.l.b16 %v5120
      %v5141 = vunpack.c.l.b16 %v5121
      %v5142 = vunpack.c.l.b16 %v5122
      %v5143 = vunpack.c.l.b16 %v5123
      %v5144 = vunpack.c.l.b16 %v5124
      %v5145 = vunpack.c.l.b16 %v5125
      %v5146 = vpack.c.b16 %v5139, %v5138
      %v5147 = vpack.c.b16 %v5141, %v5140
      %v5148 = vpack.c.b16 %v5143, %v5142
      %v5149 = vpack.c.b16 %v5145, %v5144
      %5154 = vmatpush.bf16.msra.mxu0 0
      %5155 = vmatpush.bf16.msra.mxu0 0
      %5156 = vmatpush.bf16.msra.mxu0 0
      %5157 = vmatpush.bf16.msra.mxu0 0
      %5158 = vmatpush.bf16.msra.mxu0 %v5149
      %5159 = vmatpush.bf16.msra.mxu0 %v5148
      %5160 = vmatpush.bf16.msra.mxu0 %v5147
      %5161 = vmatpush.bf16.msra.mxu0 %v5146
      %5162 = vmatmul.bf16.gmra.mxu0 %v5079
      %v5163 = vpop.f32.mrf.mxu0
      %v5164 = vadd.f32 %v5128, %v5163
      %v5165 = vpop.f32.mrf.mxu0
      %v5166 = vadd.f32 %v5128, %v5165
      %5167 = vmatmul.bf16.gmra.mxu0 %v5082
      %v5168 = vpop.f32.mrf.mxu0
      %v5169 = vadd.f32 %v5128, %v5168
      %v5170 = vpop.f32.mrf.mxu0
      %v5171 = vadd.f32 %v5128, %v5170
      %5172 = vmatmul.bf16.gmra.mxu0 %v5085
      %v5173 = vpop.f32.mrf.mxu0
      %v5174 = vadd.f32 %v5128, %v5173
      %v5175 = vpop.f32.mrf.mxu0
      %v5176 = vadd.f32 %v5128, %v5175
      %5177 = vmatmul.bf16.gmra.mxu0 %v5088
      %v5178 = vpop.f32.mrf.mxu0
      %v5179 = vadd.f32 %v5128, %v5178
      %v5180 = vpop.f32.mrf.mxu0
      %5181 = vdwg.mxu0
      %v5182 = vpack.c.bf16 %v5035, %v5035
      %v5183 = vpack.c.bf16 %v5102, %v5100
      %v5184 = vpack.c.bf16 %v5107, %v5105
      %v5185 = vpack.c.bf16 %v5112, %v5110
      %v5186 = vpack.c.bf16 %v5115, %v5115
      %vm5187 = vcmask 130048
      %v5189 = vsel %vm5187, %v5182, 0
      %v5192 = vsel %vm5187, %v5183, 0
      %v5195 = vsel %vm5187, %v5184, 0
      %v5198 = vsel %vm5187, %v5185, 0
      %v5201 = vsel %vm5187, %v5186, 0
      %5203 = vmatpush.bf16.xpose.msra.mxu0 0
      %5204 = vmatpush.bf16.xpose.msra.mxu0 0
      %5205 = vmatpush.bf16.xpose.msra.mxu0 0
      %5206 = vmatpush.bf16.xpose.msra.mxu0 0
      %5207 = vmatpush.bf16.xpose.msra.mxu0 %v5201
      %5208 = vmatpush.bf16.xpose.msra.mxu0 %v5198
      %5209 = vmatpush.bf16.xpose.msra.mxu0 %v5195
      %5210 = vmatpush.bf16.xpose.msra.mxu0 %v5192
      %5211 = vmatmul.bf16.gmra.mxu0 %v5189
      %v5212 = vpop.f32.mrf.mxu0
      %v5213 = vadd.f32 0.0, %v5212
      %v5214 = vpop.f32.mrf.mxu0
      %5215 = vdwg.mxu0
      %v5216 = vmul.f32 %v5213, 0.25
      %v5218 = vperm.slane %v4984, 0
      %v5220 = vadd.f32 %v5216, %v5218
      %vm5221 = vcmask 400384
      %v5222 = vsel %vm5221, %v5220, -inf
      %5223 = vmax.xlane.f32.xlu0 %v5222
      %v5224 = vpop.xlane.xlu0 %5223
      %v5225 = vsub.f32 %v5220, %v5224
      %v5226 = vmul.f32 %v5225, 1.442695
      %v5227 = vpow.pop %v5226
      %v5228 = vsel %vm5221, %v5227, 0.0
      %5229 = vadd.xlane.f32.xlu0 %v5228
      %v5230 = vpop.xlane.xlu0 %5229
      %v5231 = vrcp.pop %v5230
      %v5232 = vmul.f32 %v5227, %v5231
      %v5233 = vpack.c.bf16 %v5232, %v5232
      %v5234 = vpack.c.bf16 %v5166, %v5164
      %v5235 = vpack.c.bf16 %v5171, %v5169
      %v5236 = vpack.c.bf16 %v5176, %v5174
      %v5237 = vpack.c.bf16 %v5179, %v5179
      %v5239 = vsel %vm5221, %v5233, 0
      %vm5241 = vcmask 1040384
      %v5242 = vsel 0, 4294967295, 65535
      %v5243 = vsel %vm5241, %v5242, 0
      %v5245 = vand.u32 %v5237, %v5243
      %5247 = vmatpush.bf16.msra.mxu0 0
      %5248 = vmatpush.bf16.msra.mxu0 0
      %5249 = vmatpush.bf16.msra.mxu0 0
      %5250 = vmatpush.bf16.msra.mxu0 0
      %5251 = vmatpush.bf16.msra.mxu0 %v5245
      %5252 = vmatpush.bf16.msra.mxu0 %v5236
      %5253 = vmatpush.bf16.msra.mxu0 %v5235
      %5254 = vmatpush.bf16.msra.mxu0 %v5234
      %5255 = vmatmul.bf16.gmra.mxu0 %v5239
      %v5256 = vpop.f32.mrf.mxu0
      %v5257 = vadd.f32 0.0, %v5256
      %v5258 = vpop.f32.mrf.mxu0
      %5259 = vdwg.mxu0
      %v5260 = vld [vmem:[%s31] sm:$0xf]
      %v5261 = vld [vmem:[%s31 + $0x4] sm:$0xf]
      %v5262 = vpack.c.bf16 %v5257, %v5257
      %s5263 = scalar_lea.vmem %s19, 32
      %v5264 = vld [vmem:[%s5263] sm:$0xf]
      %v5265 = vld [vmem:[%s5263 + $0x4] sm:$0xf]
      %v5266 = vld [vmem:[%s5263 + $0x8] sm:$0xf]
      %v5267 = vld [vmem:[%s5263 + $0xc] sm:$0xf]
      %v5268 = vld [vmem:[%s5263 + $0x10] sm:$0xf]
      %v5269 = vld [vmem:[%s5263 + $0x14] sm:$0xf]
      %v5270 = vld [vmem:[%s5263 + $0x18] sm:$0xf]
      %v5271 = vld [vmem:[%s5263 + $0x1c] sm:$0xf]
      %s5272 = scalar_lea.vmem %s21, 1
      %v5273 = vld [vmem:[%s5272] sm:$0x1]
      %v5275 = vperm.slane %v5273, 0
      %v5285 = vunpack.c.l.b16 %v5264
      %v5286 = vunpack.c.l.b16 %v5265
      %v5287 = vunpack.c.l.b16 %v5266
      %v5288 = vunpack.c.l.b16 %v5267
      %v5289 = vunpack.c.l.b16 %v5268
      %v5290 = vunpack.c.l.b16 %v5269
      %v5291 = vunpack.c.l.b16 %v5270
      %v5292 = vunpack.c.l.b16 %v5271
      %v5293 = vpack.c.b16 %v5286, %v5285
      %v5294 = vpack.c.b16 %v5288, %v5287
      %v5295 = vpack.c.b16 %v5290, %v5289
      %v5296 = vpack.c.b16 %v5292, %v5291
      %5301 = vmatpush.bf16.msra.mxu0 0
      %5302 = vmatpush.bf16.msra.mxu0 0
      %5303 = vmatpush.bf16.msra.mxu0 0
      %5304 = vmatpush.bf16.msra.mxu0 0
      %5305 = vmatpush.bf16.msra.mxu0 %v5296
      %5306 = vmatpush.bf16.msra.mxu0 %v5295
      %5307 = vmatpush.bf16.msra.mxu0 %v5294
      %5308 = vmatpush.bf16.msra.mxu0 %v5293
      %5309 = vmatmul.bf16.gmra.mxu0 %v5023
      %v5310 = vpop.f32.mrf.mxu0
      %v5311 = vadd.f32 %v5275, %v5310
      %v5312 = vpop.f32.mrf.mxu0
      %5313 = vdwg.mxu0
      %s5314 = scalar_lea.vmem %s23, 32
      %v5315 = vld [vmem:[%s5314] sm:$0xf]
      %v5316 = vld [vmem:[%s5314 + $0x4] sm:$0xf]
      %v5317 = vld [vmem:[%s5314 + $0x8] sm:$0xf]
      %v5318 = vld [vmem:[%s5314 + $0xc] sm:$0xf]
      %v5319 = vld [vmem:[%s5314 + $0x10] sm:$0xf]
      %v5320 = vld [vmem:[%s5314 + $0x14] sm:$0xf]
      %v5321 = vld [vmem:[%s5314 + $0x18] sm:$0xf]
      %v5322 = vld [vmem:[%s5314 + $0x1c] sm:$0xf]
      %s5323 = scalar_lea.vmem %s25, 1
      %v5324 = vld [vmem:[%s5323] sm:$0x1]
      %v5326 = vperm.slane %v5324, 0
      %v5336 = vunpack.c.l.b16 %v5315
      %v5337 = vunpack.c.l.b16 %v5316
      %v5338 = vunpack.c.l.b16 %v5317
      %v5339 = vunpack.c.l.b16 %v5318
      %v5340 = vunpack.c.l.b16 %v5319
      %v5341 = vunpack.c.l.b16 %v5320
      %v5342 = vunpack.c.l.b16 %v5321
      %v5343 = vunpack.c.l.b16 %v5322
      %v5344 = vpack.c.b16 %v5337, %v5336
      %v5345 = vpack.c.b16 %v5339, %v5338
      %v5346 = vpack.c.b16 %v5341, %v5340
      %v5347 = vpack.c.b16 %v5343, %v5342
      %5352 = vmatpush.bf16.msra.mxu0 0
      %5353 = vmatpush.bf16.msra.mxu0 0
      %5354 = vmatpush.bf16.msra.mxu0 0
      %5355 = vmatpush.bf16.msra.mxu0 0
      %5356 = vmatpush.bf16.msra.mxu0 %v5347
      %5357 = vmatpush.bf16.msra.mxu0 %v5346
      %5358 = vmatpush.bf16.msra.mxu0 %v5345
      %5359 = vmatpush.bf16.msra.mxu0 %v5344
      %5360 = vmatmul.bf16.gmra.mxu0 %v5079
      %v5361 = vpop.f32.mrf.mxu0
      %v5362 = vadd.f32 %v5326, %v5361
      %v5363 = vpop.f32.mrf.mxu0
      %v5364 = vadd.f32 %v5326, %v5363
      %5365 = vmatmul.bf16.gmra.mxu0 %v5082
      %v5366 = vpop.f32.mrf.mxu0
      %v5367 = vadd.f32 %v5326, %v5366
      %v5368 = vpop.f32.mrf.mxu0
      %v5369 = vadd.f32 %v5326, %v5368
      %5370 = vmatmul.bf16.gmra.mxu0 %v5085
      %v5371 = vpop.f32.mrf.mxu0
      %v5372 = vadd.f32 %v5326, %v5371
      %v5373 = vpop.f32.mrf.mxu0
      %v5374 = vadd.f32 %v5326, %v5373
      %5375 = vmatmul.bf16.gmra.mxu0 %v5088
      %v5376 = vpop.f32.mrf.mxu0
      %v5377 = vadd.f32 %v5326, %v5376
      %v5378 = vpop.f32.mrf.mxu0
      %5379 = vdwg.mxu0
      %s5380 = scalar_lea.vmem %s27, 32
      %v5381 = vld [vmem:[%s5380] sm:$0xf]
      %v5382 = vld [vmem:[%s5380 + $0x4] sm:$0xf]
      %v5383 = vld [vmem:[%s5380 + $0x8] sm:$0xf]
      %v5384 = vld [vmem:[%s5380 + $0xc] sm:$0xf]
      %v5385 = vld [vmem:[%s5380 + $0x10] sm:$0xf]
      %v5386 = vld [vmem:[%s5380 + $0x14] sm:$0xf]
      %v5387 = vld [vmem:[%s5380 + $0x18] sm:$0xf]
      %v5388 = vld [vmem:[%s5380 + $0x1c] sm:$0xf]
      %s5389 = scalar_lea.vmem %s29, 1
      %v5390 = vld [vmem:[%s5389] sm:$0x1]
      %v5392 = vperm.slane %v5390, 0
      %v5402 = vunpack.c.l.b16 %v5381
      %v5403 = vunpack.c.l.b16 %v5382
      %v5404 = vunpack.c.l.b16 %v5383
      %v5405 = vunpack.c.l.b16 %v5384
      %v5406 = vunpack.c.l.b16 %v5385
      %v5407 = vunpack.c.l.b16 %v5386
      %v5408 = vunpack.c.l.b16 %v5387
      %v5409 = vunpack.c.l.b16 %v5388
      %v5410 = vpack.c.b16 %v5403, %v5402
      %v5411 = vpack.c.b16 %v5405, %v5404
      %v5412 = vpack.c.b16 %v5407, %v5406
      %v5413 = vpack.c.b16 %v5409, %v5408
      %5418 = vmatpush.bf16.msra.mxu0 0
      %5419 = vmatpush.bf16.msra.mxu0 0
      %5420 = vmatpush.bf16.msra.mxu0 0
      %5421 = vmatpush.bf16.msra.mxu0 0
      %5422 = vmatpush.bf16.msra.mxu0 %v5413
      %5423 = vmatpush.bf16.msra.mxu0 %v5412
      %5424 = vmatpush.bf16.msra.mxu0 %v5411
      %5425 = vmatpush.bf16.msra.mxu0 %v5410
      %5426 = vmatmul.bf16.gmra.mxu0 %v5079
      %v5427 = vpop.f32.mrf.mxu0
      %v5428 = vadd.f32 %v5392, %v5427
      %v5429 = vpop.f32.mrf.mxu0
      %v5430 = vadd.f32 %v5392, %v5429
      %5431 = vmatmul.bf16.gmra.mxu0 %v5082
      %v5432 = vpop.f32.mrf.mxu0
      %v5433 = vadd.f32 %v5392, %v5432
      %v5434 = vpop.f32.mrf.mxu0
      %v5435 = vadd.f32 %v5392, %v5434
      %5436 = vmatmul.bf16.gmra.mxu0 %v5085
      %v5437 = vpop.f32.mrf.mxu0
      %v5438 = vadd.f32 %v5392, %v5437
      %v5439 = vpop.f32.mrf.mxu0
      %v5440 = vadd.f32 %v5392, %v5439
      %5441 = vmatmul.bf16.gmra.mxu0 %v5088
      %v5442 = vpop.f32.mrf.mxu0
      %v5443 = vadd.f32 %v5392, %v5442
      %v5444 = vpop.f32.mrf.mxu0
      %5445 = vdwg.mxu0
      %v5446 = vpack.c.bf16 %v5311, %v5311
      %v5447 = vpack.c.bf16 %v5364, %v5362
      %v5448 = vpack.c.bf16 %v5369, %v5367
      %v5449 = vpack.c.bf16 %v5374, %v5372
      %v5450 = vpack.c.bf16 %v5377, %v5377
      %v5452 = vsel %vm5187, %v5446, 0
      %v5455 = vsel %vm5187, %v5447, 0
      %v5458 = vsel %vm5187, %v5448, 0
      %v5461 = vsel %vm5187, %v5449, 0
      %v5464 = vsel %vm5187, %v5450, 0
      %5466 = vmatpush.bf16.xpose.msra.mxu0 0
      %5467 = vmatpush.bf16.xpose.msra.mxu0 0
      %5468 = vmatpush.bf16.xpose.msra.mxu0 0
      %5469 = vmatpush.bf16.xpose.msra.mxu0 0
      %5470 = vmatpush.bf16.xpose.msra.mxu0 %v5464
      %5471 = vmatpush.bf16.xpose.msra.mxu0 %v5461
      %5472 = vmatpush.bf16.xpose.msra.mxu0 %v5458
      %5473 = vmatpush.bf16.xpose.msra.mxu0 %v5455
      %5474 = vmatmul.bf16.gmra.mxu0 %v5452
      %v5475 = vpop.f32.mrf.mxu0
      %v5476 = vadd.f32 0.0, %v5475
      %v5477 = vpop.f32.mrf.mxu0
      %5478 = vdwg.mxu0
      %v5479 = vmul.f32 %v5476, 0.25
      %v5480 = vadd.f32 %v5479, %v5218
      %v5481 = vsel %vm5221, %v5480, -inf
      %5482 = vmax.xlane.f32.xlu0 %v5481
      %v5483 = vpop.xlane.xlu0 %5482
      %v5484 = vsub.f32 %v5480, %v5483
      %v5485 = vmul.f32 %v5484, 1.442695
      %v5486 = vpow.pop %v5485
      %v5487 = vsel %vm5221, %v5486, 0.0
      %5488 = vadd.xlane.f32.xlu0 %v5487
      %v5489 = vpop.xlane.xlu0 %5488
      %v5490 = vrcp.pop %v5489
      %v5491 = vmul.f32 %v5486, %v5490
      %v5492 = vpack.c.bf16 %v5491, %v5491
      %v5493 = vpack.c.bf16 %v5430, %v5428
      %v5494 = vpack.c.bf16 %v5435, %v5433
      %v5495 = vpack.c.bf16 %v5440, %v5438
      %v5496 = vpack.c.bf16 %v5443, %v5443
      %v5498 = vsel %vm5221, %v5492, 0
      %v5501 = vand.u32 %v5496, %v5243
      %5503 = vmatpush.bf16.msra.mxu0 0
      %5504 = vmatpush.bf16.msra.mxu0 0
      %5505 = vmatpush.bf16.msra.mxu0 0
      %5506 = vmatpush.bf16.msra.mxu0 0
      %5507 = vmatpush.bf16.msra.mxu0 %v5501
      %5508 = vmatpush.bf16.msra.mxu0 %v5495
      %5509 = vmatpush.bf16.msra.mxu0 %v5494
      %5510 = vmatpush.bf16.msra.mxu0 %v5493
      %5511 = vmatmul.bf16.gmra.mxu0 %v5498
      %v5512 = vpop.f32.mrf.mxu0
      %v5513 = vadd.f32 0.0, %v5512
      %v5514 = vpop.f32.mrf.mxu0
      %5515 = vdwg.mxu0
      %s5516 = scalar_lea.vmem %s31, 8
      %v5517 = vld [vmem:[%s5516] sm:$0xf]
      %v5518 = vld [vmem:[%s5516 + $0x4] sm:$0xf]
      %v5519 = vpack.c.bf16 %v5513, %v5513
      %v5522 = vunpack.c.l.b16 %v5517
      %v5523 = vunpack.c.l.b16 %v5518
      %v5524 = vpack.c.b16 %v5523, %v5522
      %v5527 = vsel %vm5187, %v5519, 0
      %5529 = vmatpush.bf16.msra.mxu0 0
      %5530 = vmatpush.bf16.msra.mxu0 0
      %5531 = vmatpush.bf16.msra.mxu0 0
      %5532 = vmatpush.bf16.msra.mxu0 0
      %5533 = vmatpush.bf16.msra.mxu0 0
      %5534 = vmatpush.bf16.msra.mxu0 0
      %5535 = vmatpush.bf16.msra.mxu0 0
      %5536 = vmatpush.bf16.msra.mxu0 %v5524
      %5537 = vmatmul.bf16.gmra.mxu0 %v5527
      %v5538 = vpop.f32.mrf.mxu0
      %v5539 = vadd.f32 0.0, %v5538
      %v5540 = vpop.f32.mrf.mxu0
      %5541 = vdwg.mxu0
      %v5544 = vunpack.c.l.b16 %v5260
      %v5545 = vunpack.c.l.b16 %v5261
      %v5546 = vpack.c.b16 %v5545, %v5544
      %v5549 = vsel %vm5187, %v5262, 0
      %5551 = vmatpush.bf16.msra.mxu0 0
      %5552 = vmatpush.bf16.msra.mxu0 0
      %5553 = vmatpush.bf16.msra.mxu0 0
      %5554 = vmatpush.bf16.msra.mxu0 0
      %5555 = vmatpush.bf16.msra.mxu0 0
      %5556 = vmatpush.bf16.msra.mxu0 0
      %5557 = vmatpush.bf16.msra.mxu0 0
      %5558 = vmatpush.bf16.msra.mxu0 %v5546
      %5559 = vmatmul.bf16.gmra.mxu0 %v5549
      %v5560 = vpop.f32.mrf.mxu0
      %v5561 = vadd.f32 %v5539, %v5560
      %v5562 = vpop.f32.mrf.mxu0
      %5563 = vdwg.mxu0
      %s5564 = scalar_lea.vmem %s19, 64
      %v5565 = vld [vmem:[%s5564] sm:$0xf]
      %v5566 = vld [vmem:[%s5564 + $0x4] sm:$0xf]
      %v5567 = vld [vmem:[%s5564 + $0x8] sm:$0xf]
      %v5568 = vld [vmem:[%s5564 + $0xc] sm:$0xf]
      %v5569 = vld [vmem:[%s5564 + $0x10] sm:$0xf]
      %v5570 = vld [vmem:[%s5564 + $0x14] sm:$0xf]
      %v5571 = vld [vmem:[%s5564 + $0x18] sm:$0xf]
      %v5572 = vld [vmem:[%s5564 + $0x1c] sm:$0xf]
      %s5573 = scalar_lea.vmem %s21, 2
      %v5574 = vld [vmem:[%s5573] sm:$0x1]
      %v5576 = vperm.slane %v5574, 0
      %v5586 = vunpack.c.l.b16 %v5565
      %v5587 = vunpack.c.l.b16 %v5566
      %v5588 = vunpack.c.l.b16 %v5567
      %v5589 = vunpack.c.l.b16 %v5568
      %v5590 = vunpack.c.l.b16 %v5569
      %v5591 = vunpack.c.l.b16 %v5570
      %v5592 = vunpack.c.l.b16 %v5571
      %v5593 = vunpack.c.l.b16 %v5572
      %v5594 = vpack.c.b16 %v5587, %v5586
      %v5595 = vpack.c.b16 %v5589, %v5588
      %v5596 = vpack.c.b16 %v5591, %v5590
      %v5597 = vpack.c.b16 %v5593, %v5592
      %5602 = vmatpush.bf16.msra.mxu0 0
      %5603 = vmatpush.bf16.msra.mxu0 0
      %5604 = vmatpush.bf16.msra.mxu0 0
      %5605 = vmatpush.bf16.msra.mxu0 0
      %5606 = vmatpush.bf16.msra.mxu0 %v5597
      %5607 = vmatpush.bf16.msra.mxu0 %v5596
      %5608 = vmatpush.bf16.msra.mxu0 %v5595
      %5609 = vmatpush.bf16.msra.mxu0 %v5594
      %5610 = vmatmul.bf16.gmra.mxu0 %v5023
      %v5611 = vpop.f32.mrf.mxu0
      %v5612 = vadd.f32 %v5576, %v5611
      %v5613 = vpop.f32.mrf.mxu0
      %5614 = vdwg.mxu0
      %s5615 = scalar_lea.vmem %s23, 64
      %v5616 = vld [vmem:[%s5615] sm:$0xf]
      %v5617 = vld [vmem:[%s5615 + $0x4] sm:$0xf]
      %v5618 = vld [vmem:[%s5615 + $0x8] sm:$0xf]
      %v5619 = vld [vmem:[%s5615 + $0xc] sm:$0xf]
      %v5620 = vld [vmem:[%s5615 + $0x10] sm:$0xf]
      %v5621 = vld [vmem:[%s5615 + $0x14] sm:$0xf]
      %v5622 = vld [vmem:[%s5615 + $0x18] sm:$0xf]
      %v5623 = vld [vmem:[%s5615 + $0x1c] sm:$0xf]
      %s5624 = scalar_lea.vmem %s25, 2
      %v5625 = vld [vmem:[%s5624] sm:$0x1]
      %v5627 = vperm.slane %v5625, 0
      %v5637 = vunpack.c.l.b16 %v5616
      %v5638 = vunpack.c.l.b16 %v5617
      %v5639 = vunpack.c.l.b16 %v5618
      %v5640 = vunpack.c.l.b16 %v5619
      %v5641 = vunpack.c.l.b16 %v5620
      %v5642 = vunpack.c.l.b16 %v5621
      %v5643 = vunpack.c.l.b16 %v5622
      %v5644 = vunpack.c.l.b16 %v5623
      %v5645 = vpack.c.b16 %v5638, %v5637
      %v5646 = vpack.c.b16 %v5640, %v5639
      %v5647 = vpack.c.b16 %v5642, %v5641
      %v5648 = vpack.c.b16 %v5644, %v5643
      %5653 = vmatpush.bf16.msra.mxu0 0
      %5654 = vmatpush.bf16.msra.mxu0 0
      %5655 = vmatpush.bf16.msra.mxu0 0
      %5656 = vmatpush.bf16.msra.mxu0 0
      %5657 = vmatpush.bf16.msra.mxu0 %v5648
      %5658 = vmatpush.bf16.msra.mxu0 %v5647
      %5659 = vmatpush.bf16.msra.mxu0 %v5646
      %5660 = vmatpush.bf16.msra.mxu0 %v5645
      %5661 = vmatmul.bf16.gmra.mxu0 %v5079
      %v5662 = vpop.f32.mrf.mxu0
      %v5663 = vadd.f32 %v5627, %v5662
      %v5664 = vpop.f32.mrf.mxu0
      %v5665 = vadd.f32 %v5627, %v5664
      %5666 = vmatmul.bf16.gmra.mxu0 %v5082
      %v5667 = vpop.f32.mrf.mxu0
      %v5668 = vadd.f32 %v5627, %v5667
      %v5669 = vpop.f32.mrf.mxu0
      %v5670 = vadd.f32 %v5627, %v5669
      %5671 = vmatmul.bf16.gmra.mxu0 %v5085
      %v5672 = vpop.f32.mrf.mxu0
      %v5673 = vadd.f32 %v5627, %v5672
      %v5674 = vpop.f32.mrf.mxu0
      %v5675 = vadd.f32 %v5627, %v5674
      %5676 = vmatmul.bf16.gmra.mxu0 %v5088
      %v5677 = vpop.f32.mrf.mxu0
      %v5678 = vadd.f32 %v5627, %v5677
      %v5679 = vpop.f32.mrf.mxu0
      %5680 = vdwg.mxu0
      %s5681 = scalar_lea.vmem %s27, 64
      %v5682 = vld [vmem:[%s5681] sm:$0xf]
      %v5683 = vld [vmem:[%s5681 + $0x4] sm:$0xf]
      %v5684 = vld [vmem:[%s5681 + $0x8] sm:$0xf]
      %v5685 = vld [vmem:[%s5681 + $0xc] sm:$0xf]
      %v5686 = vld [vmem:[%s5681 + $0x10] sm:$0xf]
      %v5687 = vld [vmem:[%s5681 + $0x14] sm:$0xf]
      %v5688 = vld [vmem:[%s5681 + $0x18] sm:$0xf]
      %v5689 = vld [vmem:[%s5681 + $0x1c] sm:$0xf]
      %s5690 = scalar_lea.vmem %s29, 2
      %v5691 = vld [vmem:[%s5690] sm:$0x1]
      %v5693 = vperm.slane %v5691, 0
      %v5703 = vunpack.c.l.b16 %v5682
      %v5704 = vunpack.c.l.b16 %v5683
      %v5705 = vunpack.c.l.b16 %v5684
      %v5706 = vunpack.c.l.b16 %v5685
      %v5707 = vunpack.c.l.b16 %v5686
      %v5708 = vunpack.c.l.b16 %v5687
      %v5709 = vunpack.c.l.b16 %v5688
      %v5710 = vunpack.c.l.b16 %v5689
      %v5711 = vpack.c.b16 %v5704, %v5703
      %v5712 = vpack.c.b16 %v5706, %v5705
      %v5713 = vpack.c.b16 %v5708, %v5707
      %v5714 = vpack.c.b16 %v5710, %v5709
      %5719 = vmatpush.bf16.msra.mxu0 0
      %5720 = vmatpush.bf16.msra.mxu0 0
      %5721 = vmatpush.bf16.msra.mxu0 0
      %5722 = vmatpush.bf16.msra.mxu0 0
      %5723 = vmatpush.bf16.msra.mxu0 %v5714
      %5724 = vmatpush.bf16.msra.mxu0 %v5713
      %5725 = vmatpush.bf16.msra.mxu0 %v5712
      %5726 = vmatpush.bf16.msra.mxu0 %v5711
      %5727 = vmatmul.bf16.gmra.mxu0 %v5079
      %v5728 = vpop.f32.mrf.mxu0
      %v5729 = vadd.f32 %v5693, %v5728
      %v5730 = vpop.f32.mrf.mxu0
      %v5731 = vadd.f32 %v5693, %v5730
      %5732 = vmatmul.bf16.gmra.mxu0 %v5082
      %v5733 = vpop.f32.mrf.mxu0
      %v5734 = vadd.f32 %v5693, %v5733
      %v5735 = vpop.f32.mrf.mxu0
      %v5736 = vadd.f32 %v5693, %v5735
      %5737 = vmatmul.bf16.gmra.mxu0 %v5085
      %v5738 = vpop.f32.mrf.mxu0
      %v5739 = vadd.f32 %v5693, %v5738
      %v5740 = vpop.f32.mrf.mxu0
      %v5741 = vadd.f32 %v5693, %v5740
      %5742 = vmatmul.bf16.gmra.mxu0 %v5088
      %v5743 = vpop.f32.mrf.mxu0
      %v5744 = vadd.f32 %v5693, %v5743
      %v5745 = vpop.f32.mrf.mxu0
      %5746 = vdwg.mxu0
      %v5747 = vpack.c.bf16 %v5612, %v5612
      %v5748 = vpack.c.bf16 %v5665, %v5663
      %v5749 = vpack.c.bf16 %v5670, %v5668
      %v5750 = vpack.c.bf16 %v5675, %v5673
      %v5751 = vpack.c.bf16 %v5678, %v5678
      %v5753 = vsel %vm5187, %v5747, 0
      %v5756 = vsel %vm5187, %v5748, 0
      %v5759 = vsel %vm5187, %v5749, 0
      %v5762 = vsel %vm5187, %v5750, 0
      %v5765 = vsel %vm5187, %v5751, 0
      %5767 = vmatpush.bf16.xpose.msra.mxu0 0
      %5768 = vmatpush.bf16.xpose.msra.mxu0 0
      %5769 = vmatpush.bf16.xpose.msra.mxu0 0
      %5770 = vmatpush.bf16.xpose.msra.mxu0 0
      %5771 = vmatpush.bf16.xpose.msra.mxu0 %v5765
      %5772 = vmatpush.bf16.xpose.msra.mxu0 %v5762
      %5773 = vmatpush.bf16.xpose.msra.mxu0 %v5759
      %5774 = vmatpush.bf16.xpose.msra.mxu0 %v5756
      %5775 = vmatmul.bf16.gmra.mxu0 %v5753
      %v5776 = vpop.f32.mrf.mxu0
      %v5777 = vadd.f32 0.0, %v5776
      %v5778 = vpop.f32.mrf.mxu0
      %5779 = vdwg.mxu0
      %v5780 = vmul.f32 %v5777, 0.25
      %v5781 = vadd.f32 %v5780, %v5218
      %v5782 = vsel %vm5221, %v5781, -inf
      %5783 = vmax.xlane.f32.xlu0 %v5782
      %v5784 = vpop.xlane.xlu0 %5783
      %v5785 = vsub.f32 %v5781, %v5784
      %v5786 = vmul.f32 %v5785, 1.442695
      %v5787 = vpow.pop %v5786
      %v5788 = vsel %vm5221, %v5787, 0.0
      %5789 = vadd.xlane.f32.xlu0 %v5788
      %v5790 = vpop.xlane.xlu0 %5789
      %v5791 = vrcp.pop %v5790
      %v5792 = vmul.f32 %v5787, %v5791
      %v5793 = vpack.c.bf16 %v5792, %v5792
      %v5794 = vpack.c.bf16 %v5731, %v5729
      %v5795 = vpack.c.bf16 %v5736, %v5734
      %v5796 = vpack.c.bf16 %v5741, %v5739
      %v5797 = vpack.c.bf16 %v5744, %v5744
      %v5799 = vsel %vm5221, %v5793, 0
      %v5802 = vand.u32 %v5797, %v5243
      %5804 = vmatpush.bf16.msra.mxu0 0
      %5805 = vmatpush.bf16.msra.mxu0 0
      %5806 = vmatpush.bf16.msra.mxu0 0
      %5807 = vmatpush.bf16.msra.mxu0 0
      %5808 = vmatpush.bf16.msra.mxu0 %v5802
      %5809 = vmatpush.bf16.msra.mxu0 %v5796
      %5810 = vmatpush.bf16.msra.mxu0 %v5795
      %5811 = vmatpush.bf16.msra.mxu0 %v5794
      %5812 = vmatmul.bf16.gmra.mxu0 %v5799
      %v5813 = vpop.f32.mrf.mxu0
      %v5814 = vadd.f32 0.0, %v5813
      %v5815 = vpop.f32.mrf.mxu0
      %5816 = vdwg.mxu0
      %s5817 = scalar_lea.vmem %s31, 16
      %v5818 = vld [vmem:[%s5817] sm:$0xf]
      %v5819 = vld [vmem:[%s5817 + $0x4] sm:$0xf]
      %v5820 = vpack.c.bf16 %v5814, %v5814
      %v5823 = vunpack.c.l.b16 %v5818
      %v5824 = vunpack.c.l.b16 %v5819
      %v5825 = vpack.c.b16 %v5824, %v5823
      %v5828 = vsel %vm5187, %v5820, 0
      %5830 = vmatpush.bf16.msra.mxu0 0
      %5831 = vmatpush.bf16.msra.mxu0 0
      %5832 = vmatpush.bf16.msra.mxu0 0
      %5833 = vmatpush.bf16.msra.mxu0 0
      %5834 = vmatpush.bf16.msra.mxu0 0
      %5835 = vmatpush.bf16.msra.mxu0 0
      %5836 = vmatpush.bf16.msra.mxu0 0
      %5837 = vmatpush.bf16.msra.mxu0 %v5825
      %5838 = vmatmul.bf16.gmra.mxu0 %v5828
      %v5839 = vpop.f32.mrf.mxu0
      %v5840 = vadd.f32 0.0, %v5839
      %v5841 = vpop.f32.mrf.mxu0
      %5842 = vdwg.mxu0
      %v5843 = vadd.f32 %v5561, %v5840
      %s5844 = scalar_lea.vmem %s19, 96
      %v5845 = vld [vmem:[%s5844] sm:$0xf]
      %v5846 = vld [vmem:[%s5844 + $0x4] sm:$0xf]
      %v5847 = vld [vmem:[%s5844 + $0x8] sm:$0xf]
      %v5848 = vld [vmem:[%s5844 + $0xc] sm:$0xf]
      %v5849 = vld [vmem:[%s5844 + $0x10] sm:$0xf]
      %v5850 = vld [vmem:[%s5844 + $0x14] sm:$0xf]
      %v5851 = vld [vmem:[%s5844 + $0x18] sm:$0xf]
      %v5852 = vld [vmem:[%s5844 + $0x1c] sm:$0xf]
      %s5853 = scalar_lea.vmem %s21, 3
      %v5854 = vld [vmem:[%s5853] sm:$0x1]
      %v5856 = vperm.slane %v5854, 0
      %v5866 = vunpack.c.l.b16 %v5845
      %v5867 = vunpack.c.l.b16 %v5846
      %v5868 = vunpack.c.l.b16 %v5847
      %v5869 = vunpack.c.l.b16 %v5848
      %v5870 = vunpack.c.l.b16 %v5849
      %v5871 = vunpack.c.l.b16 %v5850
      %v5872 = vunpack.c.l.b16 %v5851
      %v5873 = vunpack.c.l.b16 %v5852
      %v5874 = vpack.c.b16 %v5867, %v5866
      %v5875 = vpack.c.b16 %v5869, %v5868
      %v5876 = vpack.c.b16 %v5871, %v5870
      %v5877 = vpack.c.b16 %v5873, %v5872
      %5882 = vmatpush.bf16.msra.mxu0 0
      %5883 = vmatpush.bf16.msra.mxu0 0
      %5884 = vmatpush.bf16.msra.mxu0 0
      %5885 = vmatpush.bf16.msra.mxu0 0
      %5886 = vmatpush.bf16.msra.mxu0 %v5877
      %5887 = vmatpush.bf16.msra.mxu0 %v5876
      %5888 = vmatpush.bf16.msra.mxu0 %v5875
      %5889 = vmatpush.bf16.msra.mxu0 %v5874
      %5890 = vmatmul.bf16.gmra.mxu0 %v5023
      %v5891 = vpop.f32.mrf.mxu0
      %v5892 = vadd.f32 %v5856, %v5891
      %v5893 = vpop.f32.mrf.mxu0
      %5894 = vdwg.mxu0
      %s5895 = scalar_lea.vmem %s23, 96
      %v5896 = vld [vmem:[%s5895] sm:$0xf]
      %v5897 = vld [vmem:[%s5895 + $0x4] sm:$0xf]
      %v5898 = vld [vmem:[%s5895 + $0x8] sm:$0xf]
      %v5899 = vld [vmem:[%s5895 + $0xc] sm:$0xf]
      %v5900 = vld [vmem:[%s5895 + $0x10] sm:$0xf]
      %v5901 = vld [vmem:[%s5895 + $0x14] sm:$0xf]
      %v5902 = vld [vmem:[%s5895 + $0x18] sm:$0xf]
      %v5903 = vld [vmem:[%s5895 + $0x1c] sm:$0xf]
      %s5904 = scalar_lea.vmem %s25, 3
      %v5905 = vld [vmem:[%s5904] sm:$0x1]
      %v5907 = vperm.slane %v5905, 0
      %v5917 = vunpack.c.l.b16 %v5896
      %v5918 = vunpack.c.l.b16 %v5897
      %v5919 = vunpack.c.l.b16 %v5898
      %v5920 = vunpack.c.l.b16 %v5899
      %v5921 = vunpack.c.l.b16 %v5900
      %v5922 = vunpack.c.l.b16 %v5901
      %v5923 = vunpack.c.l.b16 %v5902
      %v5924 = vunpack.c.l.b16 %v5903
      %v5925 = vpack.c.b16 %v5918, %v5917
      %v5926 = vpack.c.b16 %v5920, %v5919
      %v5927 = vpack.c.b16 %v5922, %v5921
      %v5928 = vpack.c.b16 %v5924, %v5923
      %5933 = vmatpush.bf16.msra.mxu0 0
      %5934 = vmatpush.bf16.msra.mxu0 0
      %5935 = vmatpush.bf16.msra.mxu0 0
      %5936 = vmatpush.bf16.msra.mxu0 0
      %5937 = vmatpush.bf16.msra.mxu0 %v5928
      %5938 = vmatpush.bf16.msra.mxu0 %v5927
      %5939 = vmatpush.bf16.msra.mxu0 %v5926
      %5940 = vmatpush.bf16.msra.mxu0 %v5925
      %5941 = vmatmul.bf16.gmra.mxu0 %v5079
      %v5942 = vpop.f32.mrf.mxu0
      %v5943 = vadd.f32 %v5907, %v5942
      %v5944 = vpop.f32.mrf.mxu0
      %v5945 = vadd.f32 %v5907, %v5944
      %5946 = vmatmul.bf16.gmra.mxu0 %v5082
      %v5947 = vpop.f32.mrf.mxu0
      %v5948 = vadd.f32 %v5907, %v5947
      %v5949 = vpop.f32.mrf.mxu0
      %v5950 = vadd.f32 %v5907, %v5949
      %5951 = vmatmul.bf16.gmra.mxu0 %v5085
      %v5952 = vpop.f32.mrf.mxu0
      %v5953 = vadd.f32 %v5907, %v5952
      %v5954 = vpop.f32.mrf.mxu0
      %v5955 = vadd.f32 %v5907, %v5954
      %5956 = vmatmul.bf16.gmra.mxu0 %v5088
      %v5957 = vpop.f32.mrf.mxu0
      %v5958 = vadd.f32 %v5907, %v5957
      %v5959 = vpop.f32.mrf.mxu0
      %5960 = vdwg.mxu0
      %s5961 = scalar_lea.vmem %s27, 96
      %v5962 = vld [vmem:[%s5961] sm:$0xf]
      %v5963 = vld [vmem:[%s5961 + $0x4] sm:$0xf]
      %v5964 = vld [vmem:[%s5961 + $0x8] sm:$0xf]
      %v5965 = vld [vmem:[%s5961 + $0xc] sm:$0xf]
      %v5966 = vld [vmem:[%s5961 + $0x10] sm:$0xf]
      %v5967 = vld [vmem:[%s5961 + $0x14] sm:$0xf]
      %v5968 = vld [vmem:[%s5961 + $0x18] sm:$0xf]
      %v5969 = vld [vmem:[%s5961 + $0x1c] sm:$0xf]
      %s5970 = scalar_lea.vmem %s29, 3
      %v5971 = vld [vmem:[%s5970] sm:$0x1]
      %v5973 = vperm.slane %v5971, 0
      %v5983 = vunpack.c.l.b16 %v5962
      %v5984 = vunpack.c.l.b16 %v5963
      %v5985 = vunpack.c.l.b16 %v5964
      %v5986 = vunpack.c.l.b16 %v5965
      %v5987 = vunpack.c.l.b16 %v5966
      %v5988 = vunpack.c.l.b16 %v5967
      %v5989 = vunpack.c.l.b16 %v5968
      %v5990 = vunpack.c.l.b16 %v5969
      %v5991 = vpack.c.b16 %v5984, %v5983
      %v5992 = vpack.c.b16 %v5986, %v5985
      %v5993 = vpack.c.b16 %v5988, %v5987
      %v5994 = vpack.c.b16 %v5990, %v5989
      %5999 = vmatpush.bf16.msra.mxu0 0
      %6000 = vmatpush.bf16.msra.mxu0 0
      %6001 = vmatpush.bf16.msra.mxu0 0
      %6002 = vmatpush.bf16.msra.mxu0 0
      %6003 = vmatpush.bf16.msra.mxu0 %v5994
      %6004 = vmatpush.bf16.msra.mxu0 %v5993
      %6005 = vmatpush.bf16.msra.mxu0 %v5992
      %6006 = vmatpush.bf16.msra.mxu0 %v5991
      %6007 = vmatmul.bf16.gmra.mxu0 %v5079
      %v6008 = vpop.f32.mrf.mxu0
      %v6009 = vadd.f32 %v5973, %v6008
      %v6010 = vpop.f32.mrf.mxu0
      %v6011 = vadd.f32 %v5973, %v6010
      %6012 = vmatmul.bf16.gmra.mxu0 %v5082
      %v6013 = vpop.f32.mrf.mxu0
      %v6014 = vadd.f32 %v5973, %v6013
      %v6015 = vpop.f32.mrf.mxu0
      %v6016 = vadd.f32 %v5973, %v6015
      %6017 = vmatmul.bf16.gmra.mxu0 %v5085
      %v6018 = vpop.f32.mrf.mxu0
      %v6019 = vadd.f32 %v5973, %v6018
      %v6020 = vpop.f32.mrf.mxu0
      %v6021 = vadd.f32 %v5973, %v6020
      %6022 = vmatmul.bf16.gmra.mxu0 %v5088
      %v6023 = vpop.f32.mrf.mxu0
      %v6024 = vadd.f32 %v5973, %v6023
      %v6025 = vpop.f32.mrf.mxu0
      %6026 = vdwg.mxu0
      %v6027 = vpack.c.bf16 %v5892, %v5892
      %v6028 = vpack.c.bf16 %v5945, %v5943
      %v6029 = vpack.c.bf16 %v5950, %v5948
      %v6030 = vpack.c.bf16 %v5955, %v5953
      %v6031 = vpack.c.bf16 %v5958, %v5958
      %v6033 = vsel %vm5187, %v6027, 0
      %v6036 = vsel %vm5187, %v6028, 0
      %v6039 = vsel %vm5187, %v6029, 0
      %v6042 = vsel %vm5187, %v6030, 0
      %v6045 = vsel %vm5187, %v6031, 0
      %6047 = vmatpush.bf16.xpose.msra.mxu0 0
      %6048 = vmatpush.bf16.xpose.msra.mxu0 0
      %6049 = vmatpush.bf16.xpose.msra.mxu0 0
      %6050 = vmatpush.bf16.xpose.msra.mxu0 0
      %6051 = vmatpush.bf16.xpose.msra.mxu0 %v6045
      %6052 = vmatpush.bf16.xpose.msra.mxu0 %v6042
      %6053 = vmatpush.bf16.xpose.msra.mxu0 %v6039
      %6054 = vmatpush.bf16.xpose.msra.mxu0 %v6036
      %6055 = vmatmul.bf16.gmra.mxu0 %v6033
      %v6056 = vpop.f32.mrf.mxu0
      %v6057 = vadd.f32 0.0, %v6056
      %v6058 = vpop.f32.mrf.mxu0
      %6059 = vdwg.mxu0
      %v6060 = vmul.f32 %v6057, 0.25
      %v6061 = vadd.f32 %v6060, %v5218
      %v6062 = vsel %vm5221, %v6061, -inf
      %6063 = vmax.xlane.f32.xlu0 %v6062
      %v6064 = vpop.xlane.xlu0 %6063
      %v6065 = vsub.f32 %v6061, %v6064
      %v6066 = vmul.f32 %v6065, 1.442695
      %v6067 = vpow.pop %v6066
      %v6068 = vsel %vm5221, %v6067, 0.0
      %6069 = vadd.xlane.f32.xlu0 %v6068
      %v6070 = vpop.xlane.xlu0 %6069
      %v6071 = vrcp.pop %v6070
      %v6072 = vmul.f32 %v6067, %v6071
      %v6073 = vpack.c.bf16 %v6072, %v6072
      %v6074 = vpack.c.bf16 %v6011, %v6009
      %v6075 = vpack.c.bf16 %v6016, %v6014
      %v6076 = vpack.c.bf16 %v6021, %v6019
      %v6077 = vpack.c.bf16 %v6024, %v6024
      %v6079 = vsel %vm5221, %v6073, 0
      %v6082 = vand.u32 %v6077, %v5243
      %6084 = vmatpush.bf16.msra.mxu0 0
      %6085 = vmatpush.bf16.msra.mxu0 0
      %6086 = vmatpush.bf16.msra.mxu0 0
      %6087 = vmatpush.bf16.msra.mxu0 0
      %6088 = vmatpush.bf16.msra.mxu0 %v6082
      %6089 = vmatpush.bf16.msra.mxu0 %v6076
      %6090 = vmatpush.bf16.msra.mxu0 %v6075
      %6091 = vmatpush.bf16.msra.mxu0 %v6074
      %6092 = vmatmul.bf16.gmra.mxu0 %v6079
      %v6093 = vpop.f32.mrf.mxu0
      %v6094 = vadd.f32 0.0, %v6093
      %v6095 = vpop.f32.mrf.mxu0
      %6096 = vdwg.mxu0
      %s6097 = scalar_lea.vmem %s31, 24
      %v6098 = vld [vmem:[%s6097] sm:$0xf]
      %v6099 = vld [vmem:[%s6097 + $0x4] sm:$0xf]
      %v6100 = vpack.c.bf16 %v6094, %v6094
      %v6103 = vunpack.c.l.b16 %v6098
      %v6104 = vunpack.c.l.b16 %v6099
      %v6105 = vpack.c.b16 %v6104, %v6103
      %v6108 = vsel %vm5187, %v6100, 0
      %6110 = vmatpush.bf16.msra.mxu0 0
      %6111 = vmatpush.bf16.msra.mxu0 0
      %6112 = vmatpush.bf16.msra.mxu0 0
      %6113 = vmatpush.bf16.msra.mxu0 0
      %6114 = vmatpush.bf16.msra.mxu0 0
      %6115 = vmatpush.bf16.msra.mxu0 0
      %6116 = vmatpush.bf16.msra.mxu0 0
      %6117 = vmatpush.bf16.msra.mxu0 %v6105
      %6118 = vmatmul.bf16.gmra.mxu0 %v6108
      %v6119 = vpop.f32.mrf.mxu0
      %v6120 = vadd.f32 0.0, %v6119
      %v6121 = vpop.f32.mrf.mxu0
      %6122 = vdwg.mxu0
      %v6123 = vadd.f32 %v5843, %v6120
      %s6124 = scalar_lea.vmem %s9, 4
      %v6125 = vld [vmem:[%s6124] sm:$0x1]
      %v6127 = vperm.slane %v6125, 0
      %v6129 = vadd.f32 %v6123, %v6127
      %v6130 = vadd.f32 %v6129, %v1072
      %s6131 = scalar_lea.vmem %s9, 5
      %v6132 = vld [vmem:[%s6131] sm:$0x1]
      %s6133 = scalar_lea.vmem %s9, 6
      %v6134 = vld [vmem:[%s6133] sm:$0x1]
      %v6135 = vsel %vm1035, %v6130, 0.0
      %6136 = vadd.xlane.f32.xlu0 %v6135
      %v6137 = vpop.xlane.xlu0 %6136
      %v6138 = vmul.f32 %v6137, %v1045
      %v6139 = vsub.f32 %v6130, %v6138
      %v6140 = vmul.f32 %v6139, %v6139
      %v6141 = vsel %vm1035, %v6140, 0.0
      %6142 = vadd.xlane.f32.xlu0 %v6141
      %v6143 = vpop.xlane.xlu0 %6142
      %v6144 = vmul.f32 %v6143, %v1045
      %v6145 = vadd.f32 %v6144, 1e-12
      %v6146 = vrsqrt.pop %v6145
      %v6147 = vmul.f32 %v6146, %v6145
      %v6148 = vmul.f32 %v6147, %v6146
      %v6149 = vmul.f32 0.5, %v6148
      %v6150 = vsub.f32 1.5, %v6149
      %v6151 = vmul.f32 %v6146, %v6150
      %vm6152 = vweird.f32 %v6145
      %vm6153 = vweird.f32 %v6146
      %vm6154 = vmor %vm6152, %vm6153
      %v6155 = vsel %vm6154, %v6146, %v6151
      %v6156 = vmul.f32 %v6139, %v6155
      %v6158 = vperm.slane %v6132, 0
      %v6160 = vmul.f32 %v6156, %v6158
      %v6162 = vperm.slane %v6134, 0
      %v6164 = vadd.f32 %v6160, %v6162
      %v6165 = vld [vmem:[%s39] sm:$0xff]
      %v6166 = vld [vmem:[%s39 + $0x8] sm:$0xff]
      %v6167 = vld [vmem:[%s39 + $0x10] sm:$0xff]
      %v6168 = vld [vmem:[%s39 + $0x18] sm:$0xff]
      %v6169 = vld [vmem:[%s39 + $0x20] sm:$0xff]
      %v6170 = vld [vmem:[%s39 + $0x28] sm:$0xff]
      %v6171 = vld [vmem:[%s39 + $0x30] sm:$0xff]
      %v6172 = vld [vmem:[%s39 + $0x38] sm:$0xff]
      %v6173 = vpack.c.bf16 %v6164, %v6164
      %v6174 = vld [vmem:[%s41] sm:$0x3]
      %v6176 = vperm.slane %v6174, 0
      %v6177 = vperm.slane %v6174, 1
      %v6188 = vunpack.c.l.b16 %v6165
      %v6189 = vunpack.c.h.b16 %v6165
      %v6190 = vunpack.c.l.b16 %v6166
      %v6191 = vunpack.c.h.b16 %v6166
      %v6192 = vunpack.c.l.b16 %v6167
      %v6193 = vunpack.c.h.b16 %v6167
      %v6194 = vunpack.c.l.b16 %v6168
      %v6195 = vunpack.c.h.b16 %v6168
      %v6196 = vunpack.c.l.b16 %v6169
      %v6197 = vunpack.c.h.b16 %v6169
      %v6198 = vunpack.c.l.b16 %v6170
      %v6199 = vunpack.c.h.b16 %v6170
      %v6200 = vunpack.c.l.b16 %v6171
      %v6201 = vunpack.c.h.b16 %v6171
      %v6202 = vunpack.c.l.b16 %v6172
      %v6203 = vunpack.c.h.b16 %v6172
      %v6204 = vpack.c.b16 %v6190, %v6188
      %v6205 = vpack.c.b16 %v6191, %v6189
      %v6206 = vpack.c.b16 %v6194, %v6192
      %v6207 = vpack.c.b16 %v6195, %v6193
      %v6208 = vpack.c.b16 %v6198, %v6196
      %v6209 = vpack.c.b16 %v6199, %v6197
      %v6210 = vpack.c.b16 %v6202, %v6200
      %v6211 = vpack.c.b16 %v6203, %v6201
      %v6221 = vsel %vm1035, %v6173, 0
      %6223 = vmatpush.bf16.msra.mxu0 0
      %6224 = vmatpush.bf16.msra.mxu0 0
      %6225 = vmatpush.bf16.msra.mxu0 0
      %6226 = vmatpush.bf16.msra.mxu0 0
      %6227 = vmatpush.bf16.msra.mxu0 %v6210
      %6228 = vmatpush.bf16.msra.mxu0 %v6208
      %6229 = vmatpush.bf16.msra.mxu0 %v6206
      %6230 = vmatpush.bf16.msra.mxu0 %v6204
      %6231 = vmatmul.bf16.gmra.mxu0 %v6221
      %v6232 = vpop.f32.mrf.mxu0
      %v6233 = vadd.f32 %v6176, %v6232
      %v6234 = vpop.f32.mrf.mxu0
      %6235 = vdwg.mxu0
      %6236 = vmatpush.bf16.msra.mxu0 0
      %6237 = vmatpush.bf16.msra.mxu0 0
      %6238 = vmatpush.bf16.msra.mxu0 0
      %6239 = vmatpush.bf16.msra.mxu0 0
      %6240 = vmatpush.bf16.msra.mxu0 %v6211
      %6241 = vmatpush.bf16.msra.mxu0 %v6209
      %6242 = vmatpush.bf16.msra.mxu0 %v6207
      %6243 = vmatpush.bf16.msra.mxu0 %v6205
      %6244 = vmatmul.bf16.gmra.mxu0 %v6221
      %v6245 = vpop.f32.mrf.mxu0
      %v6246 = vadd.f32 %v6177, %v6245
      %v6247 = vpop.f32.mrf.mxu0
      %6248 = vdwg.mxu0
      %v6249 = vmul.f32 %v6233, 0.5
      %v6250 = vmul.f32 %v6246, 0.5
      %v6251 = vmul.f32 %v6233, 0.044715
      %v6252 = vmul.f32 %v6246, 0.044715
      %v6253 = vmul.f32 %v6251, %v6233
      %v6254 = vmul.f32 %v6252, %v6246
      %v6255 = vmul.f32 %v6253, %v6233
      %v6256 = vmul.f32 %v6254, %v6246
      %v6257 = vadd.f32 %v6233, %v6255
      %v6258 = vadd.f32 %v6246, %v6256
      %v6259 = vmul.f32 %v6257, 0.7978846
      %v6260 = vmul.f32 %v6258, 0.7978846
      %v6261 = vtanh.pop %v6259
      %v6262 = vtanh.pop %v6260
      %v6263 = vadd.f32 %v6261, 1.0
      %v6264 = vadd.f32 %v6262, 1.0
      %v6265 = vmul.f32 %v6249, %v6263
      %v6266 = vmul.f32 %v6250, %v6264
      %v6267 = vld [vmem:[%s43] sm:$0xf]
      %v6268 = vld [vmem:[%s43 + $0x4] sm:$0xf]
      %v6269 = vld [vmem:[%s43 + $0x8] sm:$0xf]
      %v6270 = vld [vmem:[%s43 + $0xc] sm:$0xf]
      %v6271 = vld [vmem:[%s43 + $0x10] sm:$0xf]
      %v6272 = vld [vmem:[%s43 + $0x14] sm:$0xf]
      %v6273 = vld [vmem:[%s43 + $0x18] sm:$0xf]
      %v6274 = vld [vmem:[%s43 + $0x1c] sm:$0xf]
      %v6275 = vld [vmem:[%s43 + $0x20] sm:$0xf]
      %v6276 = vld [vmem:[%s43 + $0x24] sm:$0xf]
      %v6277 = vld [vmem:[%s43 + $0x28] sm:$0xf]
      %v6278 = vld [vmem:[%s43 + $0x2c] sm:$0xf]
      %v6279 = vld [vmem:[%s43 + $0x30] sm:$0xf]
      %v6280 = vld [vmem:[%s43 + $0x34] sm:$0xf]
      %v6281 = vld [vmem:[%s43 + $0x38] sm:$0xf]
      %v6282 = vld [vmem:[%s43 + $0x3c] sm:$0xf]
      %v6283 = vld [vmem:[%s43 + $0x40] sm:$0xf]
      %v6284 = vld [vmem:[%s43 + $0x44] sm:$0xf]
      %v6285 = vld [vmem:[%s43 + $0x48] sm:$0xf]
      %v6286 = vld [vmem:[%s43 + $0x4c] sm:$0xf]
      %v6287 = vld [vmem:[%s43 + $0x50] sm:$0xf]
      %v6288 = vld [vmem:[%s43 + $0x54] sm:$0xf]
      %v6289 = vld [vmem:[%s43 + $0x58] sm:$0xf]
      %v6290 = vld [vmem:[%s43 + $0x5c] sm:$0xf]
      %v6291 = vld [vmem:[%s43 + $0x60] sm:$0xf]
      %v6292 = vld [vmem:[%s43 + $0x64] sm:$0xf]
      %v6293 = vld [vmem:[%s43 + $0x68] sm:$0xf]
      %v6294 = vld [vmem:[%s43 + $0x6c] sm:$0xf]
      %v6295 = vld [vmem:[%s43 + $0x70] sm:$0xf]
      %v6296 = vld [vmem:[%s43 + $0x74] sm:$0xf]
      %v6297 = vld [vmem:[%s43 + $0x78] sm:$0xf]
      %v6298 = vld [vmem:[%s43 + $0x7c] sm:$0xf]
      %v6299 = vpack.c.bf16 %v6265, %v6265
      %v6300 = vpack.c.bf16 %v6266, %v6266
      %s6301 = scalar_lea.vmem %s9, 7
      %v6302 = vld [vmem:[%s6301] sm:$0x1]
      %v6304 = vperm.slane %v6302, 0
      %v6338 = vunpack.c.l.b16 %v6267
      %v6339 = vunpack.c.l.b16 %v6268
      %v6340 = vunpack.c.l.b16 %v6269
      %v6341 = vunpack.c.l.b16 %v6270
      %v6342 = vunpack.c.l.b16 %v6271
      %v6343 = vunpack.c.l.b16 %v6272
      %v6344 = vunpack.c.l.b16 %v6273
      %v6345 = vunpack.c.l.b16 %v6274
      %v6346 = vunpack.c.l.b16 %v6275
      %v6347 = vunpack.c.l.b16 %v6276
      %v6348 = vunpack.c.l.b16 %v6277
      %v6349 = vunpack.c.l.b16 %v6278
      %v6350 = vunpack.c.l.b16 %v6279
      %v6351 = vunpack.c.l.b16 %v6280
      %v6352 = vunpack.c.l.b16 %v6281
      %v6353 = vunpack.c.l.b16 %v6282
      %v6354 = vunpack.c.l.b16 %v6283
      %v6355 = vunpack.c.l.b16 %v6284
      %v6356 = vunpack.c.l.b16 %v6285
      %v6357 = vunpack.c.l.b16 %v6286
      %v6358 = vunpack.c.l.b16 %v6287
      %v6359 = vunpack.c.l.b16 %v6288
      %v6360 = vunpack.c.l.b16 %v6289
      %v6361 = vunpack.c.l.b16 %v6290
      %v6362 = vunpack.c.l.b16 %v6291
      %v6363 = vunpack.c.l.b16 %v6292
      %v6364 = vunpack.c.l.b16 %v6293
      %v6365 = vunpack.c.l.b16 %v6294
      %v6366 = vunpack.c.l.b16 %v6295
      %v6367 = vunpack.c.l.b16 %v6296
      %v6368 = vunpack.c.l.b16 %v6297
      %v6369 = vunpack.c.l.b16 %v6298
      %v6370 = vpack.c.b16 %v6339, %v6338
      %v6371 = vpack.c.b16 %v6341, %v6340
      %v6372 = vpack.c.b16 %v6343, %v6342
      %v6373 = vpack.c.b16 %v6345, %v6344
      %v6374 = vpack.c.b16 %v6347, %v6346
      %v6375 = vpack.c.b16 %v6349, %v6348
      %v6376 = vpack.c.b16 %v6351, %v6350
      %v6377 = vpack.c.b16 %v6353, %v6352
      %v6378 = vpack.c.b16 %v6355, %v6354
      %v6379 = vpack.c.b16 %v6357, %v6356
      %v6380 = vpack.c.b16 %v6359, %v6358
      %v6381 = vpack.c.b16 %v6361, %v6360
      %v6382 = vpack.c.b16 %v6363, %v6362
      %v6383 = vpack.c.b16 %v6365, %v6364
      %v6384 = vpack.c.b16 %v6367, %v6366
      %v6385 = vpack.c.b16 %v6369, %v6368
      %6402 = vmatpush.bf16.msra.mxu0 %v6377
      %6403 = vmatpush.bf16.msra.mxu0 %v6376
      %6404 = vmatpush.bf16.msra.mxu0 %v6375
      %6405 = vmatpush.bf16.msra.mxu0 %v6374
      %6406 = vmatpush.bf16.msra.mxu0 %v6373
      %6407 = vmatpush.bf16.msra.mxu0 %v6372
      %6408 = vmatpush.bf16.msra.mxu0 %v6371
      %6409 = vmatpush.bf16.msra.mxu0 %v6370
      %6410 = vmatmul.bf16.gmra.mxu0 %v6299
      %v6411 = vpop.f32.mrf.mxu0
      %v6412 = vadd.f32 %v6304, %v6411
      %v6413 = vpop.f32.mrf.mxu0
      %6414 = vdwg.mxu0
      %6415 = vmatpush.bf16.msra.mxu0 %v6385
      %6416 = vmatpush.bf16.msra.mxu0 %v6384
      %6417 = vmatpush.bf16.msra.mxu0 %v6383
      %6418 = vmatpush.bf16.msra.mxu0 %v6382
      %6419 = vmatpush.bf16.msra.mxu0 %v6381
      %6420 = vmatpush.bf16.msra.mxu0 %v6380
      %6421 = vmatpush.bf16.msra.mxu0 %v6379
      %6422 = vmatpush.bf16.msra.mxu0 %v6378
      %6423 = vmatmul.bf16.gmra.mxu0 %v6300
      %v6424 = vpop.f32.mrf.mxu0
      %v6425 = vadd.f32 %v6412, %v6424
      %v6426 = vpop.f32.mrf.mxu0
      %6427 = vdwg.mxu0
      %v6428 = vadd.f32 %v6425, %v6164
      %s6429 = scalar_lea.vmem %s9, 8
      %v6430 = vld [vmem:[%s6429] sm:$0x1]
      %s6431 = scalar_lea.vmem %s9, 9
      %v6432 = vld [vmem:[%s6431] sm:$0x1]
      %v6433 = vsel %vm1035, %v6428, 0.0
      %6434 = vadd.xlane.f32.xlu0 %v6433
      %v6435 = vpop.xlane.xlu0 %6434
      %v6436 = vmul.f32 %v6435, %v1045
      %v6437 = vsub.f32 %v6428, %v6436
      %v6438 = vmul.f32 %v6437, %v6437
      %v6439 = vsel %vm1035, %v6438, 0.0
      %6440 = vadd.xlane.f32.xlu0 %v6439
      %v6441 = vpop.xlane.xlu0 %6440
      %v6442 = vmul.f32 %v6441, %v1045
      %v6443 = vadd.f32 %v6442, 1e-12
      %v6444 = vrsqrt.pop %v6443
      %v6445 = vmul.f32 %v6444, %v6443
      %v6446 = vmul.f32 %v6445, %v6444
      %v6447 = vmul.f32 0.5, %v6446
      %v6448 = vsub.f32 1.5, %v6447
      %v6449 = vmul.f32 %v6444, %v6448
      %vm6450 = vweird.f32 %v6443
      %vm6451 = vweird.f32 %v6444
      %vm6452 = vmor %vm6450, %vm6451
      %v6453 = vsel %vm6452, %v6444, %v6449
      %v6454 = vmul.f32 %v6437, %v6453
      %v6456 = vperm.slane %v6430, 0
      %v6458 = vmul.f32 %v6454, %v6456
      %v6460 = vperm.slane %v6432, 0
      %v6462 = vadd.f32 %v6458, %v6460
      %v6463 = vld [vmem:[%s33] sm:$0xf]
      %v6464 = vld [vmem:[%s33 + $0x4] sm:$0xf]
      %v6465 = vld [vmem:[%s33 + $0x8] sm:$0xf]
      %v6466 = vld [vmem:[%s33 + $0xc] sm:$0xf]
      %v6467 = vld [vmem:[%s33 + $0x10] sm:$0xf]
      %v6468 = vld [vmem:[%s33 + $0x14] sm:$0xf]
      %v6469 = vld [vmem:[%s33 + $0x18] sm:$0xf]
      %v6470 = vld [vmem:[%s33 + $0x1c] sm:$0xf]
      %v6471 = vpack.c.bf16 %v3489, %v3487
      %v6472 = vpack.c.bf16 %v3494, %v3492
      %v6473 = vpack.c.bf16 %v3499, %v3497
      %v6474 = vpack.c.bf16 %v3502, %v3502
      %s6475 = scalar_lea.vmem %s9, 10
      %v6476 = vld [vmem:[%s6475] sm:$0x1]
      %v6478 = vperm.slane %v6476, 0
      %v6488 = vunpack.c.l.b16 %v6463
      %v6489 = vunpack.c.l.b16 %v6464
      %v6490 = vunpack.c.l.b16 %v6465
      %v6491 = vunpack.c.l.b16 %v6466
      %v6492 = vunpack.c.l.b16 %v6467
      %v6493 = vunpack.c.l.b16 %v6468
      %v6494 = vunpack.c.l.b16 %v6469
      %v6495 = vunpack.c.l.b16 %v6470
      %v6496 = vpack.c.b16 %v6489, %v6488
      %v6497 = vpack.c.b16 %v6491, %v6490
      %v6498 = vpack.c.b16 %v6493, %v6492
      %v6499 = vpack.c.b16 %v6495, %v6494
      %v6505 = vsel %vm1035, %v6471, 0
      %v6508 = vsel %vm1035, %v6472, 0
      %v6511 = vsel %vm1035, %v6473, 0
      %v6514 = vsel %vm1035, %v6474, 0
      %6516 = vmatpush.bf16.msra.mxu0 0
      %6517 = vmatpush.bf16.msra.mxu0 0
      %6518 = vmatpush.bf16.msra.mxu0 0
      %6519 = vmatpush.bf16.msra.mxu0 0
      %6520 = vmatpush.bf16.msra.mxu0 %v6499
      %6521 = vmatpush.bf16.msra.mxu0 %v6498
      %6522 = vmatpush.bf16.msra.mxu0 %v6497
      %6523 = vmatpush.bf16.msra.mxu0 %v6496
      %6524 = vmatmul.bf16.gmra.mxu0 %v6505
      %v6525 = vpop.f32.mrf.mxu0
      %v6526 = vadd.f32 %v6478, %v6525
      %v6527 = vpop.f32.mrf.mxu0
      %v6528 = vadd.f32 %v6478, %v6527
      %6529 = vmatmul.bf16.gmra.mxu0 %v6508
      %v6530 = vpop.f32.mrf.mxu0
      %v6531 = vadd.f32 %v6478, %v6530
      %v6532 = vpop.f32.mrf.mxu0
      %v6533 = vadd.f32 %v6478, %v6532
      %6534 = vmatmul.bf16.gmra.mxu0 %v6511
      %v6535 = vpop.f32.mrf.mxu0
      %v6536 = vadd.f32 %v6478, %v6535
      %v6537 = vpop.f32.mrf.mxu0
      %v6538 = vadd.f32 %v6478, %v6537
      %6539 = vmatmul.bf16.gmra.mxu0 %v6514
      %v6540 = vpop.f32.mrf.mxu0
      %v6541 = vadd.f32 %v6478, %v6540
      %v6542 = vpop.f32.mrf.mxu0
      %6543 = vdwg.mxu0
      %v6544 = vld [vmem:[%s35] sm:$0xf]
      %v6545 = vld [vmem:[%s35 + $0x4] sm:$0xf]
      %v6546 = vld [vmem:[%s35 + $0x8] sm:$0xf]
      %v6547 = vld [vmem:[%s35 + $0xc] sm:$0xf]
      %v6548 = vld [vmem:[%s35 + $0x10] sm:$0xf]
      %v6549 = vld [vmem:[%s35 + $0x14] sm:$0xf]
      %v6550 = vld [vmem:[%s35 + $0x18] sm:$0xf]
      %v6551 = vld [vmem:[%s35 + $0x1c] sm:$0xf]
      %s6552 = scalar_lea.vmem %s9, 11
      %v6553 = vld [vmem:[%s6552] sm:$0x1]
      %v6555 = vperm.slane %v6553, 0
      %v6565 = vunpack.c.l.b16 %v6544
      %v6566 = vunpack.c.l.b16 %v6545
      %v6567 = vunpack.c.l.b16 %v6546
      %v6568 = vunpack.c.l.b16 %v6547
      %v6569 = vunpack.c.l.b16 %v6548
      %v6570 = vunpack.c.l.b16 %v6549
      %v6571 = vunpack.c.l.b16 %v6550
      %v6572 = vunpack.c.l.b16 %v6551
      %v6573 = vpack.c.b16 %v6566, %v6565
      %v6574 = vpack.c.b16 %v6568, %v6567
      %v6575 = vpack.c.b16 %v6570, %v6569
      %v6576 = vpack.c.b16 %v6572, %v6571
      %6581 = vmatpush.bf16.msra.mxu0 0
      %6582 = vmatpush.bf16.msra.mxu0 0
      %6583 = vmatpush.bf16.msra.mxu0 0
      %6584 = vmatpush.bf16.msra.mxu0 0
      %6585 = vmatpush.bf16.msra.mxu0 %v6576
      %6586 = vmatpush.bf16.msra.mxu0 %v6575
      %6587 = vmatpush.bf16.msra.mxu0 %v6574
      %6588 = vmatpush.bf16.msra.mxu0 %v6573
      %6589 = vmatmul.bf16.gmra.mxu0 %v5023
      %v6590 = vpop.f32.mrf.mxu0
      %v6591 = vadd.f32 %v6555, %v6590
      %v6592 = vpop.f32.mrf.mxu0
      %6593 = vdwg.mxu0
      %v6594 = vld [vmem:[%s37] sm:$0xf]
      %v6595 = vld [vmem:[%s37 + $0x4] sm:$0xf]
      %v6596 = vld [vmem:[%s37 + $0x8] sm:$0xf]
      %v6597 = vld [vmem:[%s37 + $0xc] sm:$0xf]
      %v6598 = vld [vmem:[%s37 + $0x10] sm:$0xf]
      %v6599 = vld [vmem:[%s37 + $0x14] sm:$0xf]
      %v6600 = vld [vmem:[%s37 + $0x18] sm:$0xf]
      %v6601 = vld [vmem:[%s37 + $0x1c] sm:$0xf]
      %s6602 = scalar_lea.vmem %s9, 12
      %v6603 = vld [vmem:[%s6602] sm:$0x1]
      %v6605 = vperm.slane %v6603, 0
      %v6615 = vunpack.c.l.b16 %v6594
      %v6616 = vunpack.c.l.b16 %v6595
      %v6617 = vunpack.c.l.b16 %v6596
      %v6618 = vunpack.c.l.b16 %v6597
      %v6619 = vunpack.c.l.b16 %v6598
      %v6620 = vunpack.c.l.b16 %v6599
      %v6621 = vunpack.c.l.b16 %v6600
      %v6622 = vunpack.c.l.b16 %v6601
      %v6623 = vpack.c.b16 %v6616, %v6615
      %v6624 = vpack.c.b16 %v6618, %v6617
      %v6625 = vpack.c.b16 %v6620, %v6619
      %v6626 = vpack.c.b16 %v6622, %v6621
      %6631 = vmatpush.bf16.msra.mxu0 0
      %6632 = vmatpush.bf16.msra.mxu0 0
      %6633 = vmatpush.bf16.msra.mxu0 0
      %6634 = vmatpush.bf16.msra.mxu0 0
      %6635 = vmatpush.bf16.msra.mxu0 %v6626
      %6636 = vmatpush.bf16.msra.mxu0 %v6625
      %6637 = vmatpush.bf16.msra.mxu0 %v6624
      %6638 = vmatpush.bf16.msra.mxu0 %v6623
      %6639 = vmatmul.bf16.gmra.mxu0 %v5023
      %v6640 = vpop.f32.mrf.mxu0
      %v6641 = vadd.f32 %v6605, %v6640
      %v6642 = vpop.f32.mrf.mxu0
      %6643 = vdwg.mxu0
      %v6644 = vpack.c.bf16 %v6528, %v6526
      %v6645 = vpack.c.bf16 %v6533, %v6531
      %v6646 = vpack.c.bf16 %v6538, %v6536
      %v6647 = vpack.c.bf16 %v6541, %v6541
      %v6648 = vpack.c.bf16 %v6591, %v6591
      %v6650 = vsel %vm1035, %v6644, 0
      %v6653 = vsel %vm1035, %v6645, 0
      %v6656 = vsel %vm1035, %v6646, 0
      %v6659 = vsel %vm1035, %v6647, 0
      %v6662 = vsel %vm1035, %v6648, 0
      %6664 = vmatpush.bf16.xpose.msra.mxu0 0
      %6665 = vmatpush.bf16.xpose.msra.mxu0 0
      %6666 = vmatpush.bf16.xpose.msra.mxu0 0
      %6667 = vmatpush.bf16.xpose.msra.mxu0 0
      %6668 = vmatpush.bf16.xpose.msra.mxu0 0
      %6669 = vmatpush.bf16.xpose.msra.mxu0 0
      %6670 = vmatpush.bf16.xpose.msra.mxu0 0
      %6671 = vmatpush.bf16.xpose.msra.mxu0 %v6662
      %6672 = vmatmul.bf16.gmra.mxu0 %v6650
      %v6673 = vpop.f32.mrf.mxu0
      %v6674 = vadd.f32 0.0, %v6673
      %v6675 = vpop.f32.mrf.mxu0
      %v6676 = vadd.f32 0.0, %v6675
      %6677 = vmatmul.bf16.gmra.mxu0 %v6653
      %v6678 = vpop.f32.mrf.mxu0
      %v6679 = vadd.f32 0.0, %v6678
      %v6680 = vpop.f32.mrf.mxu0
      %v6681 = vadd.f32 0.0, %v6680
      %6682 = vmatmul.bf16.gmra.mxu0 %v6656
      %v6683 = vpop.f32.mrf.mxu0
      %v6684 = vadd.f32 0.0, %v6683
      %v6685 = vpop.f32.mrf.mxu0
      %v6686 = vadd.f32 0.0, %v6685
      %6687 = vmatmul.bf16.gmra.mxu0 %v6659
      %v6688 = vpop.f32.mrf.mxu0
      %v6689 = vadd.f32 0.0, %v6688
      %v6690 = vpop.f32.mrf.mxu0
      %6691 = vdwg.mxu0
      %v6692 = vmul.f32 %v6674, 0.015625
      %v6693 = vmul.f32 %v6676, 0.015625
      %v6694 = vmul.f32 %v6679, 0.015625
      %v6695 = vmul.f32 %v6681, 0.015625
      %v6696 = vmul.f32 %v6684, 0.015625
      %v6697 = vmul.f32 %v6686, 0.015625
      %v6698 = vmul.f32 %v6689, 0.015625
      %vm6699 = vcmask 64512
      %v6700 = vsel %vm6699, %v6692, -inf
      %6701 = vmax.xlane.f32.xlu0 %v6700
      %v6702 = vpop.xlane.xlu0 %6701
      %v6703 = vsel %vm6699, %v6693, -inf
      %6704 = vmax.xlane.f32.xlu0 %v6703
      %v6705 = vpop.xlane.xlu0 %6704
      %v6706 = vsel %vm6699, %v6694, -inf
      %6707 = vmax.xlane.f32.xlu0 %v6706
      %v6708 = vpop.xlane.xlu0 %6707
      %v6709 = vsel %vm6699, %v6695, -inf
      %6710 = vmax.xlane.f32.xlu0 %v6709
      %v6711 = vpop.xlane.xlu0 %6710
      %v6712 = vsel %vm6699, %v6696, -inf
      %6713 = vmax.xlane.f32.xlu0 %v6712
      %v6714 = vpop.xlane.xlu0 %6713
      %v6715 = vsel %vm6699, %v6697, -inf
      %6716 = vmax.xlane.f32.xlu0 %v6715
      %v6717 = vpop.xlane.xlu0 %6716
      %vm6718 = vcmask 57344
      %v6719 = vsel %vm6718, %v6698, -inf
      %6720 = vmax.xlane.f32.xlu0 %v6719
      %v6721 = vpop.xlane.xlu0 %6720
      %v6722 = vsub.f32 %v6692, %v6702
      %v6723 = vsub.f32 %v6693, %v6705
      %v6724 = vsub.f32 %v6694, %v6708
      %v6725 = vsub.f32 %v6695, %v6711
      %v6726 = vsub.f32 %v6696, %v6714
      %v6727 = vsub.f32 %v6697, %v6717
      %v6728 = vsub.f32 %v6698, %v6721
      %v6729 = vmul.f32 %v6722, 1.442695
      %v6730 = vpow.pop %v6729
      %v6731 = vmul.f32 %v6723, 1.442695
      %v6732 = vpow.pop %v6731
      %v6733 = vmul.f32 %v6724, 1.442695
      %v6734 = vpow.pop %v6733
      %v6735 = vmul.f32 %v6725, 1.442695
      %v6736 = vpow.pop %v6735
      %v6737 = vmul.f32 %v6726, 1.442695
      %v6738 = vpow.pop %v6737
      %v6739 = vmul.f32 %v6727, 1.442695
      %v6740 = vpow.pop %v6739
      %v6741 = vmul.f32 %v6728, 1.442695
      %v6742 = vpow.pop %v6741
      %v6743 = vsel %vm6699, %v6730, 0.0
      %6744 = vadd.xlane.f32.xlu0 %v6743
      %v6745 = vpop.xlane.xlu0 %6744
      %v6746 = vsel %vm6699, %v6732, 0.0
      %6747 = vadd.xlane.f32.xlu0 %v6746
      %v6748 = vpop.xlane.xlu0 %6747
      %v6749 = vsel %vm6699, %v6734, 0.0
      %6750 = vadd.xlane.f32.xlu0 %v6749
      %v6751 = vpop.xlane.xlu0 %6750
      %v6752 = vsel %vm6699, %v6736, 0.0
      %6753 = vadd.xlane.f32.xlu0 %v6752
      %v6754 = vpop.xlane.xlu0 %6753
      %v6755 = vsel %vm6699, %v6738, 0.0
      %6756 = vadd.xlane.f32.xlu0 %v6755
      %v6757 = vpop.xlane.xlu0 %6756
      %v6758 = vsel %vm6699, %v6740, 0.0
      %6759 = vadd.xlane.f32.xlu0 %v6758
      %v6760 = vpop.xlane.xlu0 %6759
      %v6761 = vsel %vm6718, %v6742, 0.0
      %6762 = vadd.xlane.f32.xlu0 %v6761
      %v6763 = vpop.xlane.xlu0 %6762
      %v6764 = vrcp.pop %v6745
      %v6765 = vrcp.pop %v6748
      %v6766 = vrcp.pop %v6751
      %v6767 = vrcp.pop %v6754
      %v6768 = vrcp.pop %v6757
      %v6769 = vrcp.pop %v6760
      %v6770 = vrcp.pop %v6763
      %v6771 = vmul.f32 %v6730, %v6764
      %v6772 = vmul.f32 %v6732, %v6765
      %v6773 = vmul.f32 %v6734, %v6766
      %v6774 = vmul.f32 %v6736, %v6767
      %v6775 = vmul.f32 %v6738, %v6768
      %v6776 = vmul.f32 %v6740, %v6769
      %v6777 = vmul.f32 %v6742, %v6770
      %v6778 = vpack.c.bf16 %v6772, %v6771
      %v6779 = vpack.c.bf16 %v6774, %v6773
      %v6780 = vpack.c.bf16 %v6776, %v6775
      %v6781 = vpack.c.bf16 %v6777, %v6777
      %v6782 = vpack.c.bf16 %v6641, %v6641
      %v6784 = vsel %vm6699, %v6778, 0
      %v6787 = vsel %vm6699, %v6779, 0
      %v6790 = vsel %vm6699, %v6780, 0
      %v6793 = vsel %vm6699, %v6781, 0
      %vm6795 = vcmask 1043456
      %v6797 = vsel %vm6795, %v6782, 0
      %6799 = vmatpush.bf16.msra.mxu0 0
      %6800 = vmatpush.bf16.msra.mxu0 0
      %6801 = vmatpush.bf16.msra.mxu0 0
      %6802 = vmatpush.bf16.msra.mxu0 0
      %6803 = vmatpush.bf16.msra.mxu0 0
      %6804 = vmatpush.bf16.msra.mxu0 0
      %6805 = vmatpush.bf16.msra.mxu0 0
      %6806 = vmatpush.bf16.msra.mxu0 %v6797
      %6807 = vmatmul.bf16.gmra.mxu0 %v6784
      %v6808 = vpop.f32.mrf.mxu0
      %v6809 = vadd.f32 0.0, %v6808
      %v6810 = vpop.f32.mrf.mxu0
      %v6811 = vadd.f32 0.0, %v6810
      %6812 = vmatmul.bf16.gmra.mxu0 %v6787
      %v6813 = vpop.f32.mrf.mxu0
      %v6814 = vadd.f32 0.0, %v6813
      %v6815 = vpop.f32.mrf.mxu0
      %v6816 = vadd.f32 0.0, %v6815
      %6817 = vmatmul.bf16.gmra.mxu0 %v6790
      %v6818 = vpop.f32.mrf.mxu0
      %v6819 = vadd.f32 0.0, %v6818
      %v6820 = vpop.f32.mrf.mxu0
      %v6821 = vadd.f32 0.0, %v6820
      %6822 = vmatmul.bf16.gmra.mxu0 %v6793
      %v6823 = vpop.f32.mrf.mxu0
      %v6824 = vadd.f32 0.0, %v6823
      %v6825 = vpop.f32.mrf.mxu0
      %6826 = vdwg.mxu0
      %v6827 = vtanh.pop %v6809
      %v6828 = vtanh.pop %v6811
      %v6829 = vtanh.pop %v6814
      %v6830 = vtanh.pop %v6816
      %v6831 = vtanh.pop %v6819
      %v6832 = vtanh.pop %v6821
      %v6833 = vtanh.pop %v6824
      %v6834 = vsel %vm1035, %v6827, 0.0
      %v6835 = vsel %vm1035, %v6828, 0.0
      %v6836 = vadd.f32 %v6834, %v6835
      %v6837 = vsel %vm1035, %v6829, 0.0
      %v6838 = vadd.f32 %v6836, %v6837
      %v6839 = vsel %vm1035, %v6830, 0.0
      %v6840 = vadd.f32 %v6838, %v6839
      %v6841 = vsel %vm1035, %v6831, 0.0
      %v6842 = vadd.f32 %v6840, %v6841
      %v6843 = vsel %vm1035, %v6832, 0.0
      %v6844 = vadd.f32 %v6842, %v6843
      %vm6845 = vcmask 516096
      %v6846 = vsel %vm6845, %v6833, 0.0
      %v6847 = vadd.f32 %v6844, %v6846
      %v6848 = vrot.slane %v6847, 4
      %v6849 = vadd.f32 %v6847, %v6848
      %v6850 = vrot.slane %v6849, 2
      %v6851 = vadd.f32 %v6849, %v6850
      %v6852 = vrot.slane %v6851, 1
      %v6853 = vadd.f32 %v6851, %v6852
      %v6854 = vsel %vm1035, %v3487, 0.0
      %v6855 = vsel %vm1035, %v3489, 0.0
      %v6856 = vadd.f32 %v6854, %v6855
      %v6857 = vsel %vm1035, %v3492, 0.0
      %v6858 = vadd.f32 %v6856, %v6857
      %v6859 = vsel %vm1035, %v3494, 0.0
      %v6860 = vadd.f32 %v6858, %v6859
      %v6861 = vsel %vm1035, %v3497, 0.0
      %v6862 = vadd.f32 %v6860, %v6861
      %v6863 = vsel %vm1035, %v3499, 0.0
      %v6864 = vadd.f32 %v6862, %v6863
      %v6865 = vsel %vm6845, %v3502, 0.0
      %v6866 = vadd.f32 %v6864, %v6865
      %v6867 = vrot.slane %v6866, 4
      %v6868 = vadd.f32 %v6866, %v6867
      %v6869 = vrot.slane %v6868, 2
      %v6870 = vadd.f32 %v6868, %v6869
      %v6871 = vrot.slane %v6870, 1
      %v6872 = vadd.f32 %v6870, %v6871
      %v6873 = vadd.f32 %v6853, %v6872
      %v6874 = vld [vmem:[%s1025] sm:$0x1]
      %6876 = vset.pattern.permute.xlu0 0
      %6877 = vperm.xlu0 %6876, %v6874
      %v6878 = vpop.permute.xlu0 %6877
      %v6880 = vperm.slane %v6878, 0
      %v6881 = vmul.f32 %v6873, %v6880
      %s6882 = scalar_lea.vmem %s9, 13
      %v6883 = vld [vmem:[%s6882] sm:$0x1]
      %s6884 = scalar_lea.vmem %s9, 14
      %v6885 = vld [vmem:[%s6884] sm:$0x1]
      %v6886 = vsel %vm1035, %v6881, 0.0
      %6887 = vadd.xlane.f32.xlu0 %v6886
      %v6888 = vpop.xlane.xlu0 %6887
      %v6889 = vmul.f32 %v6888, %v1045
      %v6890 = vsub.f32 %v6881, %v6889
      %v6891 = vmul.f32 %v6890, %v6890
      %v6892 = vsel %vm1035, %v6891, 0.0
      %6893 = vadd.xlane.f32.xlu0 %v6892
      %v6894 = vpop.xlane.xlu0 %6893
      %v6895 = vmul.f32 %v6894, %v1045
      %v6896 = vadd.f32 %v6895, 1e-05
      %v6897 = vrsqrt.pop %v6896
      %v6898 = vmul.f32 %v6897, %v6896
      %v6899 = vmul.f32 %v6898, %v6897
      %v6900 = vmul.f32 0.5, %v6899
      %v6901 = vsub.f32 1.5, %v6900
      %v6902 = vmul.f32 %v6897, %v6901
      %vm6903 = vweird.f32 %v6896
      %vm6904 = vweird.f32 %v6897
      %vm6905 = vmor %vm6903, %vm6904
      %v6906 = vsel %vm6905, %v6897, %v6902
      %v6907 = vmul.f32 %v6890, %v6906
      %v6908 = vmul.f32 %v6907, %v6883
      %v6909 = vadd.f32 %v6908, %v6885
      %v6910 = vperm.slane %v6909, 0
      %v6911 = vlaneseq
      %v6912 = vshrl.u32 %v6911, 7
      %v6913 = vld [vmem:[%s45] sm:$0xff]
      %v6914 = vld [vmem:[%s45 + $0x8] sm:$0xff]
      %v6915 = vld [vmem:[%s45 + $0x10] sm:$0xff]
      %v6916 = vld [vmem:[%s45 + $0x18] sm:$0xff]
      %v6917 = vld [vmem:[%s45 + $0x20] sm:$0xff]
      %v6918 = vld [vmem:[%s45 + $0x28] sm:$0xff]
      %v6919 = vld [vmem:[%s45 + $0x30] sm:$0xff]
      %v6920 = vld [vmem:[%s45 + $0x38] sm:$0xff]
      %v6921 = vpack.c.bf16 %v6910, %v6910
      %v6922 = vld [vmem:[%s47] sm:$0x3]
      %v6924 = vperm.slane %v6922, 0
      %v6925 = vperm.slane %v6922, 1
      %v6936 = vunpack.c.l.b16 %v6913
      %v6937 = vunpack.c.h.b16 %v6913
      %v6938 = vunpack.c.l.b16 %v6914
      %v6939 = vunpack.c.h.b16 %v6914
      %v6940 = vunpack.c.l.b16 %v6915
      %v6941 = vunpack.c.h.b16 %v6915
      %v6942 = vunpack.c.l.b16 %v6916
      %v6943 = vunpack.c.h.b16 %v6916
      %v6944 = vunpack.c.l.b16 %v6917
      %v6945 = vunpack.c.h.b16 %v6917
      %v6946 = vunpack.c.l.b16 %v6918
      %v6947 = vunpack.c.h.b16 %v6918
      %v6948 = vunpack.c.l.b16 %v6919
      %v6949 = vunpack.c.h.b16 %v6919
      %v6950 = vunpack.c.l.b16 %v6920
      %v6951 = vunpack.c.h.b16 %v6920
      %v6952 = vpack.c.b16 %v6938, %v6936
      %v6953 = vpack.c.b16 %v6939, %v6937
      %v6954 = vpack.c.b16 %v6942, %v6940
      %v6955 = vpack.c.b16 %v6943, %v6941
      %v6956 = vpack.c.b16 %v6946, %v6944
      %v6957 = vpack.c.b16 %v6947, %v6945
      %v6958 = vpack.c.b16 %v6950, %v6948
      %v6959 = vpack.c.b16 %v6951, %v6949
      %v6969 = vsel %vm1035, %v6921, 0
      %6971 = vmatpush.bf16.msra.mxu0 0
      %6972 = vmatpush.bf16.msra.mxu0 0
      %6973 = vmatpush.bf16.msra.mxu0 0
      %6974 = vmatpush.bf16.msra.mxu0 0
      %6975 = vmatpush.bf16.msra.mxu0 %v6958
      %6976 = vmatpush.bf16.msra.mxu0 %v6956
      %6977 = vmatpush.bf16.msra.mxu0 %v6954
      %6978 = vmatpush.bf16.msra.mxu0 %v6952
      %6979 = vmatmul.bf16.gmra.mxu0 %v6969
      %v6980 = vpop.f32.mrf.mxu0
      %v6981 = vadd.f32 %v6924, %v6980
      %v6982 = vpop.f32.mrf.mxu0
      %6983 = vdwg.mxu0
      %6984 = vmatpush.bf16.msra.mxu0 0
      %6985 = vmatpush.bf16.msra.mxu0 0
      %6986 = vmatpush.bf16.msra.mxu0 0
      %6987 = vmatpush.bf16.msra.mxu0 0
      %6988 = vmatpush.bf16.msra.mxu0 %v6959
      %6989 = vmatpush.bf16.msra.mxu0 %v6957
      %6990 = vmatpush.bf16.msra.mxu0 %v6955
      %6991 = vmatpush.bf16.msra.mxu0 %v6953
      %6992 = vmatmul.bf16.gmra.mxu0 %v6969
      %v6993 = vpop.f32.mrf.mxu0
      %v6994 = vadd.f32 %v6925, %v6993
      %v6995 = vpop.f32.mrf.mxu0
      %6996 = vdwg.mxu0
      %v6997 = vtanh.pop %v6981
      %v6998 = vtanh.pop %v6994
      %vm6999 = vcmp.eq.s32.totalorder %v6912, 0
      %v7000 = vsel %vm6999, 1, 0
      %vm7001 = vcmp.eq.s32.totalorder %v7000, 1
      %v7002 = vsel %vm7001, %v6997, 0.0
      %v7003 = vsel %vm7001, %v6998, 0.0
      %v7004 = vadd.f32 %v7002, 0.0
      %v7005 = vadd.f32 %v7003, 0.0
      %s7006 = scalar_lea.vmem %s45, 64
      %v7007 = vld [vmem:[%s7006] sm:$0xff]
      %v7008 = vld [vmem:[%s7006 + $0x8] sm:$0xff]
      %v7009 = vld [vmem:[%s7006 + $0x10] sm:$0xff]
      %v7010 = vld [vmem:[%s7006 + $0x18] sm:$0xff]
      %v7011 = vld [vmem:[%s7006 + $0x20] sm:$0xff]
      %v7012 = vld [vmem:[%s7006 + $0x28] sm:$0xff]
      %v7013 = vld [vmem:[%s7006 + $0x30] sm:$0xff]
      %v7014 = vld [vmem:[%s7006 + $0x38] sm:$0xff]
      %s7015 = scalar_lea.vmem %s47, 2
      %v7016 = vld [vmem:[%s7015] sm:$0x3]
      %v7018 = vperm.slane %v7016, 0
      %v7019 = vperm.slane %v7016, 1
      %v7030 = vunpack.c.l.b16 %v7007
      %v7031 = vunpack.c.h.b16 %v7007
      %v7032 = vunpack.c.l.b16 %v7008
      %v7033 = vunpack.c.h.b16 %v7008
      %v7034 = vunpack.c.l.b16 %v7009
      %v7035 = vunpack.c.h.b16 %v7009
      %v7036 = vunpack.c.l.b16 %v7010
      %v7037 = vunpack.c.h.b16 %v7010
      %v7038 = vunpack.c.l.b16 %v7011
      %v7039 = vunpack.c.h.b16 %v7011
      %v7040 = vunpack.c.l.b16 %v7012
      %v7041 = vunpack.c.h.b16 %v7012
      %v7042 = vunpack.c.l.b16 %v7013
      %v7043 = vunpack.c.h.b16 %v7013
      %v7044 = vunpack.c.l.b16 %v7014
      %v7045 = vunpack.c.h.b16 %v7014
      %v7046 = vpack.c.b16 %v7032, %v7030
      %v7047 = vpack.c.b16 %v7033, %v7031
      %v7048 = vpack.c.b16 %v7036, %v7034
      %v7049 = vpack.c.b16 %v7037, %v7035
      %v7050 = vpack.c.b16 %v7040, %v7038
      %v7051 = vpack.c.b16 %v7041, %v7039
      %v7052 = vpack.c.b16 %v7044, %v7042
      %v7053 = vpack.c.b16 %v7045, %v7043
      %7062 = vmatpush.bf16.msra.mxu0 0
      %7063 = vmatpush.bf16.msra.mxu0 0
      %7064 = vmatpush.bf16.msra.mxu0 0
      %7065 = vmatpush.bf16.msra.mxu0 0
      %7066 = vmatpush.bf16.msra.mxu0 %v7052
      %7067 = vmatpush.bf16.msra.mxu0 %v7050
      %7068 = vmatpush.bf16.msra.mxu0 %v7048
      %7069 = vmatpush.bf16.msra.mxu0 %v7046
      %7070 = vmatmul.bf16.gmra.mxu0 %v6969
      %v7071 = vpop.f32.mrf.mxu0
      %v7072 = vadd.f32 %v7018, %v7071
      %v7073 = vpop.f32.mrf.mxu0
      %7074 = vdwg.mxu0
      %7075 = vmatpush.bf16.msra.mxu0 0
      %7076 = vmatpush.bf16.msra.mxu0 0
      %7077 = vmatpush.bf16.msra.mxu0 0
      %7078 = vmatpush.bf16.msra.mxu0 0
      %7079 = vmatpush.bf16.msra.mxu0 %v7053
      %7080 = vmatpush.bf16.msra.mxu0 %v7051
      %7081 = vmatpush.bf16.msra.mxu0 %v7049
      %7082 = vmatpush.bf16.msra.mxu0 %v7047
      %7083 = vmatmul.bf16.gmra.mxu0 %v6969
      %v7084 = vpop.f32.mrf.mxu0
      %v7085 = vadd.f32 %v7019, %v7084
      %v7086 = vpop.f32.mrf.mxu0
      %7087 = vdwg.mxu0
      %v7088 = vtanh.pop %v7072
      %v7089 = vtanh.pop %v7085
      %vm7090 = vcmp.eq.s32.totalorder %v6912, 1
      %v7091 = vsel %vm7090, 1, 0
      %vm7092 = vcmp.eq.s32.totalorder %v7091, 1
      %v7093 = vsel %vm7092, %v7088, 0.0
      %v7094 = vsel %vm7092, %v7089, 0.0
      %v7095 = vadd.f32 %v7004, %v7093
      %v7096 = vadd.f32 %v7005, %v7094
      %s7097 = scalar_lea.vmem %s45, 128
      %v7098 = vld [vmem:[%s7097] sm:$0xff]
      %v7099 = vld [vmem:[%s7097 + $0x8] sm:$0xff]
      %v7100 = vld [vmem:[%s7097 + $0x10] sm:$0xff]
      %v7101 = vld [vmem:[%s7097 + $0x18] sm:$0xff]
      %v7102 = vld [vmem:[%s7097 + $0x20] sm:$0xff]
      %v7103 = vld [vmem:[%s7097 + $0x28] sm:$0xff]
      %v7104 = vld [vmem:[%s7097 + $0x30] sm:$0xff]
      %v7105 = vld [vmem:[%s7097 + $0x38] sm:$0xff]
      %s7106 = scalar_lea.vmem %s47, 4
      %v7107 = vld [vmem:[%s7106] sm:$0x3]
      %v7109 = vperm.slane %v7107, 0
      %v7110 = vperm.slane %v7107, 1
      %v7121 = vunpack.c.l.b16 %v7098
      %v7122 = vunpack.c.h.b16 %v7098
      %v7123 = vunpack.c.l.b16 %v7099
      %v7124 = vunpack.c.h.b16 %v7099
      %v7125 = vunpack.c.l.b16 %v7100
      %v7126 = vunpack.c.h.b16 %v7100
      %v7127 = vunpack.c.l.b16 %v7101
      %v7128 = vunpack.c.h.b16 %v7101
      %v7129 = vunpack.c.l.b16 %v7102
      %v7130 = vunpack.c.h.b16 %v7102
      %v7131 = vunpack.c.l.b16 %v7103
      %v7132 = vunpack.c.h.b16 %v7103
      %v7133 = vunpack.c.l.b16 %v7104
      %v7134 = vunpack.c.h.b16 %v7104
      %v7135 = vunpack.c.l.b16 %v7105
      %v7136 = vunpack.c.h.b16 %v7105
      %v7137 = vpack.c.b16 %v7123, %v7121
      %v7138 = vpack.c.b16 %v7124, %v7122
      %v7139 = vpack.c.b16 %v7127, %v7125
      %v7140 = vpack.c.b16 %v7128, %v7126
      %v7141 = vpack.c.b16 %v7131, %v7129
      %v7142 = vpack.c.b16 %v7132, %v7130
      %v7143 = vpack.c.b16 %v7135, %v7133
      %v7144 = vpack.c.b16 %v7136, %v7134
      %7153 = vmatpush.bf16.msra.mxu0 0
      %7154 = vmatpush.bf16.msra.mxu0 0
      %7155 = vmatpush.bf16.msra.mxu0 0
      %7156 = vmatpush.bf16.msra.mxu0 0
      %7157 = vmatpush.bf16.msra.mxu0 %v7143
      %7158 = vmatpush.bf16.msra.mxu0 %v7141
      %7159 = vmatpush.bf16.msra.mxu0 %v7139
      %7160 = vmatpush.bf16.msra.mxu0 %v7137
      %7161 = vmatmul.bf16.gmra.mxu0 %v6969
      %v7162 = vpop.f32.mrf.mxu0
      %v7163 = vadd.f32 %v7109, %v7162
      %v7164 = vpop.f32.mrf.mxu0
      %7165 = vdwg.mxu0
      %7166 = vmatpush.bf16.msra.mxu0 0
      %7167 = vmatpush.bf16.msra.mxu0 0
      %7168 = vmatpush.bf16.msra.mxu0 0
      %7169 = vmatpush.bf16.msra.mxu0 0
      %7170 = vmatpush.bf16.msra.mxu0 %v7144
      %7171 = vmatpush.bf16.msra.mxu0 %v7142
      %7172 = vmatpush.bf16.msra.mxu0 %v7140
      %7173 = vmatpush.bf16.msra.mxu0 %v7138
      %7174 = vmatmul.bf16.gmra.mxu0 %v6969
      %v7175 = vpop.f32.mrf.mxu0
      %v7176 = vadd.f32 %v7110, %v7175
      %v7177 = vpop.f32.mrf.mxu0
      %7178 = vdwg.mxu0
      %v7179 = vtanh.pop %v7163
      %v7180 = vtanh.pop %v7176
      %vm7181 = vcmp.eq.s32.totalorder %v6912, 2
      %v7182 = vsel %vm7181, 1, 0
      %vm7183 = vcmp.eq.s32.totalorder %v7182, 1
      %v7184 = vsel %vm7183, %v7179, 0.0
      %v7185 = vsel %vm7183, %v7180, 0.0
      %v7186 = vadd.f32 %v7095, %v7184
      %v7187 = vadd.f32 %v7096, %v7185
      %s7188 = scalar_lea.vmem %s45, 192
      %v7189 = vld [vmem:[%s7188] sm:$0xff]
      %v7190 = vld [vmem:[%s7188 + $0x8] sm:$0xff]
      %v7191 = vld [vmem:[%s7188 + $0x10] sm:$0xff]
      %v7192 = vld [vmem:[%s7188 + $0x18] sm:$0xff]
      %v7193 = vld [vmem:[%s7188 + $0x20] sm:$0xff]
      %v7194 = vld [vmem:[%s7188 + $0x28] sm:$0xff]
      %v7195 = vld [vmem:[%s7188 + $0x30] sm:$0xff]
      %v7196 = vld [vmem:[%s7188 + $0x38] sm:$0xff]
      %s7197 = scalar_lea.vmem %s47, 6
      %v7198 = vld [vmem:[%s7197] sm:$0x3]
      %v7200 = vperm.slane %v7198, 0
      %v7201 = vperm.slane %v7198, 1
      %v7212 = vunpack.c.l.b16 %v7189
      %v7213 = vunpack.c.h.b16 %v7189
      %v7214 = vunpack.c.l.b16 %v7190
      %v7215 = vunpack.c.h.b16 %v7190
      %v7216 = vunpack.c.l.b16 %v7191
      %v7217 = vunpack.c.h.b16 %v7191
      %v7218 = vunpack.c.l.b16 %v7192
      %v7219 = vunpack.c.h.b16 %v7192
      %v7220 = vunpack.c.l.b16 %v7193
      %v7221 = vunpack.c.h.b16 %v7193
      %v7222 = vunpack.c.l.b16 %v7194
      %v7223 = vunpack.c.h.b16 %v7194
      %v7224 = vunpack.c.l.b16 %v7195
      %v7225 = vunpack.c.h.b16 %v7195
      %v7226 = vunpack.c.l.b16 %v7196
      %v7227 = vunpack.c.h.b16 %v7196
      %v7228 = vpack.c.b16 %v7214, %v7212
      %v7229 = vpack.c.b16 %v7215, %v7213
      %v7230 = vpack.c.b16 %v7218, %v7216
      %v7231 = vpack.c.b16 %v7219, %v7217
      %v7232 = vpack.c.b16 %v7222, %v7220
      %v7233 = vpack.c.b16 %v7223, %v7221
      %v7234 = vpack.c.b16 %v7226, %v7224
      %v7235 = vpack.c.b16 %v7227, %v7225
      %7244 = vmatpush.bf16.msra.mxu0 0
      %7245 = vmatpush.bf16.msra.mxu0 0
      %7246 = vmatpush.bf16.msra.mxu0 0
      %7247 = vmatpush.bf16.msra.mxu0 0
      %7248 = vmatpush.bf16.msra.mxu0 %v7234
      %7249 = vmatpush.bf16.msra.mxu0 %v7232
      %7250 = vmatpush.bf16.msra.mxu0 %v7230
      %7251 = vmatpush.bf16.msra.mxu0 %v7228
      %7252 = vmatmul.bf16.gmra.mxu0 %v6969
      %v7253 = vpop.f32.mrf.mxu0
      %v7254 = vadd.f32 %v7200, %v7253
      %v7255 = vpop.f32.mrf.mxu0
      %7256 = vdwg.mxu0
      %7257 = vmatpush.bf16.msra.mxu0 0
      %7258 = vmatpush.bf16.msra.mxu0 0
      %7259 = vmatpush.bf16.msra.mxu0 0
      %7260 = vmatpush.bf16.msra.mxu0 0
      %7261 = vmatpush.bf16.msra.mxu0 %v7235
      %7262 = vmatpush.bf16.msra.mxu0 %v7233
      %7263 = vmatpush.bf16.msra.mxu0 %v7231
      %7264 = vmatpush.bf16.msra.mxu0 %v7229
      %7265 = vmatmul.bf16.gmra.mxu0 %v6969
      %v7266 = vpop.f32.mrf.mxu0
      %v7267 = vadd.f32 %v7201, %v7266
      %v7268 = vpop.f32.mrf.mxu0
      %7269 = vdwg.mxu0
      %v7270 = vtanh.pop %v7254
      %v7271 = vtanh.pop %v7267
      %vm7272 = vcmp.eq.s32.totalorder %v6912, 3
      %v7273 = vsel %vm7272, 1, 0
      %vm7274 = vcmp.eq.s32.totalorder %v7273, 1
      %v7275 = vsel %vm7274, %v7270, 0.0
      %v7276 = vsel %vm7274, %v7271, 0.0
      %v7277 = vadd.f32 %v7186, %v7275
      %v7278 = vadd.f32 %v7187, %v7276
      %s7279 = scalar_lea.vmem %s45, 256
      %v7280 = vld [vmem:[%s7279] sm:$0xff]
      %v7281 = vld [vmem:[%s7279 + $0x8] sm:$0xff]
      %v7282 = vld [vmem:[%s7279 + $0x10] sm:$0xff]
      %v7283 = vld [vmem:[%s7279 + $0x18] sm:$0xff]
      %v7284 = vld [vmem:[%s7279 + $0x20] sm:$0xff]
      %v7285 = vld [vmem:[%s7279 + $0x28] sm:$0xff]
      %v7286 = vld [vmem:[%s7279 + $0x30] sm:$0xff]
      %v7287 = vld [vmem:[%s7279 + $0x38] sm:$0xff]
      %s7288 = scalar_lea.vmem %s47, 8
      %v7289 = vld [vmem:[%s7288] sm:$0x3]
      %v7291 = vperm.slane %v7289, 0
      %v7292 = vperm.slane %v7289, 1
      %v7303 = vunpack.c.l.b16 %v7280
      %v7304 = vunpack.c.h.b16 %v7280
      %v7305 = vunpack.c.l.b16 %v7281
      %v7306 = vunpack.c.h.b16 %v7281
      %v7307 = vunpack.c.l.b16 %v7282
      %v7308 = vunpack.c.h.b16 %v7282
      %v7309 = vunpack.c.l.b16 %v7283
      %v7310 = vunpack.c.h.b16 %v7283
      %v7311 = vunpack.c.l.b16 %v7284
      %v7312 = vunpack.c.h.b16 %v7284
      %v7313 = vunpack.c.l.b16 %v7285
      %v7314 = vunpack.c.h.b16 %v7285
      %v7315 = vunpack.c.l.b16 %v7286
      %v7316 = vunpack.c.h.b16 %v7286
      %v7317 = vunpack.c.l.b16 %v7287
      %v7318 = vunpack.c.h.b16 %v7287
      %v7319 = vpack.c.b16 %v7305, %v7303
      %v7320 = vpack.c.b16 %v7306, %v7304
      %v7321 = vpack.c.b16 %v7309, %v7307
      %v7322 = vpack.c.b16 %v7310, %v7308
      %v7323 = vpack.c.b16 %v7313, %v7311
      %v7324 = vpack.c.b16 %v7314, %v7312
      %v7325 = vpack.c.b16 %v7317, %v7315
      %v7326 = vpack.c.b16 %v7318, %v7316
      %7335 = vmatpush.bf16.msra.mxu0 0
      %7336 = vmatpush.bf16.msra.mxu0 0
      %7337 = vmatpush.bf16.msra.mxu0 0
      %7338 = vmatpush.bf16.msra.mxu0 0
      %7339 = vmatpush.bf16.msra.mxu0 %v7325
      %7340 = vmatpush.bf16.msra.mxu0 %v7323
      %7341 = vmatpush.bf16.msra.mxu0 %v7321
      %7342 = vmatpush.bf16.msra.mxu0 %v7319
      %7343 = vmatmul.bf16.gmra.mxu0 %v6969
      %v7344 = vpop.f32.mrf.mxu0
      %v7345 = vadd.f32 %v7291, %v7344
      %v7346 = vpop.f32.mrf.mxu0
      %7347 = vdwg.mxu0
      %7348 = vmatpush.bf16.msra.mxu0 0
      %7349 = vmatpush.bf16.msra.mxu0 0
      %7350 = vmatpush.bf16.msra.mxu0 0
      %7351 = vmatpush.bf16.msra.mxu0 0
      %7352 = vmatpush.bf16.msra.mxu0 %v7326
      %7353 = vmatpush.bf16.msra.mxu0 %v7324
      %7354 = vmatpush.bf16.msra.mxu0 %v7322
      %7355 = vmatpush.bf16.msra.mxu0 %v7320
      %7356 = vmatmul.bf16.gmra.mxu0 %v6969
      %v7357 = vpop.f32.mrf.mxu0
      %v7358 = vadd.f32 %v7292, %v7357
      %v7359 = vpop.f32.mrf.mxu0
      %7360 = vdwg.mxu0
      %v7361 = vtanh.pop %v7345
      %v7362 = vtanh.pop %v7358
      %vm7363 = vcmp.eq.s32.totalorder %v6912, 4
      %v7364 = vsel %vm7363, 1, 0
      %vm7365 = vcmp.eq.s32.totalorder %v7364, 1
      %v7366 = vsel %vm7365, %v7361, 0.0
      %v7367 = vsel %vm7365, %v7362, 0.0
      %v7368 = vadd.f32 %v7277, %v7366
      %v7369 = vadd.f32 %v7278, %v7367
      %s7370 = scalar_lea.vmem %s45, 320
      %v7371 = vld [vmem:[%s7370] sm:$0xff]
      %v7372 = vld [vmem:[%s7370 + $0x8] sm:$0xff]
      %v7373 = vld [vmem:[%s7370 + $0x10] sm:$0xff]
      %v7374 = vld [vmem:[%s7370 + $0x18] sm:$0xff]
      %v7375 = vld [vmem:[%s7370 + $0x20] sm:$0xff]
      %v7376 = vld [vmem:[%s7370 + $0x28] sm:$0xff]
      %v7377 = vld [vmem:[%s7370 + $0x30] sm:$0xff]
      %v7378 = vld [vmem:[%s7370 + $0x38] sm:$0xff]
      %s7379 = scalar_lea.vmem %s47, 10
      %v7380 = vld [vmem:[%s7379] sm:$0x3]
      %v7382 = vperm.slane %v7380, 0
      %v7383 = vperm.slane %v7380, 1
      %v7394 = vunpack.c.l.b16 %v7371
      %v7395 = vunpack.c.h.b16 %v7371
      %v7396 = vunpack.c.l.b16 %v7372
      %v7397 = vunpack.c.h.b16 %v7372
      %v7398 = vunpack.c.l.b16 %v7373
      %v7399 = vunpack.c.h.b16 %v7373
      %v7400 = vunpack.c.l.b16 %v7374
      %v7401 = vunpack.c.h.b16 %v7374
      %v7402 = vunpack.c.l.b16 %v7375
      %v7403 = vunpack.c.h.b16 %v7375
      %v7404 = vunpack.c.l.b16 %v7376
      %v7405 = vunpack.c.h.b16 %v7376
      %v7406 = vunpack.c.l.b16 %v7377
      %v7407 = vunpack.c.h.b16 %v7377
      %v7408 = vunpack.c.l.b16 %v7378
      %v7409 = vunpack.c.h.b16 %v7378
      %v7410 = vpack.c.b16 %v7396, %v7394
      %v7411 = vpack.c.b16 %v7397, %v7395
      %v7412 = vpack.c.b16 %v7400, %v7398
      %v7413 = vpack.c.b16 %v7401, %v7399
      %v7414 = vpack.c.b16 %v7404, %v7402
      %v7415 = vpack.c.b16 %v7405, %v7403
      %v7416 = vpack.c.b16 %v7408, %v7406
      %v7417 = vpack.c.b16 %v7409, %v7407
      %7426 = vmatpush.bf16.msra.mxu0 0
      %7427 = vmatpush.bf16.msra.mxu0 0
      %7428 = vmatpush.bf16.msra.mxu0 0
      %7429 = vmatpush.bf16.msra.mxu0 0
      %7430 = vmatpush.bf16.msra.mxu0 %v7416
      %7431 = vmatpush.bf16.msra.mxu0 %v7414
      %7432 = vmatpush.bf16.msra.mxu0 %v7412
      %7433 = vmatpush.bf16.msra.mxu0 %v7410
      %7434 = vmatmul.bf16.gmra.mxu0 %v6969
      %v7435 = vpop.f32.mrf.mxu0
      %v7436 = vadd.f32 %v7382, %v7435
      %v7437 = vpop.f32.mrf.mxu0
      %7438 = vdwg.mxu0
      %7439 = vmatpush.bf16.msra.mxu0 0
      %7440 = vmatpush.bf16.msra.mxu0 0
      %7441 = vmatpush.bf16.msra.mxu0 0
      %7442 = vmatpush.bf16.msra.mxu0 0
      %7443 = vmatpush.bf16.msra.mxu0 %v7417
      %7444 = vmatpush.bf16.msra.mxu0 %v7415
      %7445 = vmatpush.bf16.msra.mxu0 %v7413
      %7446 = vmatpush.bf16.msra.mxu0 %v7411
      %7447 = vmatmul.bf16.gmra.mxu0 %v6969
      %v7448 = vpop.f32.mrf.mxu0
      %v7449 = vadd.f32 %v7383, %v7448
      %v7450 = vpop.f32.mrf.mxu0
      %7451 = vdwg.mxu0
      %v7452 = vtanh.pop %v7436
      %v7453 = vtanh.pop %v7449
      %vm7454 = vcmp.eq.s32.totalorder %v6912, 5
      %v7455 = vsel %vm7454, 1, 0
      %vm7456 = vcmp.eq.s32.totalorder %v7455, 1
      %v7457 = vsel %vm7456, %v7452, 0.0
      %v7458 = vsel %vm7456, %v7453, 0.0
      %v7459 = vadd.f32 %v7368, %v7457
      %v7460 = vadd.f32 %v7369, %v7458
      %s7461 = scalar_lea.vmem %s45, 384
      %v7462 = vld [vmem:[%s7461] sm:$0xff]
      %v7463 = vld [vmem:[%s7461 + $0x8] sm:$0xff]
      %v7464 = vld [vmem:[%s7461 + $0x10] sm:$0xff]
      %v7465 = vld [vmem:[%s7461 + $0x18] sm:$0xff]
      %v7466 = vld [vmem:[%s7461 + $0x20] sm:$0xff]
      %v7467 = vld [vmem:[%s7461 + $0x28] sm:$0xff]
      %v7468 = vld [vmem:[%s7461 + $0x30] sm:$0xff]
      %v7469 = vld [vmem:[%s7461 + $0x38] sm:$0xff]
      %s7470 = scalar_lea.vmem %s47, 12
      %v7471 = vld [vmem:[%s7470] sm:$0x3]
      %v7473 = vperm.slane %v7471, 0
      %v7474 = vperm.slane %v7471, 1
      %v7485 = vunpack.c.l.b16 %v7462
      %v7486 = vunpack.c.h.b16 %v7462
      %v7487 = vunpack.c.l.b16 %v7463
      %v7488 = vunpack.c.h.b16 %v7463
      %v7489 = vunpack.c.l.b16 %v7464
      %v7490 = vunpack.c.h.b16 %v7464
      %v7491 = vunpack.c.l.b16 %v7465
      %v7492 = vunpack.c.h.b16 %v7465
      %v7493 = vunpack.c.l.b16 %v7466
      %v7494 = vunpack.c.h.b16 %v7466
      %v7495 = vunpack.c.l.b16 %v7467
      %v7496 = vunpack.c.h.b16 %v7467
      %v7497 = vunpack.c.l.b16 %v7468
      %v7498 = vunpack.c.h.b16 %v7468
      %v7499 = vunpack.c.l.b16 %v7469
      %v7500 = vunpack.c.h.b16 %v7469
      %v7501 = vpack.c.b16 %v7487, %v7485
      %v7502 = vpack.c.b16 %v7488, %v7486
      %v7503 = vpack.c.b16 %v7491, %v7489
      %v7504 = vpack.c.b16 %v7492, %v7490
      %v7505 = vpack.c.b16 %v7495, %v7493
      %v7506 = vpack.c.b16 %v7496, %v7494
      %v7507 = vpack.c.b16 %v7499, %v7497
      %v7508 = vpack.c.b16 %v7500, %v7498
      %7517 = vmatpush.bf16.msra.mxu0 0
      %7518 = vmatpush.bf16.msra.mxu0 0
      %7519 = vmatpush.bf16.msra.mxu0 0
      %7520 = vmatpush.bf16.msra.mxu0 0
      %7521 = vmatpush.bf16.msra.mxu0 %v7507
      %7522 = vmatpush.bf16.msra.mxu0 %v7505
      %7523 = vmatpush.bf16.msra.mxu0 %v7503
      %7524 = vmatpush.bf16.msra.mxu0 %v7501
      %7525 = vmatmul.bf16.gmra.mxu0 %v6969
      %v7526 = vpop.f32.mrf.mxu0
      %v7527 = vadd.f32 %v7473, %v7526
      %v7528 = vpop.f32.mrf.mxu0
      %7529 = vdwg.mxu0
      %7530 = vmatpush.bf16.msra.mxu0 0
      %7531 = vmatpush.bf16.msra.mxu0 0
      %7532 = vmatpush.bf16.msra.mxu0 0
      %7533 = vmatpush.bf16.msra.mxu0 0
      %7534 = vmatpush.bf16.msra.mxu0 %v7508
      %7535 = vmatpush.bf16.msra.mxu0 %v7506
      %7536 = vmatpush.bf16.msra.mxu0 %v7504
      %7537 = vmatpush.bf16.msra.mxu0 %v7502
      %7538 = vmatmul.bf16.gmra.mxu0 %v6969
      %v7539 = vpop.f32.mrf.mxu0
      %v7540 = vadd.f32 %v7474, %v7539
      %v7541 = vpop.f32.mrf.mxu0
      %7542 = vdwg.mxu0
      %v7543 = vtanh.pop %v7527
      %v7544 = vtanh.pop %v7540
      %vm7545 = vcmp.eq.s32.totalorder %v6912, 6
      %v7546 = vsel %vm7545, 1, 0
      %vm7547 = vcmp.eq.s32.totalorder %v7546, 1
      %v7548 = vsel %vm7547, %v7543, 0.0
      %v7549 = vsel %vm7547, %v7544, 0.0
      %v7550 = vadd.f32 %v7459, %v7548
      %v7551 = vadd.f32 %v7460, %v7549
      %s7552 = scalar_lea.vmem %s45, 448
      %v7553 = vld [vmem:[%s7552] sm:$0xff]
      %v7554 = vld [vmem:[%s7552 + $0x8] sm:$0xff]
      %v7555 = vld [vmem:[%s7552 + $0x10] sm:$0xff]
      %v7556 = vld [vmem:[%s7552 + $0x18] sm:$0xff]
      %v7557 = vld [vmem:[%s7552 + $0x20] sm:$0xff]
      %v7558 = vld [vmem:[%s7552 + $0x28] sm:$0xff]
      %v7559 = vld [vmem:[%s7552 + $0x30] sm:$0xff]
      %v7560 = vld [vmem:[%s7552 + $0x38] sm:$0xff]
      %s7561 = scalar_lea.vmem %s47, 14
      %v7562 = vld [vmem:[%s7561] sm:$0x3]
      %v7564 = vperm.slane %v7562, 0
      %v7565 = vperm.slane %v7562, 1
      %v7576 = vunpack.c.l.b16 %v7553
      %v7577 = vunpack.c.h.b16 %v7553
      %v7578 = vunpack.c.l.b16 %v7554
      %v7579 = vunpack.c.h.b16 %v7554
      %v7580 = vunpack.c.l.b16 %v7555
      %v7581 = vunpack.c.h.b16 %v7555
      %v7582 = vunpack.c.l.b16 %v7556
      %v7583 = vunpack.c.h.b16 %v7556
      %v7584 = vunpack.c.l.b16 %v7557
      %v7585 = vunpack.c.h.b16 %v7557
      %v7586 = vunpack.c.l.b16 %v7558
      %v7587 = vunpack.c.h.b16 %v7558
      %v7588 = vunpack.c.l.b16 %v7559
      %v7589 = vunpack.c.h.b16 %v7559
      %v7590 = vunpack.c.l.b16 %v7560
      %v7591 = vunpack.c.h.b16 %v7560
      %v7592 = vpack.c.b16 %v7578, %v7576
      %v7593 = vpack.c.b16 %v7579, %v7577
      %v7594 = vpack.c.b16 %v7582, %v7580
      %v7595 = vpack.c.b16 %v7583, %v7581
      %v7596 = vpack.c.b16 %v7586, %v7584
      %v7597 = vpack.c.b16 %v7587, %v7585
      %v7598 = vpack.c.b16 %v7590, %v7588
      %v7599 = vpack.c.b16 %v7591, %v7589
      %7608 = vmatpush.bf16.msra.mxu0 0
      %7609 = vmatpush.bf16.msra.mxu0 0
      %7610 = vmatpush.bf16.msra.mxu0 0
      %7611 = vmatpush.bf16.msra.mxu0 0
      %7612 = vmatpush.bf16.msra.mxu0 %v7598
      %7613 = vmatpush.bf16.msra.mxu0 %v7596
      %7614 = vmatpush.bf16.msra.mxu0 %v7594
      %7615 = vmatpush.bf16.msra.mxu0 %v7592
      %7616 = vmatmul.bf16.gmra.mxu0 %v6969
      %v7617 = vpop.f32.mrf.mxu0
      %v7618 = vadd.f32 %v7564, %v7617
      %v7619 = vpop.f32.mrf.mxu0
      %7620 = vdwg.mxu0
      %7621 = vmatpush.bf16.msra.mxu0 0
      %7622 = vmatpush.bf16.msra.mxu0 0
      %7623 = vmatpush.bf16.msra.mxu0 0
      %7624 = vmatpush.bf16.msra.mxu0 0
      %7625 = vmatpush.bf16.msra.mxu0 %v7599
      %7626 = vmatpush.bf16.msra.mxu0 %v7597
      %7627 = vmatpush.bf16.msra.mxu0 %v7595
      %7628 = vmatpush.bf16.msra.mxu0 %v7593
      %7629 = vmatmul.bf16.gmra.mxu0 %v6969
      %v7630 = vpop.f32.mrf.mxu0
      %v7631 = vadd.f32 %v7565, %v7630
      %v7632 = vpop.f32.mrf.mxu0
      %7633 = vdwg.mxu0
      %v7634 = vtanh.pop %v7618
      %v7635 = vtanh.pop %v7631
      %vm7636 = vcmp.eq.s32.totalorder %v6912, 7
      %v7637 = vsel %vm7636, 1, 0
      %vm7638 = vcmp.eq.s32.totalorder %v7637, 1
      %v7639 = vsel %vm7638, %v7634, 0.0
      %v7640 = vsel %vm7638, %v7635, 0.0
      %v7641 = vadd.f32 %v7550, %v7639
      %v7642 = vadd.f32 %v7551, %v7640
      %v7643 = vld [vmem:[%s49] sm:$0xf]
      %v7644 = vld [vmem:[%s49 + $0x4] sm:$0xf]
      %v7645 = vld [vmem:[%s49 + $0x8] sm:$0xf]
      %v7646 = vld [vmem:[%s49 + $0xc] sm:$0xf]
      %v7647 = vld [vmem:[%s49 + $0x10] sm:$0xf]
      %v7648 = vld [vmem:[%s49 + $0x14] sm:$0xf]
      %v7649 = vld [vmem:[%s49 + $0x18] sm:$0xf]
      %v7650 = vld [vmem:[%s49 + $0x1c] sm:$0xf]
      %v7651 = vpack.c.bf16 %v6462, %v6462
      %s7652 = scalar_lea.vmem %s9, 15
      %v7653 = vld [vmem:[%s7652] sm:$0x1]
      %v7655 = vperm.slane %v7653, 0
      %v7665 = vunpack.c.l.b16 %v7643
      %v7666 = vunpack.c.l.b16 %v7644
      %v7667 = vunpack.c.l.b16 %v7645
      %v7668 = vunpack.c.l.b16 %v7646
      %v7669 = vunpack.c.l.b16 %v7647
      %v7670 = vunpack.c.l.b16 %v7648
      %v7671 = vunpack.c.l.b16 %v7649
      %v7672 = vunpack.c.l.b16 %v7650
      %v7673 = vpack.c.b16 %v7666, %v7665
      %v7674 = vpack.c.b16 %v7668, %v7667
      %v7675 = vpack.c.b16 %v7670, %v7669
      %v7676 = vpack.c.b16 %v7672, %v7671
      %v7682 = vsel %vm1035, %v7651, 0
      %7684 = vmatpush.bf16.msra.mxu0 0
      %7685 = vmatpush.bf16.msra.mxu0 0
      %7686 = vmatpush.bf16.msra.mxu0 0
      %7687 = vmatpush.bf16.msra.mxu0 0
      %7688 = vmatpush.bf16.msra.mxu0 %v7676
      %7689 = vmatpush.bf16.msra.mxu0 %v7675
      %7690 = vmatpush.bf16.msra.mxu0 %v7674
      %7691 = vmatpush.bf16.msra.mxu0 %v7673
      %7692 = vmatmul.bf16.gmra.mxu0 %v7682
      %v7693 = vpop.f32.mrf.mxu0
      %v7694 = vadd.f32 %v7655, %v7693
      %v7695 = vpop.f32.mrf.mxu0
      %7696 = vdwg.mxu0
      %v7697 = vld [vmem:[%s51] sm:$0xf]
      %v7698 = vld [vmem:[%s51 + $0x4] sm:$0xf]
      %v7699 = vld [vmem:[%s51 + $0x8] sm:$0xf]
      %v7700 = vld [vmem:[%s51 + $0xc] sm:$0xf]
      %v7701 = vld [vmem:[%s51 + $0x10] sm:$0xf]
      %v7702 = vld [vmem:[%s51 + $0x14] sm:$0xf]
      %v7703 = vld [vmem:[%s51 + $0x18] sm:$0xf]
      %v7704 = vld [vmem:[%s51 + $0x1c] sm:$0xf]
      %v7705 = vpack.c.bf16 %v7694, %v7694
      %v7706 = vld [vmem:[%s53] sm:$0xf]
      %v7707 = vld [vmem:[%s53 + $0x4] sm:$0xf]
      %v7708 = vld [vmem:[%s53 + $0x8] sm:$0xf]
      %v7709 = vld [vmem:[%s53 + $0xc] sm:$0xf]
      %v7710 = vld [vmem:[%s53 + $0x10] sm:$0xf]
      %v7711 = vld [vmem:[%s53 + $0x14] sm:$0xf]
      %v7712 = vld [vmem:[%s53 + $0x18] sm:$0xf]
      %v7713 = vld [vmem:[%s53 + $0x1c] sm:$0xf]
      %v7714 = vld [vmem:[%s53 + $0x20] sm:$0xf]
      %v7715 = vld [vmem:[%s53 + $0x24] sm:$0xf]
      %v7716 = vld [vmem:[%s53 + $0x28] sm:$0xf]
      %v7717 = vld [vmem:[%s53 + $0x2c] sm:$0xf]
      %v7718 = vld [vmem:[%s53 + $0x30] sm:$0xf]
      %v7719 = vld [vmem:[%s53 + $0x34] sm:$0xf]
      %v7720 = vld [vmem:[%s53 + $0x38] sm:$0xf]
      %v7721 = vld [vmem:[%s53 + $0x3c] sm:$0xf]
      %v7722 = vld [vmem:[%s53 + $0x40] sm:$0xf]
      %v7723 = vld [vmem:[%s53 + $0x44] sm:$0xf]
      %v7724 = vld [vmem:[%s53 + $0x48] sm:$0xf]
      %v7725 = vld [vmem:[%s53 + $0x4c] sm:$0xf]
      %v7726 = vld [vmem:[%s53 + $0x50] sm:$0xf]
      %v7727 = vld [vmem:[%s53 + $0x54] sm:$0xf]
      %v7728 = vld [vmem:[%s53 + $0x58] sm:$0xf]
      %v7729 = vld [vmem:[%s53 + $0x5c] sm:$0xf]
      %v7730 = vpack.c.bf16 %v7641, %v7641
      %v7731 = vpack.c.bf16 %v7642, %v7642
      %v7756 = vunpack.c.l.b16 %v7706
      %v7757 = vunpack.c.l.b16 %v7707
      %v7758 = vunpack.c.l.b16 %v7708
      %v7759 = vunpack.c.l.b16 %v7709
      %v7760 = vunpack.c.l.b16 %v7710
      %v7761 = vunpack.c.l.b16 %v7711
      %v7762 = vunpack.c.l.b16 %v7712
      %v7763 = vunpack.c.l.b16 %v7713
      %v7764 = vunpack.c.l.b16 %v7714
      %v7765 = vunpack.c.l.b16 %v7715
      %v7766 = vunpack.c.l.b16 %v7716
      %v7767 = vunpack.c.l.b16 %v7717
      %v7768 = vunpack.c.l.b16 %v7718
      %v7769 = vunpack.c.l.b16 %v7719
      %v7770 = vunpack.c.l.b16 %v7720
      %v7771 = vunpack.c.l.b16 %v7721
      %v7772 = vunpack.c.l.b16 %v7722
      %v7773 = vunpack.c.l.b16 %v7723
      %v7774 = vunpack.c.l.b16 %v7724
      %v7775 = vunpack.c.l.b16 %v7725
      %v7776 = vunpack.c.l.b16 %v7726
      %v7777 = vunpack.c.l.b16 %v7727
      %v7778 = vunpack.c.l.b16 %v7728
      %v7779 = vunpack.c.l.b16 %v7729
      %v7780 = vpack.c.b16 %v7757, %v7756
      %v7781 = vpack.c.b16 %v7759, %v7758
      %v7782 = vpack.c.b16 %v7761, %v7760
      %v7783 = vpack.c.b16 %v7763, %v7762
      %v7784 = vpack.c.b16 %v7765, %v7764
      %v7785 = vpack.c.b16 %v7767, %v7766
      %v7786 = vpack.c.b16 %v7769, %v7768
      %v7787 = vpack.c.b16 %v7771, %v7770
      %v7788 = vpack.c.b16 %v7773, %v7772
      %v7789 = vpack.c.b16 %v7775, %v7774
      %v7790 = vpack.c.b16 %v7777, %v7776
      %v7791 = vpack.c.b16 %v7779, %v7778
      %v7805 = vsel %vm1035, %v7731, 0
      %7807 = vmatpush.bf16.msra.mxu0 %v7787
      %7808 = vmatpush.bf16.msra.mxu0 %v7786
      %7809 = vmatpush.bf16.msra.mxu0 %v7785
      %7810 = vmatpush.bf16.msra.mxu0 %v7784
      %7811 = vmatpush.bf16.msra.mxu0 %v7783
      %7812 = vmatpush.bf16.msra.mxu0 %v7782
      %7813 = vmatpush.bf16.msra.mxu0 %v7781
      %7814 = vmatpush.bf16.msra.mxu0 %v7780
      %7815 = vmatmul.bf16.gmra.mxu0 %v7730
      %v7816 = vpop.f32.mrf.mxu0
      %v7817 = vadd.f32 0.0, %v7816
      %v7818 = vpop.f32.mrf.mxu0
      %7819 = vdwg.mxu0
      %7820 = vmatpush.bf16.msra.mxu0 0
      %7821 = vmatpush.bf16.msra.mxu0 0
      %7822 = vmatpush.bf16.msra.mxu0 0
      %7823 = vmatpush.bf16.msra.mxu0 0
      %7824 = vmatpush.bf16.msra.mxu0 %v7791
      %7825 = vmatpush.bf16.msra.mxu0 %v7790
      %7826 = vmatpush.bf16.msra.mxu0 %v7789
      %7827 = vmatpush.bf16.msra.mxu0 %v7788
      %7828 = vmatmul.bf16.gmra.mxu0 %v7805
      %v7829 = vpop.f32.mrf.mxu0
      %v7830 = vadd.f32 %v7817, %v7829
      %v7831 = vpop.f32.mrf.mxu0
      %7832 = vdwg.mxu0
      %v7841 = vunpack.c.l.b16 %v7697
      %v7842 = vunpack.c.l.b16 %v7698
      %v7843 = vunpack.c.l.b16 %v7699
      %v7844 = vunpack.c.l.b16 %v7700
      %v7845 = vunpack.c.l.b16 %v7701
      %v7846 = vunpack.c.l.b16 %v7702
      %v7847 = vunpack.c.l.b16 %v7703
      %v7848 = vunpack.c.l.b16 %v7704
      %v7849 = vpack.c.b16 %v7842, %v7841
      %v7850 = vpack.c.b16 %v7844, %v7843
      %v7851 = vpack.c.b16 %v7846, %v7845
      %v7852 = vpack.c.b16 %v7848, %v7847
      %v7858 = vsel %vm1035, %v7705, 0
      %7860 = vmatpush.bf16.msra.mxu0 0
      %7861 = vmatpush.bf16.msra.mxu0 0
      %7862 = vmatpush.bf16.msra.mxu0 0
      %7863 = vmatpush.bf16.msra.mxu0 0
      %7864 = vmatpush.bf16.msra.mxu0 %v7852
      %7865 = vmatpush.bf16.msra.mxu0 %v7851
      %7866 = vmatpush.bf16.msra.mxu0 %v7850
      %7867 = vmatpush.bf16.msra.mxu0 %v7849
      %7868 = vmatmul.bf16.gmra.mxu0 %v7858
      %v7869 = vpop.f32.mrf.mxu0
      %v7870 = vadd.f32 %v7830, %v7869
      %v7871 = vpop.f32.mrf.mxu0
      %7872 = vdwg.mxu0
      %s7873 = scalar_lea.vmem %s9, 16
      %v7874 = vld [vmem:[%s7873] sm:$0x1]
      %v7876 = vperm.slane %v7874, 0
      %v7878 = vadd.f32 %v7870, %v7876
      %v7879 = vsub.f32 0.0, %v7878
      %v7880 = vmul.f32 %v7879, 1.442695
      %v7881 = vpow.pop %v7880
      %v7882 = vadd.f32 %v7881, 1.0
      %v7883 = vrcp.pop %v7882
      %v7884 = vmul.f32 %v7882, %v7883
      %v7885 = vsub.f32 1.0, %v7884
      %v7886 = vmul.f32 %v7883, %v7885
      %v7887 = vadd.f32 %v7883, %v7886
      %vm7888 = vweird.f32 %v7882
      %vm7889 = vweird.f32 %v7883
      %vm7890 = vmor %vm7888, %vm7889
      %v7891 = vsel %vm7890, %v7883, %v7887
      %v7892 = vand.u32 2147483647, %v7882
      %vm7893 = vcmp.eq.f32.partialorder %v7892, 8.507059e+37
      %v7894 = vand.u32 %v7882, 2147483648
      %v7895 = vor.u32 1.1754944e-38, %v7894
      %v7896 = vsel %vm7893, %v7895, %v7891
      %v7897 = vmul.f32 1.0, %v7896
      %v7898 = vld [vmem:[%s55] sm:$0xff]
      %v7899 = vld [vmem:[%s55 + $0x8] sm:$0xff]
      %v7900 = vld [vmem:[%s55 + $0x10] sm:$0xff]
      %v7901 = vld [vmem:[%s55 + $0x18] sm:$0xff]
      %v7902 = vld [vmem:[%s55 + $0x20] sm:$0xff]
      %v7903 = vld [vmem:[%s55 + $0x28] sm:$0xff]
      %v7904 = vld [vmem:[%s55 + $0x30] sm:$0xff]
      %v7905 = vld [vmem:[%s55 + $0x38] sm:$0xff]
      %v7906 = vld [vmem:[%s55 + $0x40] sm:$0xff]
      %v7907 = vld [vmem:[%s55 + $0x48] sm:$0xff]
      %v7908 = vld [vmem:[%s55 + $0x50] sm:$0xff]
      %v7909 = vld [vmem:[%s55 + $0x58] sm:$0xff]
      %v7910 = vld [vmem:[%s55 + $0x60] sm:$0xff]
      %v7911 = vld [vmem:[%s55 + $0x68] sm:$0xff]
      %v7912 = vld [vmem:[%s55 + $0x70] sm:$0xff]
      %v7913 = vld [vmem:[%s55 + $0x78] sm:$0xff]
      %v7914 = vld [vmem:[%s55 + $0x80] sm:$0xff]
      %v7915 = vld [vmem:[%s55 + $0x88] sm:$0xff]
      %v7916 = vld [vmem:[%s55 + $0x90] sm:$0xff]
      %v7917 = vld [vmem:[%s55 + $0x98] sm:$0xff]
      %v7918 = vld [vmem:[%s55 + $0xa0] sm:$0xff]
      %v7919 = vld [vmem:[%s55 + $0xa8] sm:$0xff]
      %v7920 = vld [vmem:[%s55 + $0xb0] sm:$0xff]
      %v7921 = vld [vmem:[%s55 + $0xb8] sm:$0xff]
      %v7922 = vld [vmem:[%s55 + $0xc0] sm:$0xff]
      %v7923 = vld [vmem:[%s55 + $0xc8] sm:$0xff]
      %v7924 = vld [vmem:[%s55 + $0xd0] sm:$0xff]
      %v7925 = vld [vmem:[%s55 + $0xd8] sm:$0xff]
      %v7926 = vld [vmem:[%s55 + $0xe0] sm:$0xff]
      %v7927 = vld [vmem:[%s55 + $0xe8] sm:$0xff]
      %v7928 = vld [vmem:[%s55 + $0xf0] sm:$0xff]
      %v7929 = vld [vmem:[%s55 + $0xf8] sm:$0xff]
      %v7930 = vld [vmem:[%s57] sm:$0xff]
      %v7931 = vld [vmem:[%s57 + $0x8] sm:$0xff]
      %v7932 = vld [vmem:[%s57 + $0x10] sm:$0xff]
      %v7933 = vld [vmem:[%s57 + $0x18] sm:$0xff]
      %v7934 = vld [vmem:[%s57 + $0x20] sm:$0xff]
      %v7935 = vld [vmem:[%s57 + $0x28] sm:$0xff]
      %v7936 = vld [vmem:[%s57 + $0x30] sm:$0xff]
      %v7937 = vld [vmem:[%s57 + $0x38] sm:$0xff]
      %v7938 = vld [vmem:[%s57 + $0x40] sm:$0xff]
      %v7939 = vld [vmem:[%s57 + $0x48] sm:$0xff]
      %v7940 = vld [vmem:[%s57 + $0x50] sm:$0xff]
      %v7941 = vld [vmem:[%s57 + $0x58] sm:$0xff]
      %v7942 = vld [vmem:[%s57 + $0x60] sm:$0xff]
      %v7943 = vld [vmem:[%s57 + $0x68] sm:$0xff]
      %v7944 = vld [vmem:[%s57 + $0x70] sm:$0xff]
      %v7945 = vld [vmem:[%s57 + $0x78] sm:$0xff]
      %v7946 = vld [vmem:[%s57 + $0x80] sm:$0xff]
      %v7947 = vld [vmem:[%s57 + $0x88] sm:$0xff]
      %v7948 = vld [vmem:[%s57 + $0x90] sm:$0xff]
      %v7949 = vld [vmem:[%s57 + $0x98] sm:$0xff]
      %v7950 = vld [vmem:[%s57 + $0xa0] sm:$0xff]
      %v7951 = vld [vmem:[%s57 + $0xa8] sm:$0xff]
      %v7952 = vld [vmem:[%s57 + $0xb0] sm:$0xff]
      %v7953 = vld [vmem:[%s57 + $0xb8] sm:$0xff]
      %v7954 = vld [vmem:[%s57 + $0xc0] sm:$0xff]
      %v7955 = vld [vmem:[%s57 + $0xc8] sm:$0xff]
      %v7956 = vld [vmem:[%s57 + $0xd0] sm:$0xff]
      %v7957 = vld [vmem:[%s57 + $0xd8] sm:$0xff]
      %v7958 = vld [vmem:[%s57 + $0xe0] sm:$0xff]
      %v7959 = vld [vmem:[%s57 + $0xe8] sm:$0xff]
      %v7960 = vld [vmem:[%s57 + $0xf0] sm:$0xff]
      %v7961 = vld [vmem:[%s57 + $0xf8] sm:$0xff]
      %v7962 = vpack.c.bf16 %v7897, %v7897
      %v7995 = vunpack.c.l.b16 %v7930
      %v7996 = vunpack.c.h.b16 %v7930
      %v7997 = vunpack.c.l.b16 %v7931
      %v7998 = vunpack.c.h.b16 %v7931
      %v7999 = vunpack.c.l.b16 %v7932
      %v8000 = vunpack.c.h.b16 %v7932
      %v8001 = vunpack.c.l.b16 %v7933
      %v8002 = vunpack.c.h.b16 %v7933
      %v8003 = vunpack.c.l.b16 %v7934
      %v8004 = vunpack.c.h.b16 %v7934
      %v8005 = vunpack.c.l.b16 %v7935
      %v8006 = vunpack.c.h.b16 %v7935
      %v8007 = vunpack.c.l.b16 %v7936
      %v8008 = vunpack.c.h.b16 %v7936
      %v8009 = vunpack.c.l.b16 %v7937
      %v8010 = vunpack.c.h.b16 %v7937
      %v8011 = vunpack.c.l.b16 %v7938
      %v8012 = vunpack.c.h.b16 %v7938
      %v8013 = vunpack.c.l.b16 %v7939
      %v8014 = vunpack.c.h.b16 %v7939
      %v8015 = vunpack.c.l.b16 %v7940
      %v8016 = vunpack.c.h.b16 %v7940
      %v8017 = vunpack.c.l.b16 %v7941
      %v8018 = vunpack.c.h.b16 %v7941
      %v8019 = vunpack.c.l.b16 %v7942
      %v8020 = vunpack.c.h.b16 %v7942
      %v8021 = vunpack.c.l.b16 %v7943
      %v8022 = vunpack.c.h.b16 %v7943
      %v8023 = vunpack.c.l.b16 %v7944
      %v8024 = vunpack.c.h.b16 %v7944
      %v8025 = vunpack.c.l.b16 %v7945
      %v8026 = vunpack.c.h.b16 %v7945
      %v8027 = vunpack.c.l.b16 %v7946
      %v8028 = vunpack.c.h.b16 %v7946
      %v8029 = vunpack.c.l.b16 %v7947
      %v8030 = vunpack.c.h.b16 %v7947
      %v8031 = vunpack.c.l.b16 %v7948
      %v8032 = vunpack.c.h.b16 %v7948
      %v8033 = vunpack.c.l.b16 %v7949
      %v8034 = vunpack.c.h.b16 %v7949
      %v8035 = vunpack.c.l.b16 %v7950
      %v8036 = vunpack.c.h.b16 %v7950
      %v8037 = vunpack.c.l.b16 %v7951
      %v8038 = vunpack.c.h.b16 %v7951
      %v8039 = vunpack.c.l.b16 %v7952
      %v8040 = vunpack.c.h.b16 %v7952
      %v8041 = vunpack.c.l.b16 %v7953
      %v8042 = vunpack.c.h.b16 %v7953
      %v8043 = vunpack.c.l.b16 %v7954
      %v8044 = vunpack.c.h.b16 %v7954
      %v8045 = vunpack.c.l.b16 %v7955
      %v8046 = vunpack.c.h.b16 %v7955
      %v8047 = vunpack.c.l.b16 %v7956
      %v8048 = vunpack.c.h.b16 %v7956
      %v8049 = vunpack.c.l.b16 %v7957
      %v8050 = vunpack.c.h.b16 %v7957
      %v8051 = vunpack.c.l.b16 %v7958
      %v8052 = vunpack.c.h.b16 %v7958
      %v8053 = vunpack.c.l.b16 %v7959
      %v8054 = vunpack.c.h.b16 %v7959
      %v8055 = vunpack.c.l.b16 %v7960
      %v8056 = vunpack.c.h.b16 %v7960
      %v8057 = vunpack.c.l.b16 %v7961
      %v8058 = vunpack.c.h.b16 %v7961
      %v8059 = vpack.c.b16 %v8003, %v7995
      %v8060 = vpack.c.b16 %v8004, %v7996
      %v8061 = vpack.c.b16 %v8005, %v7997
      %v8062 = vpack.c.b16 %v8006, %v7998
      %v8063 = vpack.c.b16 %v8007, %v7999
      %v8064 = vpack.c.b16 %v8008, %v8000
      %v8065 = vpack.c.b16 %v8009, %v8001
      %v8066 = vpack.c.b16 %v8010, %v8002
      %v8067 = vpack.c.b16 %v8019, %v8011
      %v8068 = vpack.c.b16 %v8020, %v8012
      %v8069 = vpack.c.b16 %v8021, %v8013
      %v8070 = vpack.c.b16 %v8022, %v8014
      %v8071 = vpack.c.b16 %v8023, %v8015
      %v8072 = vpack.c.b16 %v8024, %v8016
      %v8073 = vpack.c.b16 %v8025, %v8017
      %v8074 = vpack.c.b16 %v8026, %v8018
      %v8075 = vpack.c.b16 %v8035, %v8027
      %v8076 = vpack.c.b16 %v8036, %v8028
      %v8077 = vpack.c.b16 %v8037, %v8029
      %v8078 = vpack.c.b16 %v8038, %v8030
      %v8079 = vpack.c.b16 %v8039, %v8031
      %v8080 = vpack.c.b16 %v8040, %v8032
      %v8081 = vpack.c.b16 %v8041, %v8033
      %v8082 = vpack.c.b16 %v8042, %v8034
      %v8083 = vpack.c.b16 %v8051, %v8043
      %v8084 = vpack.c.b16 %v8052, %v8044
      %v8085 = vpack.c.b16 %v8053, %v8045
      %v8086 = vpack.c.b16 %v8054, %v8046
      %v8087 = vpack.c.b16 %v8055, %v8047
      %v8088 = vpack.c.b16 %v8056, %v8048
      %v8089 = vpack.c.b16 %v8057, %v8049
      %v8090 = vpack.c.b16 %v8058, %v8050
      %v8124 = vsel %vm1035, %v7962, 0
      %8126 = vmatpush.bf16.msra.mxu0 0
      %8127 = vmatpush.bf16.msra.mxu0 0
      %8128 = vmatpush.bf16.msra.mxu0 0
      %8129 = vmatpush.bf16.msra.mxu0 0
      %8130 = vmatpush.bf16.msra.mxu0 %v8083
      %8131 = vmatpush.bf16.msra.mxu0 %v8075
      %8132 = vmatpush.bf16.msra.mxu0 %v8067
      %8133 = vmatpush.bf16.msra.mxu0 %v8059
      %8134 = vmatmul.bf16.gmra.mxu0 %v8124
      %v8135 = vpop.f32.mrf.mxu0
      %v8136 = vadd.f32 0.0, %v8135
      %v8137 = vpop.f32.mrf.mxu0
      %8138 = vdwg.mxu0
      %8139 = vmatpush.bf16.msra.mxu0 0
      %8140 = vmatpush.bf16.msra.mxu0 0
      %8141 = vmatpush.bf16.msra.mxu0 0
      %8142 = vmatpush.bf16.msra.mxu0 0
      %8143 = vmatpush.bf16.msra.mxu0 %v8084
      %8144 = vmatpush.bf16.msra.mxu0 %v8076
      %8145 = vmatpush.bf16.msra.mxu0 %v8068
      %8146 = vmatpush.bf16.msra.mxu0 %v8060
      %8147 = vmatmul.bf16.gmra.mxu0 %v8124
      %v8148 = vpop.f32.mrf.mxu0
      %v8149 = vadd.f32 0.0, %v8148
      %v8150 = vpop.f32.mrf.mxu0
      %8151 = vdwg.mxu0
      %8152 = vmatpush.bf16.msra.mxu0 0
      %8153 = vmatpush.bf16.msra.mxu0 0
      %8154 = vmatpush.bf16.msra.mxu0 0
      %8155 = vmatpush.bf16.msra.mxu0 0
      %8156 = vmatpush.bf16.msra.mxu0 %v8085
      %8157 = vmatpush.bf16.msra.mxu0 %v8077
      %8158 = vmatpush.bf16.msra.mxu0 %v8069
      %8159 = vmatpush.bf16.msra.mxu0 %v8061
      %8160 = vmatmul.bf16.gmra.mxu0 %v8124
      %v8161 = vpop.f32.mrf.mxu0
      %v8162 = vadd.f32 0.0, %v8161
      %v8163 = vpop.f32.mrf.mxu0
      %8164 = vdwg.mxu0
      %8165 = vmatpush.bf16.msra.mxu0 0
      %8166 = vmatpush.bf16.msra.mxu0 0
      %8167 = vmatpush.bf16.msra.mxu0 0
      %8168 = vmatpush.bf16.msra.mxu0 0
      %8169 = vmatpush.bf16.msra.mxu0 %v8086
      %8170 = vmatpush.bf16.msra.mxu0 %v8078
      %8171 = vmatpush.bf16.msra.mxu0 %v8070
      %8172 = vmatpush.bf16.msra.mxu0 %v8062
      %8173 = vmatmul.bf16.gmra.mxu0 %v8124
      %v8174 = vpop.f32.mrf.mxu0
      %v8175 = vadd.f32 0.0, %v8174
      %v8176 = vpop.f32.mrf.mxu0
      %8177 = vdwg.mxu0
      %8178 = vmatpush.bf16.msra.mxu0 0
      %8179 = vmatpush.bf16.msra.mxu0 0
      %8180 = vmatpush.bf16.msra.mxu0 0
      %8181 = vmatpush.bf16.msra.mxu0 0
      %8182 = vmatpush.bf16.msra.mxu0 %v8087
      %8183 = vmatpush.bf16.msra.mxu0 %v8079
      %8184 = vmatpush.bf16.msra.mxu0 %v8071
      %8185 = vmatpush.bf16.msra.mxu0 %v8063
      %8186 = vmatmul.bf16.gmra.mxu0 %v8124
      %v8187 = vpop.f32.mrf.mxu0
      %v8188 = vadd.f32 0.0, %v8187
      %v8189 = vpop.f32.mrf.mxu0
      %8190 = vdwg.mxu0
      %8191 = vmatpush.bf16.msra.mxu0 0
      %8192 = vmatpush.bf16.msra.mxu0 0
      %8193 = vmatpush.bf16.msra.mxu0 0
      %8194 = vmatpush.bf16.msra.mxu0 0
      %8195 = vmatpush.bf16.msra.mxu0 %v8088
      %8196 = vmatpush.bf16.msra.mxu0 %v8080
      %8197 = vmatpush.bf16.msra.mxu0 %v8072
      %8198 = vmatpush.bf16.msra.mxu0 %v8064
      %8199 = vmatmul.bf16.gmra.mxu0 %v8124
      %v8200 = vpop.f32.mrf.mxu0
      %v8201 = vadd.f32 0.0, %v8200
      %v8202 = vpop.f32.mrf.mxu0
      %8203 = vdwg.mxu0
      %8204 = vmatpush.bf16.msra.mxu0 0
      %8205 = vmatpush.bf16.msra.mxu0 0
      %8206 = vmatpush.bf16.msra.mxu0 0
      %8207 = vmatpush.bf16.msra.mxu0 0
      %8208 = vmatpush.bf16.msra.mxu0 %v8089
      %8209 = vmatpush.bf16.msra.mxu0 %v8081
      %8210 = vmatpush.bf16.msra.mxu0 %v8073
      %8211 = vmatpush.bf16.msra.mxu0 %v8065
      %8212 = vmatmul.bf16.gmra.mxu0 %v8124
      %v8213 = vpop.f32.mrf.mxu0
      %v8214 = vadd.f32 0.0, %v8213
      %v8215 = vpop.f32.mrf.mxu0
      %8216 = vdwg.mxu0
      %8217 = vmatpush.bf16.msra.mxu0 0
      %8218 = vmatpush.bf16.msra.mxu0 0
      %8219 = vmatpush.bf16.msra.mxu0 0
      %8220 = vmatpush.bf16.msra.mxu0 0
      %8221 = vmatpush.bf16.msra.mxu0 %v8090
      %8222 = vmatpush.bf16.msra.mxu0 %v8082
      %8223 = vmatpush.bf16.msra.mxu0 %v8074
      %8224 = vmatpush.bf16.msra.mxu0 %v8066
      %8225 = vmatmul.bf16.gmra.mxu0 %v8124
      %v8226 = vpop.f32.mrf.mxu0
      %v8227 = vadd.f32 0.0, %v8226
      %v8228 = vpop.f32.mrf.mxu0
      %8229 = vdwg.mxu0
      %v8262 = vunpack.c.l.b16 %v7898
      %v8263 = vunpack.c.h.b16 %v7898
      %v8264 = vunpack.c.l.b16 %v7899
      %v8265 = vunpack.c.h.b16 %v7899
      %v8266 = vunpack.c.l.b16 %v7900
      %v8267 = vunpack.c.h.b16 %v7900
      %v8268 = vunpack.c.l.b16 %v7901
      %v8269 = vunpack.c.h.b16 %v7901
      %v8270 = vunpack.c.l.b16 %v7902
      %v8271 = vunpack.c.h.b16 %v7902
      %v8272 = vunpack.c.l.b16 %v7903
      %v8273 = vunpack.c.h.b16 %v7903
      %v8274 = vunpack.c.l.b16 %v7904
      %v8275 = vunpack.c.h.b16 %v7904
      %v8276 = vunpack.c.l.b16 %v7905
      %v8277 = vunpack.c.h.b16 %v7905
      %v8278 = vunpack.c.l.b16 %v7906
      %v8279 = vunpack.c.h.b16 %v7906
      %v8280 = vunpack.c.l.b16 %v7907
      %v8281 = vunpack.c.h.b16 %v7907
      %v8282 = vunpack.c.l.b16 %v7908
      %v8283 = vunpack.c.h.b16 %v7908
      %v8284 = vunpack.c.l.b16 %v7909
      %v8285 = vunpack.c.h.b16 %v7909
      %v8286 = vunpack.c.l.b16 %v7910
      %v8287 = vunpack.c.h.b16 %v7910
      %v8288 = vunpack.c.l.b16 %v7911
      %v8289 = vunpack.c.h.b16 %v7911
      %v8290 = vunpack.c.l.b16 %v7912
      %v8291 = vunpack.c.h.b16 %v7912
      %v8292 = vunpack.c.l.b16 %v7913
      %v8293 = vunpack.c.h.b16 %v7913
      %v8294 = vunpack.c.l.b16 %v7914
      %v8295 = vunpack.c.h.b16 %v7914
      %v8296 = vunpack.c.l.b16 %v7915
      %v8297 = vunpack.c.h.b16 %v7915
      %v8298 = vunpack.c.l.b16 %v7916
      %v8299 = vunpack.c.h.b16 %v7916
      %v8300 = vunpack.c.l.b16 %v7917
      %v8301 = vunpack.c.h.b16 %v7917
      %v8302 = vunpack.c.l.b16 %v7918
      %v8303 = vunpack.c.h.b16 %v7918
      %v8304 = vunpack.c.l.b16 %v7919
      %v8305 = vunpack.c.h.b16 %v7919
      %v8306 = vunpack.c.l.b16 %v7920
      %v8307 = vunpack.c.h.b16 %v7920
      %v8308 = vunpack.c.l.b16 %v7921
      %v8309 = vunpack.c.h.b16 %v7921
      %v8310 = vunpack.c.l.b16 %v7922
      %v8311 = vunpack.c.h.b16 %v7922
      %v8312 = vunpack.c.l.b16 %v7923
      %v8313 = vunpack.c.h.b16 %v7923
      %v8314 = vunpack.c.l.b16 %v7924
      %v8315 = vunpack.c.h.b16 %v7924
      %v8316 = vunpack.c.l.b16 %v7925
      %v8317 = vunpack.c.h.b16 %v7925
      %v8318 = vunpack.c.l.b16 %v7926
      %v8319 = vunpack.c.h.b16 %v7926
      %v8320 = vunpack.c.l.b16 %v7927
      %v8321 = vunpack.c.h.b16 %v7927
      %v8322 = vunpack.c.l.b16 %v7928
      %v8323 = vunpack.c.h.b16 %v7928
      %v8324 = vunpack.c.l.b16 %v7929
      %v8325 = vunpack.c.h.b16 %v7929
      %v8326 = vpack.c.b16 %v8270, %v8262
      %v8327 = vpack.c.b16 %v8271, %v8263
      %v8328 = vpack.c.b16 %v8272, %v8264
      %v8329 = vpack.c.b16 %v8273, %v8265
      %v8330 = vpack.c.b16 %v8274, %v8266
      %v8331 = vpack.c.b16 %v8275, %v8267
      %v8332 = vpack.c.b16 %v8276, %v8268
      %v8333 = vpack.c.b16 %v8277, %v8269
      %v8334 = vpack.c.b16 %v8286, %v8278
      %v8335 = vpack.c.b16 %v8287, %v8279
      %v8336 = vpack.c.b16 %v8288, %v8280
      %v8337 = vpack.c.b16 %v8289, %v8281
      %v8338 = vpack.c.b16 %v8290, %v8282
      %v8339 = vpack.c.b16 %v8291, %v8283
      %v8340 = vpack.c.b16 %v8292, %v8284
      %v8341 = vpack.c.b16 %v8293, %v8285
      %v8342 = vpack.c.b16 %v8302, %v8294
      %v8343 = vpack.c.b16 %v8303, %v8295
      %v8344 = vpack.c.b16 %v8304, %v8296
      %v8345 = vpack.c.b16 %v8305, %v8297
      %v8346 = vpack.c.b16 %v8306, %v8298
      %v8347 = vpack.c.b16 %v8307, %v8299
      %v8348 = vpack.c.b16 %v8308, %v8300
      %v8349 = vpack.c.b16 %v8309, %v8301
      %v8350 = vpack.c.b16 %v8318, %v8310
      %v8351 = vpack.c.b16 %v8319, %v8311
      %v8352 = vpack.c.b16 %v8320, %v8312
      %v8353 = vpack.c.b16 %v8321, %v8313
      %v8354 = vpack.c.b16 %v8322, %v8314
      %v8355 = vpack.c.b16 %v8323, %v8315
      %v8356 = vpack.c.b16 %v8324, %v8316
      %v8357 = vpack.c.b16 %v8325, %v8317
      %8390 = vmatpush.bf16.msra.mxu0 0
      %8391 = vmatpush.bf16.msra.mxu0 0
      %8392 = vmatpush.bf16.msra.mxu0 0
      %8393 = vmatpush.bf16.msra.mxu0 0
      %8394 = vmatpush.bf16.msra.mxu0 %v8350
      %8395 = vmatpush.bf16.msra.mxu0 %v8342
      %8396 = vmatpush.bf16.msra.mxu0 %v8334
      %8397 = vmatpush.bf16.msra.mxu0 %v8326
      %8398 = vmatmul.bf16.gmra.mxu0 %v5023
      %v8399 = vpop.f32.mrf.mxu0
      %v8400 = vadd.f32 %v8136, %v8399
      %v8401 = vpop.f32.mrf.mxu0
      %8402 = vdwg.mxu0
      %8403 = vmatpush.bf16.msra.mxu0 0
      %8404 = vmatpush.bf16.msra.mxu0 0
      %8405 = vmatpush.bf16.msra.mxu0 0
      %8406 = vmatpush.bf16.msra.mxu0 0
      %8407 = vmatpush.bf16.msra.mxu0 %v8351
      %8408 = vmatpush.bf16.msra.mxu0 %v8343
      %8409 = vmatpush.bf16.msra.mxu0 %v8335
      %8410 = vmatpush.bf16.msra.mxu0 %v8327
      %8411 = vmatmul.bf16.gmra.mxu0 %v5023
      %v8412 = vpop.f32.mrf.mxu0
      %v8413 = vadd.f32 %v8149, %v8412
      %v8414 = vpop.f32.mrf.mxu0
      %8415 = vdwg.mxu0
      %8416 = vmatpush.bf16.msra.mxu0 0
      %8417 = vmatpush.bf16.msra.mxu0 0
      %8418 = vmatpush.bf16.msra.mxu0 0
      %8419 = vmatpush.bf16.msra.mxu0 0
      %8420 = vmatpush.bf16.msra.mxu0 %v8352
      %8421 = vmatpush.bf16.msra.mxu0 %v8344
      %8422 = vmatpush.bf16.msra.mxu0 %v8336
      %8423 = vmatpush.bf16.msra.mxu0 %v8328
      %8424 = vmatmul.bf16.gmra.mxu0 %v5023
      %v8425 = vpop.f32.mrf.mxu0
      %v8426 = vadd.f32 %v8162, %v8425
      %v8427 = vpop.f32.mrf.mxu0
      %8428 = vdwg.mxu0
      %8429 = vmatpush.bf16.msra.mxu0 0
      %8430 = vmatpush.bf16.msra.mxu0 0
      %8431 = vmatpush.bf16.msra.mxu0 0
      %8432 = vmatpush.bf16.msra.mxu0 0
      %8433 = vmatpush.bf16.msra.mxu0 %v8353
      %8434 = vmatpush.bf16.msra.mxu0 %v8345
      %8435 = vmatpush.bf16.msra.mxu0 %v8337
      %8436 = vmatpush.bf16.msra.mxu0 %v8329
      %8437 = vmatmul.bf16.gmra.mxu0 %v5023
      %v8438 = vpop.f32.mrf.mxu0
      %v8439 = vadd.f32 %v8175, %v8438
      %v8440 = vpop.f32.mrf.mxu0
      %8441 = vdwg.mxu0
      %8442 = vmatpush.bf16.msra.mxu0 0
      %8443 = vmatpush.bf16.msra.mxu0 0
      %8444 = vmatpush.bf16.msra.mxu0 0
      %8445 = vmatpush.bf16.msra.mxu0 0
      %8446 = vmatpush.bf16.msra.mxu0 %v8354
      %8447 = vmatpush.bf16.msra.mxu0 %v8346
      %8448 = vmatpush.bf16.msra.mxu0 %v8338
      %8449 = vmatpush.bf16.msra.mxu0 %v8330
      %8450 = vmatmul.bf16.gmra.mxu0 %v5023
      %v8451 = vpop.f32.mrf.mxu0
      %v8452 = vadd.f32 %v8188, %v8451
      %v8453 = vpop.f32.mrf.mxu0
      %8454 = vdwg.mxu0
      %8455 = vmatpush.bf16.msra.mxu0 0
      %8456 = vmatpush.bf16.msra.mxu0 0
      %8457 = vmatpush.bf16.msra.mxu0 0
      %8458 = vmatpush.bf16.msra.mxu0 0
      %8459 = vmatpush.bf16.msra.mxu0 %v8355
      %8460 = vmatpush.bf16.msra.mxu0 %v8347
      %8461 = vmatpush.bf16.msra.mxu0 %v8339
      %8462 = vmatpush.bf16.msra.mxu0 %v8331
      %8463 = vmatmul.bf16.gmra.mxu0 %v5023
      %v8464 = vpop.f32.mrf.mxu0
      %v8465 = vadd.f32 %v8201, %v8464
      %v8466 = vpop.f32.mrf.mxu0
      %8467 = vdwg.mxu0
      %8468 = vmatpush.bf16.msra.mxu0 0
      %8469 = vmatpush.bf16.msra.mxu0 0
      %8470 = vmatpush.bf16.msra.mxu0 0
      %8471 = vmatpush.bf16.msra.mxu0 0
      %8472 = vmatpush.bf16.msra.mxu0 %v8356
      %8473 = vmatpush.bf16.msra.mxu0 %v8348
      %8474 = vmatpush.bf16.msra.mxu0 %v8340
      %8475 = vmatpush.bf16.msra.mxu0 %v8332
      %8476 = vmatmul.bf16.gmra.mxu0 %v5023
      %v8477 = vpop.f32.mrf.mxu0
      %v8478 = vadd.f32 %v8214, %v8477
      %v8479 = vpop.f32.mrf.mxu0
      %8480 = vdwg.mxu0
      %8481 = vmatpush.bf16.msra.mxu0 0
      %8482 = vmatpush.bf16.msra.mxu0 0
      %8483 = vmatpush.bf16.msra.mxu0 0
      %8484 = vmatpush.bf16.msra.mxu0 0
      %8485 = vmatpush.bf16.msra.mxu0 %v8357
      %8486 = vmatpush.bf16.msra.mxu0 %v8349
      %8487 = vmatpush.bf16.msra.mxu0 %v8341
      %8488 = vmatpush.bf16.msra.mxu0 %v8333
      %8489 = vmatmul.bf16.gmra.mxu0 %v5023
      %v8490 = vpop.f32.mrf.mxu0
      %v8491 = vadd.f32 %v8227, %v8490
      %v8492 = vpop.f32.mrf.mxu0
      %8493 = vdwg.mxu0
      %v8494 = vld [vmem:[%s59] sm:$0xff]
      %v8496 = vperm.slane %v8494, 0
      %v8497 = vperm.slane %v8494, 1
      %v8498 = vperm.slane %v8494, 2
      %v8499 = vperm.slane %v8494, 3
      %v8500 = vperm.slane %v8494, 4
      %v8501 = vperm.slane %v8494, 5
      %v8502 = vperm.slane %v8494, 6
      %v8503 = vperm.slane %v8494, 7
      %v8512 = vadd.f32 %v8400, %v8496
      %v8513 = vadd.f32 %v8413, %v8497
      %v8514 = vadd.f32 %v8426, %v8498
      %v8515 = vadd.f32 %v8439, %v8499
      %v8516 = vadd.f32 %v8452, %v8500
      %v8517 = vadd.f32 %v8465, %v8501
      %v8518 = vadd.f32 %v8478, %v8502
      %v8519 = vadd.f32 %v8491, %v8503
      %v8520 = vmax.f32 %v8512, 0.0
      %v8521 = vmax.f32 %v8513, 0.0
      %v8522 = vmax.f32 %v8514, 0.0
      %v8523 = vmax.f32 %v8515, 0.0
      %v8524 = vmax.f32 %v8516, 0.0
      %v8525 = vmax.f32 %v8517, 0.0
      %v8526 = vmax.f32 %v8518, 0.0
      %v8527 = vmax.f32 %v8519, 0.0
      %v8528 = vld [vmem:[%s61] sm:$0xf]
      %v8529 = vld [vmem:[%s61 + $0x4] sm:$0xf]
      %v8530 = vld [vmem:[%s61 + $0x8] sm:$0xf]
      %v8531 = vld [vmem:[%s61 + $0xc] sm:$0xf]
      %v8532 = vld [vmem:[%s61 + $0x10] sm:$0xf]
      %v8533 = vld [vmem:[%s61 + $0x14] sm:$0xf]
      %v8534 = vld [vmem:[%s61 + $0x18] sm:$0xf]
      %v8535 = vld [vmem:[%s61 + $0x1c] sm:$0xf]
      %v8536 = vld [vmem:[%s61 + $0x20] sm:$0xf]
      %v8537 = vld [vmem:[%s61 + $0x24] sm:$0xf]
      %v8538 = vld [vmem:[%s61 + $0x28] sm:$0xf]
      %v8539 = vld [vmem:[%s61 + $0x2c] sm:$0xf]
      %v8540 = vld [vmem:[%s61 + $0x30] sm:$0xf]
      %v8541 = vld [vmem:[%s61 + $0x34] sm:$0xf]
      %v8542 = vld [vmem:[%s61 + $0x38] sm:$0xf]
      %v8543 = vld [vmem:[%s61 + $0x3c] sm:$0xf]
      %v8544 = vld [vmem:[%s61 + $0x40] sm:$0xf]
      %v8545 = vld [vmem:[%s61 + $0x44] sm:$0xf]
      %v8546 = vld [vmem:[%s61 + $0x48] sm:$0xf]
      %v8547 = vld [vmem:[%s61 + $0x4c] sm:$0xf]
      %v8548 = vld [vmem:[%s61 + $0x50] sm:$0xf]
      %v8549 = vld [vmem:[%s61 + $0x54] sm:$0xf]
      %v8550 = vld [vmem:[%s61 + $0x58] sm:$0xf]
      %v8551 = vld [vmem:[%s61 + $0x5c] sm:$0xf]
      %v8552 = vld [vmem:[%s61 + $0x60] sm:$0xf]
      %v8553 = vld [vmem:[%s61 + $0x64] sm:$0xf]
      %v8554 = vld [vmem:[%s61 + $0x68] sm:$0xf]
      %v8555 = vld [vmem:[%s61 + $0x6c] sm:$0xf]
      %v8556 = vld [vmem:[%s61 + $0x70] sm:$0xf]
      %v8557 = vld [vmem:[%s61 + $0x74] sm:$0xf]
      %v8558 = vld [vmem:[%s61 + $0x78] sm:$0xf]
      %v8559 = vld [vmem:[%s61 + $0x7c] sm:$0xf]
      %v8560 = vld [vmem:[%s61 + $0x80] sm:$0xf]
      %v8561 = vld [vmem:[%s61 + $0x84] sm:$0xf]
      %v8562 = vld [vmem:[%s61 + $0x88] sm:$0xf]
      %v8563 = vld [vmem:[%s61 + $0x8c] sm:$0xf]
      %v8564 = vld [vmem:[%s61 + $0x90] sm:$0xf]
      %v8565 = vld [vmem:[%s61 + $0x94] sm:$0xf]
      %v8566 = vld [vmem:[%s61 + $0x98] sm:$0xf]
      %v8567 = vld [vmem:[%s61 + $0x9c] sm:$0xf]
      %v8568 = vld [vmem:[%s61 + $0xa0] sm:$0xf]
      %v8569 = vld [vmem:[%s61 + $0xa4] sm:$0xf]
      %v8570 = vld [vmem:[%s61 + $0xa8] sm:$0xf]
      %v8571 = vld [vmem:[%s61 + $0xac] sm:$0xf]
      %v8572 = vld [vmem:[%s61 + $0xb0] sm:$0xf]
      %v8573 = vld [vmem:[%s61 + $0xb4] sm:$0xf]
      %v8574 = vld [vmem:[%s61 + $0xb8] sm:$0xf]
      %v8575 = vld [vmem:[%s61 + $0xbc] sm:$0xf]
      %v8576 = vld [vmem:[%s61 + $0xc0] sm:$0xf]
      %v8577 = vld [vmem:[%s61 + $0xc4] sm:$0xf]
      %v8578 = vld [vmem:[%s61 + $0xc8] sm:$0xf]
      %v8579 = vld [vmem:[%s61 + $0xcc] sm:$0xf]
      %v8580 = vld [vmem:[%s61 + $0xd0] sm:$0xf]
      %v8581 = vld [vmem:[%s61 + $0xd4] sm:$0xf]
      %v8582 = vld [vmem:[%s61 + $0xd8] sm:$0xf]
      %v8583 = vld [vmem:[%s61 + $0xdc] sm:$0xf]
      %v8584 = vld [vmem:[%s61 + $0xe0] sm:$0xf]
      %v8585 = vld [vmem:[%s61 + $0xe4] sm:$0xf]
      %v8586 = vld [vmem:[%s61 + $0xe8] sm:$0xf]
      %v8587 = vld [vmem:[%s61 + $0xec] sm:$0xf]
      %v8588 = vld [vmem:[%s61 + $0xf0] sm:$0xf]
      %v8589 = vld [vmem:[%s61 + $0xf4] sm:$0xf]
      %v8590 = vld [vmem:[%s61 + $0xf8] sm:$0xf]
      %v8591 = vld [vmem:[%s61 + $0xfc] sm:$0xf]
      %v8592 = vld [vmem:[%s61 + $0x100] sm:$0xf]
      %v8593 = vld [vmem:[%s61 + $0x104] sm:$0xf]
      %v8594 = vld [vmem:[%s61 + $0x108] sm:$0xf]
      %v8595 = vld [vmem:[%s61 + $0x10c] sm:$0xf]
      %v8596 = vld [vmem:[%s61 + $0x110] sm:$0xf]
      %v8597 = vld [vmem:[%s61 + $0x114] sm:$0xf]
      %v8598 = vld [vmem:[%s61 + $0x118] sm:$0xf]
      %v8599 = vld [vmem:[%s61 + $0x11c] sm:$0xf]
      %v8600 = vld [vmem:[%s61 + $0x120] sm:$0xf]
      %v8601 = vld [vmem:[%s61 + $0x124] sm:$0xf]
      %v8602 = vld [vmem:[%s61 + $0x128] sm:$0xf]
      %v8603 = vld [vmem:[%s61 + $0x12c] sm:$0xf]
      %v8604 = vld [vmem:[%s61 + $0x130] sm:$0xf]
      %v8605 = vld [vmem:[%s61 + $0x134] sm:$0xf]
      %v8606 = vld [vmem:[%s61 + $0x138] sm:$0xf]
      %v8607 = vld [vmem:[%s61 + $0x13c] sm:$0xf]
      %v8608 = vld [vmem:[%s61 + $0x140] sm:$0xf]
      %v8609 = vld [vmem:[%s61 + $0x144] sm:$0xf]
      %v8610 = vld [vmem:[%s61 + $0x148] sm:$0xf]
      %v8611 = vld [vmem:[%s61 + $0x14c] sm:$0xf]
      %v8612 = vld [vmem:[%s61 + $0x150] sm:$0xf]
      %v8613 = vld [vmem:[%s61 + $0x154] sm:$0xf]
      %v8614 = vld [vmem:[%s61 + $0x158] sm:$0xf]
      %v8615 = vld [vmem:[%s61 + $0x15c] sm:$0xf]
      %v8616 = vld [vmem:[%s61 + $0x160] sm:$0xf]
      %v8617 = vld [vmem:[%s61 + $0x164] sm:$0xf]
      %v8618 = vld [vmem:[%s61 + $0x168] sm:$0xf]
      %v8619 = vld [vmem:[%s61 + $0x16c] sm:$0xf]
      %v8620 = vld [vmem:[%s61 + $0x170] sm:$0xf]
      %v8621 = vld [vmem:[%s61 + $0x174] sm:$0xf]
      %v8622 = vld [vmem:[%s61 + $0x178] sm:$0xf]
      %v8623 = vld [vmem:[%s61 + $0x17c] sm:$0xf]
      %v8624 = vld [vmem:[%s61 + $0x180] sm:$0xf]
      %v8625 = vld [vmem:[%s61 + $0x184] sm:$0xf]
      %v8626 = vld [vmem:[%s61 + $0x188] sm:$0xf]
      %v8627 = vld [vmem:[%s61 + $0x18c] sm:$0xf]
      %v8628 = vld [vmem:[%s61 + $0x190] sm:$0xf]
      %v8629 = vld [vmem:[%s61 + $0x194] sm:$0xf]
      %v8630 = vld [vmem:[%s61 + $0x198] sm:$0xf]
      %v8631 = vld [vmem:[%s61 + $0x19c] sm:$0xf]
      %v8632 = vld [vmem:[%s61 + $0x1a0] sm:$0xf]
      %v8633 = vld [vmem:[%s61 + $0x1a4] sm:$0xf]
      %v8634 = vld [vmem:[%s61 + $0x1a8] sm:$0xf]
      %v8635 = vld [vmem:[%s61 + $0x1ac] sm:$0xf]
      %v8636 = vld [vmem:[%s61 + $0x1b0] sm:$0xf]
      %v8637 = vld [vmem:[%s61 + $0x1b4] sm:$0xf]
      %v8638 = vld [vmem:[%s61 + $0x1b8] sm:$0xf]
      %v8639 = vld [vmem:[%s61 + $0x1bc] sm:$0xf]
      %v8640 = vld [vmem:[%s61 + $0x1c0] sm:$0xf]
      %v8641 = vld [vmem:[%s61 + $0x1c4] sm:$0xf]
      %v8642 = vld [vmem:[%s61 + $0x1c8] sm:$0xf]
      %v8643 = vld [vmem:[%s61 + $0x1cc] sm:$0xf]
      %v8644 = vld [vmem:[%s61 + $0x1d0] sm:$0xf]
      %v8645 = vld [vmem:[%s61 + $0x1d4] sm:$0xf]
      %v8646 = vld [vmem:[%s61 + $0x1d8] sm:$0xf]
      %v8647 = vld [vmem:[%s61 + $0x1dc] sm:$0xf]
      %v8648 = vld [vmem:[%s61 + $0x1e0] sm:$0xf]
      %v8649 = vld [vmem:[%s61 + $0x1e4] sm:$0xf]
      %v8650 = vld [vmem:[%s61 + $0x1e8] sm:$0xf]
      %v8651 = vld [vmem:[%s61 + $0x1ec] sm:$0xf]
      %v8652 = vld [vmem:[%s61 + $0x1f0] sm:$0xf]
      %v8653 = vld [vmem:[%s61 + $0x1f4] sm:$0xf]
      %v8654 = vld [vmem:[%s61 + $0x1f8] sm:$0xf]
      %v8655 = vld [vmem:[%s61 + $0x1fc] sm:$0xf]
      %v8656 = vpack.c.bf16 %v8520, %v8520
      %v8657 = vpack.c.bf16 %v8521, %v8521
      %v8658 = vpack.c.bf16 %v8522, %v8522
      %v8659 = vpack.c.bf16 %v8523, %v8523
      %v8660 = vpack.c.bf16 %v8524, %v8524
      %v8661 = vpack.c.bf16 %v8525, %v8525
      %v8662 = vpack.c.bf16 %v8526, %v8526
      %v8663 = vpack.c.bf16 %v8527, %v8527
      %v8664 = vld [vmem:[%s63] sm:$0x1]
      %v8666 = vperm.slane %v8664, 0
      %v8796 = vunpack.c.l.b16 %v8528
      %v8797 = vunpack.c.l.b16 %v8529
      %v8798 = vunpack.c.l.b16 %v8530
      %v8799 = vunpack.c.l.b16 %v8531
      %v8800 = vunpack.c.l.b16 %v8532
      %v8801 = vunpack.c.l.b16 %v8533
      %v8802 = vunpack.c.l.b16 %v8534
      %v8803 = vunpack.c.l.b16 %v8535
      %v8804 = vunpack.c.l.b16 %v8536
      %v8805 = vunpack.c.l.b16 %v8537
      %v8806 = vunpack.c.l.b16 %v8538
      %v8807 = vunpack.c.l.b16 %v8539
      %v8808 = vunpack.c.l.b16 %v8540
      %v8809 = vunpack.c.l.b16 %v8541
      %v8810 = vunpack.c.l.b16 %v8542
      %v8811 = vunpack.c.l.b16 %v8543
      %v8812 = vunpack.c.l.b16 %v8544
      %v8813 = vunpack.c.l.b16 %v8545
      %v8814 = vunpack.c.l.b16 %v8546
      %v8815 = vunpack.c.l.b16 %v8547
      %v8816 = vunpack.c.l.b16 %v8548
      %v8817 = vunpack.c.l.b16 %v8549
      %v8818 = vunpack.c.l.b16 %v8550
      %v8819 = vunpack.c.l.b16 %v8551
      %v8820 = vunpack.c.l.b16 %v8552
      %v8821 = vunpack.c.l.b16 %v8553
      %v8822 = vunpack.c.l.b16 %v8554
      %v8823 = vunpack.c.l.b16 %v8555
      %v8824 = vunpack.c.l.b16 %v8556
      %v8825 = vunpack.c.l.b16 %v8557
      %v8826 = vunpack.c.l.b16 %v8558
      %v8827 = vunpack.c.l.b16 %v8559
      %v8828 = vunpack.c.l.b16 %v8560
      %v8829 = vunpack.c.l.b16 %v8561
      %v8830 = vunpack.c.l.b16 %v8562
      %v8831 = vunpack.c.l.b16 %v8563
      %v8832 = vunpack.c.l.b16 %v8564
      %v8833 = vunpack.c.l.b16 %v8565
      %v8834 = vunpack.c.l.b16 %v8566
      %v8835 = vunpack.c.l.b16 %v8567
      %v8836 = vunpack.c.l.b16 %v8568
      %v8837 = vunpack.c.l.b16 %v8569
      %v8838 = vunpack.c.l.b16 %v8570
      %v8839 = vunpack.c.l.b16 %v8571
      %v8840 = vunpack.c.l.b16 %v8572
      %v8841 = vunpack.c.l.b16 %v8573
      %v8842 = vunpack.c.l.b16 %v8574
      %v8843 = vunpack.c.l.b16 %v8575
      %v8844 = vunpack.c.l.b16 %v8576
      %v8845 = vunpack.c.l.b16 %v8577
      %v8846 = vunpack.c.l.b16 %v8578
      %v8847 = vunpack.c.l.b16 %v8579
      %v8848 = vunpack.c.l.b16 %v8580
      %v8849 = vunpack.c.l.b16 %v8581
      %v8850 = vunpack.c.l.b16 %v8582
      %v8851 = vunpack.c.l.b16 %v8583
      %v8852 = vunpack.c.l.b16 %v8584
      %v8853 = vunpack.c.l.b16 %v8585
      %v8854 = vunpack.c.l.b16 %v8586
      %v8855 = vunpack.c.l.b16 %v8587
      %v8856 = vunpack.c.l.b16 %v8588
      %v8857 = vunpack.c.l.b16 %v8589
      %v8858 = vunpack.c.l.b16 %v8590
      %v8859 = vunpack.c.l.b16 %v8591
      %v8860 = vunpack.c.l.b16 %v8592
      %v8861 = vunpack.c.l.b16 %v8593
      %v8862 = vunpack.c.l.b16 %v8594
      %v8863 = vunpack.c.l.b16 %v8595
      %v8864 = vunpack.c.l.b16 %v8596
      %v8865 = vunpack.c.l.b16 %v8597
      %v8866 = vunpack.c.l.b16 %v8598
      %v8867 = vunpack.c.l.b16 %v8599
      %v8868 = vunpack.c.l.b16 %v8600
      %v8869 = vunpack.c.l.b16 %v8601
      %v8870 = vunpack.c.l.b16 %v8602
      %v8871 = vunpack.c.l.b16 %v8603
      %v8872 = vunpack.c.l.b16 %v8604
      %v8873 = vunpack.c.l.b16 %v8605
      %v8874 = vunpack.c.l.b16 %v8606
      %v8875 = vunpack.c.l.b16 %v8607
      %v8876 = vunpack.c.l.b16 %v8608
      %v8877 = vunpack.c.l.b16 %v8609
      %v8878 = vunpack.c.l.b16 %v8610
      %v8879 = vunpack.c.l.b16 %v8611
      %v8880 = vunpack.c.l.b16 %v8612
      %v8881 = vunpack.c.l.b16 %v8613
      %v8882 = vunpack.c.l.b16 %v8614
      %v8883 = vunpack.c.l.b16 %v8615
      %v8884 = vunpack.c.l.b16 %v8616
      %v8885 = vunpack.c.l.b16 %v8617
      %v8886 = vunpack.c.l.b16 %v8618
      %v8887 = vunpack.c.l.b16 %v8619
      %v8888 = vunpack.c.l.b16 %v8620
      %v8889 = vunpack.c.l.b16 %v8621
      %v8890 = vunpack.c.l.b16 %v8622
      %v8891 = vunpack.c.l.b16 %v8623
      %v8892 = vunpack.c.l.b16 %v8624
      %v8893 = vunpack.c.l.b16 %v8625
      %v8894 = vunpack.c.l.b16 %v8626
      %v8895 = vunpack.c.l.b16 %v8627
      %v8896 = vunpack.c.l.b16 %v8628
      %v8897 = vunpack.c.l.b16 %v8629
      %v8898 = vunpack.c.l.b16 %v8630
      %v8899 = vunpack.c.l.b16 %v8631
      %v8900 = vunpack.c.l.b16 %v8632
      %v8901 = vunpack.c.l.b16 %v8633
      %v8902 = vunpack.c.l.b16 %v8634
      %v8903 = vunpack.c.l.b16 %v8635
      %v8904 = vunpack.c.l.b16 %v8636
      %v8905 = vunpack.c.l.b16 %v8637
      %v8906 = vunpack.c.l.b16 %v8638
      %v8907 = vunpack.c.l.b16 %v8639
      %v8908 = vunpack.c.l.b16 %v8640
      %v8909 = vunpack.c.l.b16 %v8641
      %v8910 = vunpack.c.l.b16 %v8642
      %v8911 = vunpack.c.l.b16 %v8643
      %v8912 = vunpack.c.l.b16 %v8644
      %v8913 = vunpack.c.l.b16 %v8645
      %v8914 = vunpack.c.l.b16 %v8646
      %v8915 = vunpack.c.l.b16 %v8647
      %v8916 = vunpack.c.l.b16 %v8648
      %v8917 = vunpack.c.l.b16 %v8649
      %v8918 = vunpack.c.l.b16 %v8650
      %v8919 = vunpack.c.l.b16 %v8651
      %v8920 = vunpack.c.l.b16 %v8652
      %v8921 = vunpack.c.l.b16 %v8653
      %v8922 = vunpack.c.l.b16 %v8654
      %v8923 = vunpack.c.l.b16 %v8655
      %v8924 = vpack.c.b16 %v8797, %v8796
      %v8925 = vpack.c.b16 %v8799, %v8798
      %v8926 = vpack.c.b16 %v8801, %v8800
      %v8927 = vpack.c.b16 %v8803, %v8802
      %v8928 = vpack.c.b16 %v8805, %v8804
      %v8929 = vpack.c.b16 %v8807, %v8806
      %v8930 = vpack.c.b16 %v8809, %v8808
      %v8931 = vpack.c.b16 %v8811, %v8810
      %v8932 = vpack.c.b16 %v8813, %v8812
      %v8933 = vpack.c.b16 %v8815, %v8814
      %v8934 = vpack.c.b16 %v8817, %v8816
      %v8935 = vpack.c.b16 %v8819, %v8818
      %v8936 = vpack.c.b16 %v8821, %v8820
      %v8937 = vpack.c.b16 %v8823, %v8822
      %v8938 = vpack.c.b16 %v8825, %v8824
      %v8939 = vpack.c.b16 %v8827, %v8826
      %v8940 = vpack.c.b16 %v8829, %v8828
      %v8941 = vpack.c.b16 %v8831, %v8830
      %v8942 = vpack.c.b16 %v8833, %v8832
      %v8943 = vpack.c.b16 %v8835, %v8834
      %v8944 = vpack.c.b16 %v8837, %v8836
      %v8945 = vpack.c.b16 %v8839, %v8838
      %v8946 = vpack.c.b16 %v8841, %v8840
      %v8947 = vpack.c.b16 %v8843, %v8842
      %v8948 = vpack.c.b16 %v8845, %v8844
      %v8949 = vpack.c.b16 %v8847, %v8846
      %v8950 = vpack.c.b16 %v8849, %v8848
      %v8951 = vpack.c.b16 %v8851, %v8850
      %v8952 = vpack.c.b16 %v8853, %v8852
      %v8953 = vpack.c.b16 %v8855, %v8854
      %v8954 = vpack.c.b16 %v8857, %v8856
      %v8955 = vpack.c.b16 %v8859, %v8858
      %v8956 = vpack.c.b16 %v8861, %v8860
      %v8957 = vpack.c.b16 %v8863, %v8862
      %v8958 = vpack.c.b16 %v8865, %v8864
      %v8959 = vpack.c.b16 %v8867, %v8866
      %v8960 = vpack.c.b16 %v8869, %v8868
      %v8961 = vpack.c.b16 %v8871, %v8870
      %v8962 = vpack.c.b16 %v8873, %v8872
      %v8963 = vpack.c.b16 %v8875, %v8874
      %v8964 = vpack.c.b16 %v8877, %v8876
      %v8965 = vpack.c.b16 %v8879, %v8878
      %v8966 = vpack.c.b16 %v8881, %v8880
      %v8967 = vpack.c.b16 %v8883, %v8882
      %v8968 = vpack.c.b16 %v8885, %v8884
      %v8969 = vpack.c.b16 %v8887, %v8886
      %v8970 = vpack.c.b16 %v8889, %v8888
      %v8971 = vpack.c.b16 %v8891, %v8890
      %v8972 = vpack.c.b16 %v8893, %v8892
      %v8973 = vpack.c.b16 %v8895, %v8894
      %v8974 = vpack.c.b16 %v8897, %v8896
      %v8975 = vpack.c.b16 %v8899, %v8898
      %v8976 = vpack.c.b16 %v8901, %v8900
      %v8977 = vpack.c.b16 %v8903, %v8902
      %v8978 = vpack.c.b16 %v8905, %v8904
      %v8979 = vpack.c.b16 %v8907, %v8906
      %v8980 = vpack.c.b16 %v8909, %v8908
      %v8981 = vpack.c.b16 %v8911, %v8910
      %v8982 = vpack.c.b16 %v8913, %v8912
      %v8983 = vpack.c.b16 %v8915, %v8914
      %v8984 = vpack.c.b16 %v8917, %v8916
      %v8985 = vpack.c.b16 %v8919, %v8918
      %v8986 = vpack.c.b16 %v8921, %v8920
      %v8987 = vpack.c.b16 %v8923, %v8922
      %9052 = vmatpush.bf16.msra.mxu0 %v8931
      %9053 = vmatpush.bf16.msra.mxu0 %v8930
      %9054 = vmatpush.bf16.msra.mxu0 %v8929
      %9055 = vmatpush.bf16.msra.mxu0 %v8928
      %9056 = vmatpush.bf16.msra.mxu0 %v8927
      %9057 = vmatpush.bf16.msra.mxu0 %v8926
      %9058 = vmatpush.bf16.msra.mxu0 %v8925
      %9059 = vmatpush.bf16.msra.mxu0 %v8924
      %9060 = vmatmul.bf16.gmra.mxu0 %v8656
      %v9061 = vpop.f32.mrf.mxu0
      %v9062 = vadd.f32 %v8666, %v9061
      %v9063 = vpop.f32.mrf.mxu0
      %9064 = vdwg.mxu0
      %9065 = vmatpush.bf16.msra.mxu0 %v8939
      %9066 = vmatpush.bf16.msra.mxu0 %v8938
      %9067 = vmatpush.bf16.msra.mxu0 %v8937
      %9068 = vmatpush.bf16.msra.mxu0 %v8936
      %9069 = vmatpush.bf16.msra.mxu0 %v8935
      %9070 = vmatpush.bf16.msra.mxu0 %v8934
      %9071 = vmatpush.bf16.msra.mxu0 %v8933
      %9072 = vmatpush.bf16.msra.mxu0 %v8932
      %9073 = vmatmul.bf16.gmra.mxu0 %v8657
      %v9074 = vpop.f32.mrf.mxu0
      %v9075 = vadd.f32 %v9062, %v9074
      %v9076 = vpop.f32.mrf.mxu0
      %9077 = vdwg.mxu0
      %9078 = vmatpush.bf16.msra.mxu0 %v8947
      %9079 = vmatpush.bf16.msra.mxu0 %v8946
      %9080 = vmatpush.bf16.msra.mxu0 %v8945
      %9081 = vmatpush.bf16.msra.mxu0 %v8944
      %9082 = vmatpush.bf16.msra.mxu0 %v8943
      %9083 = vmatpush.bf16.msra.mxu0 %v8942
      %9084 = vmatpush.bf16.msra.mxu0 %v8941
      %9085 = vmatpush.bf16.msra.mxu0 %v8940
      %9086 = vmatmul.bf16.gmra.mxu0 %v8658
      %v9087 = vpop.f32.mrf.mxu0
      %v9088 = vadd.f32 %v9075, %v9087
      %v9089 = vpop.f32.mrf.mxu0
      %9090 = vdwg.mxu0
      %9091 = vmatpush.bf16.msra.mxu0 %v8955
      %9092 = vmatpush.bf16.msra.mxu0 %v8954
      %9093 = vmatpush.bf16.msra.mxu0 %v8953
      %9094 = vmatpush.bf16.msra.mxu0 %v8952
      %9095 = vmatpush.bf16.msra.mxu0 %v8951
      %9096 = vmatpush.bf16.msra.mxu0 %v8950
      %9097 = vmatpush.bf16.msra.mxu0 %v8949
      %9098 = vmatpush.bf16.msra.mxu0 %v8948
      %9099 = vmatmul.bf16.gmra.mxu0 %v8659
      %v9100 = vpop.f32.mrf.mxu0
      %v9101 = vadd.f32 %v9088, %v9100
      %v9102 = vpop.f32.mrf.mxu0
      %9103 = vdwg.mxu0
      %9104 = vmatpush.bf16.msra.mxu0 %v8963
      %9105 = vmatpush.bf16.msra.mxu0 %v8962
      %9106 = vmatpush.bf16.msra.mxu0 %v8961
      %9107 = vmatpush.bf16.msra.mxu0 %v8960
      %9108 = vmatpush.bf16.msra.mxu0 %v8959
      %9109 = vmatpush.bf16.msra.mxu0 %v8958
      %9110 = vmatpush.bf16.msra.mxu0 %v8957
      %9111 = vmatpush.bf16.msra.mxu0 %v8956
      %9112 = vmatmul.bf16.gmra.mxu0 %v8660
      %v9113 = vpop.f32.mrf.mxu0
      %v9114 = vadd.f32 %v9101, %v9113
      %v9115 = vpop.f32.mrf.mxu0
      %9116 = vdwg.mxu0
      %9117 = vmatpush.bf16.msra.mxu0 %v8971
      %9118 = vmatpush.bf16.msra.mxu0 %v8970
      %9119 = vmatpush.bf16.msra.mxu0 %v8969
      %9120 = vmatpush.bf16.msra.mxu0 %v8968
      %9121 = vmatpush.bf16.msra.mxu0 %v8967
      %9122 = vmatpush.bf16.msra.mxu0 %v8966
      %9123 = vmatpush.bf16.msra.mxu0 %v8965
      %9124 = vmatpush.bf16.msra.mxu0 %v8964
      %9125 = vmatmul.bf16.gmra.mxu0 %v8661
      %v9126 = vpop.f32.mrf.mxu0
      %v9127 = vadd.f32 %v9114, %v9126
      %v9128 = vpop.f32.mrf.mxu0
      %9129 = vdwg.mxu0
      %9130 = vmatpush.bf16.msra.mxu0 %v8979
      %9131 = vmatpush.bf16.msra.mxu0 %v8978
      %9132 = vmatpush.bf16.msra.mxu0 %v8977
      %9133 = vmatpush.bf16.msra.mxu0 %v8976
      %9134 = vmatpush.bf16.msra.mxu0 %v8975
      %9135 = vmatpush.bf16.msra.mxu0 %v8974
      %9136 = vmatpush.bf16.msra.mxu0 %v8973
      %9137 = vmatpush.bf16.msra.mxu0 %v8972
      %9138 = vmatmul.bf16.gmra.mxu0 %v8662
      %v9139 = vpop.f32.mrf.mxu0
      %v9140 = vadd.f32 %v9127, %v9139
      %v9141 = vpop.f32.mrf.mxu0
      %9142 = vdwg.mxu0
      %9143 = vmatpush.bf16.msra.mxu0 %v8987
      %9144 = vmatpush.bf16.msra.mxu0 %v8986
      %9145 = vmatpush.bf16.msra.mxu0 %v8985
      %9146 = vmatpush.bf16.msra.mxu0 %v8984
      %9147 = vmatpush.bf16.msra.mxu0 %v8983
      %9148 = vmatpush.bf16.msra.mxu0 %v8982
      %9149 = vmatpush.bf16.msra.mxu0 %v8981
      %9150 = vmatpush.bf16.msra.mxu0 %v8980
      %9151 = vmatmul.bf16.gmra.mxu0 %v8663
      %v9152 = vpop.f32.mrf.mxu0
      %v9153 = vadd.f32 %v9140, %v9152
      %v9154 = vpop.f32.mrf.mxu0
      %9155 = vdwg.mxu0
      %9156 = vst [vmem:[%s1029] sm:$0xff] %v9153
      %p9157 = scmp.lt.s32.totalorder %s76, 1
      %s9158 = scalar_select %p9157, %s76, 1
      %s9159 = smul.addr %s9158, 8
      %s9160 = scalar_lea.vmem %s65, %s9159
      // Predicated region
      $region149: #{siamner_forward.1} parent=147 // pred_check
        %p9161 = pneg %p786
      $region150: #{siamner_forward.1} parent=147 // pred_check_branch
        %9163 = sbr.rel (%p9161) target = $region152
      $region151: #{siamner_forward.1} parent=147 // pred_region
        _
      $region152: #{siamner_forward.1} parent=147 // pred_fallthru
        _
    $region148: #{siamner_forward.1} parent=5 // pred_fallthru
      _
    %p9164 = scmp.le.s32.totalorder 2, %s71
    // Predicated region
    $region153: #{siamner_forward.1} parent=5 // pred_check
      %p9165 = pneg %p9164
    $region154: #{siamner_forward.1} parent=5 // pred_check_branch
      %9167 = sbr.rel (%p9165) target = $region156
    $region155: #{siamner_forward.1} parent=5 // pred_region
      %s9168 = ssub.s32 %s71, 2
      // Predicated region
      $region157: #{siamner_forward.1} parent=155 // pred_check
        %p9169 = pneg %p792
      $region158: #{siamner_forward.1} parent=155 // pred_check_branch
        %9171 = sbr.rel (%p9169) target = $region160
      $region159: #{siamner_forward.1} parent=155 // pred_region
        %p9172 = scmp.lt.s32.totalorder %s77, 1
        %s9173 = scalar_select %p9172, %s77, 1
        %s9174 = smul.addr %s9173, 8
        %s9175 = scalar_lea.vmem %s65, %s9174
      $region160: #{siamner_forward.1} parent=155 // pred_fallthru
        _
    $region156: #{siamner_forward.1} parent=5 // pred_fallthru
      _
  $region6: #{siamner_forward.1} parent=0 // loop_footer
    %s75 = sadd.s32 1, %s71
  $region7: #{siamner_forward.1} parent=0 // loop_footer_branch
    %70 = sbr.rel target = $region3
  $region8: #{siamner_forward.1} parent=0 // loop_exit
    _

</llo_original>
